<compile_context>
chip_gen: v5e
topology: v5e:2x2
jax: 0.10.0
libtpu: 0.0.40
codegen_flags: <defaults>
</compile_context>

<pallas_src>
import numpy as np
import jax
import jax.numpy as jnp
from jax import lax
from jax.experimental import pallas as pl
from jax.experimental.pallas import tpu as pltpu

EPS = 1e-5  # nn.BatchNorm2d default


def _interp_taps(n_in, n_out):
    """Static (lo, hi, frac) taps for 1-D bilinear resize, align_corners=True."""
    if n_out == 1:
        return [(0, 0, 0.0)]
    taps = []
    for i in range(n_out):
        pos = i * (n_in - 1) / (n_out - 1)
        lo = min(int(np.floor(pos)), n_in - 1)
        hi = min(lo + 1, n_in - 1)
        taps.append((lo, hi, float(pos - lo)))
    return taps


# ----------------------------------------------------------------------------
# Pallas kernel: fused upsample+pad+concat, then (conv3x3 -> BN -> ReLU) x 2.
# Everything fits in VMEM at these sizes, so grid = () (single step).
# ----------------------------------------------------------------------------
def _make_kernel(N, H, W, C2, C1, H1, W1, Cmid, Cout,
                 h_taps, w_taps, py0, px0, y_extra, x_extra):
    Hp, Wp = H + 2, W + 2
    Cin = C2 + C1
    NHW = N * H * W
    Wo = len(w_taps)
    assert Cmid <= Cin  # lets conv2 reuse conv1's padded scratch + zero halo

    def bn_relu(y, g, b, axis):
        # training-mode BatchNorm (batch stats, biased var), single pass:
        # var = E[y^2] - mu^2 ; scale = g*rsqrt(var+eps) ; shift = b - mu*scale
        inv_n = 1.0 / NHW
        s1 = jnp.sum(y, axis=axis, keepdims=True)
        s2 = jnp.sum(y * y, axis=axis, keepdims=True)
        mean = s1 * inv_n
        var = s2 * inv_n - mean * mean
        scale = g * lax.rsqrt(var + EPS)
        shift = b - mean * scale
        return jnp.maximum(y * scale + shift, 0.0)

    def kernel(x2_ref, x1_ref, w1_ref, g1_ref, b1_ref, w2t_ref, g2_ref, b2_ref,
               o_ref, xw_scr, xp_scr, t_scr):
        # ---- zero the 1-pixel halo ONCE (shared by conv1 and conv2) ---------
        zr = jnp.zeros((N, 1, Wp, Cin), jnp.float32)
        zc = jnp.zeros((N, Hp, 1, Cin), jnp.float32)
        xp_scr[:, 0:1, :, :] = zr
        xp_scr[:, Hp - 1:Hp, :, :] = zr
        xp_scr[:, :, 0:1, :] = zc
        xp_scr[:, :, Wp - 1:Wp, :] = zc
        if y_extra or x_extra:
            # upsampled x1 does not cover the full interior -> zero its slab
            xp_scr[:, 1:H + 1, 1:W + 1, C2:] = jnp.zeros((N, H, W, C1),
                                                         jnp.float32)
        # skip connection (x2) -> channels [0, C2)   (torch.cat([x2, x1]))
        xp_scr[:, 1:H + 1, 1:W + 1, 0:C2] = x2_ref[...]

        # ---- fused bilinear x2 upsample of x1 (align_corners=True) ----------
        # width pass into scratch...
        for j, (lo, hi, f) in enumerate(w_taps):
            xw_scr[:, :, j:j + 1, :] = (x1_ref[:, :, lo:lo + 1, :] * (1.0 - f)
                                        + x1_ref[:, :, hi:hi + 1, :] * f)
        # ...height pass writes straight into the padded input, chans [C2,Cin)
        for i, (lo, hi, f) in enumerate(h_taps):
            xp_scr[:, 1 + py0 + i:2 + py0 + i, 1 + px0:1 + px0 + Wo, C2:] = (
                xw_scr[:, lo:lo + 1, :, :] * (1.0 - f)
                + xw_scr[:, hi:hi + 1, :, :] * f)

        # ---- conv1: im2col -> ONE matmul (K = 9*Cin) -------------------------
        for t in range(9):
            dy, dx = t // 3, t % 3
            t_scr[:, t * Cin:(t + 1) * Cin] = (
                xp_scr[:, dy:dy + H, dx:dx + W, :].reshape(NHW, Cin))
        y1 = jnp.dot(t_scr[...], w1_ref[...],
                     preferred_element_type=jnp.float32)          # (NHW, Cmid)
        y1 = bn_relu(y1, g1_ref[...], b1_ref[...], axis=0)

        # ---- conv2: reuse padded scratch (halo of chans [0,Cmid) already 0) --
        xp_scr[:, 1:H + 1, 1:W + 1, 0:Cmid] = y1.reshape(N, H, W, Cmid)
        for t in range(9):
            dy, dx = t // 3, t % 3
            t_scr[:, t * Cmid:(t + 1) * Cmid] = (
                xp_scr[:, dy:dy + H, dx:dx + W, 0:Cmid].reshape(NHW, Cmid))
        # (Cout, 9*Cmid) x (NHW, 9*Cmid)^T -> (Cout, NHW): spatial on lanes,
        # so BN2/ReLU and the final store are lane-dense (NHW = 512 = 4*128).
        y2 = lax.dot_general(w2t_ref[...], t_scr[:, 0:9 * Cmid],
                             dimension_numbers=(((1,), (1,)), ((), ())),
                             preferred_element_type=jnp.float32)  # (Cout, NHW)
        y2 = bn_relu(y2, g2_ref[...], b2_ref[...], axis=1)
        o_ref[...] = y2.astype(o_ref.dtype)

    return kernel


def up_forward(x1_nchw, x2_nchw, params):
    """Up.forward(x1, x2) with NCHW inputs/outputs (PyTorch convention)."""
    w1, g1, b1, w2, g2, b2 = params
    N, C1, H1, W1 = x1_nchw.shape
    _, C2, H, W = x2_nchw.shape
    Cin = C1 + C2
    Cmid = w1.shape[-1]
    Cout = w2.shape[-1]
    assert w1.shape == (3, 3, Cin, Cmid) and w2.shape == (3, 3, Cmid, Cout)

    Ho, Wo = 2 * H1, 2 * W1
    diffY, diffX = H - Ho, W - Wo
    py0, px0 = diffY // 2, diffX // 2
    h_taps = _interp_taps(H1, Ho)
    w_taps = _interp_taps(W1, Wo)

    kernel = _make_kernel(N, H, W, C2, C1, H1, W1, Cmid, Cout,
                          h_taps, w_taps, py0, px0,
                          y_extra=(diffY != 0), x_extra=(diffX != 0))

    x1 = jnp.transpose(x1_nchw, (0, 2, 3, 1))          # -> NHWC
    x2 = jnp.transpose(x2_nchw, (0, 2, 3, 1))
    w1f = w1.reshape(9 * Cin, Cmid)                     # rows = t*Cin + c
    w2t = jnp.transpose(w2.reshape(9 * Cmid, Cout), (1, 0))   # (Cout, 9*Cmid)

    vm = pl.BlockSpec(memory_space=pltpu.MemorySpace.VMEM)
    out = pl.pallas_call(
        kernel,
        out_shape=jax.ShapeDtypeStruct((Cout, N * H * W), jnp.float32),
        in_specs=[vm] * 8,
        out_specs=vm,
        scratch_shapes=[
            pltpu.VMEM((N, H1, Wo, C1), jnp.float32),         # width-upsampled x1
            pltpu.VMEM((N, H + 2, W + 2, Cin), jnp.float32),  # padded input (shared)
            pltpu.VMEM((N * H * W, 9 * Cin), jnp.float32),    # im2col (shared)
        ],
    )(x2, x1, w1f, g1.reshape(1, Cmid), b1.reshape(1, Cmid),
      w2t, g2.reshape(Cout, 1), b2.reshape(Cout, 1))

    # (Cout, N*H*W) -> NCHW (layout plumbing only)
    return jnp.transpose(out.reshape(Cout, N, H, W), (1, 0, 2, 3))


# ----------------------------------------------------------------------------
# Pure-JAX reference (gather upsample + lax.conv) for correctness checking
# ----------------------------------------------------------------------------
def upsample_bilinear_x2_align_corners(x):
    N, H, W, C = x.shape
    Ho, Wo = 2 * H, 2 * W

    def coords(n_in, n_out):
        pos = jnp.arange(n_out, dtype=jnp.float32) * (n_in - 1) / (n_out - 1)
        lo = jnp.clip(jnp.floor(pos).astype(jnp.int32), 0, n_in - 1)
        hi = jnp.clip(lo + 1, 0, n_in - 1)
        frac = (pos - lo.astype(jnp.float32)).astype(x.dtype)
        return lo, hi, frac

    y0, y1, wy = coords(H, Ho)
    x0, x1, wx = coords(W, Wo)
    r0 = x[:, y0, :, :]
    r1 = x[:, y1, :, :]
    rows = r0 * (1 - wy)[None, :, None, None] + r1 * wy[None, :, None, None]
    c0 = rows[:, :, x0, :]
    c1 = rows[:, :, x1, :]
    return c0 * (1 - wx)[None, None, :, None] + c1 * wx[None, None, :, None]


def double_conv_ref(x, w1, g1, b1, w2, g2, b2):
    dn = ('NHWC', 'HWIO', 'NHWC')

    def bn_relu(y, g, b):
        mu = y.mean(axis=(0, 1, 2))
        var = ((y - mu) ** 2).mean(axis=(0, 1, 2))
        return jnp.maximum((y - mu) / jnp.sqrt(var + EPS) * g + b, 0.0)

    y = lax.conv_general_dilated(x, w1, (1, 1), 'SAME', dimension_numbers=dn)
    y = bn_relu(y, g1, b1)
    y = lax.conv_general_dilated(y, w2, (1, 1), 'SAME', dimension_numbers=dn)
    return bn_relu(y, g2, b2)


if __name__ == "__main__":
    # Up(in_channels=8, out_channels=8, bilinear=True)
    in_channels, out_channels = 8, 8
    mid_channels = in_channels // 2
    c1 = in_channels // 2          # channels of x1 (coarse feature map)
    c2 = in_channels - c1          # channels of x2 (skip connection)
    N, H1, W1 = 2, 8, 8            # x1: (2, 4, 8, 8)   NCHW
    H2, W2 = 16, 16                # x2: (2, 4, 16, 16) NCHW

    key = jax.random.PRNGKey(0)
    k = jax.random.split(key, 8)
    x1 = jax.random.normal(k[0], (N, c1, H1, W1), jnp.float32)
    x2 = jax.random.normal(k[1], (N, c2, H2, W2), jnp.float32)
    # conv weights in HWIO layout (torch OIHW transposed to (kh, kw, in, out))
    w1 = 0.1 * jax.random.normal(k[2], (3, 3, in_channels, mid_channels), jnp.float32)
    w2 = 0.1 * jax.random.normal(k[3], (3, 3, mid_channels, out_channels), jnp.float32)
    g1 = 1.0 + 0.1 * jax.random.normal(k[4], (mid_channels,), jnp.float32)
    b1 = 0.1 * jax.random.normal(k[5], (mid_channels,), jnp.float32)
    g2 = 1.0 + 0.1 * jax.random.normal(k[6], (out_channels,), jnp.float32)
    b2 = 0.1 * jax.random.normal(k[7], (out_channels,), jnp.float32)
    params = (w1, g1, b1, w2, g2, b2)

    out = jax.block_until_ready(jax.jit(up_forward)(x1, x2, params))

    # reference check
    x1h = upsample_bilinear_x2_align_corners(jnp.transpose(x1, (0, 2, 3, 1)))
    x2h = jnp.transpose(x2, (0, 2, 3, 1))
    xcat = jnp.concatenate([x2h, x1h], axis=-1)
    ref = jnp.transpose(double_conv_ref(xcat, *params), (0, 3, 1, 2))
    np.testing.assert_allclose(np.asarray(out), np.asarray(ref),
                               atol=2e-3, rtol=2e-3)
    print("KERNEL_OK")
</pallas_src>

<mosaic_0001>
module attributes {stable_mosaic.version = 11 : i64} {
  func.func @kernel(%arg0: memref<2x16x16x4xf32, #tpu.memory_space<vmem>>, %arg1: memref<2x8x8x4xf32, #tpu.memory_space<vmem>>, %arg2: memref<72x4xf32, #tpu.memory_space<vmem>>, %arg3: memref<1x4xf32, #tpu.memory_space<vmem>>, %arg4: memref<1x4xf32, #tpu.memory_space<vmem>>, %arg5: memref<8x36xf32, #tpu.memory_space<vmem>>, %arg6: memref<8x1xf32, #tpu.memory_space<vmem>>, %arg7: memref<8x1xf32, #tpu.memory_space<vmem>>, %arg8: memref<8x512xf32, #tpu.memory_space<vmem>>, %arg9: memref<2x8x16x4xf32, #tpu.memory_space<vmem>>, %arg10: memref<2x18x18x8xf32, #tpu.memory_space<vmem>>, %arg11: memref<512x72xf32, #tpu.memory_space<vmem>>) attributes {dimension_semantics = [], scalar_prefetch = 0 : i64, scratch_operands = 3 : i64, tpu.core_type = #tpu.core_type<tc>} {
    %cst = arith.constant 0.000000e+00 : f32
    %0 = vector.broadcast %cst : f32 to vector<2x1x18x8xf32>
    %cst_0 = arith.constant 0.000000e+00 : f32
    %1 = vector.broadcast %cst_0 : f32 to vector<2x18x1x8xf32>
    %c0 = arith.constant 0 : index
    %c0_1 = arith.constant 0 : index
    %c0_2 = arith.constant 0 : index
    %c0_3 = arith.constant 0 : index
    %2 = vector.load %arg10[%c0, %c0_1, %c0_2, %c0_3] : memref<2x18x18x8xf32, #tpu.memory_space<vmem>>, vector<2x1x18x8xf32>
    tpu.vector_store %arg10[%c0, %c0_1, %c0_2, %c0_3], %0 {strides = array<i32>} : memref<2x18x18x8xf32, #tpu.memory_space<vmem>>, vector<2x1x18x8xf32>,
    %c0_4 = arith.constant 0 : index
    %c17 = arith.constant 17 : index
    %c0_5 = arith.constant 0 : index
    %c0_6 = arith.constant 0 : index
    %3 = vector.load %arg10[%c0_4, %c17, %c0_5, %c0_6] : memref<2x18x18x8xf32, #tpu.memory_space<vmem>>, vector<2x1x18x8xf32>
    tpu.vector_store %arg10[%c0_4, %c17, %c0_5, %c0_6], %0 {strides = array<i32>} : memref<2x18x18x8xf32, #tpu.memory_space<vmem>>, vector<2x1x18x8xf32>,
    %c0_7 = arith.constant 0 : index
    %c0_8 = arith.constant 0 : index
    %c0_9 = arith.constant 0 : index
    %c0_10 = arith.constant 0 : index
    %4 = vector.load %arg10[%c0_7, %c0_8, %c0_9, %c0_10] : memref<2x18x18x8xf32, #tpu.memory_space<vmem>>, vector<2x18x1x8xf32>
    tpu.vector_store %arg10[%c0_7, %c0_8, %c0_9, %c0_10], %1 {strides = array<i32>} : memref<2x18x18x8xf32, #tpu.memory_space<vmem>>, vector<2x18x1x8xf32>,
    %c0_11 = arith.constant 0 : index
    %c0_12 = arith.constant 0 : index
    %c17_13 = arith.constant 17 : index
    %c0_14 = arith.constant 0 : index
    %5 = vector.load %arg10[%c0_11, %c0_12, %c17_13, %c0_14] : memref<2x18x18x8xf32, #tpu.memory_space<vmem>>, vector<2x18x1x8xf32>
    tpu.vector_store %arg10[%c0_11, %c0_12, %c17_13, %c0_14], %1 {strides = array<i32>} : memref<2x18x18x8xf32, #tpu.memory_space<vmem>>, vector<2x18x1x8xf32>,
    %c0_15 = arith.constant 0 : index
    %c0_16 = arith.constant 0 : index
    %c0_17 = arith.constant 0 : index
    %c0_18 = arith.constant 0 : index
    %6 = vector.load %arg0[%c0_15, %c0_16, %c0_17, %c0_18] : memref<2x16x16x4xf32, #tpu.memory_space<vmem>>, vector<2x16x16x4xf32>
    %c0_19 = arith.constant 0 : index
    %c1 = arith.constant 1 : index
    %c1_20 = arith.constant 1 : index
    %c0_21 = arith.constant 0 : index
    %7 = vector.load %arg10[%c0_19, %c1, %c1_20, %c0_21] : memref<2x18x18x8xf32, #tpu.memory_space<vmem>>, vector<2x16x16x4xf32>
    tpu.vector_store %arg10[%c0_19, %c1, %c1_20, %c0_21], %6 {strides = array<i32>} : memref<2x18x18x8xf32, #tpu.memory_space<vmem>>, vector<2x16x16x4xf32>,
    %c0_22 = arith.constant 0 : index
    %c0_23 = arith.constant 0 : index
    %c0_24 = arith.constant 0 : index
    %c0_25 = arith.constant 0 : index
    %8 = vector.load %arg1[%c0_22, %c0_23, %c0_24, %c0_25] : memref<2x8x8x4xf32, #tpu.memory_space<vmem>>, vector<2x8x1x4xf32>
    %cst_26 = arith.constant 1.000000e+00 : f32
    %9 = vector.broadcast %cst_26 : f32 to vector<2x8x1x4xf32>
    %10 = arith.mulf %8, %9 : vector<2x8x1x4xf32>
    %c0_27 = arith.constant 0 : index
    %c0_28 = arith.constant 0 : index
    %c1_29 = arith.constant 1 : index
    %c0_30 = arith.constant 0 : index
    %11 = vector.load %arg1[%c0_27, %c0_28, %c1_29, %c0_30] : memref<2x8x8x4xf32, #tpu.memory_space<vmem>>, vector<2x8x1x4xf32>
    %cst_31 = arith.constant 0.000000e+00 : f32
    %12 = vector.broadcast %cst_31 : f32 to vector<2x8x1x4xf32>
    %13 = arith.mulf %11, %12 : vector<2x8x1x4xf32>
    %14 = arith.addf %10, %13 : vector<2x8x1x4xf32>
    %c0_32 = arith.constant 0 : index
    %c0_33 = arith.constant 0 : index
    %c0_34 = arith.constant 0 : index
    %c0_35 = arith.constant 0 : index
    %15 = vector.load %arg9[%c0_32, %c0_33, %c0_34, %c0_35] : memref<2x8x16x4xf32, #tpu.memory_space<vmem>>, vector<2x8x1x4xf32>
    tpu.vector_store %arg9[%c0_32, %c0_33, %c0_34, %c0_35], %14 {strides = array<i32>} : memref<2x8x16x4xf32, #tpu.memory_space<vmem>>, vector<2x8x1x4xf32>,
    %c0_36 = arith.constant 0 : index
    %c0_37 = arith.constant 0 : index
    %c0_38 = arith.constant 0 : index
    %c0_39 = arith.constant 0 : index
    %16 = vector.load %arg1[%c0_36, %c0_37, %c0_38, %c0_39] : memref<2x8x8x4xf32, #tpu.memory_space<vmem>>, vector<2x8x1x4xf32>
    %cst_40 = arith.constant 0.533333361 : f32
    %17 = vector.broadcast %cst_40 : f32 to vector<2x8x1x4xf32>
    %18 = arith.mulf %16, %17 : vector<2x8x1x4xf32>
    %c0_41 = arith.constant 0 : index
    %c0_42 = arith.constant 0 : index
    %c1_43 = arith.constant 1 : index
    %c0_44 = arith.constant 0 : index
    %19 = vector.load %arg1[%c0_41, %c0_42, %c1_43, %c0_44] : memref<2x8x8x4xf32, #tpu.memory_space<vmem>>, vector<2x8x1x4xf32>
    %cst_45 = arith.constant 0.466666669 : f32
    %20 = vector.broadcast %cst_45 : f32 to vector<2x8x1x4xf32>
    %21 = arith.mulf %19, %20 : vector<2x8x1x4xf32>
    %22 = arith.addf %18, %21 : vector<2x8x1x4xf32>
    %c0_46 = arith.constant 0 : index
    %c0_47 = arith.constant 0 : index
    %c1_48 = arith.constant 1 : index
    %c0_49 = arith.constant 0 : index
    %23 = vector.load %arg9[%c0_46, %c0_47, %c1_48, %c0_49] : memref<2x8x16x4xf32, #tpu.memory_space<vmem>>, vector<2x8x1x4xf32>
    tpu.vector_store %arg9[%c0_46, %c0_47, %c1_48, %c0_49], %22 {strides = array<i32>} : memref<2x8x16x4xf32, #tpu.memory_space<vmem>>, vector<2x8x1x4xf32>,
    %c0_50 = arith.constant 0 : index
    %c0_51 = arith.constant 0 : index
    %c0_52 = arith.constant 0 : index
    %c0_53 = arith.constant 0 : index
    %24 = vector.load %arg1[%c0_50, %c0_51, %c0_52, %c0_53] : memref<2x8x8x4xf32, #tpu.memory_space<vmem>>, vector<2x8x1x4xf32>
    %cst_54 = arith.constant 0.0666666701 : f32
    %25 = vector.broadcast %cst_54 : f32 to vector<2x8x1x4xf32>
    %26 = arith.mulf %24, %25 : vector<2x8x1x4xf32>
    %c0_55 = arith.constant 0 : index
    %c0_56 = arith.constant 0 : index
    %c1_57 = arith.constant 1 : index
    %c0_58 = arith.constant 0 : index
    %27 = vector.load %arg1[%c0_55, %c0_56, %c1_57, %c0_58] : memref<2x8x8x4xf32, #tpu.memory_space<vmem>>, vector<2x8x1x4xf32>
    %cst_59 = arith.constant 0.933333337 : f32
    %28 = vector.broadcast %cst_59 : f32 to vector<2x8x1x4xf32>
    %29 = arith.mulf %27, %28 : vector<2x8x1x4xf32>
    %30 = arith.addf %26, %29 : vector<2x8x1x4xf32>
    %c0_60 = arith.constant 0 : index
    %c0_61 = arith.constant 0 : index
    %c2 = arith.constant 2 : index
    %c0_62 = arith.constant 0 : index
    %31 = vector.load %arg9[%c0_60, %c0_61, %c2, %c0_62] : memref<2x8x16x4xf32, #tpu.memory_space<vmem>>, vector<2x8x1x4xf32>
    tpu.vector_store %arg9[%c0_60, %c0_61, %c2, %c0_62], %30 {strides = array<i32>} : memref<2x8x16x4xf32, #tpu.memory_space<vmem>>, vector<2x8x1x4xf32>,
    %c0_63 = arith.constant 0 : index
    %c0_64 = arith.constant 0 : index
    %c1_65 = arith.constant 1 : index
    %c0_66 = arith.constant 0 : index
    %32 = vector.load %arg1[%c0_63, %c0_64, %c1_65, %c0_66] : memref<2x8x8x4xf32, #tpu.memory_space<vmem>>, vector<2x8x1x4xf32>
    %cst_67 = arith.constant 6.000000e-01 : f32
    %33 = vector.broadcast %cst_67 : f32 to vector<2x8x1x4xf32>
    %34 = arith.mulf %32, %33 : vector<2x8x1x4xf32>
    %c0_68 = arith.constant 0 : index
    %c0_69 = arith.constant 0 : index
    %c2_70 = arith.constant 2 : index
    %c0_71 = arith.constant 0 : index
    %35 = vector.load %arg1[%c0_68, %c0_69, %c2_70, %c0_71] : memref<2x8x8x4xf32, #tpu.memory_space<vmem>>, vector<2x8x1x4xf32>
    %cst_72 = arith.constant 4.000000e-01 : f32
    %36 = vector.broadcast %cst_72 : f32 to vector<2x8x1x4xf32>
    %37 = arith.mulf %35, %36 : vector<2x8x1x4xf32>
    %38 = arith.addf %34, %37 : vector<2x8x1x4xf32>
    %c0_73 = arith.constant 0 : index
    %c0_74 = arith.constant 0 : index
    %c3 = arith.constant 3 : index
    %c0_75 = arith.constant 0 : index
    %39 = vector.load %arg9[%c0_73, %c0_74, %c3, %c0_75] : memref<2x8x16x4xf32, #tpu.memory_space<vmem>>, vector<2x8x1x4xf32>
    tpu.vector_store %arg9[%c0_73, %c0_74, %c3, %c0_75], %38 {strides = array<i32>} : memref<2x8x16x4xf32, #tpu.memory_space<vmem>>, vector<2x8x1x4xf32>,
    %c0_76 = arith.constant 0 : index
    %c0_77 = arith.constant 0 : index
    %c1_78 = arith.constant 1 : index
    %c0_79 = arith.constant 0 : index
    %40 = vector.load %arg1[%c0_76, %c0_77, %c1_78, %c0_79] : memref<2x8x8x4xf32, #tpu.memory_space<vmem>>, vector<2x8x1x4xf32>
    %cst_80 = arith.constant 0.13333334 : f32
    %41 = vector.broadcast %cst_80 : f32 to vector<2x8x1x4xf32>
    %42 = arith.mulf %40, %41 : vector<2x8x1x4xf32>
    %c0_81 = arith.constant 0 : index
    %c0_82 = arith.constant 0 : index
    %c2_83 = arith.constant 2 : index
    %c0_84 = arith.constant 0 : index
    %43 = vector.load %arg1[%c0_81, %c0_82, %c2_83, %c0_84] : memref<2x8x8x4xf32, #tpu.memory_space<vmem>>, vector<2x8x1x4xf32>
    %cst_85 = arith.constant 0.866666674 : f32
    %44 = vector.broadcast %cst_85 : f32 to vector<2x8x1x4xf32>
    %45 = arith.mulf %43, %44 : vector<2x8x1x4xf32>
    %46 = arith.addf %42, %45 : vector<2x8x1x4xf32>
    %c0_86 = arith.constant 0 : index
    %c0_87 = arith.constant 0 : index
    %c4 = arith.constant 4 : index
    %c0_88 = arith.constant 0 : index
    %47 = vector.load %arg9[%c0_86, %c0_87, %c4, %c0_88] : memref<2x8x16x4xf32, #tpu.memory_space<vmem>>, vector<2x8x1x4xf32>
    tpu.vector_store %arg9[%c0_86, %c0_87, %c4, %c0_88], %46 {strides = array<i32>} : memref<2x8x16x4xf32, #tpu.memory_space<vmem>>, vector<2x8x1x4xf32>,
    %c0_89 = arith.constant 0 : index
    %c0_90 = arith.constant 0 : index
    %c2_91 = arith.constant 2 : index
    %c0_92 = arith.constant 0 : index
    %48 = vector.load %arg1[%c0_89, %c0_90, %c2_91, %c0_92] : memref<2x8x8x4xf32, #tpu.memory_space<vmem>>, vector<2x8x1x4xf32>
    %cst_93 = arith.constant 0.666666686 : f32
    %49 = vector.broadcast %cst_93 : f32 to vector<2x8x1x4xf32>
    %50 = arith.mulf %48, %49 : vector<2x8x1x4xf32>
    %c0_94 = arith.constant 0 : index
    %c0_95 = arith.constant 0 : index
    %c3_96 = arith.constant 3 : index
    %c0_97 = arith.constant 0 : index
    %51 = vector.load %arg1[%c0_94, %c0_95, %c3_96, %c0_97] : memref<2x8x8x4xf32, #tpu.memory_space<vmem>>, vector<2x8x1x4xf32>
    %cst_98 = arith.constant 0.333333343 : f32
    %52 = vector.broadcast %cst_98 : f32 to vector<2x8x1x4xf32>
    %53 = arith.mulf %51, %52 : vector<2x8x1x4xf32>
    %54 = arith.addf %50, %53 : vector<2x8x1x4xf32>
    %c0_99 = arith.constant 0 : index
    %c0_100 = arith.constant 0 : index
    %c5 = arith.constant 5 : index
    %c0_101 = arith.constant 0 : index
    %55 = vector.load %arg9[%c0_99, %c0_100, %c5, %c0_101] : memref<2x8x16x4xf32, #tpu.memory_space<vmem>>, vector<2x8x1x4xf32>
    tpu.vector_store %arg9[%c0_99, %c0_100, %c5, %c0_101], %54 {strides = array<i32>} : memref<2x8x16x4xf32, #tpu.memory_space<vmem>>, vector<2x8x1x4xf32>,
    %c0_102 = arith.constant 0 : index
    %c0_103 = arith.constant 0 : index
    %c2_104 = arith.constant 2 : index
    %c0_105 = arith.constant 0 : index
    %56 = vector.load %arg1[%c0_102, %c0_103, %c2_104, %c0_105] : memref<2x8x8x4xf32, #tpu.memory_space<vmem>>, vector<2x8x1x4xf32>
    %cst_106 = arith.constant 2.000000e-01 : f32
    %57 = vector.broadcast %cst_106 : f32 to vector<2x8x1x4xf32>
    %58 = arith.mulf %56, %57 : vector<2x8x1x4xf32>
    %c0_107 = arith.constant 0 : index
    %c0_108 = arith.constant 0 : index
    %c3_109 = arith.constant 3 : index
    %c0_110 = arith.constant 0 : index
    %59 = vector.load %arg1[%c0_107, %c0_108, %c3_109, %c0_110] : memref<2x8x8x4xf32, #tpu.memory_space<vmem>>, vector<2x8x1x4xf32>
    %cst_111 = arith.constant 8.000000e-01 : f32
    %60 = vector.broadcast %cst_111 : f32 to vector<2x8x1x4xf32>
    %61 = arith.mulf %59, %60 : vector<2x8x1x4xf32>
    %62 = arith.addf %58, %61 : vector<2x8x1x4xf32>
    %c0_112 = arith.constant 0 : index
    %c0_113 = arith.constant 0 : index
    %c6 = arith.constant 6 : index
    %c0_114 = arith.constant 0 : index
    %63 = vector.load %arg9[%c0_112, %c0_113, %c6, %c0_114] : memref<2x8x16x4xf32, #tpu.memory_space<vmem>>, vector<2x8x1x4xf32>
    tpu.vector_store %arg9[%c0_112, %c0_113, %c6, %c0_114], %62 {strides = array<i32>} : memref<2x8x16x4xf32, #tpu.memory_space<vmem>>, vector<2x8x1x4xf32>,
    %c0_115 = arith.constant 0 : index
    %c0_116 = arith.constant 0 : index
    %c3_117 = arith.constant 3 : index
    %c0_118 = arith.constant 0 : index
    %64 = vector.load %arg1[%c0_115, %c0_116, %c3_117, %c0_118] : memref<2x8x8x4xf32, #tpu.memory_space<vmem>>, vector<2x8x1x4xf32>
    %cst_119 = arith.constant 0.733333349 : f32
    %65 = vector.broadcast %cst_119 : f32 to vector<2x8x1x4xf32>
    %66 = arith.mulf %64, %65 : vector<2x8x1x4xf32>
    %c0_120 = arith.constant 0 : index
    %c0_121 = arith.constant 0 : index
    %c4_122 = arith.constant 4 : index
    %c0_123 = arith.constant 0 : index
    %67 = vector.load %arg1[%c0_120, %c0_121, %c4_122, %c0_123] : memref<2x8x8x4xf32, #tpu.memory_space<vmem>>, vector<2x8x1x4xf32>
    %cst_124 = arith.constant 0.266666681 : f32
    %68 = vector.broadcast %cst_124 : f32 to vector<2x8x1x4xf32>
    %69 = arith.mulf %67, %68 : vector<2x8x1x4xf32>
    %70 = arith.addf %66, %69 : vector<2x8x1x4xf32>
    %c0_125 = arith.constant 0 : index
    %c0_126 = arith.constant 0 : index
    %c7 = arith.constant 7 : index
    %c0_127 = arith.constant 0 : index
    %71 = vector.load %arg9[%c0_125, %c0_126, %c7, %c0_127] : memref<2x8x16x4xf32, #tpu.memory_space<vmem>>, vector<2x8x1x4xf32>
    tpu.vector_store %arg9[%c0_125, %c0_126, %c7, %c0_127], %70 {strides = array<i32>} : memref<2x8x16x4xf32, #tpu.memory_space<vmem>>, vector<2x8x1x4xf32>,
    %c0_128 = arith.constant 0 : index
    %c0_129 = arith.constant 0 : index
    %c3_130 = arith.constant 3 : index
    %c0_131 = arith.constant 0 : index
    %72 = vector.load %arg1[%c0_128, %c0_129, %c3_130, %c0_131] : memref<2x8x8x4xf32, #tpu.memory_space<vmem>>, vector<2x8x1x4xf32>
    %cst_132 = arith.constant 0.266666681 : f32
    %73 = vector.broadcast %cst_132 : f32 to vector<2x8x1x4xf32>
    %74 = arith.mulf %72, %73 : vector<2x8x1x4xf32>
    %c0_133 = arith.constant 0 : index
    %c0_134 = arith.constant 0 : index
    %c4_135 = arith.constant 4 : index
    %c0_136 = arith.constant 0 : index
    %75 = vector.load %arg1[%c0_133, %c0_134, %c4_135, %c0_136] : memref<2x8x8x4xf32, #tpu.memory_space<vmem>>, vector<2x8x1x4xf32>
    %cst_137 = arith.constant 0.733333349 : f32
    %76 = vector.broadcast %cst_137 : f32 to vector<2x8x1x4xf32>
    %77 = arith.mulf %75, %76 : vector<2x8x1x4xf32>
    %78 = arith.addf %74, %77 : vector<2x8x1x4xf32>
    %c0_138 = arith.constant 0 : index
    %c0_139 = arith.constant 0 : index
    %c8 = arith.constant 8 : index
    %c0_140 = arith.constant 0 : index
    %79 = vector.load %arg9[%c0_138, %c0_139, %c8, %c0_140] : memref<2x8x16x4xf32, #tpu.memory_space<vmem>>, vector<2x8x1x4xf32>
    tpu.vector_store %arg9[%c0_138, %c0_139, %c8, %c0_140], %78 {strides = array<i32>} : memref<2x8x16x4xf32, #tpu.memory_space<vmem>>, vector<2x8x1x4xf32>,
    %c0_141 = arith.constant 0 : index
    %c0_142 = arith.constant 0 : index
    %c4_143 = arith.constant 4 : index
    %c0_144 = arith.constant 0 : index
    %80 = vector.load %arg1[%c0_141, %c0_142, %c4_143, %c0_144] : memref<2x8x8x4xf32, #tpu.memory_space<vmem>>, vector<2x8x1x4xf32>
    %cst_145 = arith.constant 8.000000e-01 : f32
    %81 = vector.broadcast %cst_145 : f32 to vector<2x8x1x4xf32>
    %82 = arith.mulf %80, %81 : vector<2x8x1x4xf32>
    %c0_146 = arith.constant 0 : index
    %c0_147 = arith.constant 0 : index
    %c5_148 = arith.constant 5 : index
    %c0_149 = arith.constant 0 : index
    %83 = vector.load %arg1[%c0_146, %c0_147, %c5_148, %c0_149] : memref<2x8x8x4xf32, #tpu.memory_space<vmem>>, vector<2x8x1x4xf32>
    %cst_150 = arith.constant 2.000000e-01 : f32
    %84 = vector.broadcast %cst_150 : f32 to vector<2x8x1x4xf32>
    %85 = arith.mulf %83, %84 : vector<2x8x1x4xf32>
    %86 = arith.addf %82, %85 : vector<2x8x1x4xf32>
    %c0_151 = arith.constant 0 : index
    %c0_152 = arith.constant 0 : index
    %c9 = arith.constant 9 : index
    %c0_153 = arith.constant 0 : index
    %87 = vector.load %arg9[%c0_151, %c0_152, %c9, %c0_153] : memref<2x8x16x4xf32, #tpu.memory_space<vmem>>, vector<2x8x1x4xf32>
    tpu.vector_store %arg9[%c0_151, %c0_152, %c9, %c0_153], %86 {strides = array<i32>} : memref<2x8x16x4xf32, #tpu.memory_space<vmem>>, vector<2x8x1x4xf32>,
    %c0_154 = arith.constant 0 : index
    %c0_155 = arith.constant 0 : index
    %c4_156 = arith.constant 4 : index
    %c0_157 = arith.constant 0 : index
    %88 = vector.load %arg1[%c0_154, %c0_155, %c4_156, %c0_157] : memref<2x8x8x4xf32, #tpu.memory_space<vmem>>, vector<2x8x1x4xf32>
    %cst_158 = arith.constant 0.333333343 : f32
    %89 = vector.broadcast %cst_158 : f32 to vector<2x8x1x4xf32>
    %90 = arith.mulf %88, %89 : vector<2x8x1x4xf32>
    %c0_159 = arith.constant 0 : index
    %c0_160 = arith.constant 0 : index
    %c5_161 = arith.constant 5 : index
    %c0_162 = arith.constant 0 : index
    %91 = vector.load %arg1[%c0_159, %c0_160, %c5_161, %c0_162] : memref<2x8x8x4xf32, #tpu.memory_space<vmem>>, vector<2x8x1x4xf32>
    %cst_163 = arith.constant 0.666666686 : f32
    %92 = vector.broadcast %cst_163 : f32 to vector<2x8x1x4xf32>
    %93 = arith.mulf %91, %92 : vector<2x8x1x4xf32>
    %94 = arith.addf %90, %93 : vector<2x8x1x4xf32>
    %c0_164 = arith.constant 0 : index
    %c0_165 = arith.constant 0 : index
    %c10 = arith.constant 10 : index
    %c0_166 = arith.constant 0 : index
    %95 = vector.load %arg9[%c0_164, %c0_165, %c10, %c0_166] : memref<2x8x16x4xf32, #tpu.memory_space<vmem>>, vector<2x8x1x4xf32>
    tpu.vector_store %arg9[%c0_164, %c0_165, %c10, %c0_166], %94 {strides = array<i32>} : memref<2x8x16x4xf32, #tpu.memory_space<vmem>>, vector<2x8x1x4xf32>,
    %c0_167 = arith.constant 0 : index
    %c0_168 = arith.constant 0 : index
    %c5_169 = arith.constant 5 : index
    %c0_170 = arith.constant 0 : index
    %96 = vector.load %arg1[%c0_167, %c0_168, %c5_169, %c0_170] : memref<2x8x8x4xf32, #tpu.memory_space<vmem>>, vector<2x8x1x4xf32>
    %cst_171 = arith.constant 0.866666674 : f32
    %97 = vector.broadcast %cst_171 : f32 to vector<2x8x1x4xf32>
    %98 = arith.mulf %96, %97 : vector<2x8x1x4xf32>
    %c0_172 = arith.constant 0 : index
    %c0_173 = arith.constant 0 : index
    %c6_174 = arith.constant 6 : index
    %c0_175 = arith.constant 0 : index
    %99 = vector.load %arg1[%c0_172, %c0_173, %c6_174, %c0_175] : memref<2x8x8x4xf32, #tpu.memory_space<vmem>>, vector<2x8x1x4xf32>
    %cst_176 = arith.constant 0.13333334 : f32
    %100 = vector.broadcast %cst_176 : f32 to vector<2x8x1x4xf32>
    %101 = arith.mulf %99, %100 : vector<2x8x1x4xf32>
    %102 = arith.addf %98, %101 : vector<2x8x1x4xf32>
    %c0_177 = arith.constant 0 : index
    %c0_178 = arith.constant 0 : index
    %c11 = arith.constant 11 : index
    %c0_179 = arith.constant 0 : index
    %103 = vector.load %arg9[%c0_177, %c0_178, %c11, %c0_179] : memref<2x8x16x4xf32, #tpu.memory_space<vmem>>, vector<2x8x1x4xf32>
    tpu.vector_store %arg9[%c0_177, %c0_178, %c11, %c0_179], %102 {strides = array<i32>} : memref<2x8x16x4xf32, #tpu.memory_space<vmem>>, vector<2x8x1x4xf32>,
    %c0_180 = arith.constant 0 : index
    %c0_181 = arith.constant 0 : index
    %c5_182 = arith.constant 5 : index
    %c0_183 = arith.constant 0 : index
    %104 = vector.load %arg1[%c0_180, %c0_181, %c5_182, %c0_183] : memref<2x8x8x4xf32, #tpu.memory_space<vmem>>, vector<2x8x1x4xf32>
    %cst_184 = arith.constant 4.000000e-01 : f32
    %105 = vector.broadcast %cst_184 : f32 to vector<2x8x1x4xf32>
    %106 = arith.mulf %104, %105 : vector<2x8x1x4xf32>
    %c0_185 = arith.constant 0 : index
    %c0_186 = arith.constant 0 : index
    %c6_187 = arith.constant 6 : index
    %c0_188 = arith.constant 0 : index
    %107 = vector.load %arg1[%c0_185, %c0_186, %c6_187, %c0_188] : memref<2x8x8x4xf32, #tpu.memory_space<vmem>>, vector<2x8x1x4xf32>
    %cst_189 = arith.constant 6.000000e-01 : f32
    %108 = vector.broadcast %cst_189 : f32 to vector<2x8x1x4xf32>
    %109 = arith.mulf %107, %108 : vector<2x8x1x4xf32>
    %110 = arith.addf %106, %109 : vector<2x8x1x4xf32>
    %c0_190 = arith.constant 0 : index
    %c0_191 = arith.constant 0 : index
    %c12 = arith.constant 12 : index
    %c0_192 = arith.constant 0 : index
    %111 = vector.load %arg9[%c0_190, %c0_191, %c12, %c0_192] : memref<2x8x16x4xf32, #tpu.memory_space<vmem>>, vector<2x8x1x4xf32>
    tpu.vector_store %arg9[%c0_190, %c0_191, %c12, %c0_192], %110 {strides = array<i32>} : memref<2x8x16x4xf32, #tpu.memory_space<vmem>>, vector<2x8x1x4xf32>,
    %c0_193 = arith.constant 0 : index
    %c0_194 = arith.constant 0 : index
    %c6_195 = arith.constant 6 : index
    %c0_196 = arith.constant 0 : index
    %112 = vector.load %arg1[%c0_193, %c0_194, %c6_195, %c0_196] : memref<2x8x8x4xf32, #tpu.memory_space<vmem>>, vector<2x8x1x4xf32>
    %cst_197 = arith.constant 0.933333337 : f32
    %113 = vector.broadcast %cst_197 : f32 to vector<2x8x1x4xf32>
    %114 = arith.mulf %112, %113 : vector<2x8x1x4xf32>
    %c0_198 = arith.constant 0 : index
    %c0_199 = arith.constant 0 : index
    %c7_200 = arith.constant 7 : index
    %c0_201 = arith.constant 0 : index
    %115 = vector.load %arg1[%c0_198, %c0_199, %c7_200, %c0_201] : memref<2x8x8x4xf32, #tpu.memory_space<vmem>>, vector<2x8x1x4xf32>
    %cst_202 = arith.constant 0.0666666701 : f32
    %116 = vector.broadcast %cst_202 : f32 to vector<2x8x1x4xf32>
    %117 = arith.mulf %115, %116 : vector<2x8x1x4xf32>
    %118 = arith.addf %114, %117 : vector<2x8x1x4xf32>
    %c0_203 = arith.constant 0 : index
    %c0_204 = arith.constant 0 : index
    %c13 = arith.constant 13 : index
    %c0_205 = arith.constant 0 : index
    %119 = vector.load %arg9[%c0_203, %c0_204, %c13, %c0_205] : memref<2x8x16x4xf32, #tpu.memory_space<vmem>>, vector<2x8x1x4xf32>
    tpu.vector_store %arg9[%c0_203, %c0_204, %c13, %c0_205], %118 {strides = array<i32>} : memref<2x8x16x4xf32, #tpu.memory_space<vmem>>, vector<2x8x1x4xf32>,
    %c0_206 = arith.constant 0 : index
    %c0_207 = arith.constant 0 : index
    %c6_208 = arith.constant 6 : index
    %c0_209 = arith.constant 0 : index
    %120 = vector.load %arg1[%c0_206, %c0_207, %c6_208, %c0_209] : memref<2x8x8x4xf32, #tpu.memory_space<vmem>>, vector<2x8x1x4xf32>
    %cst_210 = arith.constant 0.466666669 : f32
    %121 = vector.broadcast %cst_210 : f32 to vector<2x8x1x4xf32>
    %122 = arith.mulf %120, %121 : vector<2x8x1x4xf32>
    %c0_211 = arith.constant 0 : index
    %c0_212 = arith.constant 0 : index
    %c7_213 = arith.constant 7 : index
    %c0_214 = arith.constant 0 : index
    %123 = vector.load %arg1[%c0_211, %c0_212, %c7_213, %c0_214] : memref<2x8x8x4xf32, #tpu.memory_space<vmem>>, vector<2x8x1x4xf32>
    %cst_215 = arith.constant 0.533333361 : f32
    %124 = vector.broadcast %cst_215 : f32 to vector<2x8x1x4xf32>
    %125 = arith.mulf %123, %124 : vector<2x8x1x4xf32>
    %126 = arith.addf %122, %125 : vector<2x8x1x4xf32>
    %c0_216 = arith.constant 0 : index
    %c0_217 = arith.constant 0 : index
    %c14 = arith.constant 14 : index
    %c0_218 = arith.constant 0 : index
    %127 = vector.load %arg9[%c0_216, %c0_217, %c14, %c0_218] : memref<2x8x16x4xf32, #tpu.memory_space<vmem>>, vector<2x8x1x4xf32>
    tpu.vector_store %arg9[%c0_216, %c0_217, %c14, %c0_218], %126 {strides = array<i32>} : memref<2x8x16x4xf32, #tpu.memory_space<vmem>>, vector<2x8x1x4xf32>,
    %c0_219 = arith.constant 0 : index
    %c0_220 = arith.constant 0 : index
    %c7_221 = arith.constant 7 : index
    %c0_222 = arith.constant 0 : index
    %128 = vector.load %arg1[%c0_219, %c0_220, %c7_221, %c0_222] : memref<2x8x8x4xf32, #tpu.memory_space<vmem>>, vector<2x8x1x4xf32>
    %cst_223 = arith.constant 1.000000e+00 : f32
    %129 = vector.broadcast %cst_223 : f32 to vector<2x8x1x4xf32>
    %130 = arith.mulf %128, %129 : vector<2x8x1x4xf32>
    %c0_224 = arith.constant 0 : index
    %c0_225 = arith.constant 0 : index
    %c7_226 = arith.constant 7 : index
    %c0_227 = arith.constant 0 : index
    %131 = vector.load %arg1[%c0_224, %c0_225, %c7_226, %c0_227] : memref<2x8x8x4xf32, #tpu.memory_space<vmem>>, vector<2x8x1x4xf32>
    %cst_228 = arith.constant 0.000000e+00 : f32
    %132 = vector.broadcast %cst_228 : f32 to vector<2x8x1x4xf32>
    %133 = arith.mulf %131, %132 : vector<2x8x1x4xf32>
    %134 = arith.addf %130, %133 : vector<2x8x1x4xf32>
    %c0_229 = arith.constant 0 : index
    %c0_230 = arith.constant 0 : index
    %c15 = arith.constant 15 : index
    %c0_231 = arith.constant 0 : index
    %135 = vector.load %arg9[%c0_229, %c0_230, %c15, %c0_231] : memref<2x8x16x4xf32, #tpu.memory_space<vmem>>, vector<2x8x1x4xf32>
    tpu.vector_store %arg9[%c0_229, %c0_230, %c15, %c0_231], %134 {strides = array<i32>} : memref<2x8x16x4xf32, #tpu.memory_space<vmem>>, vector<2x8x1x4xf32>,
    %c0_232 = arith.constant 0 : index
    %c0_233 = arith.constant 0 : index
    %c0_234 = arith.constant 0 : index
    %c0_235 = arith.constant 0 : index
    %136 = vector.load %arg9[%c0_232, %c0_233, %c0_234, %c0_235] : memref<2x8x16x4xf32, #tpu.memory_space<vmem>>, vector<2x1x16x4xf32>
    %cst_236 = arith.constant 1.000000e+00 : f32
    %137 = vector.broadcast %cst_236 : f32 to vector<2x1x16x4xf32>
    %138 = arith.mulf %136, %137 : vector<2x1x16x4xf32>
    %c0_237 = arith.constant 0 : index
    %c1_238 = arith.constant 1 : index
    %c0_239 = arith.constant 0 : index
    %c0_240 = arith.constant 0 : index
    %139 = vector.load %arg9[%c0_237, %c1_238, %c0_239, %c0_240] : memref<2x8x16x4xf32, #tpu.memory_space<vmem>>, vector<2x1x16x4xf32>
    %cst_241 = arith.constant 0.000000e+00 : f32
    %140 = vector.broadcast %cst_241 : f32 to vector<2x1x16x4xf32>
    %141 = arith.mulf %139, %140 : vector<2x1x16x4xf32>
    %142 = arith.addf %138, %141 : vector<2x1x16x4xf32>
    %c0_242 = arith.constant 0 : index
    %c1_243 = arith.constant 1 : index
    %c1_244 = arith.constant 1 : index
    %c4_245 = arith.constant 4 : index
    %143 = vector.load %arg10[%c0_242, %c1_243, %c1_244, %c4_245] : memref<2x18x18x8xf32, #tpu.memory_space<vmem>>, vector<2x1x16x4xf32>
    tpu.vector_store %arg10[%c0_242, %c1_243, %c1_244, %c4_245], %142 {strides = array<i32>} : memref<2x18x18x8xf32, #tpu.memory_space<vmem>>, vector<2x1x16x4xf32>,
    %c0_246 = arith.constant 0 : index
    %c0_247 = arith.constant 0 : index
    %c0_248 = arith.constant 0 : index
    %c0_249 = arith.constant 0 : index
    %144 = vector.load %arg9[%c0_246, %c0_247, %c0_248, %c0_249] : memref<2x8x16x4xf32, #tpu.memory_space<vmem>>, vector<2x1x16x4xf32>
    %cst_250 = arith.constant 0.533333361 : f32
    %145 = vector.broadcast %cst_250 : f32 to vector<2x1x16x4xf32>
    %146 = arith.mulf %144, %145 : vector<2x1x16x4xf32>
    %c0_251 = arith.constant 0 : index
    %c1_252 = arith.constant 1 : index
    %c0_253 = arith.constant 0 : index
    %c0_254 = arith.constant 0 : index
    %147 = vector.load %arg9[%c0_251, %c1_252, %c0_253, %c0_254] : memref<2x8x16x4xf32, #tpu.memory_space<vmem>>, vector<2x1x16x4xf32>
    %cst_255 = arith.constant 0.466666669 : f32
    %148 = vector.broadcast %cst_255 : f32 to vector<2x1x16x4xf32>
    %149 = arith.mulf %147, %148 : vector<2x1x16x4xf32>
    %150 = arith.addf %146, %149 : vector<2x1x16x4xf32>
    %c0_256 = arith.constant 0 : index
    %c2_257 = arith.constant 2 : index
    %c1_258 = arith.constant 1 : index
    %c4_259 = arith.constant 4 : index
    %151 = vector.load %arg10[%c0_256, %c2_257, %c1_258, %c4_259] : memref<2x18x18x8xf32, #tpu.memory_space<vmem>>, vector<2x1x16x4xf32>
    tpu.vector_store %arg10[%c0_256, %c2_257, %c1_258, %c4_259], %150 {strides = array<i32>} : memref<2x18x18x8xf32, #tpu.memory_space<vmem>>, vector<2x1x16x4xf32>,
    %c0_260 = arith.constant 0 : index
    %c0_261 = arith.constant 0 : index
    %c0_262 = arith.constant 0 : index
    %c0_263 = arith.constant 0 : index
    %152 = vector.load %arg9[%c0_260, %c0_261, %c0_262, %c0_263] : memref<2x8x16x4xf32, #tpu.memory_space<vmem>>, vector<2x1x16x4xf32>
    %cst_264 = arith.constant 0.0666666701 : f32
    %153 = vector.broadcast %cst_264 : f32 to vector<2x1x16x4xf32>
    %154 = arith.mulf %152, %153 : vector<2x1x16x4xf32>
    %c0_265 = arith.constant 0 : index
    %c1_266 = arith.constant 1 : index
    %c0_267 = arith.constant 0 : index
    %c0_268 = arith.constant 0 : index
    %155 = vector.load %arg9[%c0_265, %c1_266, %c0_267, %c0_268] : memref<2x8x16x4xf32, #tpu.memory_space<vmem>>, vector<2x1x16x4xf32>
    %cst_269 = arith.constant 0.933333337 : f32
    %156 = vector.broadcast %cst_269 : f32 to vector<2x1x16x4xf32>
    %157 = arith.mulf %155, %156 : vector<2x1x16x4xf32>
    %158 = arith.addf %154, %157 : vector<2x1x16x4xf32>
    %c0_270 = arith.constant 0 : index
    %c3_271 = arith.constant 3 : index
    %c1_272 = arith.constant 1 : index
    %c4_273 = arith.constant 4 : index
    %159 = vector.load %arg10[%c0_270, %c3_271, %c1_272, %c4_273] : memref<2x18x18x8xf32, #tpu.memory_space<vmem>>, vector<2x1x16x4xf32>
    tpu.vector_store %arg10[%c0_270, %c3_271, %c1_272, %c4_273], %158 {strides = array<i32>} : memref<2x18x18x8xf32, #tpu.memory_space<vmem>>, vector<2x1x16x4xf32>,
    %c0_274 = arith.constant 0 : index
    %c1_275 = arith.constant 1 : index
    %c0_276 = arith.constant 0 : index
    %c0_277 = arith.constant 0 : index
    %160 = vector.load %arg9[%c0_274, %c1_275, %c0_276, %c0_277] : memref<2x8x16x4xf32, #tpu.memory_space<vmem>>, vector<2x1x16x4xf32>
    %cst_278 = arith.constant 6.000000e-01 : f32
    %161 = vector.broadcast %cst_278 : f32 to vector<2x1x16x4xf32>
    %162 = arith.mulf %160, %161 : vector<2x1x16x4xf32>
    %c0_279 = arith.constant 0 : index
    %c2_280 = arith.constant 2 : index
    %c0_281 = arith.constant 0 : index
    %c0_282 = arith.constant 0 : index
    %163 = vector.load %arg9[%c0_279, %c2_280, %c0_281, %c0_282] : memref<2x8x16x4xf32, #tpu.memory_space<vmem>>, vector<2x1x16x4xf32>
    %cst_283 = arith.constant 4.000000e-01 : f32
    %164 = vector.broadcast %cst_283 : f32 to vector<2x1x16x4xf32>
    %165 = arith.mulf %163, %164 : vector<2x1x16x4xf32>
    %166 = arith.addf %162, %165 : vector<2x1x16x4xf32>
    %c0_284 = arith.constant 0 : index
    %c4_285 = arith.constant 4 : index
    %c1_286 = arith.constant 1 : index
    %c4_287 = arith.constant 4 : index
    %167 = vector.load %arg10[%c0_284, %c4_285, %c1_286, %c4_287] : memref<2x18x18x8xf32, #tpu.memory_space<vmem>>, vector<2x1x16x4xf32>
    tpu.vector_store %arg10[%c0_284, %c4_285, %c1_286, %c4_287], %166 {strides = array<i32>} : memref<2x18x18x8xf32, #tpu.memory_space<vmem>>, vector<2x1x16x4xf32>,
    %c0_288 = arith.constant 0 : index
    %c1_289 = arith.constant 1 : index
    %c0_290 = arith.constant 0 : index
    %c0_291 = arith.constant 0 : index
    %168 = vector.load %arg9[%c0_288, %c1_289, %c0_290, %c0_291] : memref<2x8x16x4xf32, #tpu.memory_space<vmem>>, vector<2x1x16x4xf32>
    %cst_292 = arith.constant 0.13333334 : f32
    %169 = vector.broadcast %cst_292 : f32 to vector<2x1x16x4xf32>
    %170 = arith.mulf %168, %169 : vector<2x1x16x4xf32>
    %c0_293 = arith.constant 0 : index
    %c2_294 = arith.constant 2 : index
    %c0_295 = arith.constant 0 : index
    %c0_296 = arith.constant 0 : index
    %171 = vector.load %arg9[%c0_293, %c2_294, %c0_295, %c0_296] : memref<2x8x16x4xf32, #tpu.memory_space<vmem>>, vector<2x1x16x4xf32>
    %cst_297 = arith.constant 0.866666674 : f32
    %172 = vector.broadcast %cst_297 : f32 to vector<2x1x16x4xf32>
    %173 = arith.mulf %171, %172 : vector<2x1x16x4xf32>
    %174 = arith.addf %170, %173 : vector<2x1x16x4xf32>
    %c0_298 = arith.constant 0 : index
    %c5_299 = arith.constant 5 : index
    %c1_300 = arith.constant 1 : index
    %c4_301 = arith.constant 4 : index
    %175 = vector.load %arg10[%c0_298, %c5_299, %c1_300, %c4_301] : memref<2x18x18x8xf32, #tpu.memory_space<vmem>>, vector<2x1x16x4xf32>
    tpu.vector_store %arg10[%c0_298, %c5_299, %c1_300, %c4_301], %174 {strides = array<i32>} : memref<2x18x18x8xf32, #tpu.memory_space<vmem>>, vector<2x1x16x4xf32>,
    %c0_302 = arith.constant 0 : index
    %c2_303 = arith.constant 2 : index
    %c0_304 = arith.constant 0 : index
    %c0_305 = arith.constant 0 : index
    %176 = vector.load %arg9[%c0_302, %c2_303, %c0_304, %c0_305] : memref<2x8x16x4xf32, #tpu.memory_space<vmem>>, vector<2x1x16x4xf32>
    %cst_306 = arith.constant 0.666666686 : f32
    %177 = vector.broadcast %cst_306 : f32 to vector<2x1x16x4xf32>
    %178 = arith.mulf %176, %177 : vector<2x1x16x4xf32>
    %c0_307 = arith.constant 0 : index
    %c3_308 = arith.constant 3 : index
    %c0_309 = arith.constant 0 : index
    %c0_310 = arith.constant 0 : index
    %179 = vector.load %arg9[%c0_307, %c3_308, %c0_309, %c0_310] : memref<2x8x16x4xf32, #tpu.memory_space<vmem>>, vector<2x1x16x4xf32>
    %cst_311 = arith.constant 0.333333343 : f32
    %180 = vector.broadcast %cst_311 : f32 to vector<2x1x16x4xf32>
    %181 = arith.mulf %179, %180 : vector<2x1x16x4xf32>
    %182 = arith.addf %178, %181 : vector<2x1x16x4xf32>
    %c0_312 = arith.constant 0 : index
    %c6_313 = arith.constant 6 : index
    %c1_314 = arith.constant 1 : index
    %c4_315 = arith.constant 4 : index
    %183 = vector.load %arg10[%c0_312, %c6_313, %c1_314, %c4_315] : memref<2x18x18x8xf32, #tpu.memory_space<vmem>>, vector<2x1x16x4xf32>
    tpu.vector_store %arg10[%c0_312, %c6_313, %c1_314, %c4_315], %182 {strides = array<i32>} : memref<2x18x18x8xf32, #tpu.memory_space<vmem>>, vector<2x1x16x4xf32>,
    %c0_316 = arith.constant 0 : index
    %c2_317 = arith.constant 2 : index
    %c0_318 = arith.constant 0 : index
    %c0_319 = arith.constant 0 : index
    %184 = vector.load %arg9[%c0_316, %c2_317, %c0_318, %c0_319] : memref<2x8x16x4xf32, #tpu.memory_space<vmem>>, vector<2x1x16x4xf32>
    %cst_320 = arith.constant 2.000000e-01 : f32
    %185 = vector.broadcast %cst_320 : f32 to vector<2x1x16x4xf32>
    %186 = arith.mulf %184, %185 : vector<2x1x16x4xf32>
    %c0_321 = arith.constant 0 : index
    %c3_322 = arith.constant 3 : index
    %c0_323 = arith.constant 0 : index
    %c0_324 = arith.constant 0 : index
    %187 = vector.load %arg9[%c0_321, %c3_322, %c0_323, %c0_324] : memref<2x8x16x4xf32, #tpu.memory_space<vmem>>, vector<2x1x16x4xf32>
    %cst_325 = arith.constant 8.000000e-01 : f32
    %188 = vector.broadcast %cst_325 : f32 to vector<2x1x16x4xf32>
    %189 = arith.mulf %187, %188 : vector<2x1x16x4xf32>
    %190 = arith.addf %186, %189 : vector<2x1x16x4xf32>
    %c0_326 = arith.constant 0 : index
    %c7_327 = arith.constant 7 : index
    %c1_328 = arith.constant 1 : index
    %c4_329 = arith.constant 4 : index
    %191 = vector.load %arg10[%c0_326, %c7_327, %c1_328, %c4_329] : memref<2x18x18x8xf32, #tpu.memory_space<vmem>>, vector<2x1x16x4xf32>
    tpu.vector_store %arg10[%c0_326, %c7_327, %c1_328, %c4_329], %190 {strides = array<i32>} : memref<2x18x18x8xf32, #tpu.memory_space<vmem>>, vector<2x1x16x4xf32>,
    %c0_330 = arith.constant 0 : index
    %c3_331 = arith.constant 3 : index
    %c0_332 = arith.constant 0 : index
    %c0_333 = arith.constant 0 : index
    %192 = vector.load %arg9[%c0_330, %c3_331, %c0_332, %c0_333] : memref<2x8x16x4xf32, #tpu.memory_space<vmem>>, vector<2x1x16x4xf32>
    %cst_334 = arith.constant 0.733333349 : f32
    %193 = vector.broadcast %cst_334 : f32 to vector<2x1x16x4xf32>
    %194 = arith.mulf %192, %193 : vector<2x1x16x4xf32>
    %c0_335 = arith.constant 0 : index
    %c4_336 = arith.constant 4 : index
    %c0_337 = arith.constant 0 : index
    %c0_338 = arith.constant 0 : index
    %195 = vector.load %arg9[%c0_335, %c4_336, %c0_337, %c0_338] : memref<2x8x16x4xf32, #tpu.memory_space<vmem>>, vector<2x1x16x4xf32>
    %cst_339 = arith.constant 0.266666681 : f32
    %196 = vector.broadcast %cst_339 : f32 to vector<2x1x16x4xf32>
    %197 = arith.mulf %195, %196 : vector<2x1x16x4xf32>
    %198 = arith.addf %194, %197 : vector<2x1x16x4xf32>
    %c0_340 = arith.constant 0 : index
    %c8_341 = arith.constant 8 : index
    %c1_342 = arith.constant 1 : index
    %c4_343 = arith.constant 4 : index
    %199 = vector.load %arg10[%c0_340, %c8_341, %c1_342, %c4_343] : memref<2x18x18x8xf32, #tpu.memory_space<vmem>>, vector<2x1x16x4xf32>
    tpu.vector_store %arg10[%c0_340, %c8_341, %c1_342, %c4_343], %198 {strides = array<i32>} : memref<2x18x18x8xf32, #tpu.memory_space<vmem>>, vector<2x1x16x4xf32>,
    %c0_344 = arith.constant 0 : index
    %c3_345 = arith.constant 3 : index
    %c0_346 = arith.constant 0 : index
    %c0_347 = arith.constant 0 : index
    %200 = vector.load %arg9[%c0_344, %c3_345, %c0_346, %c0_347] : memref<2x8x16x4xf32, #tpu.memory_space<vmem>>, vector<2x1x16x4xf32>
    %cst_348 = arith.constant 0.266666681 : f32
    %201 = vector.broadcast %cst_348 : f32 to vector<2x1x16x4xf32>
    %202 = arith.mulf %200, %201 : vector<2x1x16x4xf32>
    %c0_349 = arith.constant 0 : index
    %c4_350 = arith.constant 4 : index
    %c0_351 = arith.constant 0 : index
    %c0_352 = arith.constant 0 : index
    %203 = vector.load %arg9[%c0_349, %c4_350, %c0_351, %c0_352] : memref<2x8x16x4xf32, #tpu.memory_space<vmem>>, vector<2x1x16x4xf32>
    %cst_353 = arith.constant 0.733333349 : f32
    %204 = vector.broadcast %cst_353 : f32 to vector<2x1x16x4xf32>
    %205 = arith.mulf %203, %204 : vector<2x1x16x4xf32>
    %206 = arith.addf %202, %205 : vector<2x1x16x4xf32>
    %c0_354 = arith.constant 0 : index
    %c9_355 = arith.constant 9 : index
    %c1_356 = arith.constant 1 : index
    %c4_357 = arith.constant 4 : index
    %207 = vector.load %arg10[%c0_354, %c9_355, %c1_356, %c4_357] : memref<2x18x18x8xf32, #tpu.memory_space<vmem>>, vector<2x1x16x4xf32>
    tpu.vector_store %arg10[%c0_354, %c9_355, %c1_356, %c4_357], %206 {strides = array<i32>} : memref<2x18x18x8xf32, #tpu.memory_space<vmem>>, vector<2x1x16x4xf32>,
    %c0_358 = arith.constant 0 : index
    %c4_359 = arith.constant 4 : index
    %c0_360 = arith.constant 0 : index
    %c0_361 = arith.constant 0 : index
    %208 = vector.load %arg9[%c0_358, %c4_359, %c0_360, %c0_361] : memref<2x8x16x4xf32, #tpu.memory_space<vmem>>, vector<2x1x16x4xf32>
    %cst_362 = arith.constant 8.000000e-01 : f32
    %209 = vector.broadcast %cst_362 : f32 to vector<2x1x16x4xf32>
    %210 = arith.mulf %208, %209 : vector<2x1x16x4xf32>
    %c0_363 = arith.constant 0 : index
    %c5_364 = arith.constant 5 : index
    %c0_365 = arith.constant 0 : index
    %c0_366 = arith.constant 0 : index
    %211 = vector.load %arg9[%c0_363, %c5_364, %c0_365, %c0_366] : memref<2x8x16x4xf32, #tpu.memory_space<vmem>>, vector<2x1x16x4xf32>
    %cst_367 = arith.constant 2.000000e-01 : f32
    %212 = vector.broadcast %cst_367 : f32 to vector<2x1x16x4xf32>
    %213 = arith.mulf %211, %212 : vector<2x1x16x4xf32>
    %214 = arith.addf %210, %213 : vector<2x1x16x4xf32>
    %c0_368 = arith.constant 0 : index
    %c10_369 = arith.constant 10 : index
    %c1_370 = arith.constant 1 : index
    %c4_371 = arith.constant 4 : index
    %215 = vector.load %arg10[%c0_368, %c10_369, %c1_370, %c4_371] : memref<2x18x18x8xf32, #tpu.memory_space<vmem>>, vector<2x1x16x4xf32>
    tpu.vector_store %arg10[%c0_368, %c10_369, %c1_370, %c4_371], %214 {strides = array<i32>} : memref<2x18x18x8xf32, #tpu.memory_space<vmem>>, vector<2x1x16x4xf32>,
    %c0_372 = arith.constant 0 : index
    %c4_373 = arith.constant 4 : index
    %c0_374 = arith.constant 0 : index
    %c0_375 = arith.constant 0 : index
    %216 = vector.load %arg9[%c0_372, %c4_373, %c0_374, %c0_375] : memref<2x8x16x4xf32, #tpu.memory_space<vmem>>, vector<2x1x16x4xf32>
    %cst_376 = arith.constant 0.333333343 : f32
    %217 = vector.broadcast %cst_376 : f32 to vector<2x1x16x4xf32>
    %218 = arith.mulf %216, %217 : vector<2x1x16x4xf32>
    %c0_377 = arith.constant 0 : index
    %c5_378 = arith.constant 5 : index
    %c0_379 = arith.constant 0 : index
    %c0_380 = arith.constant 0 : index
    %219 = vector.load %arg9[%c0_377, %c5_378, %c0_379, %c0_380] : memref<2x8x16x4xf32, #tpu.memory_space<vmem>>, vector<2x1x16x4xf32>
    %cst_381 = arith.constant 0.666666686 : f32
    %220 = vector.broadcast %cst_381 : f32 to vector<2x1x16x4xf32>
    %221 = arith.mulf %219, %220 : vector<2x1x16x4xf32>
    %222 = arith.addf %218, %221 : vector<2x1x16x4xf32>
    %c0_382 = arith.constant 0 : index
    %c11_383 = arith.constant 11 : index
    %c1_384 = arith.constant 1 : index
    %c4_385 = arith.constant 4 : index
    %223 = vector.load %arg10[%c0_382, %c11_383, %c1_384, %c4_385] : memref<2x18x18x8xf32, #tpu.memory_space<vmem>>, vector<2x1x16x4xf32>
    tpu.vector_store %arg10[%c0_382, %c11_383, %c1_384, %c4_385], %222 {strides = array<i32>} : memref<2x18x18x8xf32, #tpu.memory_space<vmem>>, vector<2x1x16x4xf32>,
    %c0_386 = arith.constant 0 : index
    %c5_387 = arith.constant 5 : index
    %c0_388 = arith.constant 0 : index
    %c0_389 = arith.constant 0 : index
    %224 = vector.load %arg9[%c0_386, %c5_387, %c0_388, %c0_389] : memref<2x8x16x4xf32, #tpu.memory_space<vmem>>, vector<2x1x16x4xf32>
    %cst_390 = arith.constant 0.866666674 : f32
    %225 = vector.broadcast %cst_390 : f32 to vector<2x1x16x4xf32>
    %226 = arith.mulf %224, %225 : vector<2x1x16x4xf32>
    %c0_391 = arith.constant 0 : index
    %c6_392 = arith.constant 6 : index
    %c0_393 = arith.constant 0 : index
    %c0_394 = arith.constant 0 : index
    %227 = vector.load %arg9[%c0_391, %c6_392, %c0_393, %c0_394] : memref<2x8x16x4xf32, #tpu.memory_space<vmem>>, vector<2x1x16x4xf32>
    %cst_395 = arith.constant 0.13333334 : f32
    %228 = vector.broadcast %cst_395 : f32 to vector<2x1x16x4xf32>
    %229 = arith.mulf %227, %228 : vector<2x1x16x4xf32>
    %230 = arith.addf %226, %229 : vector<2x1x16x4xf32>
    %c0_396 = arith.constant 0 : index
    %c12_397 = arith.constant 12 : index
    %c1_398 = arith.constant 1 : index
    %c4_399 = arith.constant 4 : index
    %231 = vector.load %arg10[%c0_396, %c12_397, %c1_398, %c4_399] : memref<2x18x18x8xf32, #tpu.memory_space<vmem>>, vector<2x1x16x4xf32>
    tpu.vector_store %arg10[%c0_396, %c12_397, %c1_398, %c4_399], %230 {strides = array<i32>} : memref<2x18x18x8xf32, #tpu.memory_space<vmem>>, vector<2x1x16x4xf32>,
    %c0_400 = arith.constant 0 : index
    %c5_401 = arith.constant 5 : index
    %c0_402 = arith.constant 0 : index
    %c0_403 = arith.constant 0 : index
    %232 = vector.load %arg9[%c0_400, %c5_401, %c0_402, %c0_403] : memref<2x8x16x4xf32, #tpu.memory_space<vmem>>, vector<2x1x16x4xf32>
    %cst_404 = arith.constant 4.000000e-01 : f32
    %233 = vector.broadcast %cst_404 : f32 to vector<2x1x16x4xf32>
    %234 = arith.mulf %232, %233 : vector<2x1x16x4xf32>
    %c0_405 = arith.constant 0 : index
    %c6_406 = arith.constant 6 : index
    %c0_407 = arith.constant 0 : index
    %c0_408 = arith.constant 0 : index
    %235 = vector.load %arg9[%c0_405, %c6_406, %c0_407, %c0_408] : memref<2x8x16x4xf32, #tpu.memory_space<vmem>>, vector<2x1x16x4xf32>
    %cst_409 = arith.constant 6.000000e-01 : f32
    %236 = vector.broadcast %cst_409 : f32 to vector<2x1x16x4xf32>
    %237 = arith.mulf %235, %236 : vector<2x1x16x4xf32>
    %238 = arith.addf %234, %237 : vector<2x1x16x4xf32>
    %c0_410 = arith.constant 0 : index
    %c13_411 = arith.constant 13 : index
    %c1_412 = arith.constant 1 : index
    %c4_413 = arith.constant 4 : index
    %239 = vector.load %arg10[%c0_410, %c13_411, %c1_412, %c4_413] : memref<2x18x18x8xf32, #tpu.memory_space<vmem>>, vector<2x1x16x4xf32>
    tpu.vector_store %arg10[%c0_410, %c13_411, %c1_412, %c4_413], %238 {strides = array<i32>} : memref<2x18x18x8xf32, #tpu.memory_space<vmem>>, vector<2x1x16x4xf32>,
    %c0_414 = arith.constant 0 : index
    %c6_415 = arith.constant 6 : index
    %c0_416 = arith.constant 0 : index
    %c0_417 = arith.constant 0 : index
    %240 = vector.load %arg9[%c0_414, %c6_415, %c0_416, %c0_417] : memref<2x8x16x4xf32, #tpu.memory_space<vmem>>, vector<2x1x16x4xf32>
    %cst_418 = arith.constant 0.933333337 : f32
    %241 = vector.broadcast %cst_418 : f32 to vector<2x1x16x4xf32>
    %242 = arith.mulf %240, %241 : vector<2x1x16x4xf32>
    %c0_419 = arith.constant 0 : index
    %c7_420 = arith.constant 7 : index
    %c0_421 = arith.constant 0 : index
    %c0_422 = arith.constant 0 : index
    %243 = vector.load %arg9[%c0_419, %c7_420, %c0_421, %c0_422] : memref<2x8x16x4xf32, #tpu.memory_space<vmem>>, vector<2x1x16x4xf32>
    %cst_423 = arith.constant 0.0666666701 : f32
    %244 = vector.broadcast %cst_423 : f32 to vector<2x1x16x4xf32>
    %245 = arith.mulf %243, %244 : vector<2x1x16x4xf32>
    %246 = arith.addf %242, %245 : vector<2x1x16x4xf32>
    %c0_424 = arith.constant 0 : index
    %c14_425 = arith.constant 14 : index
    %c1_426 = arith.constant 1 : index
    %c4_427 = arith.constant 4 : index
    %247 = vector.load %arg10[%c0_424, %c14_425, %c1_426, %c4_427] : memref<2x18x18x8xf32, #tpu.memory_space<vmem>>, vector<2x1x16x4xf32>
    tpu.vector_store %arg10[%c0_424, %c14_425, %c1_426, %c4_427], %246 {strides = array<i32>} : memref<2x18x18x8xf32, #tpu.memory_space<vmem>>, vector<2x1x16x4xf32>,
    %c0_428 = arith.constant 0 : index
    %c6_429 = arith.constant 6 : index
    %c0_430 = arith.constant 0 : index
    %c0_431 = arith.constant 0 : index
    %248 = vector.load %arg9[%c0_428, %c6_429, %c0_430, %c0_431] : memref<2x8x16x4xf32, #tpu.memory_space<vmem>>, vector<2x1x16x4xf32>
    %cst_432 = arith.constant 0.466666669 : f32
    %249 = vector.broadcast %cst_432 : f32 to vector<2x1x16x4xf32>
    %250 = arith.mulf %248, %249 : vector<2x1x16x4xf32>
    %c0_433 = arith.constant 0 : index
    %c7_434 = arith.constant 7 : index
    %c0_435 = arith.constant 0 : index
    %c0_436 = arith.constant 0 : index
    %251 = vector.load %arg9[%c0_433, %c7_434, %c0_435, %c0_436] : memref<2x8x16x4xf32, #tpu.memory_space<vmem>>, vector<2x1x16x4xf32>
    %cst_437 = arith.constant 0.533333361 : f32
    %252 = vector.broadcast %cst_437 : f32 to vector<2x1x16x4xf32>
    %253 = arith.mulf %251, %252 : vector<2x1x16x4xf32>
    %254 = arith.addf %250, %253 : vector<2x1x16x4xf32>
    %c0_438 = arith.constant 0 : index
    %c15_439 = arith.constant 15 : index
    %c1_440 = arith.constant 1 : index
    %c4_441 = arith.constant 4 : index
    %255 = vector.load %arg10[%c0_438, %c15_439, %c1_440, %c4_441] : memref<2x18x18x8xf32, #tpu.memory_space<vmem>>, vector<2x1x16x4xf32>
    tpu.vector_store %arg10[%c0_438, %c15_439, %c1_440, %c4_441], %254 {strides = array<i32>} : memref<2x18x18x8xf32, #tpu.memory_space<vmem>>, vector<2x1x16x4xf32>,
    %c0_442 = arith.constant 0 : index
    %c7_443 = arith.constant 7 : index
    %c0_444 = arith.constant 0 : index
    %c0_445 = arith.constant 0 : index
    %256 = vector.load %arg9[%c0_442, %c7_443, %c0_444, %c0_445] : memref<2x8x16x4xf32, #tpu.memory_space<vmem>>, vector<2x1x16x4xf32>
    %cst_446 = arith.constant 1.000000e+00 : f32
    %257 = vector.broadcast %cst_446 : f32 to vector<2x1x16x4xf32>
    %258 = arith.mulf %256, %257 : vector<2x1x16x4xf32>
    %c0_447 = arith.constant 0 : index
    %c7_448 = arith.constant 7 : index
    %c0_449 = arith.constant 0 : index
    %c0_450 = arith.constant 0 : index
    %259 = vector.load %arg9[%c0_447, %c7_448, %c0_449, %c0_450] : memref<2x8x16x4xf32, #tpu.memory_space<vmem>>, vector<2x1x16x4xf32>
    %cst_451 = arith.constant 0.000000e+00 : f32
    %260 = vector.broadcast %cst_451 : f32 to vector<2x1x16x4xf32>
    %261 = arith.mulf %259, %260 : vector<2x1x16x4xf32>
    %262 = arith.addf %258, %261 : vector<2x1x16x4xf32>
    %c0_452 = arith.constant 0 : index
    %c16 = arith.constant 16 : index
    %c1_453 = arith.constant 1 : index
    %c4_454 = arith.constant 4 : index
    %263 = vector.load %arg10[%c0_452, %c16, %c1_453, %c4_454] : memref<2x18x18x8xf32, #tpu.memory_space<vmem>>, vector<2x1x16x4xf32>
    tpu.vector_store %arg10[%c0_452, %c16, %c1_453, %c4_454], %262 {strides = array<i32>} : memref<2x18x18x8xf32, #tpu.memory_space<vmem>>, vector<2x1x16x4xf32>,
    %c0_455 = arith.constant 0 : index
    %c0_456 = arith.constant 0 : index
    %c0_457 = arith.constant 0 : index
    %c0_458 = arith.constant 0 : index
    %264 = vector.load %arg10[%c0_455, %c0_456, %c0_457, %c0_458] : memref<2x18x18x8xf32, #tpu.memory_space<vmem>>, vector<2x16x16x8xf32>
    %265 = vector.shape_cast %264 : vector<2x16x16x8xf32> to vector<512x8xf32>
    %c0_459 = arith.constant 0 : index
    %c0_460 = arith.constant 0 : index
    %266 = vector.load %arg11[%c0_459, %c0_460] : memref<512x72xf32, #tpu.memory_space<vmem>>, vector<512x8xf32>
    tpu.vector_store %arg11[%c0_459, %c0_460], %265 {strides = array<i32>} : memref<512x72xf32, #tpu.memory_space<vmem>>, vector<512x8xf32>,
    %c0_461 = arith.constant 0 : index
    %c0_462 = arith.constant 0 : index
    %c1_463 = arith.constant 1 : index
    %c0_464 = arith.constant 0 : index
    %267 = vector.load %arg10[%c0_461, %c0_462, %c1_463, %c0_464] : memref<2x18x18x8xf32, #tpu.memory_space<vmem>>, vector<2x16x16x8xf32>
    %268 = vector.shape_cast %267 : vector<2x16x16x8xf32> to vector<512x8xf32>
    %c0_465 = arith.constant 0 : index
    %c8_466 = arith.constant 8 : index
    %269 = vector.load %arg11[%c0_465, %c8_466] : memref<512x72xf32, #tpu.memory_space<vmem>>, vector<512x8xf32>
    tpu.vector_store %arg11[%c0_465, %c8_466], %268 {strides = array<i32>} : memref<512x72xf32, #tpu.memory_space<vmem>>, vector<512x8xf32>,
    %c0_467 = arith.constant 0 : index
    %c0_468 = arith.constant 0 : index
    %c2_469 = arith.constant 2 : index
    %c0_470 = arith.constant 0 : index
    %270 = vector.load %arg10[%c0_467, %c0_468, %c2_469, %c0_470] : memref<2x18x18x8xf32, #tpu.memory_space<vmem>>, vector<2x16x16x8xf32>
    %271 = vector.shape_cast %270 : vector<2x16x16x8xf32> to vector<512x8xf32>
    %c0_471 = arith.constant 0 : index
    %c16_472 = arith.constant 16 : index
    %272 = vector.load %arg11[%c0_471, %c16_472] : memref<512x72xf32, #tpu.memory_space<vmem>>, vector<512x8xf32>
    tpu.vector_store %arg11[%c0_471, %c16_472], %271 {strides = array<i32>} : memref<512x72xf32, #tpu.memory_space<vmem>>, vector<512x8xf32>,
    %c0_473 = arith.constant 0 : index
    %c1_474 = arith.constant 1 : index
    %c0_475 = arith.constant 0 : index
    %c0_476 = arith.constant 0 : index
    %273 = vector.load %arg10[%c0_473, %c1_474, %c0_475, %c0_476] : memref<2x18x18x8xf32, #tpu.memory_space<vmem>>, vector<2x16x16x8xf32>
    %274 = vector.shape_cast %273 : vector<2x16x16x8xf32> to vector<512x8xf32>
    %c0_477 = arith.constant 0 : index
    %c24 = arith.constant 24 : index
    %275 = vector.load %arg11[%c0_477, %c24] : memref<512x72xf32, #tpu.memory_space<vmem>>, vector<512x8xf32>
    tpu.vector_store %arg11[%c0_477, %c24], %274 {strides = array<i32>} : memref<512x72xf32, #tpu.memory_space<vmem>>, vector<512x8xf32>,
    %c0_478 = arith.constant 0 : index
    %c1_479 = arith.constant 1 : index
    %c1_480 = arith.constant 1 : index
    %c0_481 = arith.constant 0 : index
    %276 = vector.load %arg10[%c0_478, %c1_479, %c1_480, %c0_481] : memref<2x18x18x8xf32, #tpu.memory_space<vmem>>, vector<2x16x16x8xf32>
    %277 = vector.shape_cast %276 : vector<2x16x16x8xf32> to vector<512x8xf32>
    %c0_482 = arith.constant 0 : index
    %c32 = arith.constant 32 : index
    %278 = vector.load %arg11[%c0_482, %c32] : memref<512x72xf32, #tpu.memory_space<vmem>>, vector<512x8xf32>
    tpu.vector_store %arg11[%c0_482, %c32], %277 {strides = array<i32>} : memref<512x72xf32, #tpu.memory_space<vmem>>, vector<512x8xf32>,
    %c0_483 = arith.constant 0 : index
    %c1_484 = arith.constant 1 : index
    %c2_485 = arith.constant 2 : index
    %c0_486 = arith.constant 0 : index
    %279 = vector.load %arg10[%c0_483, %c1_484, %c2_485, %c0_486] : memref<2x18x18x8xf32, #tpu.memory_space<vmem>>, vector<2x16x16x8xf32>
    %280 = vector.shape_cast %279 : vector<2x16x16x8xf32> to vector<512x8xf32>
    %c0_487 = arith.constant 0 : index
    %c40 = arith.constant 40 : index
    %281 = vector.load %arg11[%c0_487, %c40] : memref<512x72xf32, #tpu.memory_space<vmem>>, vector<512x8xf32>
    tpu.vector_store %arg11[%c0_487, %c40], %280 {strides = array<i32>} : memref<512x72xf32, #tpu.memory_space<vmem>>, vector<512x8xf32>,
    %c0_488 = arith.constant 0 : index
    %c2_489 = arith.constant 2 : index
    %c0_490 = arith.constant 0 : index
    %c0_491 = arith.constant 0 : index
    %282 = vector.load %arg10[%c0_488, %c2_489, %c0_490, %c0_491] : memref<2x18x18x8xf32, #tpu.memory_space<vmem>>, vector<2x16x16x8xf32>
    %283 = vector.shape_cast %282 : vector<2x16x16x8xf32> to vector<512x8xf32>
    %c0_492 = arith.constant 0 : index
    %c48 = arith.constant 48 : index
    %284 = vector.load %arg11[%c0_492, %c48] : memref<512x72xf32, #tpu.memory_space<vmem>>, vector<512x8xf32>
    tpu.vector_store %arg11[%c0_492, %c48], %283 {strides = array<i32>} : memref<512x72xf32, #tpu.memory_space<vmem>>, vector<512x8xf32>,
    %c0_493 = arith.constant 0 : index
    %c2_494 = arith.constant 2 : index
    %c1_495 = arith.constant 1 : index
    %c0_496 = arith.constant 0 : index
    %285 = vector.load %arg10[%c0_493, %c2_494, %c1_495, %c0_496] : memref<2x18x18x8xf32, #tpu.memory_space<vmem>>, vector<2x16x16x8xf32>
    %286 = vector.shape_cast %285 : vector<2x16x16x8xf32> to vector<512x8xf32>
    %c0_497 = arith.constant 0 : index
    %c56 = arith.constant 56 : index
    %287 = vector.load %arg11[%c0_497, %c56] : memref<512x72xf32, #tpu.memory_space<vmem>>, vector<512x8xf32>
    tpu.vector_store %arg11[%c0_497, %c56], %286 {strides = array<i32>} : memref<512x72xf32, #tpu.memory_space<vmem>>, vector<512x8xf32>,
    %c0_498 = arith.constant 0 : index
    %c2_499 = arith.constant 2 : index
    %c2_500 = arith.constant 2 : index
    %c0_501 = arith.constant 0 : index
    %288 = vector.load %arg10[%c0_498, %c2_499, %c2_500, %c0_501] : memref<2x18x18x8xf32, #tpu.memory_space<vmem>>, vector<2x16x16x8xf32>
    %289 = vector.shape_cast %288 : vector<2x16x16x8xf32> to vector<512x8xf32>
    %c0_502 = arith.constant 0 : index
    %c64 = arith.constant 64 : index
    %290 = vector.load %arg11[%c0_502, %c64] : memref<512x72xf32, #tpu.memory_space<vmem>>, vector<512x8xf32>
    tpu.vector_store %arg11[%c0_502, %c64], %289 {strides = array<i32>} : memref<512x72xf32, #tpu.memory_space<vmem>>, vector<512x8xf32>,
    %c0_503 = arith.constant 0 : index
    %c0_504 = arith.constant 0 : index
    %291 = vector.load %arg11[%c0_503, %c0_504] : memref<512x72xf32, #tpu.memory_space<vmem>>, vector<512x72xf32>
    %c0_505 = arith.constant 0 : index
    %c0_506 = arith.constant 0 : index
    %292 = vector.load %arg2[%c0_505, %c0_506] : memref<72x4xf32, #tpu.memory_space<vmem>>, vector<72x4xf32>
    %cst_507 = arith.constant dense<0.000000e+00> : vector<512x4xf32>
    %293 = tpu.matmul %291, %292, %cst_507 {dimension_numbers = #tpu.dot_dimension_numbers<[1], [0], [0], [1], [0, 0, 1, 1], [], []>} : vector<512x72xf32>, vector<72x4xf32>, vector<512x4xf32> -> vector<512x4xf32>
    %c0_508 = arith.constant 0 : index
    %c0_509 = arith.constant 0 : index
    %294 = vector.load %arg3[%c0_508, %c0_509] : memref<1x4xf32, #tpu.memory_space<vmem>>, vector<1x4xf32>
    %c0_510 = arith.constant 0 : index
    %c0_511 = arith.constant 0 : index
    %295 = vector.load %arg4[%c0_510, %c0_511] : memref<1x4xf32, #tpu.memory_space<vmem>>, vector<1x4xf32>
    %cst_512 = arith.constant dense<0.000000e+00> : vector<4xf32>
    %296 = vector.multi_reduction <add>, %293, %cst_512 [0] : vector<512x4xf32> to vector<4xf32>
    %297 = vector.shape_cast %296 : vector<4xf32> to vector<1x4xf32>
    %298 = arith.mulf %293, %293 : vector<512x4xf32>
    %cst_513 = arith.constant dense<0.000000e+00> : vector<4xf32>
    %299 = vector.multi_reduction <add>, %298, %cst_513 [0] : vector<512x4xf32> to vector<4xf32>
    %300 = vector.shape_cast %299 : vector<4xf32> to vector<1x4xf32>
    %cst_514 = arith.constant 0.001953125 : f32
    %301 = vector.broadcast %cst_514 : f32 to vector<1x4xf32>
    %302 = arith.mulf %297, %301 : vector<1x4xf32>
    %cst_515 = arith.constant 0.001953125 : f32
    %303 = vector.broadcast %cst_515 : f32 to vector<1x4xf32>
    %304 = arith.mulf %300, %303 : vector<1x4xf32>
    %305 = arith.mulf %302, %302 : vector<1x4xf32>
    %306 = arith.subf %304, %305 : vector<1x4xf32>
    %cst_516 = arith.constant 9.99999974E-6 : f32
    %307 = vector.broadcast %cst_516 : f32 to vector<1x4xf32>
    %308 = arith.addf %306, %307 : vector<1x4xf32>
    %309 = math.rsqrt %308 : vector<1x4xf32>
    %310 = arith.mulf %294, %309 : vector<1x4xf32>
    %311 = arith.mulf %302, %310 : vector<1x4xf32>
    %312 = arith.subf %295, %311 : vector<1x4xf32>
    %313 = vector.broadcast %310 : vector<1x4xf32> to vector<512x4xf32>
    %314 = arith.mulf %293, %313 : vector<512x4xf32>
    %315 = vector.broadcast %312 : vector<1x4xf32> to vector<512x4xf32>
    %316 = arith.addf %314, %315 : vector<512x4xf32>
    %cst_517 = arith.constant 0.000000e+00 : f32
    %317 = vector.broadcast %cst_517 : f32 to vector<512x4xf32>
    %318 = arith.maximumf %316, %317 : vector<512x4xf32>
    %319 = vector.shape_cast %318 : vector<512x4xf32> to vector<2x16x16x4xf32>
    %c0_518 = arith.constant 0 : index
    %c1_519 = arith.constant 1 : index
    %c1_520 = arith.constant 1 : index
    %c0_521 = arith.constant 0 : index
    %320 = vector.load %arg10[%c0_518, %c1_519, %c1_520, %c0_521] : memref<2x18x18x8xf32, #tpu.memory_space<vmem>>, vector<2x16x16x4xf32>
    tpu.vector_store %arg10[%c0_518, %c1_519, %c1_520, %c0_521], %319 {strides = array<i32>} : memref<2x18x18x8xf32, #tpu.memory_space<vmem>>, vector<2x16x16x4xf32>,
    %c0_522 = arith.constant 0 : index
    %c0_523 = arith.constant 0 : index
    %c0_524 = arith.constant 0 : index
    %c0_525 = arith.constant 0 : index
    %321 = vector.load %arg10[%c0_522, %c0_523, %c0_524, %c0_525] : memref<2x18x18x8xf32, #tpu.memory_space<vmem>>, vector<2x16x16x4xf32>
    %322 = vector.shape_cast %321 : vector<2x16x16x4xf32> to vector<512x4xf32>
    %c0_526 = arith.constant 0 : index
    %c0_527 = arith.constant 0 : index
    %323 = vector.load %arg11[%c0_526, %c0_527] : memref<512x72xf32, #tpu.memory_space<vmem>>, vector<512x4xf32>
    tpu.vector_store %arg11[%c0_526, %c0_527], %322 {strides = array<i32>} : memref<512x72xf32, #tpu.memory_space<vmem>>, vector<512x4xf32>,
    %c0_528 = arith.constant 0 : index
    %c0_529 = arith.constant 0 : index
    %c1_530 = arith.constant 1 : index
    %c0_531 = arith.constant 0 : index
    %324 = vector.load %arg10[%c0_528, %c0_529, %c1_530, %c0_531] : memref<2x18x18x8xf32, #tpu.memory_space<vmem>>, vector<2x16x16x4xf32>
    %325 = vector.shape_cast %324 : vector<2x16x16x4xf32> to vector<512x4xf32>
    %c0_532 = arith.constant 0 : index
    %c4_533 = arith.constant 4 : index
    %326 = vector.load %arg11[%c0_532, %c4_533] : memref<512x72xf32, #tpu.memory_space<vmem>>, vector<512x4xf32>
    tpu.vector_store %arg11[%c0_532, %c4_533], %325 {strides = array<i32>} : memref<512x72xf32, #tpu.memory_space<vmem>>, vector<512x4xf32>,
    %c0_534 = arith.constant 0 : index
    %c0_535 = arith.constant 0 : index
    %c2_536 = arith.constant 2 : index
    %c0_537 = arith.constant 0 : index
    %327 = vector.load %arg10[%c0_534, %c0_535, %c2_536, %c0_537] : memref<2x18x18x8xf32, #tpu.memory_space<vmem>>, vector<2x16x16x4xf32>
    %328 = vector.shape_cast %327 : vector<2x16x16x4xf32> to vector<512x4xf32>
    %c0_538 = arith.constant 0 : index
    %c8_539 = arith.constant 8 : index
    %329 = vector.load %arg11[%c0_538, %c8_539] : memref<512x72xf32, #tpu.memory_space<vmem>>, vector<512x4xf32>
    tpu.vector_store %arg11[%c0_538, %c8_539], %328 {strides = array<i32>} : memref<512x72xf32, #tpu.memory_space<vmem>>, vector<512x4xf32>,
    %c0_540 = arith.constant 0 : index
    %c1_541 = arith.constant 1 : index
    %c0_542 = arith.constant 0 : index
    %c0_543 = arith.constant 0 : index
    %330 = vector.load %arg10[%c0_540, %c1_541, %c0_542, %c0_543] : memref<2x18x18x8xf32, #tpu.memory_space<vmem>>, vector<2x16x16x4xf32>
    %331 = vector.shape_cast %330 : vector<2x16x16x4xf32> to vector<512x4xf32>
    %c0_544 = arith.constant 0 : index
    %c12_545 = arith.constant 12 : index
    %332 = vector.load %arg11[%c0_544, %c12_545] : memref<512x72xf32, #tpu.memory_space<vmem>>, vector<512x4xf32>
    tpu.vector_store %arg11[%c0_544, %c12_545], %331 {strides = array<i32>} : memref<512x72xf32, #tpu.memory_space<vmem>>, vector<512x4xf32>,
    %c0_546 = arith.constant 0 : index
    %c1_547 = arith.constant 1 : index
    %c1_548 = arith.constant 1 : index
    %c0_549 = arith.constant 0 : index
    %333 = vector.load %arg10[%c0_546, %c1_547, %c1_548, %c0_549] : memref<2x18x18x8xf32, #tpu.memory_space<vmem>>, vector<2x16x16x4xf32>
    %334 = vector.shape_cast %333 : vector<2x16x16x4xf32> to vector<512x4xf32>
    %c0_550 = arith.constant 0 : index
    %c16_551 = arith.constant 16 : index
    %335 = vector.load %arg11[%c0_550, %c16_551] : memref<512x72xf32, #tpu.memory_space<vmem>>, vector<512x4xf32>
    tpu.vector_store %arg11[%c0_550, %c16_551], %334 {strides = array<i32>} : memref<512x72xf32, #tpu.memory_space<vmem>>, vector<512x4xf32>,
    %c0_552 = arith.constant 0 : index
    %c1_553 = arith.constant 1 : index
    %c2_554 = arith.constant 2 : index
    %c0_555 = arith.constant 0 : index
    %336 = vector.load %arg10[%c0_552, %c1_553, %c2_554, %c0_555] : memref<2x18x18x8xf32, #tpu.memory_space<vmem>>, vector<2x16x16x4xf32>
    %337 = vector.shape_cast %336 : vector<2x16x16x4xf32> to vector<512x4xf32>
    %c0_556 = arith.constant 0 : index
    %c20 = arith.constant 20 : index
    %338 = vector.load %arg11[%c0_556, %c20] : memref<512x72xf32, #tpu.memory_space<vmem>>, vector<512x4xf32>
    tpu.vector_store %arg11[%c0_556, %c20], %337 {strides = array<i32>} : memref<512x72xf32, #tpu.memory_space<vmem>>, vector<512x4xf32>,
    %c0_557 = arith.constant 0 : index
    %c2_558 = arith.constant 2 : index
    %c0_559 = arith.constant 0 : index
    %c0_560 = arith.constant 0 : index
    %339 = vector.load %arg10[%c0_557, %c2_558, %c0_559, %c0_560] : memref<2x18x18x8xf32, #tpu.memory_space<vmem>>, vector<2x16x16x4xf32>
    %340 = vector.shape_cast %339 : vector<2x16x16x4xf32> to vector<512x4xf32>
    %c0_561 = arith.constant 0 : index
    %c24_562 = arith.constant 24 : index
    %341 = vector.load %arg11[%c0_561, %c24_562] : memref<512x72xf32, #tpu.memory_space<vmem>>, vector<512x4xf32>
    tpu.vector_store %arg11[%c0_561, %c24_562], %340 {strides = array<i32>} : memref<512x72xf32, #tpu.memory_space<vmem>>, vector<512x4xf32>,
    %c0_563 = arith.constant 0 : index
    %c2_564 = arith.constant 2 : index
    %c1_565 = arith.constant 1 : index
    %c0_566 = arith.constant 0 : index
    %342 = vector.load %arg10[%c0_563, %c2_564, %c1_565, %c0_566] : memref<2x18x18x8xf32, #tpu.memory_space<vmem>>, vector<2x16x16x4xf32>
    %343 = vector.shape_cast %342 : vector<2x16x16x4xf32> to vector<512x4xf32>
    %c0_567 = arith.constant 0 : index
    %c28 = arith.constant 28 : index
    %344 = vector.load %arg11[%c0_567, %c28] : memref<512x72xf32, #tpu.memory_space<vmem>>, vector<512x4xf32>
    tpu.vector_store %arg11[%c0_567, %c28], %343 {strides = array<i32>} : memref<512x72xf32, #tpu.memory_space<vmem>>, vector<512x4xf32>,
    %c0_568 = arith.constant 0 : index
    %c2_569 = arith.constant 2 : index
    %c2_570 = arith.constant 2 : index
    %c0_571 = arith.constant 0 : index
    %345 = vector.load %arg10[%c0_568, %c2_569, %c2_570, %c0_571] : memref<2x18x18x8xf32, #tpu.memory_space<vmem>>, vector<2x16x16x4xf32>
    %346 = vector.shape_cast %345 : vector<2x16x16x4xf32> to vector<512x4xf32>
    %c0_572 = arith.constant 0 : index
    %c32_573 = arith.constant 32 : index
    %347 = vector.load %arg11[%c0_572, %c32_573] : memref<512x72xf32, #tpu.memory_space<vmem>>, vector<512x4xf32>
    tpu.vector_store %arg11[%c0_572, %c32_573], %346 {strides = array<i32>} : memref<512x72xf32, #tpu.memory_space<vmem>>, vector<512x4xf32>,
    %c0_574 = arith.constant 0 : index
    %c0_575 = arith.constant 0 : index
    %348 = vector.load %arg5[%c0_574, %c0_575] : memref<8x36xf32, #tpu.memory_space<vmem>>, vector<8x36xf32>
    %c0_576 = arith.constant 0 : index
    %c0_577 = arith.constant 0 : index
    %349 = vector.load %arg11[%c0_576, %c0_577] : memref<512x72xf32, #tpu.memory_space<vmem>>, vector<512x36xf32>
    %cst_578 = arith.constant dense<0.000000e+00> : vector<8x512xf32>
    %350 = tpu.matmul %348, %349, %cst_578 {dimension_numbers = #tpu.dot_dimension_numbers<[1], [1], [0], [0], [0, 0, 1, 0], [], []>} : vector<8x36xf32>, vector<512x36xf32>, vector<8x512xf32> -> vector<8x512xf32>
    %c0_579 = arith.constant 0 : index
    %c0_580 = arith.constant 0 : index
    %351 = vector.load %arg6[%c0_579, %c0_580] : memref<8x1xf32, #tpu.memory_space<vmem>>, vector<8x1xf32>
    %c0_581 = arith.constant 0 : index
    %c0_582 = arith.constant 0 : index
    %352 = vector.load %arg7[%c0_581, %c0_582] : memref<8x1xf32, #tpu.memory_space<vmem>>, vector<8x1xf32>
    %cst_583 = arith.constant dense<0.000000e+00> : vector<8xf32>
    %353 = vector.multi_reduction <add>, %350, %cst_583 [1] : vector<8x512xf32> to vector<8xf32>
    %354 = vector.shape_cast %353 : vector<8xf32> to vector<8x1xf32>
    %355 = arith.mulf %350, %350 : vector<8x512xf32>
    %cst_584 = arith.constant dense<0.000000e+00> : vector<8xf32>
    %356 = vector.multi_reduction <add>, %355, %cst_584 [1] : vector<8x512xf32> to vector<8xf32>
    %357 = vector.shape_cast %356 : vector<8xf32> to vector<8x1xf32>
    %cst_585 = arith.constant 0.001953125 : f32
    %358 = vector.broadcast %cst_585 : f32 to vector<8x1xf32>
    %359 = arith.mulf %354, %358 : vector<8x1xf32>
    %cst_586 = arith.constant 0.001953125 : f32
    %360 = vector.broadcast %cst_586 : f32 to vector<8x1xf32>
    %361 = arith.mulf %357, %360 : vector<8x1xf32>
    %362 = arith.mulf %359, %359 : vector<8x1xf32>
    %363 = arith.subf %361, %362 : vector<8x1xf32>
    %cst_587 = arith.constant 9.99999974E-6 : f32
    %364 = vector.broadcast %cst_587 : f32 to vector<8x1xf32>
    %365 = arith.addf %363, %364 : vector<8x1xf32>
    %366 = math.rsqrt %365 : vector<8x1xf32>
    %367 = arith.mulf %351, %366 : vector<8x1xf32>
    %368 = arith.mulf %359, %367 : vector<8x1xf32>
    %369 = arith.subf %352, %368 : vector<8x1xf32>
    %370 = vector.broadcast %367 : vector<8x1xf32> to vector<8x512xf32>
    %371 = arith.mulf %350, %370 : vector<8x512xf32>
    %372 = vector.broadcast %369 : vector<8x1xf32> to vector<8x512xf32>
    %373 = arith.addf %371, %372 : vector<8x512xf32>
    %cst_588 = arith.constant 0.000000e+00 : f32
    %374 = vector.broadcast %cst_588 : f32 to vector<8x512xf32>
    %375 = arith.maximumf %373, %374 : vector<8x512xf32>
    %c0_589 = arith.constant 0 : index
    %c0_590 = arith.constant 0 : index
    %376 = vector.load %arg8[%c0_589, %c0_590] : memref<8x512xf32, #tpu.memory_space<vmem>>, vector<8x512xf32>
    tpu.vector_store %arg8[%c0_589, %c0_590], %375 {strides = array<i32>} : memref<8x512xf32, #tpu.memory_space<vmem>>, vector<8x512xf32>,
    return
  }
}

</mosaic_0001>

<llo_original>
// kernel: up_forward.1
$region0: #{up_forward.1}
  #allocation0 [shape = 'u32[]', space=smem, size = 0x4, offset = 0x4, fixed_abs, tag = 'smem constant byte address 0x4 - core index']
  #allocation1 [shape = 'u32[72,128]{1,0:T(1,128)}', space=vmem, size = 0x9000, scoped, tag = 'internal scratch']
  #allocation2 [shape = 'f32[2,8,16,4]{3,2,1,0:T(8,128)}', space=vmem, size = 0x20000, scoped, tag = 'scratch operand']
  #allocation3 [shape = 'f32[2,18,18,8]{3,2,1,0:T(8,128)}', space=vmem, size = 0x6c000, scoped, tag = 'scratch operand']
  #allocation4 [shape = 'f32[512,72]{1,0:T(8,128)}', space=vmem, size = 0x40000, scoped, tag = 'scratch operand']
  %s0 = inlined_call_operand.vmem [shape: f32[2,16,16,4], index: 0, kind: input, shape index: {}]
  %s1 = inlined_call_operand.vmem [shape: f32[2,8,8,4], index: 1, kind: input, shape index: {}]
  %s2 = inlined_call_operand.vmem [shape: f32[72,4], index: 2, kind: input, shape index: {}]
  %s3 = inlined_call_operand.vmem [shape: f32[1,4], index: 3, kind: input, shape index: {}]
  %s4 = inlined_call_operand.vmem [shape: f32[1,4], index: 4, kind: input, shape index: {}]
  %s5 = inlined_call_operand.vmem [shape: f32[8,36], index: 5, kind: input, shape index: {}]
  %s6 = inlined_call_operand.vmem [shape: f32[8,1], index: 6, kind: input, shape index: {}]
  %s7 = inlined_call_operand.vmem [shape: f32[8,1], index: 7, kind: input, shape index: {}]
  %s8 = inlined_call_operand.vmem [shape: f32[8,512], index: 8, kind: output, shape index: {}]
  %s9 = sld [smem:[#allocation0]]
  $region42: #{up_forward.1} parent=0
    _
  %s11 = ssub.s32 1, %s9
  %s12 = scalar_select 0, %s11, %s9
  // Predicated region
  $region2: #{up_forward.1} parent=0 // pred_check
    _
  $region3: #{up_forward.1} parent=0 // pred_check_branch
    %14 = sbr.rel (0) target = $region5
  $region4: #{up_forward.1} parent=0 // pred_region
    _
  $region5: #{up_forward.1} parent=0 // pred_fallthru
    _
  // Predicated region
  $region6: #{up_forward.1} parent=0 // pred_check
    _
  $region7: #{up_forward.1} parent=0 // pred_check_branch
    %16 = sbr.rel (0) target = $region9
  $region8: #{up_forward.1} parent=0 // pred_region
    _
  $region9: #{up_forward.1} parent=0 // pred_fallthru
    _
  // Predicated region
  $region10: #{up_forward.1} parent=0 // pred_check
    _
  $region11: #{up_forward.1} parent=0 // pred_check_branch
    %18 = sbr.rel (0) target = $region13
  $region12: #{up_forward.1} parent=0 // pred_region
    _
  $region13: #{up_forward.1} parent=0 // pred_fallthru
    _
  // Predicated region
  $region14: #{up_forward.1} parent=0 // pred_check
    _
  $region15: #{up_forward.1} parent=0 // pred_check_branch
    %20 = sbr.rel (0) target = $region17
  $region16: #{up_forward.1} parent=0 // pred_region
    _
  $region17: #{up_forward.1} parent=0 // pred_fallthru
    _
  // Predicated region
  $region18: #{up_forward.1} parent=0 // pred_check
    _
  $region19: #{up_forward.1} parent=0 // pred_check_branch
    %22 = sbr.rel (0) target = $region21
  $region20: #{up_forward.1} parent=0 // pred_region
    _
  $region21: #{up_forward.1} parent=0 // pred_fallthru
    _
  // Predicated region
  $region22: #{up_forward.1} parent=0 // pred_check
    _
  $region23: #{up_forward.1} parent=0 // pred_check_branch
    %24 = sbr.rel (0) target = $region25
  $region24: #{up_forward.1} parent=0 // pred_region
    _
  $region25: #{up_forward.1} parent=0 // pred_fallthru
    _
  // Predicated region
  $region26: #{up_forward.1} parent=0 // pred_check
    _
  $region27: #{up_forward.1} parent=0 // pred_check_branch
    %26 = sbr.rel (0) target = $region29
  $region28: #{up_forward.1} parent=0 // pred_region
    _
  $region29: #{up_forward.1} parent=0 // pred_fallthru
    _
  // Predicated region
  $region30: #{up_forward.1} parent=0 // pred_check
    _
  $region31: #{up_forward.1} parent=0 // pred_check_branch
    %28 = sbr.rel (0) target = $region33
  $region32: #{up_forward.1} parent=0 // pred_region
    _
  $region33: #{up_forward.1} parent=0 // pred_fallthru
    _
  %vm29 = vcmask 64512
  %30 = vst.msk [vmem:[#allocation3] sm:$0xff] %vm29, 0.0
  %31 = vst.msk [vmem:[#allocation3 + $0x8] sm:$0xff] %vm29, 0.0
  %vm32 = vcmask 58368
  %33 = vst.msk [vmem:[#allocation3 + $0x10] sm:$0x3] %vm32, 0.0
  %34 = vst.msk [vmem:[#allocation3 + $0x1b0] sm:$0xff] %vm29, 0.0
  %35 = vst.msk [vmem:[#allocation3 + $0x1b8] sm:$0xff] %vm29, 0.0
  %36 = vst.msk [vmem:[#allocation3 + $0x1c0] sm:$0x3] %vm32, 0.0
  %s37 = scalar_lea.vmem [#allocation3], 408
  %38 = vst.msk [vmem:[%s37] sm:$0xff] %vm29, 0.0
  %39 = vst.msk [vmem:[%s37 + $0x8] sm:$0xff] %vm29, 0.0
  %40 = vst.msk [vmem:[%s37 + $0x10] sm:$0x3] %vm32, 0.0
  %41 = vst.msk [vmem:[%s37 + $0x1b0] sm:$0xff] %vm29, 0.0
  %42 = vst.msk [vmem:[%s37 + $0x1b8] sm:$0xff] %vm29, 0.0
  %43 = vst.msk [vmem:[%s37 + $0x1c0] sm:$0x3] %vm32, 0.0
  %vm44 = vcmask 57344
  %45 = vst.msk [vmem:[#allocation3] sm:$0x1] %vm44, 0.0
  %46 = vst.msk [vmem:[#allocation3 + $0x18] sm:$0x1] %vm44, 0.0
  %47 = vst.msk [vmem:[#allocation3 + $0x30] sm:$0x1] %vm44, 0.0
  %48 = vst.msk [vmem:[#allocation3 + $0x48] sm:$0x1] %vm44, 0.0
  %49 = vst.msk [vmem:[#allocation3 + $0x60] sm:$0x1] %vm44, 0.0
  %50 = vst.msk [vmem:[#allocation3 + $0x78] sm:$0x1] %vm44, 0.0
  %51 = vst.msk [vmem:[#allocation3 + $0x90] sm:$0x1] %vm44, 0.0
  %52 = vst.msk [vmem:[#allocation3 + $0xa8] sm:$0x1] %vm44, 0.0
  %53 = vst.msk [vmem:[#allocation3 + $0xc0] sm:$0x1] %vm44, 0.0
  %54 = vst.msk [vmem:[#allocation3 + $0xd8] sm:$0x1] %vm44, 0.0
  %55 = vst.msk [vmem:[#allocation3 + $0xf0] sm:$0x1] %vm44, 0.0
  %56 = vst.msk [vmem:[#allocation3 + $0x108] sm:$0x1] %vm44, 0.0
  %57 = vst.msk [vmem:[#allocation3 + $0x120] sm:$0x1] %vm44, 0.0
  %58 = vst.msk [vmem:[#allocation3 + $0x138] sm:$0x1] %vm44, 0.0
  %59 = vst.msk [vmem:[#allocation3 + $0x150] sm:$0x1] %vm44, 0.0
  %60 = vst.msk [vmem:[#allocation3 + $0x168] sm:$0x1] %vm44, 0.0
  %61 = vst.msk [vmem:[#allocation3 + $0x180] sm:$0x1] %vm44, 0.0
  %62 = vst.msk [vmem:[#allocation3 + $0x198] sm:$0x1] %vm44, 0.0
  %63 = vst.msk [vmem:[#allocation3 + $0x1b0] sm:$0x1] %vm44, 0.0
  %64 = vst.msk [vmem:[#allocation3 + $0x1c8] sm:$0x1] %vm44, 0.0
  %65 = vst.msk [vmem:[#allocation3 + $0x1e0] sm:$0x1] %vm44, 0.0
  %66 = vst.msk [vmem:[#allocation3 + $0x1f8] sm:$0x1] %vm44, 0.0
  %67 = vst.msk [vmem:[#allocation3 + $0x210] sm:$0x1] %vm44, 0.0
  %68 = vst.msk [vmem:[#allocation3 + $0x228] sm:$0x1] %vm44, 0.0
  %69 = vst.msk [vmem:[#allocation3 + $0x240] sm:$0x1] %vm44, 0.0
  %70 = vst.msk [vmem:[#allocation3 + $0x258] sm:$0x1] %vm44, 0.0
  %71 = vst.msk [vmem:[#allocation3 + $0x270] sm:$0x1] %vm44, 0.0
  %72 = vst.msk [vmem:[#allocation3 + $0x288] sm:$0x1] %vm44, 0.0
  %73 = vst.msk [vmem:[#allocation3 + $0x2a0] sm:$0x1] %vm44, 0.0
  %74 = vst.msk [vmem:[#allocation3 + $0x2b8] sm:$0x1] %vm44, 0.0
  %75 = vst.msk [vmem:[#allocation3 + $0x2d0] sm:$0x1] %vm44, 0.0
  %76 = vst.msk [vmem:[#allocation3 + $0x2e8] sm:$0x1] %vm44, 0.0
  %77 = vst.msk [vmem:[#allocation3 + $0x300] sm:$0x1] %vm44, 0.0
  %78 = vst.msk [vmem:[#allocation3 + $0x318] sm:$0x1] %vm44, 0.0
  %79 = vst.msk [vmem:[#allocation3 + $0x330] sm:$0x1] %vm44, 0.0
  %80 = vst.msk [vmem:[#allocation3 + $0x348] sm:$0x1] %vm44, 0.0
  %81 = vst.msk [vmem:[#allocation3 + $0x11] sm:$0x1] %vm44, 0.0
  %82 = vst.msk [vmem:[#allocation3 + $0x29] sm:$0x1] %vm44, 0.0
  %83 = vst.msk [vmem:[#allocation3 + $0x41] sm:$0x1] %vm44, 0.0
  %84 = vst.msk [vmem:[#allocation3 + $0x59] sm:$0x1] %vm44, 0.0
  %85 = vst.msk [vmem:[#allocation3 + $0x71] sm:$0x1] %vm44, 0.0
  %86 = vst.msk [vmem:[#allocation3 + $0x89] sm:$0x1] %vm44, 0.0
  %87 = vst.msk [vmem:[#allocation3 + $0xa1] sm:$0x1] %vm44, 0.0
  %88 = vst.msk [vmem:[#allocation3 + $0xb9] sm:$0x1] %vm44, 0.0
  %89 = vst.msk [vmem:[#allocation3 + $0xd1] sm:$0x1] %vm44, 0.0
  %90 = vst.msk [vmem:[#allocation3 + $0xe9] sm:$0x1] %vm44, 0.0
  %91 = vst.msk [vmem:[#allocation3 + $0x101] sm:$0x1] %vm44, 0.0
  %92 = vst.msk [vmem:[#allocation3 + $0x119] sm:$0x1] %vm44, 0.0
  %93 = vst.msk [vmem:[#allocation3 + $0x131] sm:$0x1] %vm44, 0.0
  %94 = vst.msk [vmem:[#allocation3 + $0x149] sm:$0x1] %vm44, 0.0
  %95 = vst.msk [vmem:[#allocation3 + $0x161] sm:$0x1] %vm44, 0.0
  %96 = vst.msk [vmem:[#allocation3 + $0x179] sm:$0x1] %vm44, 0.0
  %97 = vst.msk [vmem:[#allocation3 + $0x191] sm:$0x1] %vm44, 0.0
  %98 = vst.msk [vmem:[#allocation3 + $0x1a9] sm:$0x1] %vm44, 0.0
  %99 = vst.msk [vmem:[#allocation3 + $0x1c1] sm:$0x1] %vm44, 0.0
  %100 = vst.msk [vmem:[#allocation3 + $0x1d9] sm:$0x1] %vm44, 0.0
  %101 = vst.msk [vmem:[#allocation3 + $0x1f1] sm:$0x1] %vm44, 0.0
  %102 = vst.msk [vmem:[#allocation3 + $0x209] sm:$0x1] %vm44, 0.0
  %103 = vst.msk [vmem:[#allocation3 + $0x221] sm:$0x1] %vm44, 0.0
  %104 = vst.msk [vmem:[#allocation3 + $0x239] sm:$0x1] %vm44, 0.0
  %105 = vst.msk [vmem:[#allocation3 + $0x251] sm:$0x1] %vm44, 0.0
  %106 = vst.msk [vmem:[#allocation3 + $0x269] sm:$0x1] %vm44, 0.0
  %107 = vst.msk [vmem:[#allocation3 + $0x281] sm:$0x1] %vm44, 0.0
  %108 = vst.msk [vmem:[#allocation3 + $0x299] sm:$0x1] %vm44, 0.0
  %109 = vst.msk [vmem:[#allocation3 + $0x2b1] sm:$0x1] %vm44, 0.0
  %110 = vst.msk [vmem:[#allocation3 + $0x2c9] sm:$0x1] %vm44, 0.0
  %111 = vst.msk [vmem:[#allocation3 + $0x2e1] sm:$0x1] %vm44, 0.0
  %112 = vst.msk [vmem:[#allocation3 + $0x2f9] sm:$0x1] %vm44, 0.0
  %113 = vst.msk [vmem:[#allocation3 + $0x311] sm:$0x1] %vm44, 0.0
  %114 = vst.msk [vmem:[#allocation3 + $0x329] sm:$0x1] %vm44, 0.0
  %115 = vst.msk [vmem:[#allocation3 + $0x341] sm:$0x1] %vm44, 0.0
  %116 = vst.msk [vmem:[#allocation3 + $0x359] sm:$0x1] %vm44, 0.0
  %v117 = vld [vmem:[%s0] sm:$0xff]
  %v118 = vld [vmem:[%s0 + $0x8] sm:$0xff]
  %v119 = vld [vmem:[%s0 + $0x10] sm:$0xff]
  %v120 = vld [vmem:[%s0 + $0x18] sm:$0xff]
  %v121 = vld [vmem:[%s0 + $0x20] sm:$0xff]
  %v122 = vld [vmem:[%s0 + $0x28] sm:$0xff]
  %v123 = vld [vmem:[%s0 + $0x30] sm:$0xff]
  %v124 = vld [vmem:[%s0 + $0x38] sm:$0xff]
  %v125 = vld [vmem:[%s0 + $0x40] sm:$0xff]
  %v126 = vld [vmem:[%s0 + $0x48] sm:$0xff]
  %v127 = vld [vmem:[%s0 + $0x50] sm:$0xff]
  %v128 = vld [vmem:[%s0 + $0x58] sm:$0xff]
  %v129 = vld [vmem:[%s0 + $0x60] sm:$0xff]
  %v130 = vld [vmem:[%s0 + $0x68] sm:$0xff]
  %v131 = vld [vmem:[%s0 + $0x70] sm:$0xff]
  %v132 = vld [vmem:[%s0 + $0x78] sm:$0xff]
  %v133 = vld [vmem:[%s0 + $0x80] sm:$0xff]
  %v134 = vld [vmem:[%s0 + $0x88] sm:$0xff]
  %v135 = vld [vmem:[%s0 + $0x90] sm:$0xff]
  %v136 = vld [vmem:[%s0 + $0x98] sm:$0xff]
  %v137 = vld [vmem:[%s0 + $0xa0] sm:$0xff]
  %v138 = vld [vmem:[%s0 + $0xa8] sm:$0xff]
  %v139 = vld [vmem:[%s0 + $0xb0] sm:$0xff]
  %v140 = vld [vmem:[%s0 + $0xb8] sm:$0xff]
  %v141 = vld [vmem:[%s0 + $0xc0] sm:$0xff]
  %v142 = vld [vmem:[%s0 + $0xc8] sm:$0xff]
  %v143 = vld [vmem:[%s0 + $0xd0] sm:$0xff]
  %v144 = vld [vmem:[%s0 + $0xd8] sm:$0xff]
  %v145 = vld [vmem:[%s0 + $0xe0] sm:$0xff]
  %v146 = vld [vmem:[%s0 + $0xe8] sm:$0xff]
  %v147 = vld [vmem:[%s0 + $0xf0] sm:$0xff]
  %v148 = vld [vmem:[%s0 + $0xf8] sm:$0xff]
  %v149 = vld [vmem:[%s0 + $0x100] sm:$0xff]
  %v150 = vld [vmem:[%s0 + $0x108] sm:$0xff]
  %v151 = vld [vmem:[%s0 + $0x110] sm:$0xff]
  %v152 = vld [vmem:[%s0 + $0x118] sm:$0xff]
  %v153 = vld [vmem:[%s0 + $0x120] sm:$0xff]
  %v154 = vld [vmem:[%s0 + $0x128] sm:$0xff]
  %v155 = vld [vmem:[%s0 + $0x130] sm:$0xff]
  %v156 = vld [vmem:[%s0 + $0x138] sm:$0xff]
  %v157 = vld [vmem:[%s0 + $0x140] sm:$0xff]
  %v158 = vld [vmem:[%s0 + $0x148] sm:$0xff]
  %v159 = vld [vmem:[%s0 + $0x150] sm:$0xff]
  %v160 = vld [vmem:[%s0 + $0x158] sm:$0xff]
  %v161 = vld [vmem:[%s0 + $0x160] sm:$0xff]
  %v162 = vld [vmem:[%s0 + $0x168] sm:$0xff]
  %v163 = vld [vmem:[%s0 + $0x170] sm:$0xff]
  %v164 = vld [vmem:[%s0 + $0x178] sm:$0xff]
  %v165 = vld [vmem:[%s0 + $0x180] sm:$0xff]
  %v166 = vld [vmem:[%s0 + $0x188] sm:$0xff]
  %v167 = vld [vmem:[%s0 + $0x190] sm:$0xff]
  %v168 = vld [vmem:[%s0 + $0x198] sm:$0xff]
  %v169 = vld [vmem:[%s0 + $0x1a0] sm:$0xff]
  %v170 = vld [vmem:[%s0 + $0x1a8] sm:$0xff]
  %v171 = vld [vmem:[%s0 + $0x1b0] sm:$0xff]
  %v172 = vld [vmem:[%s0 + $0x1b8] sm:$0xff]
  %v173 = vld [vmem:[%s0 + $0x1c0] sm:$0xff]
  %v174 = vld [vmem:[%s0 + $0x1c8] sm:$0xff]
  %v175 = vld [vmem:[%s0 + $0x1d0] sm:$0xff]
  %v176 = vld [vmem:[%s0 + $0x1d8] sm:$0xff]
  %v177 = vld [vmem:[%s0 + $0x1e0] sm:$0xff]
  %v178 = vld [vmem:[%s0 + $0x1e8] sm:$0xff]
  %v179 = vld [vmem:[%s0 + $0x1f0] sm:$0xff]
  %v180 = vld [vmem:[%s0 + $0x1f8] sm:$0xff]
  %s181 = scalar_lea.vmem [#allocation3], 24
  %vm182 = vcmask 31744
  %183 = vst.msk [vmem:[%s181 + $0x1] sm:$0xff] %vm182, %v117
  %184 = vst.msk [vmem:[%s181 + $0x9] sm:$0xff] %vm182, %v118
  %185 = vst.msk [vmem:[%s181 + $0x19] sm:$0xff] %vm182, %v119
  %186 = vst.msk [vmem:[%s181 + $0x21] sm:$0xff] %vm182, %v120
  %187 = vst.msk [vmem:[%s181 + $0x31] sm:$0xff] %vm182, %v121
  %188 = vst.msk [vmem:[%s181 + $0x39] sm:$0xff] %vm182, %v122
  %189 = vst.msk [vmem:[%s181 + $0x49] sm:$0xff] %vm182, %v123
  %190 = vst.msk [vmem:[%s181 + $0x51] sm:$0xff] %vm182, %v124
  %191 = vst.msk [vmem:[%s181 + $0x61] sm:$0xff] %vm182, %v125
  %192 = vst.msk [vmem:[%s181 + $0x69] sm:$0xff] %vm182, %v126
  %193 = vst.msk [vmem:[%s181 + $0x79] sm:$0xff] %vm182, %v127
  %194 = vst.msk [vmem:[%s181 + $0x81] sm:$0xff] %vm182, %v128
  %195 = vst.msk [vmem:[%s181 + $0x91] sm:$0xff] %vm182, %v129
  %196 = vst.msk [vmem:[%s181 + $0x99] sm:$0xff] %vm182, %v130
  %197 = vst.msk [vmem:[%s181 + $0xa9] sm:$0xff] %vm182, %v131
  %198 = vst.msk [vmem:[%s181 + $0xb1] sm:$0xff] %vm182, %v132
  %199 = vst.msk [vmem:[%s181 + $0xc1] sm:$0xff] %vm182, %v133
  %200 = vst.msk [vmem:[%s181 + $0xc9] sm:$0xff] %vm182, %v134
  %201 = vst.msk [vmem:[%s181 + $0xd9] sm:$0xff] %vm182, %v135
  %202 = vst.msk [vmem:[%s181 + $0xe1] sm:$0xff] %vm182, %v136
  %203 = vst.msk [vmem:[%s181 + $0xf1] sm:$0xff] %vm182, %v137
  %204 = vst.msk [vmem:[%s181 + $0xf9] sm:$0xff] %vm182, %v138
  %205 = vst.msk [vmem:[%s181 + $0x109] sm:$0xff] %vm182, %v139
  %206 = vst.msk [vmem:[%s181 + $0x111] sm:$0xff] %vm182, %v140
  %207 = vst.msk [vmem:[%s181 + $0x121] sm:$0xff] %vm182, %v141
  %208 = vst.msk [vmem:[%s181 + $0x129] sm:$0xff] %vm182, %v142
  %209 = vst.msk [vmem:[%s181 + $0x139] sm:$0xff] %vm182, %v143
  %210 = vst.msk [vmem:[%s181 + $0x141] sm:$0xff] %vm182, %v144
  %211 = vst.msk [vmem:[%s181 + $0x151] sm:$0xff] %vm182, %v145
  %212 = vst.msk [vmem:[%s181 + $0x159] sm:$0xff] %vm182, %v146
  %213 = vst.msk [vmem:[%s181 + $0x169] sm:$0xff] %vm182, %v147
  %214 = vst.msk [vmem:[%s181 + $0x171] sm:$0xff] %vm182, %v148
  %215 = vst.msk [vmem:[%s181 + $0x1b1] sm:$0xff] %vm182, %v149
  %216 = vst.msk [vmem:[%s181 + $0x1b9] sm:$0xff] %vm182, %v150
  %217 = vst.msk [vmem:[%s181 + $0x1c9] sm:$0xff] %vm182, %v151
  %218 = vst.msk [vmem:[%s181 + $0x1d1] sm:$0xff] %vm182, %v152
  %219 = vst.msk [vmem:[%s181 + $0x1e1] sm:$0xff] %vm182, %v153
  %220 = vst.msk [vmem:[%s181 + $0x1e9] sm:$0xff] %vm182, %v154
  %221 = vst.msk [vmem:[%s181 + $0x1f9] sm:$0xff] %vm182, %v155
  %222 = vst.msk [vmem:[%s181 + $0x201] sm:$0xff] %vm182, %v156
  %223 = vst.msk [vmem:[%s181 + $0x211] sm:$0xff] %vm182, %v157
  %224 = vst.msk [vmem:[%s181 + $0x219] sm:$0xff] %vm182, %v158
  %225 = vst.msk [vmem:[%s181 + $0x229] sm:$0xff] %vm182, %v159
  %226 = vst.msk [vmem:[%s181 + $0x231] sm:$0xff] %vm182, %v160
  %227 = vst.msk [vmem:[%s181 + $0x241] sm:$0xff] %vm182, %v161
  %228 = vst.msk [vmem:[%s181 + $0x249] sm:$0xff] %vm182, %v162
  %229 = vst.msk [vmem:[%s181 + $0x259] sm:$0xff] %vm182, %v163
  %230 = vst.msk [vmem:[%s181 + $0x261] sm:$0xff] %vm182, %v164
  %231 = vst.msk [vmem:[%s181 + $0x271] sm:$0xff] %vm182, %v165
  %232 = vst.msk [vmem:[%s181 + $0x279] sm:$0xff] %vm182, %v166
  %233 = vst.msk [vmem:[%s181 + $0x289] sm:$0xff] %vm182, %v167
  %234 = vst.msk [vmem:[%s181 + $0x291] sm:$0xff] %vm182, %v168
  %235 = vst.msk [vmem:[%s181 + $0x2a1] sm:$0xff] %vm182, %v169
  %236 = vst.msk [vmem:[%s181 + $0x2a9] sm:$0xff] %vm182, %v170
  %237 = vst.msk [vmem:[%s181 + $0x2b9] sm:$0xff] %vm182, %v171
  %238 = vst.msk [vmem:[%s181 + $0x2c1] sm:$0xff] %vm182, %v172
  %239 = vst.msk [vmem:[%s181 + $0x2d1] sm:$0xff] %vm182, %v173
  %240 = vst.msk [vmem:[%s181 + $0x2d9] sm:$0xff] %vm182, %v174
  %241 = vst.msk [vmem:[%s181 + $0x2e9] sm:$0xff] %vm182, %v175
  %242 = vst.msk [vmem:[%s181 + $0x2f1] sm:$0xff] %vm182, %v176
  %243 = vst.msk [vmem:[%s181 + $0x301] sm:$0xff] %vm182, %v177
  %244 = vst.msk [vmem:[%s181 + $0x309] sm:$0xff] %vm182, %v178
  %245 = vst.msk [vmem:[%s181 + $0x319] sm:$0xff] %vm182, %v179
  %246 = vst.msk [vmem:[%s181 + $0x321] sm:$0xff] %vm182, %v180
  %v247 = vld [vmem:[%s1] sm:$0x1]
  %v248 = vld [vmem:[%s1 + $0x8] sm:$0x1]
  %v249 = vld [vmem:[%s1 + $0x10] sm:$0x1]
  %v250 = vld [vmem:[%s1 + $0x18] sm:$0x1]
  %v251 = vld [vmem:[%s1 + $0x20] sm:$0x1]
  %v252 = vld [vmem:[%s1 + $0x28] sm:$0x1]
  %v253 = vld [vmem:[%s1 + $0x30] sm:$0x1]
  %v254 = vld [vmem:[%s1 + $0x38] sm:$0x1]
  %v255 = vld [vmem:[%s1 + $0x40] sm:$0x1]
  %v256 = vld [vmem:[%s1 + $0x48] sm:$0x1]
  %v257 = vld [vmem:[%s1 + $0x50] sm:$0x1]
  %v258 = vld [vmem:[%s1 + $0x58] sm:$0x1]
  %v259 = vld [vmem:[%s1 + $0x60] sm:$0x1]
  %v260 = vld [vmem:[%s1 + $0x68] sm:$0x1]
  %v261 = vld [vmem:[%s1 + $0x70] sm:$0x1]
  %v262 = vld [vmem:[%s1 + $0x78] sm:$0x1]
  %v263 = vld [vmem:[%s1 + $0x1] sm:$0x1]
  %v264 = vld [vmem:[%s1 + $0x9] sm:$0x1]
  %v265 = vld [vmem:[%s1 + $0x11] sm:$0x1]
  %v266 = vld [vmem:[%s1 + $0x19] sm:$0x1]
  %v267 = vld [vmem:[%s1 + $0x21] sm:$0x1]
  %v268 = vld [vmem:[%s1 + $0x29] sm:$0x1]
  %v269 = vld [vmem:[%s1 + $0x31] sm:$0x1]
  %v270 = vld [vmem:[%s1 + $0x39] sm:$0x1]
  %v271 = vld [vmem:[%s1 + $0x41] sm:$0x1]
  %v272 = vld [vmem:[%s1 + $0x49] sm:$0x1]
  %v273 = vld [vmem:[%s1 + $0x51] sm:$0x1]
  %v274 = vld [vmem:[%s1 + $0x59] sm:$0x1]
  %v275 = vld [vmem:[%s1 + $0x61] sm:$0x1]
  %v276 = vld [vmem:[%s1 + $0x69] sm:$0x1]
  %v277 = vld [vmem:[%s1 + $0x71] sm:$0x1]
  %v278 = vld [vmem:[%s1 + $0x79] sm:$0x1]
  %v279 = vmul.f32 %v263, 0.0
  %v280 = vmul.f32 %v264, 0.0
  %v281 = vmul.f32 %v265, 0.0
  %v282 = vmul.f32 %v266, 0.0
  %v283 = vmul.f32 %v267, 0.0
  %v284 = vmul.f32 %v268, 0.0
  %v285 = vmul.f32 %v269, 0.0
  %v286 = vmul.f32 %v270, 0.0
  %v287 = vmul.f32 %v271, 0.0
  %v288 = vmul.f32 %v272, 0.0
  %v289 = vmul.f32 %v273, 0.0
  %v290 = vmul.f32 %v274, 0.0
  %v291 = vmul.f32 %v275, 0.0
  %v292 = vmul.f32 %v276, 0.0
  %v293 = vmul.f32 %v277, 0.0
  %v294 = vmul.f32 %v278, 0.0
  %v295 = vadd.f32 %v247, %v279
  %v296 = vadd.f32 %v248, %v280
  %v297 = vadd.f32 %v249, %v281
  %v298 = vadd.f32 %v250, %v282
  %v299 = vadd.f32 %v251, %v283
  %v300 = vadd.f32 %v252, %v284
  %v301 = vadd.f32 %v253, %v285
  %v302 = vadd.f32 %v254, %v286
  %v303 = vadd.f32 %v255, %v287
  %v304 = vadd.f32 %v256, %v288
  %v305 = vadd.f32 %v257, %v289
  %v306 = vadd.f32 %v258, %v290
  %v307 = vadd.f32 %v259, %v291
  %v308 = vadd.f32 %v260, %v292
  %v309 = vadd.f32 %v261, %v293
  %v310 = vadd.f32 %v262, %v294
  %vm311 = vcmask 24576
  %312 = vst.msk [vmem:[#allocation2] sm:$0x1] %vm311, %v295
  %313 = vst.msk [vmem:[#allocation2 + $0x10] sm:$0x1] %vm311, %v296
  %314 = vst.msk [vmem:[#allocation2 + $0x20] sm:$0x1] %vm311, %v297
  %315 = vst.msk [vmem:[#allocation2 + $0x30] sm:$0x1] %vm311, %v298
  %316 = vst.msk [vmem:[#allocation2 + $0x40] sm:$0x1] %vm311, %v299
  %317 = vst.msk [vmem:[#allocation2 + $0x50] sm:$0x1] %vm311, %v300
  %318 = vst.msk [vmem:[#allocation2 + $0x60] sm:$0x1] %vm311, %v301
  %319 = vst.msk [vmem:[#allocation2 + $0x70] sm:$0x1] %vm311, %v302
  %320 = vst.msk [vmem:[#allocation2 + $0x80] sm:$0x1] %vm311, %v303
  %321 = vst.msk [vmem:[#allocation2 + $0x90] sm:$0x1] %vm311, %v304
  %322 = vst.msk [vmem:[#allocation2 + $0xa0] sm:$0x1] %vm311, %v305
  %323 = vst.msk [vmem:[#allocation2 + $0xb0] sm:$0x1] %vm311, %v306
  %324 = vst.msk [vmem:[#allocation2 + $0xc0] sm:$0x1] %vm311, %v307
  %325 = vst.msk [vmem:[#allocation2 + $0xd0] sm:$0x1] %vm311, %v308
  %326 = vst.msk [vmem:[#allocation2 + $0xe0] sm:$0x1] %vm311, %v309
  %327 = vst.msk [vmem:[#allocation2 + $0xf0] sm:$0x1] %vm311, %v310
  %v328 = vld [vmem:[%s1] sm:$0x1]
  %v329 = vld [vmem:[%s1 + $0x8] sm:$0x1]
  %v330 = vld [vmem:[%s1 + $0x10] sm:$0x1]
  %v331 = vld [vmem:[%s1 + $0x18] sm:$0x1]
  %v332 = vld [vmem:[%s1 + $0x20] sm:$0x1]
  %v333 = vld [vmem:[%s1 + $0x28] sm:$0x1]
  %v334 = vld [vmem:[%s1 + $0x30] sm:$0x1]
  %v335 = vld [vmem:[%s1 + $0x38] sm:$0x1]
  %v336 = vld [vmem:[%s1 + $0x40] sm:$0x1]
  %v337 = vld [vmem:[%s1 + $0x48] sm:$0x1]
  %v338 = vld [vmem:[%s1 + $0x50] sm:$0x1]
  %v339 = vld [vmem:[%s1 + $0x58] sm:$0x1]
  %v340 = vld [vmem:[%s1 + $0x60] sm:$0x1]
  %v341 = vld [vmem:[%s1 + $0x68] sm:$0x1]
  %v342 = vld [vmem:[%s1 + $0x70] sm:$0x1]
  %v343 = vld [vmem:[%s1 + $0x78] sm:$0x1]
  %v344 = vmul.f32 %v328, 0.53333336
  %v345 = vmul.f32 %v329, 0.53333336
  %v346 = vmul.f32 %v330, 0.53333336
  %v347 = vmul.f32 %v331, 0.53333336
  %v348 = vmul.f32 %v332, 0.53333336
  %v349 = vmul.f32 %v333, 0.53333336
  %v350 = vmul.f32 %v334, 0.53333336
  %v351 = vmul.f32 %v335, 0.53333336
  %v352 = vmul.f32 %v336, 0.53333336
  %v353 = vmul.f32 %v337, 0.53333336
  %v354 = vmul.f32 %v338, 0.53333336
  %v355 = vmul.f32 %v339, 0.53333336
  %v356 = vmul.f32 %v340, 0.53333336
  %v357 = vmul.f32 %v341, 0.53333336
  %v358 = vmul.f32 %v342, 0.53333336
  %v359 = vmul.f32 %v343, 0.53333336
  %v360 = vld [vmem:[%s1 + $0x1] sm:$0x1]
  %v361 = vld [vmem:[%s1 + $0x9] sm:$0x1]
  %v362 = vld [vmem:[%s1 + $0x11] sm:$0x1]
  %v363 = vld [vmem:[%s1 + $0x19] sm:$0x1]
  %v364 = vld [vmem:[%s1 + $0x21] sm:$0x1]
  %v365 = vld [vmem:[%s1 + $0x29] sm:$0x1]
  %v366 = vld [vmem:[%s1 + $0x31] sm:$0x1]
  %v367 = vld [vmem:[%s1 + $0x39] sm:$0x1]
  %v368 = vld [vmem:[%s1 + $0x41] sm:$0x1]
  %v369 = vld [vmem:[%s1 + $0x49] sm:$0x1]
  %v370 = vld [vmem:[%s1 + $0x51] sm:$0x1]
  %v371 = vld [vmem:[%s1 + $0x59] sm:$0x1]
  %v372 = vld [vmem:[%s1 + $0x61] sm:$0x1]
  %v373 = vld [vmem:[%s1 + $0x69] sm:$0x1]
  %v374 = vld [vmem:[%s1 + $0x71] sm:$0x1]
  %v375 = vld [vmem:[%s1 + $0x79] sm:$0x1]
  %v376 = vmul.f32 %v360, 0.46666667
  %v377 = vmul.f32 %v361, 0.46666667
  %v378 = vmul.f32 %v362, 0.46666667
  %v379 = vmul.f32 %v363, 0.46666667
  %v380 = vmul.f32 %v364, 0.46666667
  %v381 = vmul.f32 %v365, 0.46666667
  %v382 = vmul.f32 %v366, 0.46666667
  %v383 = vmul.f32 %v367, 0.46666667
  %v384 = vmul.f32 %v368, 0.46666667
  %v385 = vmul.f32 %v369, 0.46666667
  %v386 = vmul.f32 %v370, 0.46666667
  %v387 = vmul.f32 %v371, 0.46666667
  %v388 = vmul.f32 %v372, 0.46666667
  %v389 = vmul.f32 %v373, 0.46666667
  %v390 = vmul.f32 %v374, 0.46666667
  %v391 = vmul.f32 %v375, 0.46666667
  %v392 = vadd.f32 %v344, %v376
  %v393 = vadd.f32 %v345, %v377
  %v394 = vadd.f32 %v346, %v378
  %v395 = vadd.f32 %v347, %v379
  %v396 = vadd.f32 %v348, %v380
  %v397 = vadd.f32 %v349, %v381
  %v398 = vadd.f32 %v350, %v382
  %v399 = vadd.f32 %v351, %v383
  %v400 = vadd.f32 %v352, %v384
  %v401 = vadd.f32 %v353, %v385
  %v402 = vadd.f32 %v354, %v386
  %v403 = vadd.f32 %v355, %v387
  %v404 = vadd.f32 %v356, %v388
  %v405 = vadd.f32 %v357, %v389
  %v406 = vadd.f32 %v358, %v390
  %v407 = vadd.f32 %v359, %v391
  %408 = vst.msk [vmem:[#allocation2 + $0x1] sm:$0x1] %vm311, %v392
  %409 = vst.msk [vmem:[#allocation2 + $0x11] sm:$0x1] %vm311, %v393
  %410 = vst.msk [vmem:[#allocation2 + $0x21] sm:$0x1] %vm311, %v394
  %411 = vst.msk [vmem:[#allocation2 + $0x31] sm:$0x1] %vm311, %v395
  %412 = vst.msk [vmem:[#allocation2 + $0x41] sm:$0x1] %vm311, %v396
  %413 = vst.msk [vmem:[#allocation2 + $0x51] sm:$0x1] %vm311, %v397
  %414 = vst.msk [vmem:[#allocation2 + $0x61] sm:$0x1] %vm311, %v398
  %415 = vst.msk [vmem:[#allocation2 + $0x71] sm:$0x1] %vm311, %v399
  %416 = vst.msk [vmem:[#allocation2 + $0x81] sm:$0x1] %vm311, %v400
  %417 = vst.msk [vmem:[#allocation2 + $0x91] sm:$0x1] %vm311, %v401
  %418 = vst.msk [vmem:[#allocation2 + $0xa1] sm:$0x1] %vm311, %v402
  %419 = vst.msk [vmem:[#allocation2 + $0xb1] sm:$0x1] %vm311, %v403
  %420 = vst.msk [vmem:[#allocation2 + $0xc1] sm:$0x1] %vm311, %v404
  %421 = vst.msk [vmem:[#allocation2 + $0xd1] sm:$0x1] %vm311, %v405
  %422 = vst.msk [vmem:[#allocation2 + $0xe1] sm:$0x1] %vm311, %v406
  %423 = vst.msk [vmem:[#allocation2 + $0xf1] sm:$0x1] %vm311, %v407
  %v424 = vld [vmem:[%s1] sm:$0x1]
  %v425 = vld [vmem:[%s1 + $0x8] sm:$0x1]
  %v426 = vld [vmem:[%s1 + $0x10] sm:$0x1]
  %v427 = vld [vmem:[%s1 + $0x18] sm:$0x1]
  %v428 = vld [vmem:[%s1 + $0x20] sm:$0x1]
  %v429 = vld [vmem:[%s1 + $0x28] sm:$0x1]
  %v430 = vld [vmem:[%s1 + $0x30] sm:$0x1]
  %v431 = vld [vmem:[%s1 + $0x38] sm:$0x1]
  %v432 = vld [vmem:[%s1 + $0x40] sm:$0x1]
  %v433 = vld [vmem:[%s1 + $0x48] sm:$0x1]
  %v434 = vld [vmem:[%s1 + $0x50] sm:$0x1]
  %v435 = vld [vmem:[%s1 + $0x58] sm:$0x1]
  %v436 = vld [vmem:[%s1 + $0x60] sm:$0x1]
  %v437 = vld [vmem:[%s1 + $0x68] sm:$0x1]
  %v438 = vld [vmem:[%s1 + $0x70] sm:$0x1]
  %v439 = vld [vmem:[%s1 + $0x78] sm:$0x1]
  %v440 = vmul.f32 %v424, 0.06666667
  %v441 = vmul.f32 %v425, 0.06666667
  %v442 = vmul.f32 %v426, 0.06666667
  %v443 = vmul.f32 %v427, 0.06666667
  %v444 = vmul.f32 %v428, 0.06666667
  %v445 = vmul.f32 %v429, 0.06666667
  %v446 = vmul.f32 %v430, 0.06666667
  %v447 = vmul.f32 %v431, 0.06666667
  %v448 = vmul.f32 %v432, 0.06666667
  %v449 = vmul.f32 %v433, 0.06666667
  %v450 = vmul.f32 %v434, 0.06666667
  %v451 = vmul.f32 %v435, 0.06666667
  %v452 = vmul.f32 %v436, 0.06666667
  %v453 = vmul.f32 %v437, 0.06666667
  %v454 = vmul.f32 %v438, 0.06666667
  %v455 = vmul.f32 %v439, 0.06666667
  %v456 = vld [vmem:[%s1 + $0x1] sm:$0x1]
  %v457 = vld [vmem:[%s1 + $0x9] sm:$0x1]
  %v458 = vld [vmem:[%s1 + $0x11] sm:$0x1]
  %v459 = vld [vmem:[%s1 + $0x19] sm:$0x1]
  %v460 = vld [vmem:[%s1 + $0x21] sm:$0x1]
  %v461 = vld [vmem:[%s1 + $0x29] sm:$0x1]
  %v462 = vld [vmem:[%s1 + $0x31] sm:$0x1]
  %v463 = vld [vmem:[%s1 + $0x39] sm:$0x1]
  %v464 = vld [vmem:[%s1 + $0x41] sm:$0x1]
  %v465 = vld [vmem:[%s1 + $0x49] sm:$0x1]
  %v466 = vld [vmem:[%s1 + $0x51] sm:$0x1]
  %v467 = vld [vmem:[%s1 + $0x59] sm:$0x1]
  %v468 = vld [vmem:[%s1 + $0x61] sm:$0x1]
  %v469 = vld [vmem:[%s1 + $0x69] sm:$0x1]
  %v470 = vld [vmem:[%s1 + $0x71] sm:$0x1]
  %v471 = vld [vmem:[%s1 + $0x79] sm:$0x1]
  %v472 = vmul.f32 %v456, 0.93333334
  %v473 = vmul.f32 %v457, 0.93333334
  %v474 = vmul.f32 %v458, 0.93333334
  %v475 = vmul.f32 %v459, 0.93333334
  %v476 = vmul.f32 %v460, 0.93333334
  %v477 = vmul.f32 %v461, 0.93333334
  %v478 = vmul.f32 %v462, 0.93333334
  %v479 = vmul.f32 %v463, 0.93333334
  %v480 = vmul.f32 %v464, 0.93333334
  %v481 = vmul.f32 %v465, 0.93333334
  %v482 = vmul.f32 %v466, 0.93333334
  %v483 = vmul.f32 %v467, 0.93333334
  %v484 = vmul.f32 %v468, 0.93333334
  %v485 = vmul.f32 %v469, 0.93333334
  %v486 = vmul.f32 %v470, 0.93333334
  %v487 = vmul.f32 %v471, 0.93333334
  %v488 = vadd.f32 %v440, %v472
  %v489 = vadd.f32 %v441, %v473
  %v490 = vadd.f32 %v442, %v474
  %v491 = vadd.f32 %v443, %v475
  %v492 = vadd.f32 %v444, %v476
  %v493 = vadd.f32 %v445, %v477
  %v494 = vadd.f32 %v446, %v478
  %v495 = vadd.f32 %v447, %v479
  %v496 = vadd.f32 %v448, %v480
  %v497 = vadd.f32 %v449, %v481
  %v498 = vadd.f32 %v450, %v482
  %v499 = vadd.f32 %v451, %v483
  %v500 = vadd.f32 %v452, %v484
  %v501 = vadd.f32 %v453, %v485
  %v502 = vadd.f32 %v454, %v486
  %v503 = vadd.f32 %v455, %v487
  %504 = vst.msk [vmem:[#allocation2 + $0x2] sm:$0x1] %vm311, %v488
  %505 = vst.msk [vmem:[#allocation2 + $0x12] sm:$0x1] %vm311, %v489
  %506 = vst.msk [vmem:[#allocation2 + $0x22] sm:$0x1] %vm311, %v490
  %507 = vst.msk [vmem:[#allocation2 + $0x32] sm:$0x1] %vm311, %v491
  %508 = vst.msk [vmem:[#allocation2 + $0x42] sm:$0x1] %vm311, %v492
  %509 = vst.msk [vmem:[#allocation2 + $0x52] sm:$0x1] %vm311, %v493
  %510 = vst.msk [vmem:[#allocation2 + $0x62] sm:$0x1] %vm311, %v494
  %511 = vst.msk [vmem:[#allocation2 + $0x72] sm:$0x1] %vm311, %v495
  %512 = vst.msk [vmem:[#allocation2 + $0x82] sm:$0x1] %vm311, %v496
  %513 = vst.msk [vmem:[#allocation2 + $0x92] sm:$0x1] %vm311, %v497
  %514 = vst.msk [vmem:[#allocation2 + $0xa2] sm:$0x1] %vm311, %v498
  %515 = vst.msk [vmem:[#allocation2 + $0xb2] sm:$0x1] %vm311, %v499
  %516 = vst.msk [vmem:[#allocation2 + $0xc2] sm:$0x1] %vm311, %v500
  %517 = vst.msk [vmem:[#allocation2 + $0xd2] sm:$0x1] %vm311, %v501
  %518 = vst.msk [vmem:[#allocation2 + $0xe2] sm:$0x1] %vm311, %v502
  %519 = vst.msk [vmem:[#allocation2 + $0xf2] sm:$0x1] %vm311, %v503
  %v520 = vld [vmem:[%s1 + $0x1] sm:$0x1]
  %v521 = vld [vmem:[%s1 + $0x9] sm:$0x1]
  %v522 = vld [vmem:[%s1 + $0x11] sm:$0x1]
  %v523 = vld [vmem:[%s1 + $0x19] sm:$0x1]
  %v524 = vld [vmem:[%s1 + $0x21] sm:$0x1]
  %v525 = vld [vmem:[%s1 + $0x29] sm:$0x1]
  %v526 = vld [vmem:[%s1 + $0x31] sm:$0x1]
  %v527 = vld [vmem:[%s1 + $0x39] sm:$0x1]
  %v528 = vld [vmem:[%s1 + $0x41] sm:$0x1]
  %v529 = vld [vmem:[%s1 + $0x49] sm:$0x1]
  %v530 = vld [vmem:[%s1 + $0x51] sm:$0x1]
  %v531 = vld [vmem:[%s1 + $0x59] sm:$0x1]
  %v532 = vld [vmem:[%s1 + $0x61] sm:$0x1]
  %v533 = vld [vmem:[%s1 + $0x69] sm:$0x1]
  %v534 = vld [vmem:[%s1 + $0x71] sm:$0x1]
  %v535 = vld [vmem:[%s1 + $0x79] sm:$0x1]
  %v536 = vmul.f32 %v520, 0.6
  %v537 = vmul.f32 %v521, 0.6
  %v538 = vmul.f32 %v522, 0.6
  %v539 = vmul.f32 %v523, 0.6
  %v540 = vmul.f32 %v524, 0.6
  %v541 = vmul.f32 %v525, 0.6
  %v542 = vmul.f32 %v526, 0.6
  %v543 = vmul.f32 %v527, 0.6
  %v544 = vmul.f32 %v528, 0.6
  %v545 = vmul.f32 %v529, 0.6
  %v546 = vmul.f32 %v530, 0.6
  %v547 = vmul.f32 %v531, 0.6
  %v548 = vmul.f32 %v532, 0.6
  %v549 = vmul.f32 %v533, 0.6
  %v550 = vmul.f32 %v534, 0.6
  %v551 = vmul.f32 %v535, 0.6
  %v552 = vld [vmem:[%s1 + $0x2] sm:$0x1]
  %v553 = vld [vmem:[%s1 + $0xa] sm:$0x1]
  %v554 = vld [vmem:[%s1 + $0x12] sm:$0x1]
  %v555 = vld [vmem:[%s1 + $0x1a] sm:$0x1]
  %v556 = vld [vmem:[%s1 + $0x22] sm:$0x1]
  %v557 = vld [vmem:[%s1 + $0x2a] sm:$0x1]
  %v558 = vld [vmem:[%s1 + $0x32] sm:$0x1]
  %v559 = vld [vmem:[%s1 + $0x3a] sm:$0x1]
  %v560 = vld [vmem:[%s1 + $0x42] sm:$0x1]
  %v561 = vld [vmem:[%s1 + $0x4a] sm:$0x1]
  %v562 = vld [vmem:[%s1 + $0x52] sm:$0x1]
  %v563 = vld [vmem:[%s1 + $0x5a] sm:$0x1]
  %v564 = vld [vmem:[%s1 + $0x62] sm:$0x1]
  %v565 = vld [vmem:[%s1 + $0x6a] sm:$0x1]
  %v566 = vld [vmem:[%s1 + $0x72] sm:$0x1]
  %v567 = vld [vmem:[%s1 + $0x7a] sm:$0x1]
  %v568 = vmul.f32 %v552, 0.4
  %v569 = vmul.f32 %v553, 0.4
  %v570 = vmul.f32 %v554, 0.4
  %v571 = vmul.f32 %v555, 0.4
  %v572 = vmul.f32 %v556, 0.4
  %v573 = vmul.f32 %v557, 0.4
  %v574 = vmul.f32 %v558, 0.4
  %v575 = vmul.f32 %v559, 0.4
  %v576 = vmul.f32 %v560, 0.4
  %v577 = vmul.f32 %v561, 0.4
  %v578 = vmul.f32 %v562, 0.4
  %v579 = vmul.f32 %v563, 0.4
  %v580 = vmul.f32 %v564, 0.4
  %v581 = vmul.f32 %v565, 0.4
  %v582 = vmul.f32 %v566, 0.4
  %v583 = vmul.f32 %v567, 0.4
  %v584 = vadd.f32 %v536, %v568
  %v585 = vadd.f32 %v537, %v569
  %v586 = vadd.f32 %v538, %v570
  %v587 = vadd.f32 %v539, %v571
  %v588 = vadd.f32 %v540, %v572
  %v589 = vadd.f32 %v541, %v573
  %v590 = vadd.f32 %v542, %v574
  %v591 = vadd.f32 %v543, %v575
  %v592 = vadd.f32 %v544, %v576
  %v593 = vadd.f32 %v545, %v577
  %v594 = vadd.f32 %v546, %v578
  %v595 = vadd.f32 %v547, %v579
  %v596 = vadd.f32 %v548, %v580
  %v597 = vadd.f32 %v549, %v581
  %v598 = vadd.f32 %v550, %v582
  %v599 = vadd.f32 %v551, %v583
  %600 = vst.msk [vmem:[#allocation2 + $0x3] sm:$0x1] %vm311, %v584
  %601 = vst.msk [vmem:[#allocation2 + $0x13] sm:$0x1] %vm311, %v585
  %602 = vst.msk [vmem:[#allocation2 + $0x23] sm:$0x1] %vm311, %v586
  %603 = vst.msk [vmem:[#allocation2 + $0x33] sm:$0x1] %vm311, %v587
  %604 = vst.msk [vmem:[#allocation2 + $0x43] sm:$0x1] %vm311, %v588
  %605 = vst.msk [vmem:[#allocation2 + $0x53] sm:$0x1] %vm311, %v589
  %606 = vst.msk [vmem:[#allocation2 + $0x63] sm:$0x1] %vm311, %v590
  %607 = vst.msk [vmem:[#allocation2 + $0x73] sm:$0x1] %vm311, %v591
  %608 = vst.msk [vmem:[#allocation2 + $0x83] sm:$0x1] %vm311, %v592
  %609 = vst.msk [vmem:[#allocation2 + $0x93] sm:$0x1] %vm311, %v593
  %610 = vst.msk [vmem:[#allocation2 + $0xa3] sm:$0x1] %vm311, %v594
  %611 = vst.msk [vmem:[#allocation2 + $0xb3] sm:$0x1] %vm311, %v595
  %612 = vst.msk [vmem:[#allocation2 + $0xc3] sm:$0x1] %vm311, %v596
  %613 = vst.msk [vmem:[#allocation2 + $0xd3] sm:$0x1] %vm311, %v597
  %614 = vst.msk [vmem:[#allocation2 + $0xe3] sm:$0x1] %vm311, %v598
  %615 = vst.msk [vmem:[#allocation2 + $0xf3] sm:$0x1] %vm311, %v599
  %v616 = vld [vmem:[%s1 + $0x1] sm:$0x1]
  %v617 = vld [vmem:[%s1 + $0x9] sm:$0x1]
  %v618 = vld [vmem:[%s1 + $0x11] sm:$0x1]
  %v619 = vld [vmem:[%s1 + $0x19] sm:$0x1]
  %v620 = vld [vmem:[%s1 + $0x21] sm:$0x1]
  %v621 = vld [vmem:[%s1 + $0x29] sm:$0x1]
  %v622 = vld [vmem:[%s1 + $0x31] sm:$0x1]
  %v623 = vld [vmem:[%s1 + $0x39] sm:$0x1]
  %v624 = vld [vmem:[%s1 + $0x41] sm:$0x1]
  %v625 = vld [vmem:[%s1 + $0x49] sm:$0x1]
  %v626 = vld [vmem:[%s1 + $0x51] sm:$0x1]
  %v627 = vld [vmem:[%s1 + $0x59] sm:$0x1]
  %v628 = vld [vmem:[%s1 + $0x61] sm:$0x1]
  %v629 = vld [vmem:[%s1 + $0x69] sm:$0x1]
  %v630 = vld [vmem:[%s1 + $0x71] sm:$0x1]
  %v631 = vld [vmem:[%s1 + $0x79] sm:$0x1]
  %v632 = vmul.f32 %v616, 0.13333334
  %v633 = vmul.f32 %v617, 0.13333334
  %v634 = vmul.f32 %v618, 0.13333334
  %v635 = vmul.f32 %v619, 0.13333334
  %v636 = vmul.f32 %v620, 0.13333334
  %v637 = vmul.f32 %v621, 0.13333334
  %v638 = vmul.f32 %v622, 0.13333334
  %v639 = vmul.f32 %v623, 0.13333334
  %v640 = vmul.f32 %v624, 0.13333334
  %v641 = vmul.f32 %v625, 0.13333334
  %v642 = vmul.f32 %v626, 0.13333334
  %v643 = vmul.f32 %v627, 0.13333334
  %v644 = vmul.f32 %v628, 0.13333334
  %v645 = vmul.f32 %v629, 0.13333334
  %v646 = vmul.f32 %v630, 0.13333334
  %v647 = vmul.f32 %v631, 0.13333334
  %v648 = vld [vmem:[%s1 + $0x2] sm:$0x1]
  %v649 = vld [vmem:[%s1 + $0xa] sm:$0x1]
  %v650 = vld [vmem:[%s1 + $0x12] sm:$0x1]
  %v651 = vld [vmem:[%s1 + $0x1a] sm:$0x1]
  %v652 = vld [vmem:[%s1 + $0x22] sm:$0x1]
  %v653 = vld [vmem:[%s1 + $0x2a] sm:$0x1]
  %v654 = vld [vmem:[%s1 + $0x32] sm:$0x1]
  %v655 = vld [vmem:[%s1 + $0x3a] sm:$0x1]
  %v656 = vld [vmem:[%s1 + $0x42] sm:$0x1]
  %v657 = vld [vmem:[%s1 + $0x4a] sm:$0x1]
  %v658 = vld [vmem:[%s1 + $0x52] sm:$0x1]
  %v659 = vld [vmem:[%s1 + $0x5a] sm:$0x1]
  %v660 = vld [vmem:[%s1 + $0x62] sm:$0x1]
  %v661 = vld [vmem:[%s1 + $0x6a] sm:$0x1]
  %v662 = vld [vmem:[%s1 + $0x72] sm:$0x1]
  %v663 = vld [vmem:[%s1 + $0x7a] sm:$0x1]
  %v664 = vmul.f32 %v648, 0.8666667
  %v665 = vmul.f32 %v649, 0.8666667
  %v666 = vmul.f32 %v650, 0.8666667
  %v667 = vmul.f32 %v651, 0.8666667
  %v668 = vmul.f32 %v652, 0.8666667
  %v669 = vmul.f32 %v653, 0.8666667
  %v670 = vmul.f32 %v654, 0.8666667
  %v671 = vmul.f32 %v655, 0.8666667
  %v672 = vmul.f32 %v656, 0.8666667
  %v673 = vmul.f32 %v657, 0.8666667
  %v674 = vmul.f32 %v658, 0.8666667
  %v675 = vmul.f32 %v659, 0.8666667
  %v676 = vmul.f32 %v660, 0.8666667
  %v677 = vmul.f32 %v661, 0.8666667
  %v678 = vmul.f32 %v662, 0.8666667
  %v679 = vmul.f32 %v663, 0.8666667
  %v680 = vadd.f32 %v632, %v664
  %v681 = vadd.f32 %v633, %v665
  %v682 = vadd.f32 %v634, %v666
  %v683 = vadd.f32 %v635, %v667
  %v684 = vadd.f32 %v636, %v668
  %v685 = vadd.f32 %v637, %v669
  %v686 = vadd.f32 %v638, %v670
  %v687 = vadd.f32 %v639, %v671
  %v688 = vadd.f32 %v640, %v672
  %v689 = vadd.f32 %v641, %v673
  %v690 = vadd.f32 %v642, %v674
  %v691 = vadd.f32 %v643, %v675
  %v692 = vadd.f32 %v644, %v676
  %v693 = vadd.f32 %v645, %v677
  %v694 = vadd.f32 %v646, %v678
  %v695 = vadd.f32 %v647, %v679
  %696 = vst.msk [vmem:[#allocation2 + $0x4] sm:$0x1] %vm311, %v680
  %697 = vst.msk [vmem:[#allocation2 + $0x14] sm:$0x1] %vm311, %v681
  %698 = vst.msk [vmem:[#allocation2 + $0x24] sm:$0x1] %vm311, %v682
  %699 = vst.msk [vmem:[#allocation2 + $0x34] sm:$0x1] %vm311, %v683
  %700 = vst.msk [vmem:[#allocation2 + $0x44] sm:$0x1] %vm311, %v684
  %701 = vst.msk [vmem:[#allocation2 + $0x54] sm:$0x1] %vm311, %v685
  %702 = vst.msk [vmem:[#allocation2 + $0x64] sm:$0x1] %vm311, %v686
  %703 = vst.msk [vmem:[#allocation2 + $0x74] sm:$0x1] %vm311, %v687
  %704 = vst.msk [vmem:[#allocation2 + $0x84] sm:$0x1] %vm311, %v688
  %705 = vst.msk [vmem:[#allocation2 + $0x94] sm:$0x1] %vm311, %v689
  %706 = vst.msk [vmem:[#allocation2 + $0xa4] sm:$0x1] %vm311, %v690
  %707 = vst.msk [vmem:[#allocation2 + $0xb4] sm:$0x1] %vm311, %v691
  %708 = vst.msk [vmem:[#allocation2 + $0xc4] sm:$0x1] %vm311, %v692
  %709 = vst.msk [vmem:[#allocation2 + $0xd4] sm:$0x1] %vm311, %v693
  %710 = vst.msk [vmem:[#allocation2 + $0xe4] sm:$0x1] %vm311, %v694
  %711 = vst.msk [vmem:[#allocation2 + $0xf4] sm:$0x1] %vm311, %v695
  %v712 = vld [vmem:[%s1 + $0x2] sm:$0x1]
  %v713 = vld [vmem:[%s1 + $0xa] sm:$0x1]
  %v714 = vld [vmem:[%s1 + $0x12] sm:$0x1]
  %v715 = vld [vmem:[%s1 + $0x1a] sm:$0x1]
  %v716 = vld [vmem:[%s1 + $0x22] sm:$0x1]
  %v717 = vld [vmem:[%s1 + $0x2a] sm:$0x1]
  %v718 = vld [vmem:[%s1 + $0x32] sm:$0x1]
  %v719 = vld [vmem:[%s1 + $0x3a] sm:$0x1]
  %v720 = vld [vmem:[%s1 + $0x42] sm:$0x1]
  %v721 = vld [vmem:[%s1 + $0x4a] sm:$0x1]
  %v722 = vld [vmem:[%s1 + $0x52] sm:$0x1]
  %v723 = vld [vmem:[%s1 + $0x5a] sm:$0x1]
  %v724 = vld [vmem:[%s1 + $0x62] sm:$0x1]
  %v725 = vld [vmem:[%s1 + $0x6a] sm:$0x1]
  %v726 = vld [vmem:[%s1 + $0x72] sm:$0x1]
  %v727 = vld [vmem:[%s1 + $0x7a] sm:$0x1]
  %v728 = vmul.f32 %v712, 0.6666667
  %v729 = vmul.f32 %v713, 0.6666667
  %v730 = vmul.f32 %v714, 0.6666667
  %v731 = vmul.f32 %v715, 0.6666667
  %v732 = vmul.f32 %v716, 0.6666667
  %v733 = vmul.f32 %v717, 0.6666667
  %v734 = vmul.f32 %v718, 0.6666667
  %v735 = vmul.f32 %v719, 0.6666667
  %v736 = vmul.f32 %v720, 0.6666667
  %v737 = vmul.f32 %v721, 0.6666667
  %v738 = vmul.f32 %v722, 0.6666667
  %v739 = vmul.f32 %v723, 0.6666667
  %v740 = vmul.f32 %v724, 0.6666667
  %v741 = vmul.f32 %v725, 0.6666667
  %v742 = vmul.f32 %v726, 0.6666667
  %v743 = vmul.f32 %v727, 0.6666667
  %v744 = vld [vmem:[%s1 + $0x3] sm:$0x1]
  %v745 = vld [vmem:[%s1 + $0xb] sm:$0x1]
  %v746 = vld [vmem:[%s1 + $0x13] sm:$0x1]
  %v747 = vld [vmem:[%s1 + $0x1b] sm:$0x1]
  %v748 = vld [vmem:[%s1 + $0x23] sm:$0x1]
  %v749 = vld [vmem:[%s1 + $0x2b] sm:$0x1]
  %v750 = vld [vmem:[%s1 + $0x33] sm:$0x1]
  %v751 = vld [vmem:[%s1 + $0x3b] sm:$0x1]
  %v752 = vld [vmem:[%s1 + $0x43] sm:$0x1]
  %v753 = vld [vmem:[%s1 + $0x4b] sm:$0x1]
  %v754 = vld [vmem:[%s1 + $0x53] sm:$0x1]
  %v755 = vld [vmem:[%s1 + $0x5b] sm:$0x1]
  %v756 = vld [vmem:[%s1 + $0x63] sm:$0x1]
  %v757 = vld [vmem:[%s1 + $0x6b] sm:$0x1]
  %v758 = vld [vmem:[%s1 + $0x73] sm:$0x1]
  %v759 = vld [vmem:[%s1 + $0x7b] sm:$0x1]
  %v760 = vmul.f32 %v744, 0.33333334
  %v761 = vmul.f32 %v745, 0.33333334
  %v762 = vmul.f32 %v746, 0.33333334
  %v763 = vmul.f32 %v747, 0.33333334
  %v764 = vmul.f32 %v748, 0.33333334
  %v765 = vmul.f32 %v749, 0.33333334
  %v766 = vmul.f32 %v750, 0.33333334
  %v767 = vmul.f32 %v751, 0.33333334
  %v768 = vmul.f32 %v752, 0.33333334
  %v769 = vmul.f32 %v753, 0.33333334
  %v770 = vmul.f32 %v754, 0.33333334
  %v771 = vmul.f32 %v755, 0.33333334
  %v772 = vmul.f32 %v756, 0.33333334
  %v773 = vmul.f32 %v757, 0.33333334
  %v774 = vmul.f32 %v758, 0.33333334
  %v775 = vmul.f32 %v759, 0.33333334
  %v776 = vadd.f32 %v728, %v760
  %v777 = vadd.f32 %v729, %v761
  %v778 = vadd.f32 %v730, %v762
  %v779 = vadd.f32 %v731, %v763
  %v780 = vadd.f32 %v732, %v764
  %v781 = vadd.f32 %v733, %v765
  %v782 = vadd.f32 %v734, %v766
  %v783 = vadd.f32 %v735, %v767
  %v784 = vadd.f32 %v736, %v768
  %v785 = vadd.f32 %v737, %v769
  %v786 = vadd.f32 %v738, %v770
  %v787 = vadd.f32 %v739, %v771
  %v788 = vadd.f32 %v740, %v772
  %v789 = vadd.f32 %v741, %v773
  %v790 = vadd.f32 %v742, %v774
  %v791 = vadd.f32 %v743, %v775
  %792 = vst.msk [vmem:[#allocation2 + $0x5] sm:$0x1] %vm311, %v776
  %793 = vst.msk [vmem:[#allocation2 + $0x15] sm:$0x1] %vm311, %v777
  %794 = vst.msk [vmem:[#allocation2 + $0x25] sm:$0x1] %vm311, %v778
  %795 = vst.msk [vmem:[#allocation2 + $0x35] sm:$0x1] %vm311, %v779
  %796 = vst.msk [vmem:[#allocation2 + $0x45] sm:$0x1] %vm311, %v780
  %797 = vst.msk [vmem:[#allocation2 + $0x55] sm:$0x1] %vm311, %v781
  %798 = vst.msk [vmem:[#allocation2 + $0x65] sm:$0x1] %vm311, %v782
  %799 = vst.msk [vmem:[#allocation2 + $0x75] sm:$0x1] %vm311, %v783
  %800 = vst.msk [vmem:[#allocation2 + $0x85] sm:$0x1] %vm311, %v784
  %801 = vst.msk [vmem:[#allocation2 + $0x95] sm:$0x1] %vm311, %v785
  %802 = vst.msk [vmem:[#allocation2 + $0xa5] sm:$0x1] %vm311, %v786
  %803 = vst.msk [vmem:[#allocation2 + $0xb5] sm:$0x1] %vm311, %v787
  %804 = vst.msk [vmem:[#allocation2 + $0xc5] sm:$0x1] %vm311, %v788
  %805 = vst.msk [vmem:[#allocation2 + $0xd5] sm:$0x1] %vm311, %v789
  %806 = vst.msk [vmem:[#allocation2 + $0xe5] sm:$0x1] %vm311, %v790
  %807 = vst.msk [vmem:[#allocation2 + $0xf5] sm:$0x1] %vm311, %v791
  %v808 = vld [vmem:[%s1 + $0x2] sm:$0x1]
  %v809 = vld [vmem:[%s1 + $0xa] sm:$0x1]
  %v810 = vld [vmem:[%s1 + $0x12] sm:$0x1]
  %v811 = vld [vmem:[%s1 + $0x1a] sm:$0x1]
  %v812 = vld [vmem:[%s1 + $0x22] sm:$0x1]
  %v813 = vld [vmem:[%s1 + $0x2a] sm:$0x1]
  %v814 = vld [vmem:[%s1 + $0x32] sm:$0x1]
  %v815 = vld [vmem:[%s1 + $0x3a] sm:$0x1]
  %v816 = vld [vmem:[%s1 + $0x42] sm:$0x1]
  %v817 = vld [vmem:[%s1 + $0x4a] sm:$0x1]
  %v818 = vld [vmem:[%s1 + $0x52] sm:$0x1]
  %v819 = vld [vmem:[%s1 + $0x5a] sm:$0x1]
  %v820 = vld [vmem:[%s1 + $0x62] sm:$0x1]
  %v821 = vld [vmem:[%s1 + $0x6a] sm:$0x1]
  %v822 = vld [vmem:[%s1 + $0x72] sm:$0x1]
  %v823 = vld [vmem:[%s1 + $0x7a] sm:$0x1]
  %v824 = vmul.f32 %v808, 0.2
  %v825 = vmul.f32 %v809, 0.2
  %v826 = vmul.f32 %v810, 0.2
  %v827 = vmul.f32 %v811, 0.2
  %v828 = vmul.f32 %v812, 0.2
  %v829 = vmul.f32 %v813, 0.2
  %v830 = vmul.f32 %v814, 0.2
  %v831 = vmul.f32 %v815, 0.2
  %v832 = vmul.f32 %v816, 0.2
  %v833 = vmul.f32 %v817, 0.2
  %v834 = vmul.f32 %v818, 0.2
  %v835 = vmul.f32 %v819, 0.2
  %v836 = vmul.f32 %v820, 0.2
  %v837 = vmul.f32 %v821, 0.2
  %v838 = vmul.f32 %v822, 0.2
  %v839 = vmul.f32 %v823, 0.2
  %v840 = vld [vmem:[%s1 + $0x3] sm:$0x1]
  %v841 = vld [vmem:[%s1 + $0xb] sm:$0x1]
  %v842 = vld [vmem:[%s1 + $0x13] sm:$0x1]
  %v843 = vld [vmem:[%s1 + $0x1b] sm:$0x1]
  %v844 = vld [vmem:[%s1 + $0x23] sm:$0x1]
  %v845 = vld [vmem:[%s1 + $0x2b] sm:$0x1]
  %v846 = vld [vmem:[%s1 + $0x33] sm:$0x1]
  %v847 = vld [vmem:[%s1 + $0x3b] sm:$0x1]
  %v848 = vld [vmem:[%s1 + $0x43] sm:$0x1]
  %v849 = vld [vmem:[%s1 + $0x4b] sm:$0x1]
  %v850 = vld [vmem:[%s1 + $0x53] sm:$0x1]
  %v851 = vld [vmem:[%s1 + $0x5b] sm:$0x1]
  %v852 = vld [vmem:[%s1 + $0x63] sm:$0x1]
  %v853 = vld [vmem:[%s1 + $0x6b] sm:$0x1]
  %v854 = vld [vmem:[%s1 + $0x73] sm:$0x1]
  %v855 = vld [vmem:[%s1 + $0x7b] sm:$0x1]
  %v856 = vmul.f32 %v840, 0.8
  %v857 = vmul.f32 %v841, 0.8
  %v858 = vmul.f32 %v842, 0.8
  %v859 = vmul.f32 %v843, 0.8
  %v860 = vmul.f32 %v844, 0.8
  %v861 = vmul.f32 %v845, 0.8
  %v862 = vmul.f32 %v846, 0.8
  %v863 = vmul.f32 %v847, 0.8
  %v864 = vmul.f32 %v848, 0.8
  %v865 = vmul.f32 %v849, 0.8
  %v866 = vmul.f32 %v850, 0.8
  %v867 = vmul.f32 %v851, 0.8
  %v868 = vmul.f32 %v852, 0.8
  %v869 = vmul.f32 %v853, 0.8
  %v870 = vmul.f32 %v854, 0.8
  %v871 = vmul.f32 %v855, 0.8
  %v872 = vadd.f32 %v824, %v856
  %v873 = vadd.f32 %v825, %v857
  %v874 = vadd.f32 %v826, %v858
  %v875 = vadd.f32 %v827, %v859
  %v876 = vadd.f32 %v828, %v860
  %v877 = vadd.f32 %v829, %v861
  %v878 = vadd.f32 %v830, %v862
  %v879 = vadd.f32 %v831, %v863
  %v880 = vadd.f32 %v832, %v864
  %v881 = vadd.f32 %v833, %v865
  %v882 = vadd.f32 %v834, %v866
  %v883 = vadd.f32 %v835, %v867
  %v884 = vadd.f32 %v836, %v868
  %v885 = vadd.f32 %v837, %v869
  %v886 = vadd.f32 %v838, %v870
  %v887 = vadd.f32 %v839, %v871
  %888 = vst.msk [vmem:[#allocation2 + $0x6] sm:$0x1] %vm311, %v872
  %889 = vst.msk [vmem:[#allocation2 + $0x16] sm:$0x1] %vm311, %v873
  %890 = vst.msk [vmem:[#allocation2 + $0x26] sm:$0x1] %vm311, %v874
  %891 = vst.msk [vmem:[#allocation2 + $0x36] sm:$0x1] %vm311, %v875
  %892 = vst.msk [vmem:[#allocation2 + $0x46] sm:$0x1] %vm311, %v876
  %893 = vst.msk [vmem:[#allocation2 + $0x56] sm:$0x1] %vm311, %v877
  %894 = vst.msk [vmem:[#allocation2 + $0x66] sm:$0x1] %vm311, %v878
  %895 = vst.msk [vmem:[#allocation2 + $0x76] sm:$0x1] %vm311, %v879
  %896 = vst.msk [vmem:[#allocation2 + $0x86] sm:$0x1] %vm311, %v880
  %897 = vst.msk [vmem:[#allocation2 + $0x96] sm:$0x1] %vm311, %v881
  %898 = vst.msk [vmem:[#allocation2 + $0xa6] sm:$0x1] %vm311, %v882
  %899 = vst.msk [vmem:[#allocation2 + $0xb6] sm:$0x1] %vm311, %v883
  %900 = vst.msk [vmem:[#allocation2 + $0xc6] sm:$0x1] %vm311, %v884
  %901 = vst.msk [vmem:[#allocation2 + $0xd6] sm:$0x1] %vm311, %v885
  %902 = vst.msk [vmem:[#allocation2 + $0xe6] sm:$0x1] %vm311, %v886
  %903 = vst.msk [vmem:[#allocation2 + $0xf6] sm:$0x1] %vm311, %v887
  %v904 = vld [vmem:[%s1 + $0x3] sm:$0x1]
  %v905 = vld [vmem:[%s1 + $0xb] sm:$0x1]
  %v906 = vld [vmem:[%s1 + $0x13] sm:$0x1]
  %v907 = vld [vmem:[%s1 + $0x1b] sm:$0x1]
  %v908 = vld [vmem:[%s1 + $0x23] sm:$0x1]
  %v909 = vld [vmem:[%s1 + $0x2b] sm:$0x1]
  %v910 = vld [vmem:[%s1 + $0x33] sm:$0x1]
  %v911 = vld [vmem:[%s1 + $0x3b] sm:$0x1]
  %v912 = vld [vmem:[%s1 + $0x43] sm:$0x1]
  %v913 = vld [vmem:[%s1 + $0x4b] sm:$0x1]
  %v914 = vld [vmem:[%s1 + $0x53] sm:$0x1]
  %v915 = vld [vmem:[%s1 + $0x5b] sm:$0x1]
  %v916 = vld [vmem:[%s1 + $0x63] sm:$0x1]
  %v917 = vld [vmem:[%s1 + $0x6b] sm:$0x1]
  %v918 = vld [vmem:[%s1 + $0x73] sm:$0x1]
  %v919 = vld [vmem:[%s1 + $0x7b] sm:$0x1]
  %v920 = vmul.f32 %v904, 0.73333335
  %v921 = vmul.f32 %v905, 0.73333335
  %v922 = vmul.f32 %v906, 0.73333335
  %v923 = vmul.f32 %v907, 0.73333335
  %v924 = vmul.f32 %v908, 0.73333335
  %v925 = vmul.f32 %v909, 0.73333335
  %v926 = vmul.f32 %v910, 0.73333335
  %v927 = vmul.f32 %v911, 0.73333335
  %v928 = vmul.f32 %v912, 0.73333335
  %v929 = vmul.f32 %v913, 0.73333335
  %v930 = vmul.f32 %v914, 0.73333335
  %v931 = vmul.f32 %v915, 0.73333335
  %v932 = vmul.f32 %v916, 0.73333335
  %v933 = vmul.f32 %v917, 0.73333335
  %v934 = vmul.f32 %v918, 0.73333335
  %v935 = vmul.f32 %v919, 0.73333335
  %v936 = vld [vmem:[%s1 + $0x4] sm:$0x1]
  %v937 = vld [vmem:[%s1 + $0xc] sm:$0x1]
  %v938 = vld [vmem:[%s1 + $0x14] sm:$0x1]
  %v939 = vld [vmem:[%s1 + $0x1c] sm:$0x1]
  %v940 = vld [vmem:[%s1 + $0x24] sm:$0x1]
  %v941 = vld [vmem:[%s1 + $0x2c] sm:$0x1]
  %v942 = vld [vmem:[%s1 + $0x34] sm:$0x1]
  %v943 = vld [vmem:[%s1 + $0x3c] sm:$0x1]
  %v944 = vld [vmem:[%s1 + $0x44] sm:$0x1]
  %v945 = vld [vmem:[%s1 + $0x4c] sm:$0x1]
  %v946 = vld [vmem:[%s1 + $0x54] sm:$0x1]
  %v947 = vld [vmem:[%s1 + $0x5c] sm:$0x1]
  %v948 = vld [vmem:[%s1 + $0x64] sm:$0x1]
  %v949 = vld [vmem:[%s1 + $0x6c] sm:$0x1]
  %v950 = vld [vmem:[%s1 + $0x74] sm:$0x1]
  %v951 = vld [vmem:[%s1 + $0x7c] sm:$0x1]
  %v952 = vmul.f32 %v936, 0.26666668
  %v953 = vmul.f32 %v937, 0.26666668
  %v954 = vmul.f32 %v938, 0.26666668
  %v955 = vmul.f32 %v939, 0.26666668
  %v956 = vmul.f32 %v940, 0.26666668
  %v957 = vmul.f32 %v941, 0.26666668
  %v958 = vmul.f32 %v942, 0.26666668
  %v959 = vmul.f32 %v943, 0.26666668
  %v960 = vmul.f32 %v944, 0.26666668
  %v961 = vmul.f32 %v945, 0.26666668
  %v962 = vmul.f32 %v946, 0.26666668
  %v963 = vmul.f32 %v947, 0.26666668
  %v964 = vmul.f32 %v948, 0.26666668
  %v965 = vmul.f32 %v949, 0.26666668
  %v966 = vmul.f32 %v950, 0.26666668
  %v967 = vmul.f32 %v951, 0.26666668
  %v968 = vadd.f32 %v920, %v952
  %v969 = vadd.f32 %v921, %v953
  %v970 = vadd.f32 %v922, %v954
  %v971 = vadd.f32 %v923, %v955
  %v972 = vadd.f32 %v924, %v956
  %v973 = vadd.f32 %v925, %v957
  %v974 = vadd.f32 %v926, %v958
  %v975 = vadd.f32 %v927, %v959
  %v976 = vadd.f32 %v928, %v960
  %v977 = vadd.f32 %v929, %v961
  %v978 = vadd.f32 %v930, %v962
  %v979 = vadd.f32 %v931, %v963
  %v980 = vadd.f32 %v932, %v964
  %v981 = vadd.f32 %v933, %v965
  %v982 = vadd.f32 %v934, %v966
  %v983 = vadd.f32 %v935, %v967
  %984 = vst.msk [vmem:[#allocation2 + $0x7] sm:$0x1] %vm311, %v968
  %985 = vst.msk [vmem:[#allocation2 + $0x17] sm:$0x1] %vm311, %v969
  %986 = vst.msk [vmem:[#allocation2 + $0x27] sm:$0x1] %vm311, %v970
  %987 = vst.msk [vmem:[#allocation2 + $0x37] sm:$0x1] %vm311, %v971
  %988 = vst.msk [vmem:[#allocation2 + $0x47] sm:$0x1] %vm311, %v972
  %989 = vst.msk [vmem:[#allocation2 + $0x57] sm:$0x1] %vm311, %v973
  %990 = vst.msk [vmem:[#allocation2 + $0x67] sm:$0x1] %vm311, %v974
  %991 = vst.msk [vmem:[#allocation2 + $0x77] sm:$0x1] %vm311, %v975
  %992 = vst.msk [vmem:[#allocation2 + $0x87] sm:$0x1] %vm311, %v976
  %993 = vst.msk [vmem:[#allocation2 + $0x97] sm:$0x1] %vm311, %v977
  %994 = vst.msk [vmem:[#allocation2 + $0xa7] sm:$0x1] %vm311, %v978
  %995 = vst.msk [vmem:[#allocation2 + $0xb7] sm:$0x1] %vm311, %v979
  %996 = vst.msk [vmem:[#allocation2 + $0xc7] sm:$0x1] %vm311, %v980
  %997 = vst.msk [vmem:[#allocation2 + $0xd7] sm:$0x1] %vm311, %v981
  %998 = vst.msk [vmem:[#allocation2 + $0xe7] sm:$0x1] %vm311, %v982
  %999 = vst.msk [vmem:[#allocation2 + $0xf7] sm:$0x1] %vm311, %v983
  %v1000 = vld [vmem:[%s1 + $0x3] sm:$0x1]
  %v1001 = vld [vmem:[%s1 + $0xb] sm:$0x1]
  %v1002 = vld [vmem:[%s1 + $0x13] sm:$0x1]
  %v1003 = vld [vmem:[%s1 + $0x1b] sm:$0x1]
  %v1004 = vld [vmem:[%s1 + $0x23] sm:$0x1]
  %v1005 = vld [vmem:[%s1 + $0x2b] sm:$0x1]
  %v1006 = vld [vmem:[%s1 + $0x33] sm:$0x1]
  %v1007 = vld [vmem:[%s1 + $0x3b] sm:$0x1]
  %v1008 = vld [vmem:[%s1 + $0x43] sm:$0x1]
  %v1009 = vld [vmem:[%s1 + $0x4b] sm:$0x1]
  %v1010 = vld [vmem:[%s1 + $0x53] sm:$0x1]
  %v1011 = vld [vmem:[%s1 + $0x5b] sm:$0x1]
  %v1012 = vld [vmem:[%s1 + $0x63] sm:$0x1]
  %v1013 = vld [vmem:[%s1 + $0x6b] sm:$0x1]
  %v1014 = vld [vmem:[%s1 + $0x73] sm:$0x1]
  %v1015 = vld [vmem:[%s1 + $0x7b] sm:$0x1]
  %v1016 = vmul.f32 %v1000, 0.26666668
  %v1017 = vmul.f32 %v1001, 0.26666668
  %v1018 = vmul.f32 %v1002, 0.26666668
  %v1019 = vmul.f32 %v1003, 0.26666668
  %v1020 = vmul.f32 %v1004, 0.26666668
  %v1021 = vmul.f32 %v1005, 0.26666668
  %v1022 = vmul.f32 %v1006, 0.26666668
  %v1023 = vmul.f32 %v1007, 0.26666668
  %v1024 = vmul.f32 %v1008, 0.26666668
  %v1025 = vmul.f32 %v1009, 0.26666668
  %v1026 = vmul.f32 %v1010, 0.26666668
  %v1027 = vmul.f32 %v1011, 0.26666668
  %v1028 = vmul.f32 %v1012, 0.26666668
  %v1029 = vmul.f32 %v1013, 0.26666668
  %v1030 = vmul.f32 %v1014, 0.26666668
  %v1031 = vmul.f32 %v1015, 0.26666668
  %v1032 = vld [vmem:[%s1 + $0x4] sm:$0x1]
  %v1033 = vld [vmem:[%s1 + $0xc] sm:$0x1]
  %v1034 = vld [vmem:[%s1 + $0x14] sm:$0x1]
  %v1035 = vld [vmem:[%s1 + $0x1c] sm:$0x1]
  %v1036 = vld [vmem:[%s1 + $0x24] sm:$0x1]
  %v1037 = vld [vmem:[%s1 + $0x2c] sm:$0x1]
  %v1038 = vld [vmem:[%s1 + $0x34] sm:$0x1]
  %v1039 = vld [vmem:[%s1 + $0x3c] sm:$0x1]
  %v1040 = vld [vmem:[%s1 + $0x44] sm:$0x1]
  %v1041 = vld [vmem:[%s1 + $0x4c] sm:$0x1]
  %v1042 = vld [vmem:[%s1 + $0x54] sm:$0x1]
  %v1043 = vld [vmem:[%s1 + $0x5c] sm:$0x1]
  %v1044 = vld [vmem:[%s1 + $0x64] sm:$0x1]
  %v1045 = vld [vmem:[%s1 + $0x6c] sm:$0x1]
  %v1046 = vld [vmem:[%s1 + $0x74] sm:$0x1]
  %v1047 = vld [vmem:[%s1 + $0x7c] sm:$0x1]
  %v1048 = vmul.f32 %v1032, 0.73333335
  %v1049 = vmul.f32 %v1033, 0.73333335
  %v1050 = vmul.f32 %v1034, 0.73333335
  %v1051 = vmul.f32 %v1035, 0.73333335
  %v1052 = vmul.f32 %v1036, 0.73333335
  %v1053 = vmul.f32 %v1037, 0.73333335
  %v1054 = vmul.f32 %v1038, 0.73333335
  %v1055 = vmul.f32 %v1039, 0.73333335
  %v1056 = vmul.f32 %v1040, 0.73333335
  %v1057 = vmul.f32 %v1041, 0.73333335
  %v1058 = vmul.f32 %v1042, 0.73333335
  %v1059 = vmul.f32 %v1043, 0.73333335
  %v1060 = vmul.f32 %v1044, 0.73333335
  %v1061 = vmul.f32 %v1045, 0.73333335
  %v1062 = vmul.f32 %v1046, 0.73333335
  %v1063 = vmul.f32 %v1047, 0.73333335
  %v1064 = vadd.f32 %v1016, %v1048
  %v1065 = vadd.f32 %v1017, %v1049
  %v1066 = vadd.f32 %v1018, %v1050
  %v1067 = vadd.f32 %v1019, %v1051
  %v1068 = vadd.f32 %v1020, %v1052
  %v1069 = vadd.f32 %v1021, %v1053
  %v1070 = vadd.f32 %v1022, %v1054
  %v1071 = vadd.f32 %v1023, %v1055
  %v1072 = vadd.f32 %v1024, %v1056
  %v1073 = vadd.f32 %v1025, %v1057
  %v1074 = vadd.f32 %v1026, %v1058
  %v1075 = vadd.f32 %v1027, %v1059
  %v1076 = vadd.f32 %v1028, %v1060
  %v1077 = vadd.f32 %v1029, %v1061
  %v1078 = vadd.f32 %v1030, %v1062
  %v1079 = vadd.f32 %v1031, %v1063
  %1080 = vst.msk [vmem:[#allocation2 + $0x8] sm:$0x1] %vm311, %v1064
  %1081 = vst.msk [vmem:[#allocation2 + $0x18] sm:$0x1] %vm311, %v1065
  %1082 = vst.msk [vmem:[#allocation2 + $0x28] sm:$0x1] %vm311, %v1066
  %1083 = vst.msk [vmem:[#allocation2 + $0x38] sm:$0x1] %vm311, %v1067
  %1084 = vst.msk [vmem:[#allocation2 + $0x48] sm:$0x1] %vm311, %v1068
  %1085 = vst.msk [vmem:[#allocation2 + $0x58] sm:$0x1] %vm311, %v1069
  %1086 = vst.msk [vmem:[#allocation2 + $0x68] sm:$0x1] %vm311, %v1070
  %1087 = vst.msk [vmem:[#allocation2 + $0x78] sm:$0x1] %vm311, %v1071
  %1088 = vst.msk [vmem:[#allocation2 + $0x88] sm:$0x1] %vm311, %v1072
  %1089 = vst.msk [vmem:[#allocation2 + $0x98] sm:$0x1] %vm311, %v1073
  %1090 = vst.msk [vmem:[#allocation2 + $0xa8] sm:$0x1] %vm311, %v1074
  %1091 = vst.msk [vmem:[#allocation2 + $0xb8] sm:$0x1] %vm311, %v1075
  %1092 = vst.msk [vmem:[#allocation2 + $0xc8] sm:$0x1] %vm311, %v1076
  %1093 = vst.msk [vmem:[#allocation2 + $0xd8] sm:$0x1] %vm311, %v1077
  %1094 = vst.msk [vmem:[#allocation2 + $0xe8] sm:$0x1] %vm311, %v1078
  %1095 = vst.msk [vmem:[#allocation2 + $0xf8] sm:$0x1] %vm311, %v1079
  %v1096 = vld [vmem:[%s1 + $0x4] sm:$0x1]
  %v1097 = vld [vmem:[%s1 + $0xc] sm:$0x1]
  %v1098 = vld [vmem:[%s1 + $0x14] sm:$0x1]
  %v1099 = vld [vmem:[%s1 + $0x1c] sm:$0x1]
  %v1100 = vld [vmem:[%s1 + $0x24] sm:$0x1]
  %v1101 = vld [vmem:[%s1 + $0x2c] sm:$0x1]
  %v1102 = vld [vmem:[%s1 + $0x34] sm:$0x1]
  %v1103 = vld [vmem:[%s1 + $0x3c] sm:$0x1]
  %v1104 = vld [vmem:[%s1 + $0x44] sm:$0x1]
  %v1105 = vld [vmem:[%s1 + $0x4c] sm:$0x1]
  %v1106 = vld [vmem:[%s1 + $0x54] sm:$0x1]
  %v1107 = vld [vmem:[%s1 + $0x5c] sm:$0x1]
  %v1108 = vld [vmem:[%s1 + $0x64] sm:$0x1]
  %v1109 = vld [vmem:[%s1 + $0x6c] sm:$0x1]
  %v1110 = vld [vmem:[%s1 + $0x74] sm:$0x1]
  %v1111 = vld [vmem:[%s1 + $0x7c] sm:$0x1]
  %v1112 = vmul.f32 %v1096, 0.8
  %v1113 = vmul.f32 %v1097, 0.8
  %v1114 = vmul.f32 %v1098, 0.8
  %v1115 = vmul.f32 %v1099, 0.8
  %v1116 = vmul.f32 %v1100, 0.8
  %v1117 = vmul.f32 %v1101, 0.8
  %v1118 = vmul.f32 %v1102, 0.8
  %v1119 = vmul.f32 %v1103, 0.8
  %v1120 = vmul.f32 %v1104, 0.8
  %v1121 = vmul.f32 %v1105, 0.8
  %v1122 = vmul.f32 %v1106, 0.8
  %v1123 = vmul.f32 %v1107, 0.8
  %v1124 = vmul.f32 %v1108, 0.8
  %v1125 = vmul.f32 %v1109, 0.8
  %v1126 = vmul.f32 %v1110, 0.8
  %v1127 = vmul.f32 %v1111, 0.8
  %v1128 = vld [vmem:[%s1 + $0x5] sm:$0x1]
  %v1129 = vld [vmem:[%s1 + $0xd] sm:$0x1]
  %v1130 = vld [vmem:[%s1 + $0x15] sm:$0x1]
  %v1131 = vld [vmem:[%s1 + $0x1d] sm:$0x1]
  %v1132 = vld [vmem:[%s1 + $0x25] sm:$0x1]
  %v1133 = vld [vmem:[%s1 + $0x2d] sm:$0x1]
  %v1134 = vld [vmem:[%s1 + $0x35] sm:$0x1]
  %v1135 = vld [vmem:[%s1 + $0x3d] sm:$0x1]
  %v1136 = vld [vmem:[%s1 + $0x45] sm:$0x1]
  %v1137 = vld [vmem:[%s1 + $0x4d] sm:$0x1]
  %v1138 = vld [vmem:[%s1 + $0x55] sm:$0x1]
  %v1139 = vld [vmem:[%s1 + $0x5d] sm:$0x1]
  %v1140 = vld [vmem:[%s1 + $0x65] sm:$0x1]
  %v1141 = vld [vmem:[%s1 + $0x6d] sm:$0x1]
  %v1142 = vld [vmem:[%s1 + $0x75] sm:$0x1]
  %v1143 = vld [vmem:[%s1 + $0x7d] sm:$0x1]
  %v1144 = vmul.f32 %v1128, 0.2
  %v1145 = vmul.f32 %v1129, 0.2
  %v1146 = vmul.f32 %v1130, 0.2
  %v1147 = vmul.f32 %v1131, 0.2
  %v1148 = vmul.f32 %v1132, 0.2
  %v1149 = vmul.f32 %v1133, 0.2
  %v1150 = vmul.f32 %v1134, 0.2
  %v1151 = vmul.f32 %v1135, 0.2
  %v1152 = vmul.f32 %v1136, 0.2
  %v1153 = vmul.f32 %v1137, 0.2
  %v1154 = vmul.f32 %v1138, 0.2
  %v1155 = vmul.f32 %v1139, 0.2
  %v1156 = vmul.f32 %v1140, 0.2
  %v1157 = vmul.f32 %v1141, 0.2
  %v1158 = vmul.f32 %v1142, 0.2
  %v1159 = vmul.f32 %v1143, 0.2
  %v1160 = vadd.f32 %v1112, %v1144
  %v1161 = vadd.f32 %v1113, %v1145
  %v1162 = vadd.f32 %v1114, %v1146
  %v1163 = vadd.f32 %v1115, %v1147
  %v1164 = vadd.f32 %v1116, %v1148
  %v1165 = vadd.f32 %v1117, %v1149
  %v1166 = vadd.f32 %v1118, %v1150
  %v1167 = vadd.f32 %v1119, %v1151
  %v1168 = vadd.f32 %v1120, %v1152
  %v1169 = vadd.f32 %v1121, %v1153
  %v1170 = vadd.f32 %v1122, %v1154
  %v1171 = vadd.f32 %v1123, %v1155
  %v1172 = vadd.f32 %v1124, %v1156
  %v1173 = vadd.f32 %v1125, %v1157
  %v1174 = vadd.f32 %v1126, %v1158
  %v1175 = vadd.f32 %v1127, %v1159
  %1176 = vst.msk [vmem:[#allocation2 + $0x9] sm:$0x1] %vm311, %v1160
  %1177 = vst.msk [vmem:[#allocation2 + $0x19] sm:$0x1] %vm311, %v1161
  %1178 = vst.msk [vmem:[#allocation2 + $0x29] sm:$0x1] %vm311, %v1162
  %1179 = vst.msk [vmem:[#allocation2 + $0x39] sm:$0x1] %vm311, %v1163
  %1180 = vst.msk [vmem:[#allocation2 + $0x49] sm:$0x1] %vm311, %v1164
  %1181 = vst.msk [vmem:[#allocation2 + $0x59] sm:$0x1] %vm311, %v1165
  %1182 = vst.msk [vmem:[#allocation2 + $0x69] sm:$0x1] %vm311, %v1166
  %1183 = vst.msk [vmem:[#allocation2 + $0x79] sm:$0x1] %vm311, %v1167
  %1184 = vst.msk [vmem:[#allocation2 + $0x89] sm:$0x1] %vm311, %v1168
  %1185 = vst.msk [vmem:[#allocation2 + $0x99] sm:$0x1] %vm311, %v1169
  %1186 = vst.msk [vmem:[#allocation2 + $0xa9] sm:$0x1] %vm311, %v1170
  %1187 = vst.msk [vmem:[#allocation2 + $0xb9] sm:$0x1] %vm311, %v1171
  %1188 = vst.msk [vmem:[#allocation2 + $0xc9] sm:$0x1] %vm311, %v1172
  %1189 = vst.msk [vmem:[#allocation2 + $0xd9] sm:$0x1] %vm311, %v1173
  %1190 = vst.msk [vmem:[#allocation2 + $0xe9] sm:$0x1] %vm311, %v1174
  %1191 = vst.msk [vmem:[#allocation2 + $0xf9] sm:$0x1] %vm311, %v1175
  %v1192 = vld [vmem:[%s1 + $0x4] sm:$0x1]
  %v1193 = vld [vmem:[%s1 + $0xc] sm:$0x1]
  %v1194 = vld [vmem:[%s1 + $0x14] sm:$0x1]
  %v1195 = vld [vmem:[%s1 + $0x1c] sm:$0x1]
  %v1196 = vld [vmem:[%s1 + $0x24] sm:$0x1]
  %v1197 = vld [vmem:[%s1 + $0x2c] sm:$0x1]
  %v1198 = vld [vmem:[%s1 + $0x34] sm:$0x1]
  %v1199 = vld [vmem:[%s1 + $0x3c] sm:$0x1]
  %v1200 = vld [vmem:[%s1 + $0x44] sm:$0x1]
  %v1201 = vld [vmem:[%s1 + $0x4c] sm:$0x1]
  %v1202 = vld [vmem:[%s1 + $0x54] sm:$0x1]
  %v1203 = vld [vmem:[%s1 + $0x5c] sm:$0x1]
  %v1204 = vld [vmem:[%s1 + $0x64] sm:$0x1]
  %v1205 = vld [vmem:[%s1 + $0x6c] sm:$0x1]
  %v1206 = vld [vmem:[%s1 + $0x74] sm:$0x1]
  %v1207 = vld [vmem:[%s1 + $0x7c] sm:$0x1]
  %v1208 = vmul.f32 %v1192, 0.33333334
  %v1209 = vmul.f32 %v1193, 0.33333334
  %v1210 = vmul.f32 %v1194, 0.33333334
  %v1211 = vmul.f32 %v1195, 0.33333334
  %v1212 = vmul.f32 %v1196, 0.33333334
  %v1213 = vmul.f32 %v1197, 0.33333334
  %v1214 = vmul.f32 %v1198, 0.33333334
  %v1215 = vmul.f32 %v1199, 0.33333334
  %v1216 = vmul.f32 %v1200, 0.33333334
  %v1217 = vmul.f32 %v1201, 0.33333334
  %v1218 = vmul.f32 %v1202, 0.33333334
  %v1219 = vmul.f32 %v1203, 0.33333334
  %v1220 = vmul.f32 %v1204, 0.33333334
  %v1221 = vmul.f32 %v1205, 0.33333334
  %v1222 = vmul.f32 %v1206, 0.33333334
  %v1223 = vmul.f32 %v1207, 0.33333334
  %v1224 = vld [vmem:[%s1 + $0x5] sm:$0x1]
  %v1225 = vld [vmem:[%s1 + $0xd] sm:$0x1]
  %v1226 = vld [vmem:[%s1 + $0x15] sm:$0x1]
  %v1227 = vld [vmem:[%s1 + $0x1d] sm:$0x1]
  %v1228 = vld [vmem:[%s1 + $0x25] sm:$0x1]
  %v1229 = vld [vmem:[%s1 + $0x2d] sm:$0x1]
  %v1230 = vld [vmem:[%s1 + $0x35] sm:$0x1]
  %v1231 = vld [vmem:[%s1 + $0x3d] sm:$0x1]
  %v1232 = vld [vmem:[%s1 + $0x45] sm:$0x1]
  %v1233 = vld [vmem:[%s1 + $0x4d] sm:$0x1]
  %v1234 = vld [vmem:[%s1 + $0x55] sm:$0x1]
  %v1235 = vld [vmem:[%s1 + $0x5d] sm:$0x1]
  %v1236 = vld [vmem:[%s1 + $0x65] sm:$0x1]
  %v1237 = vld [vmem:[%s1 + $0x6d] sm:$0x1]
  %v1238 = vld [vmem:[%s1 + $0x75] sm:$0x1]
  %v1239 = vld [vmem:[%s1 + $0x7d] sm:$0x1]
  %v1240 = vmul.f32 %v1224, 0.6666667
  %v1241 = vmul.f32 %v1225, 0.6666667
  %v1242 = vmul.f32 %v1226, 0.6666667
  %v1243 = vmul.f32 %v1227, 0.6666667
  %v1244 = vmul.f32 %v1228, 0.6666667
  %v1245 = vmul.f32 %v1229, 0.6666667
  %v1246 = vmul.f32 %v1230, 0.6666667
  %v1247 = vmul.f32 %v1231, 0.6666667
  %v1248 = vmul.f32 %v1232, 0.6666667
  %v1249 = vmul.f32 %v1233, 0.6666667
  %v1250 = vmul.f32 %v1234, 0.6666667
  %v1251 = vmul.f32 %v1235, 0.6666667
  %v1252 = vmul.f32 %v1236, 0.6666667
  %v1253 = vmul.f32 %v1237, 0.6666667
  %v1254 = vmul.f32 %v1238, 0.6666667
  %v1255 = vmul.f32 %v1239, 0.6666667
  %v1256 = vadd.f32 %v1208, %v1240
  %v1257 = vadd.f32 %v1209, %v1241
  %v1258 = vadd.f32 %v1210, %v1242
  %v1259 = vadd.f32 %v1211, %v1243
  %v1260 = vadd.f32 %v1212, %v1244
  %v1261 = vadd.f32 %v1213, %v1245
  %v1262 = vadd.f32 %v1214, %v1246
  %v1263 = vadd.f32 %v1215, %v1247
  %v1264 = vadd.f32 %v1216, %v1248
  %v1265 = vadd.f32 %v1217, %v1249
  %v1266 = vadd.f32 %v1218, %v1250
  %v1267 = vadd.f32 %v1219, %v1251
  %v1268 = vadd.f32 %v1220, %v1252
  %v1269 = vadd.f32 %v1221, %v1253
  %v1270 = vadd.f32 %v1222, %v1254
  %v1271 = vadd.f32 %v1223, %v1255
  %1272 = vst.msk [vmem:[#allocation2 + $0xa] sm:$0x1] %vm311, %v1256
  %1273 = vst.msk [vmem:[#allocation2 + $0x1a] sm:$0x1] %vm311, %v1257
  %1274 = vst.msk [vmem:[#allocation2 + $0x2a] sm:$0x1] %vm311, %v1258
  %1275 = vst.msk [vmem:[#allocation2 + $0x3a] sm:$0x1] %vm311, %v1259
  %1276 = vst.msk [vmem:[#allocation2 + $0x4a] sm:$0x1] %vm311, %v1260
  %1277 = vst.msk [vmem:[#allocation2 + $0x5a] sm:$0x1] %vm311, %v1261
  %1278 = vst.msk [vmem:[#allocation2 + $0x6a] sm:$0x1] %vm311, %v1262
  %1279 = vst.msk [vmem:[#allocation2 + $0x7a] sm:$0x1] %vm311, %v1263
  %1280 = vst.msk [vmem:[#allocation2 + $0x8a] sm:$0x1] %vm311, %v1264
  %1281 = vst.msk [vmem:[#allocation2 + $0x9a] sm:$0x1] %vm311, %v1265
  %1282 = vst.msk [vmem:[#allocation2 + $0xaa] sm:$0x1] %vm311, %v1266
  %1283 = vst.msk [vmem:[#allocation2 + $0xba] sm:$0x1] %vm311, %v1267
  %1284 = vst.msk [vmem:[#allocation2 + $0xca] sm:$0x1] %vm311, %v1268
  %1285 = vst.msk [vmem:[#allocation2 + $0xda] sm:$0x1] %vm311, %v1269
  %1286 = vst.msk [vmem:[#allocation2 + $0xea] sm:$0x1] %vm311, %v1270
  %1287 = vst.msk [vmem:[#allocation2 + $0xfa] sm:$0x1] %vm311, %v1271
  %v1288 = vld [vmem:[%s1 + $0x5] sm:$0x1]
  %v1289 = vld [vmem:[%s1 + $0xd] sm:$0x1]
  %v1290 = vld [vmem:[%s1 + $0x15] sm:$0x1]
  %v1291 = vld [vmem:[%s1 + $0x1d] sm:$0x1]
  %v1292 = vld [vmem:[%s1 + $0x25] sm:$0x1]
  %v1293 = vld [vmem:[%s1 + $0x2d] sm:$0x1]
  %v1294 = vld [vmem:[%s1 + $0x35] sm:$0x1]
  %v1295 = vld [vmem:[%s1 + $0x3d] sm:$0x1]
  %v1296 = vld [vmem:[%s1 + $0x45] sm:$0x1]
  %v1297 = vld [vmem:[%s1 + $0x4d] sm:$0x1]
  %v1298 = vld [vmem:[%s1 + $0x55] sm:$0x1]
  %v1299 = vld [vmem:[%s1 + $0x5d] sm:$0x1]
  %v1300 = vld [vmem:[%s1 + $0x65] sm:$0x1]
  %v1301 = vld [vmem:[%s1 + $0x6d] sm:$0x1]
  %v1302 = vld [vmem:[%s1 + $0x75] sm:$0x1]
  %v1303 = vld [vmem:[%s1 + $0x7d] sm:$0x1]
  %v1304 = vmul.f32 %v1288, 0.8666667
  %v1305 = vmul.f32 %v1289, 0.8666667
  %v1306 = vmul.f32 %v1290, 0.8666667
  %v1307 = vmul.f32 %v1291, 0.8666667
  %v1308 = vmul.f32 %v1292, 0.8666667
  %v1309 = vmul.f32 %v1293, 0.8666667
  %v1310 = vmul.f32 %v1294, 0.8666667
  %v1311 = vmul.f32 %v1295, 0.8666667
  %v1312 = vmul.f32 %v1296, 0.8666667
  %v1313 = vmul.f32 %v1297, 0.8666667
  %v1314 = vmul.f32 %v1298, 0.8666667
  %v1315 = vmul.f32 %v1299, 0.8666667
  %v1316 = vmul.f32 %v1300, 0.8666667
  %v1317 = vmul.f32 %v1301, 0.8666667
  %v1318 = vmul.f32 %v1302, 0.8666667
  %v1319 = vmul.f32 %v1303, 0.8666667
  %v1320 = vld [vmem:[%s1 + $0x6] sm:$0x1]
  %v1321 = vld [vmem:[%s1 + $0xe] sm:$0x1]
  %v1322 = vld [vmem:[%s1 + $0x16] sm:$0x1]
  %v1323 = vld [vmem:[%s1 + $0x1e] sm:$0x1]
  %v1324 = vld [vmem:[%s1 + $0x26] sm:$0x1]
  %v1325 = vld [vmem:[%s1 + $0x2e] sm:$0x1]
  %v1326 = vld [vmem:[%s1 + $0x36] sm:$0x1]
  %v1327 = vld [vmem:[%s1 + $0x3e] sm:$0x1]
  %v1328 = vld [vmem:[%s1 + $0x46] sm:$0x1]
  %v1329 = vld [vmem:[%s1 + $0x4e] sm:$0x1]
  %v1330 = vld [vmem:[%s1 + $0x56] sm:$0x1]
  %v1331 = vld [vmem:[%s1 + $0x5e] sm:$0x1]
  %v1332 = vld [vmem:[%s1 + $0x66] sm:$0x1]
  %v1333 = vld [vmem:[%s1 + $0x6e] sm:$0x1]
  %v1334 = vld [vmem:[%s1 + $0x76] sm:$0x1]
  %v1335 = vld [vmem:[%s1 + $0x7e] sm:$0x1]
  %v1336 = vmul.f32 %v1320, 0.13333334
  %v1337 = vmul.f32 %v1321, 0.13333334
  %v1338 = vmul.f32 %v1322, 0.13333334
  %v1339 = vmul.f32 %v1323, 0.13333334
  %v1340 = vmul.f32 %v1324, 0.13333334
  %v1341 = vmul.f32 %v1325, 0.13333334
  %v1342 = vmul.f32 %v1326, 0.13333334
  %v1343 = vmul.f32 %v1327, 0.13333334
  %v1344 = vmul.f32 %v1328, 0.13333334
  %v1345 = vmul.f32 %v1329, 0.13333334
  %v1346 = vmul.f32 %v1330, 0.13333334
  %v1347 = vmul.f32 %v1331, 0.13333334
  %v1348 = vmul.f32 %v1332, 0.13333334
  %v1349 = vmul.f32 %v1333, 0.13333334
  %v1350 = vmul.f32 %v1334, 0.13333334
  %v1351 = vmul.f32 %v1335, 0.13333334
  %v1352 = vadd.f32 %v1304, %v1336
  %v1353 = vadd.f32 %v1305, %v1337
  %v1354 = vadd.f32 %v1306, %v1338
  %v1355 = vadd.f32 %v1307, %v1339
  %v1356 = vadd.f32 %v1308, %v1340
  %v1357 = vadd.f32 %v1309, %v1341
  %v1358 = vadd.f32 %v1310, %v1342
  %v1359 = vadd.f32 %v1311, %v1343
  %v1360 = vadd.f32 %v1312, %v1344
  %v1361 = vadd.f32 %v1313, %v1345
  %v1362 = vadd.f32 %v1314, %v1346
  %v1363 = vadd.f32 %v1315, %v1347
  %v1364 = vadd.f32 %v1316, %v1348
  %v1365 = vadd.f32 %v1317, %v1349
  %v1366 = vadd.f32 %v1318, %v1350
  %v1367 = vadd.f32 %v1319, %v1351
  %1368 = vst.msk [vmem:[#allocation2 + $0xb] sm:$0x1] %vm311, %v1352
  %1369 = vst.msk [vmem:[#allocation2 + $0x1b] sm:$0x1] %vm311, %v1353
  %1370 = vst.msk [vmem:[#allocation2 + $0x2b] sm:$0x1] %vm311, %v1354
  %1371 = vst.msk [vmem:[#allocation2 + $0x3b] sm:$0x1] %vm311, %v1355
  %1372 = vst.msk [vmem:[#allocation2 + $0x4b] sm:$0x1] %vm311, %v1356
  %1373 = vst.msk [vmem:[#allocation2 + $0x5b] sm:$0x1] %vm311, %v1357
  %1374 = vst.msk [vmem:[#allocation2 + $0x6b] sm:$0x1] %vm311, %v1358
  %1375 = vst.msk [vmem:[#allocation2 + $0x7b] sm:$0x1] %vm311, %v1359
  %1376 = vst.msk [vmem:[#allocation2 + $0x8b] sm:$0x1] %vm311, %v1360
  %1377 = vst.msk [vmem:[#allocation2 + $0x9b] sm:$0x1] %vm311, %v1361
  %1378 = vst.msk [vmem:[#allocation2 + $0xab] sm:$0x1] %vm311, %v1362
  %1379 = vst.msk [vmem:[#allocation2 + $0xbb] sm:$0x1] %vm311, %v1363
  %1380 = vst.msk [vmem:[#allocation2 + $0xcb] sm:$0x1] %vm311, %v1364
  %1381 = vst.msk [vmem:[#allocation2 + $0xdb] sm:$0x1] %vm311, %v1365
  %1382 = vst.msk [vmem:[#allocation2 + $0xeb] sm:$0x1] %vm311, %v1366
  %1383 = vst.msk [vmem:[#allocation2 + $0xfb] sm:$0x1] %vm311, %v1367
  %v1384 = vld [vmem:[%s1 + $0x5] sm:$0x1]
  %v1385 = vld [vmem:[%s1 + $0xd] sm:$0x1]
  %v1386 = vld [vmem:[%s1 + $0x15] sm:$0x1]
  %v1387 = vld [vmem:[%s1 + $0x1d] sm:$0x1]
  %v1388 = vld [vmem:[%s1 + $0x25] sm:$0x1]
  %v1389 = vld [vmem:[%s1 + $0x2d] sm:$0x1]
  %v1390 = vld [vmem:[%s1 + $0x35] sm:$0x1]
  %v1391 = vld [vmem:[%s1 + $0x3d] sm:$0x1]
  %v1392 = vld [vmem:[%s1 + $0x45] sm:$0x1]
  %v1393 = vld [vmem:[%s1 + $0x4d] sm:$0x1]
  %v1394 = vld [vmem:[%s1 + $0x55] sm:$0x1]
  %v1395 = vld [vmem:[%s1 + $0x5d] sm:$0x1]
  %v1396 = vld [vmem:[%s1 + $0x65] sm:$0x1]
  %v1397 = vld [vmem:[%s1 + $0x6d] sm:$0x1]
  %v1398 = vld [vmem:[%s1 + $0x75] sm:$0x1]
  %v1399 = vld [vmem:[%s1 + $0x7d] sm:$0x1]
  %v1400 = vmul.f32 %v1384, 0.4
  %v1401 = vmul.f32 %v1385, 0.4
  %v1402 = vmul.f32 %v1386, 0.4
  %v1403 = vmul.f32 %v1387, 0.4
  %v1404 = vmul.f32 %v1388, 0.4
  %v1405 = vmul.f32 %v1389, 0.4
  %v1406 = vmul.f32 %v1390, 0.4
  %v1407 = vmul.f32 %v1391, 0.4
  %v1408 = vmul.f32 %v1392, 0.4
  %v1409 = vmul.f32 %v1393, 0.4
  %v1410 = vmul.f32 %v1394, 0.4
  %v1411 = vmul.f32 %v1395, 0.4
  %v1412 = vmul.f32 %v1396, 0.4
  %v1413 = vmul.f32 %v1397, 0.4
  %v1414 = vmul.f32 %v1398, 0.4
  %v1415 = vmul.f32 %v1399, 0.4
  %v1416 = vld [vmem:[%s1 + $0x6] sm:$0x1]
  %v1417 = vld [vmem:[%s1 + $0xe] sm:$0x1]
  %v1418 = vld [vmem:[%s1 + $0x16] sm:$0x1]
  %v1419 = vld [vmem:[%s1 + $0x1e] sm:$0x1]
  %v1420 = vld [vmem:[%s1 + $0x26] sm:$0x1]
  %v1421 = vld [vmem:[%s1 + $0x2e] sm:$0x1]
  %v1422 = vld [vmem:[%s1 + $0x36] sm:$0x1]
  %v1423 = vld [vmem:[%s1 + $0x3e] sm:$0x1]
  %v1424 = vld [vmem:[%s1 + $0x46] sm:$0x1]
  %v1425 = vld [vmem:[%s1 + $0x4e] sm:$0x1]
  %v1426 = vld [vmem:[%s1 + $0x56] sm:$0x1]
  %v1427 = vld [vmem:[%s1 + $0x5e] sm:$0x1]
  %v1428 = vld [vmem:[%s1 + $0x66] sm:$0x1]
  %v1429 = vld [vmem:[%s1 + $0x6e] sm:$0x1]
  %v1430 = vld [vmem:[%s1 + $0x76] sm:$0x1]
  %v1431 = vld [vmem:[%s1 + $0x7e] sm:$0x1]
  %v1432 = vmul.f32 %v1416, 0.6
  %v1433 = vmul.f32 %v1417, 0.6
  %v1434 = vmul.f32 %v1418, 0.6
  %v1435 = vmul.f32 %v1419, 0.6
  %v1436 = vmul.f32 %v1420, 0.6
  %v1437 = vmul.f32 %v1421, 0.6
  %v1438 = vmul.f32 %v1422, 0.6
  %v1439 = vmul.f32 %v1423, 0.6
  %v1440 = vmul.f32 %v1424, 0.6
  %v1441 = vmul.f32 %v1425, 0.6
  %v1442 = vmul.f32 %v1426, 0.6
  %v1443 = vmul.f32 %v1427, 0.6
  %v1444 = vmul.f32 %v1428, 0.6
  %v1445 = vmul.f32 %v1429, 0.6
  %v1446 = vmul.f32 %v1430, 0.6
  %v1447 = vmul.f32 %v1431, 0.6
  %v1448 = vadd.f32 %v1400, %v1432
  %v1449 = vadd.f32 %v1401, %v1433
  %v1450 = vadd.f32 %v1402, %v1434
  %v1451 = vadd.f32 %v1403, %v1435
  %v1452 = vadd.f32 %v1404, %v1436
  %v1453 = vadd.f32 %v1405, %v1437
  %v1454 = vadd.f32 %v1406, %v1438
  %v1455 = vadd.f32 %v1407, %v1439
  %v1456 = vadd.f32 %v1408, %v1440
  %v1457 = vadd.f32 %v1409, %v1441
  %v1458 = vadd.f32 %v1410, %v1442
  %v1459 = vadd.f32 %v1411, %v1443
  %v1460 = vadd.f32 %v1412, %v1444
  %v1461 = vadd.f32 %v1413, %v1445
  %v1462 = vadd.f32 %v1414, %v1446
  %v1463 = vadd.f32 %v1415, %v1447
  %1464 = vst.msk [vmem:[#allocation2 + $0xc] sm:$0x1] %vm311, %v1448
  %1465 = vst.msk [vmem:[#allocation2 + $0x1c] sm:$0x1] %vm311, %v1449
  %1466 = vst.msk [vmem:[#allocation2 + $0x2c] sm:$0x1] %vm311, %v1450
  %1467 = vst.msk [vmem:[#allocation2 + $0x3c] sm:$0x1] %vm311, %v1451
  %1468 = vst.msk [vmem:[#allocation2 + $0x4c] sm:$0x1] %vm311, %v1452
  %1469 = vst.msk [vmem:[#allocation2 + $0x5c] sm:$0x1] %vm311, %v1453
  %1470 = vst.msk [vmem:[#allocation2 + $0x6c] sm:$0x1] %vm311, %v1454
  %1471 = vst.msk [vmem:[#allocation2 + $0x7c] sm:$0x1] %vm311, %v1455
  %1472 = vst.msk [vmem:[#allocation2 + $0x8c] sm:$0x1] %vm311, %v1456
  %1473 = vst.msk [vmem:[#allocation2 + $0x9c] sm:$0x1] %vm311, %v1457
  %1474 = vst.msk [vmem:[#allocation2 + $0xac] sm:$0x1] %vm311, %v1458
  %1475 = vst.msk [vmem:[#allocation2 + $0xbc] sm:$0x1] %vm311, %v1459
  %1476 = vst.msk [vmem:[#allocation2 + $0xcc] sm:$0x1] %vm311, %v1460
  %1477 = vst.msk [vmem:[#allocation2 + $0xdc] sm:$0x1] %vm311, %v1461
  %1478 = vst.msk [vmem:[#allocation2 + $0xec] sm:$0x1] %vm311, %v1462
  %1479 = vst.msk [vmem:[#allocation2 + $0xfc] sm:$0x1] %vm311, %v1463
  %v1480 = vld [vmem:[%s1 + $0x6] sm:$0x1]
  %v1481 = vld [vmem:[%s1 + $0xe] sm:$0x1]
  %v1482 = vld [vmem:[%s1 + $0x16] sm:$0x1]
  %v1483 = vld [vmem:[%s1 + $0x1e] sm:$0x1]
  %v1484 = vld [vmem:[%s1 + $0x26] sm:$0x1]
  %v1485 = vld [vmem:[%s1 + $0x2e] sm:$0x1]
  %v1486 = vld [vmem:[%s1 + $0x36] sm:$0x1]
  %v1487 = vld [vmem:[%s1 + $0x3e] sm:$0x1]
  %v1488 = vld [vmem:[%s1 + $0x46] sm:$0x1]
  %v1489 = vld [vmem:[%s1 + $0x4e] sm:$0x1]
  %v1490 = vld [vmem:[%s1 + $0x56] sm:$0x1]
  %v1491 = vld [vmem:[%s1 + $0x5e] sm:$0x1]
  %v1492 = vld [vmem:[%s1 + $0x66] sm:$0x1]
  %v1493 = vld [vmem:[%s1 + $0x6e] sm:$0x1]
  %v1494 = vld [vmem:[%s1 + $0x76] sm:$0x1]
  %v1495 = vld [vmem:[%s1 + $0x7e] sm:$0x1]
  %v1496 = vmul.f32 %v1480, 0.93333334
  %v1497 = vmul.f32 %v1481, 0.93333334
  %v1498 = vmul.f32 %v1482, 0.93333334
  %v1499 = vmul.f32 %v1483, 0.93333334
  %v1500 = vmul.f32 %v1484, 0.93333334
  %v1501 = vmul.f32 %v1485, 0.93333334
  %v1502 = vmul.f32 %v1486, 0.93333334
  %v1503 = vmul.f32 %v1487, 0.93333334
  %v1504 = vmul.f32 %v1488, 0.93333334
  %v1505 = vmul.f32 %v1489, 0.93333334
  %v1506 = vmul.f32 %v1490, 0.93333334
  %v1507 = vmul.f32 %v1491, 0.93333334
  %v1508 = vmul.f32 %v1492, 0.93333334
  %v1509 = vmul.f32 %v1493, 0.93333334
  %v1510 = vmul.f32 %v1494, 0.93333334
  %v1511 = vmul.f32 %v1495, 0.93333334
  %v1512 = vld [vmem:[%s1 + $0x7] sm:$0x1]
  %v1513 = vld [vmem:[%s1 + $0xf] sm:$0x1]
  %v1514 = vld [vmem:[%s1 + $0x17] sm:$0x1]
  %v1515 = vld [vmem:[%s1 + $0x1f] sm:$0x1]
  %v1516 = vld [vmem:[%s1 + $0x27] sm:$0x1]
  %v1517 = vld [vmem:[%s1 + $0x2f] sm:$0x1]
  %v1518 = vld [vmem:[%s1 + $0x37] sm:$0x1]
  %v1519 = vld [vmem:[%s1 + $0x3f] sm:$0x1]
  %v1520 = vld [vmem:[%s1 + $0x47] sm:$0x1]
  %v1521 = vld [vmem:[%s1 + $0x4f] sm:$0x1]
  %v1522 = vld [vmem:[%s1 + $0x57] sm:$0x1]
  %v1523 = vld [vmem:[%s1 + $0x5f] sm:$0x1]
  %v1524 = vld [vmem:[%s1 + $0x67] sm:$0x1]
  %v1525 = vld [vmem:[%s1 + $0x6f] sm:$0x1]
  %v1526 = vld [vmem:[%s1 + $0x77] sm:$0x1]
  %v1527 = vld [vmem:[%s1 + $0x7f] sm:$0x1]
  %v1528 = vmul.f32 %v1512, 0.06666667
  %v1529 = vmul.f32 %v1513, 0.06666667
  %v1530 = vmul.f32 %v1514, 0.06666667
  %v1531 = vmul.f32 %v1515, 0.06666667
  %v1532 = vmul.f32 %v1516, 0.06666667
  %v1533 = vmul.f32 %v1517, 0.06666667
  %v1534 = vmul.f32 %v1518, 0.06666667
  %v1535 = vmul.f32 %v1519, 0.06666667
  %v1536 = vmul.f32 %v1520, 0.06666667
  %v1537 = vmul.f32 %v1521, 0.06666667
  %v1538 = vmul.f32 %v1522, 0.06666667
  %v1539 = vmul.f32 %v1523, 0.06666667
  %v1540 = vmul.f32 %v1524, 0.06666667
  %v1541 = vmul.f32 %v1525, 0.06666667
  %v1542 = vmul.f32 %v1526, 0.06666667
  %v1543 = vmul.f32 %v1527, 0.06666667
  %v1544 = vadd.f32 %v1496, %v1528
  %v1545 = vadd.f32 %v1497, %v1529
  %v1546 = vadd.f32 %v1498, %v1530
  %v1547 = vadd.f32 %v1499, %v1531
  %v1548 = vadd.f32 %v1500, %v1532
  %v1549 = vadd.f32 %v1501, %v1533
  %v1550 = vadd.f32 %v1502, %v1534
  %v1551 = vadd.f32 %v1503, %v1535
  %v1552 = vadd.f32 %v1504, %v1536
  %v1553 = vadd.f32 %v1505, %v1537
  %v1554 = vadd.f32 %v1506, %v1538
  %v1555 = vadd.f32 %v1507, %v1539
  %v1556 = vadd.f32 %v1508, %v1540
  %v1557 = vadd.f32 %v1509, %v1541
  %v1558 = vadd.f32 %v1510, %v1542
  %v1559 = vadd.f32 %v1511, %v1543
  %1560 = vst.msk [vmem:[#allocation2 + $0xd] sm:$0x1] %vm311, %v1544
  %1561 = vst.msk [vmem:[#allocation2 + $0x1d] sm:$0x1] %vm311, %v1545
  %1562 = vst.msk [vmem:[#allocation2 + $0x2d] sm:$0x1] %vm311, %v1546
  %1563 = vst.msk [vmem:[#allocation2 + $0x3d] sm:$0x1] %vm311, %v1547
  %1564 = vst.msk [vmem:[#allocation2 + $0x4d] sm:$0x1] %vm311, %v1548
  %1565 = vst.msk [vmem:[#allocation2 + $0x5d] sm:$0x1] %vm311, %v1549
  %1566 = vst.msk [vmem:[#allocation2 + $0x6d] sm:$0x1] %vm311, %v1550
  %1567 = vst.msk [vmem:[#allocation2 + $0x7d] sm:$0x1] %vm311, %v1551
  %1568 = vst.msk [vmem:[#allocation2 + $0x8d] sm:$0x1] %vm311, %v1552
  %1569 = vst.msk [vmem:[#allocation2 + $0x9d] sm:$0x1] %vm311, %v1553
  %1570 = vst.msk [vmem:[#allocation2 + $0xad] sm:$0x1] %vm311, %v1554
  %1571 = vst.msk [vmem:[#allocation2 + $0xbd] sm:$0x1] %vm311, %v1555
  %1572 = vst.msk [vmem:[#allocation2 + $0xcd] sm:$0x1] %vm311, %v1556
  %1573 = vst.msk [vmem:[#allocation2 + $0xdd] sm:$0x1] %vm311, %v1557
  %1574 = vst.msk [vmem:[#allocation2 + $0xed] sm:$0x1] %vm311, %v1558
  %1575 = vst.msk [vmem:[#allocation2 + $0xfd] sm:$0x1] %vm311, %v1559
  %v1576 = vld [vmem:[%s1 + $0x6] sm:$0x1]
  %v1577 = vld [vmem:[%s1 + $0xe] sm:$0x1]
  %v1578 = vld [vmem:[%s1 + $0x16] sm:$0x1]
  %v1579 = vld [vmem:[%s1 + $0x1e] sm:$0x1]
  %v1580 = vld [vmem:[%s1 + $0x26] sm:$0x1]
  %v1581 = vld [vmem:[%s1 + $0x2e] sm:$0x1]
  %v1582 = vld [vmem:[%s1 + $0x36] sm:$0x1]
  %v1583 = vld [vmem:[%s1 + $0x3e] sm:$0x1]
  %v1584 = vld [vmem:[%s1 + $0x46] sm:$0x1]
  %v1585 = vld [vmem:[%s1 + $0x4e] sm:$0x1]
  %v1586 = vld [vmem:[%s1 + $0x56] sm:$0x1]
  %v1587 = vld [vmem:[%s1 + $0x5e] sm:$0x1]
  %v1588 = vld [vmem:[%s1 + $0x66] sm:$0x1]
  %v1589 = vld [vmem:[%s1 + $0x6e] sm:$0x1]
  %v1590 = vld [vmem:[%s1 + $0x76] sm:$0x1]
  %v1591 = vld [vmem:[%s1 + $0x7e] sm:$0x1]
  %v1592 = vmul.f32 %v1576, 0.46666667
  %v1593 = vmul.f32 %v1577, 0.46666667
  %v1594 = vmul.f32 %v1578, 0.46666667
  %v1595 = vmul.f32 %v1579, 0.46666667
  %v1596 = vmul.f32 %v1580, 0.46666667
  %v1597 = vmul.f32 %v1581, 0.46666667
  %v1598 = vmul.f32 %v1582, 0.46666667
  %v1599 = vmul.f32 %v1583, 0.46666667
  %v1600 = vmul.f32 %v1584, 0.46666667
  %v1601 = vmul.f32 %v1585, 0.46666667
  %v1602 = vmul.f32 %v1586, 0.46666667
  %v1603 = vmul.f32 %v1587, 0.46666667
  %v1604 = vmul.f32 %v1588, 0.46666667
  %v1605 = vmul.f32 %v1589, 0.46666667
  %v1606 = vmul.f32 %v1590, 0.46666667
  %v1607 = vmul.f32 %v1591, 0.46666667
  %v1608 = vld [vmem:[%s1 + $0x7] sm:$0x1]
  %v1609 = vld [vmem:[%s1 + $0xf] sm:$0x1]
  %v1610 = vld [vmem:[%s1 + $0x17] sm:$0x1]
  %v1611 = vld [vmem:[%s1 + $0x1f] sm:$0x1]
  %v1612 = vld [vmem:[%s1 + $0x27] sm:$0x1]
  %v1613 = vld [vmem:[%s1 + $0x2f] sm:$0x1]
  %v1614 = vld [vmem:[%s1 + $0x37] sm:$0x1]
  %v1615 = vld [vmem:[%s1 + $0x3f] sm:$0x1]
  %v1616 = vld [vmem:[%s1 + $0x47] sm:$0x1]
  %v1617 = vld [vmem:[%s1 + $0x4f] sm:$0x1]
  %v1618 = vld [vmem:[%s1 + $0x57] sm:$0x1]
  %v1619 = vld [vmem:[%s1 + $0x5f] sm:$0x1]
  %v1620 = vld [vmem:[%s1 + $0x67] sm:$0x1]
  %v1621 = vld [vmem:[%s1 + $0x6f] sm:$0x1]
  %v1622 = vld [vmem:[%s1 + $0x77] sm:$0x1]
  %v1623 = vld [vmem:[%s1 + $0x7f] sm:$0x1]
  %v1624 = vmul.f32 %v1608, 0.53333336
  %v1625 = vmul.f32 %v1609, 0.53333336
  %v1626 = vmul.f32 %v1610, 0.53333336
  %v1627 = vmul.f32 %v1611, 0.53333336
  %v1628 = vmul.f32 %v1612, 0.53333336
  %v1629 = vmul.f32 %v1613, 0.53333336
  %v1630 = vmul.f32 %v1614, 0.53333336
  %v1631 = vmul.f32 %v1615, 0.53333336
  %v1632 = vmul.f32 %v1616, 0.53333336
  %v1633 = vmul.f32 %v1617, 0.53333336
  %v1634 = vmul.f32 %v1618, 0.53333336
  %v1635 = vmul.f32 %v1619, 0.53333336
  %v1636 = vmul.f32 %v1620, 0.53333336
  %v1637 = vmul.f32 %v1621, 0.53333336
  %v1638 = vmul.f32 %v1622, 0.53333336
  %v1639 = vmul.f32 %v1623, 0.53333336
  %v1640 = vadd.f32 %v1592, %v1624
  %v1641 = vadd.f32 %v1593, %v1625
  %v1642 = vadd.f32 %v1594, %v1626
  %v1643 = vadd.f32 %v1595, %v1627
  %v1644 = vadd.f32 %v1596, %v1628
  %v1645 = vadd.f32 %v1597, %v1629
  %v1646 = vadd.f32 %v1598, %v1630
  %v1647 = vadd.f32 %v1599, %v1631
  %v1648 = vadd.f32 %v1600, %v1632
  %v1649 = vadd.f32 %v1601, %v1633
  %v1650 = vadd.f32 %v1602, %v1634
  %v1651 = vadd.f32 %v1603, %v1635
  %v1652 = vadd.f32 %v1604, %v1636
  %v1653 = vadd.f32 %v1605, %v1637
  %v1654 = vadd.f32 %v1606, %v1638
  %v1655 = vadd.f32 %v1607, %v1639
  %1656 = vst.msk [vmem:[#allocation2 + $0xe] sm:$0x1] %vm311, %v1640
  %1657 = vst.msk [vmem:[#allocation2 + $0x1e] sm:$0x1] %vm311, %v1641
  %1658 = vst.msk [vmem:[#allocation2 + $0x2e] sm:$0x1] %vm311, %v1642
  %1659 = vst.msk [vmem:[#allocation2 + $0x3e] sm:$0x1] %vm311, %v1643
  %1660 = vst.msk [vmem:[#allocation2 + $0x4e] sm:$0x1] %vm311, %v1644
  %1661 = vst.msk [vmem:[#allocation2 + $0x5e] sm:$0x1] %vm311, %v1645
  %1662 = vst.msk [vmem:[#allocation2 + $0x6e] sm:$0x1] %vm311, %v1646
  %1663 = vst.msk [vmem:[#allocation2 + $0x7e] sm:$0x1] %vm311, %v1647
  %1664 = vst.msk [vmem:[#allocation2 + $0x8e] sm:$0x1] %vm311, %v1648
  %1665 = vst.msk [vmem:[#allocation2 + $0x9e] sm:$0x1] %vm311, %v1649
  %1666 = vst.msk [vmem:[#allocation2 + $0xae] sm:$0x1] %vm311, %v1650
  %1667 = vst.msk [vmem:[#allocation2 + $0xbe] sm:$0x1] %vm311, %v1651
  %1668 = vst.msk [vmem:[#allocation2 + $0xce] sm:$0x1] %vm311, %v1652
  %1669 = vst.msk [vmem:[#allocation2 + $0xde] sm:$0x1] %vm311, %v1653
  %1670 = vst.msk [vmem:[#allocation2 + $0xee] sm:$0x1] %vm311, %v1654
  %1671 = vst.msk [vmem:[#allocation2 + $0xfe] sm:$0x1] %vm311, %v1655
  %v1672 = vld [vmem:[%s1 + $0x7] sm:$0x1]
  %v1673 = vld [vmem:[%s1 + $0xf] sm:$0x1]
  %v1674 = vld [vmem:[%s1 + $0x17] sm:$0x1]
  %v1675 = vld [vmem:[%s1 + $0x1f] sm:$0x1]
  %v1676 = vld [vmem:[%s1 + $0x27] sm:$0x1]
  %v1677 = vld [vmem:[%s1 + $0x2f] sm:$0x1]
  %v1678 = vld [vmem:[%s1 + $0x37] sm:$0x1]
  %v1679 = vld [vmem:[%s1 + $0x3f] sm:$0x1]
  %v1680 = vld [vmem:[%s1 + $0x47] sm:$0x1]
  %v1681 = vld [vmem:[%s1 + $0x4f] sm:$0x1]
  %v1682 = vld [vmem:[%s1 + $0x57] sm:$0x1]
  %v1683 = vld [vmem:[%s1 + $0x5f] sm:$0x1]
  %v1684 = vld [vmem:[%s1 + $0x67] sm:$0x1]
  %v1685 = vld [vmem:[%s1 + $0x6f] sm:$0x1]
  %v1686 = vld [vmem:[%s1 + $0x77] sm:$0x1]
  %v1687 = vld [vmem:[%s1 + $0x7f] sm:$0x1]
  %v1688 = vmul.f32 %v1672, 0.0
  %v1689 = vmul.f32 %v1673, 0.0
  %v1690 = vmul.f32 %v1674, 0.0
  %v1691 = vmul.f32 %v1675, 0.0
  %v1692 = vmul.f32 %v1676, 0.0
  %v1693 = vmul.f32 %v1677, 0.0
  %v1694 = vmul.f32 %v1678, 0.0
  %v1695 = vmul.f32 %v1679, 0.0
  %v1696 = vmul.f32 %v1680, 0.0
  %v1697 = vmul.f32 %v1681, 0.0
  %v1698 = vmul.f32 %v1682, 0.0
  %v1699 = vmul.f32 %v1683, 0.0
  %v1700 = vmul.f32 %v1684, 0.0
  %v1701 = vmul.f32 %v1685, 0.0
  %v1702 = vmul.f32 %v1686, 0.0
  %v1703 = vmul.f32 %v1687, 0.0
  %v1704 = vadd.f32 %v1672, %v1688
  %v1705 = vadd.f32 %v1673, %v1689
  %v1706 = vadd.f32 %v1674, %v1690
  %v1707 = vadd.f32 %v1675, %v1691
  %v1708 = vadd.f32 %v1676, %v1692
  %v1709 = vadd.f32 %v1677, %v1693
  %v1710 = vadd.f32 %v1678, %v1694
  %v1711 = vadd.f32 %v1679, %v1695
  %v1712 = vadd.f32 %v1680, %v1696
  %v1713 = vadd.f32 %v1681, %v1697
  %v1714 = vadd.f32 %v1682, %v1698
  %v1715 = vadd.f32 %v1683, %v1699
  %v1716 = vadd.f32 %v1684, %v1700
  %v1717 = vadd.f32 %v1685, %v1701
  %v1718 = vadd.f32 %v1686, %v1702
  %v1719 = vadd.f32 %v1687, %v1703
  %1720 = vst.msk [vmem:[#allocation2 + $0xf] sm:$0x1] %vm311, %v1704
  %1721 = vst.msk [vmem:[#allocation2 + $0x1f] sm:$0x1] %vm311, %v1705
  %1722 = vst.msk [vmem:[#allocation2 + $0x2f] sm:$0x1] %vm311, %v1706
  %1723 = vst.msk [vmem:[#allocation2 + $0x3f] sm:$0x1] %vm311, %v1707
  %1724 = vst.msk [vmem:[#allocation2 + $0x4f] sm:$0x1] %vm311, %v1708
  %1725 = vst.msk [vmem:[#allocation2 + $0x5f] sm:$0x1] %vm311, %v1709
  %1726 = vst.msk [vmem:[#allocation2 + $0x6f] sm:$0x1] %vm311, %v1710
  %1727 = vst.msk [vmem:[#allocation2 + $0x7f] sm:$0x1] %vm311, %v1711
  %1728 = vst.msk [vmem:[#allocation2 + $0x8f] sm:$0x1] %vm311, %v1712
  %1729 = vst.msk [vmem:[#allocation2 + $0x9f] sm:$0x1] %vm311, %v1713
  %1730 = vst.msk [vmem:[#allocation2 + $0xaf] sm:$0x1] %vm311, %v1714
  %1731 = vst.msk [vmem:[#allocation2 + $0xbf] sm:$0x1] %vm311, %v1715
  %1732 = vst.msk [vmem:[#allocation2 + $0xcf] sm:$0x1] %vm311, %v1716
  %1733 = vst.msk [vmem:[#allocation2 + $0xdf] sm:$0x1] %vm311, %v1717
  %1734 = vst.msk [vmem:[#allocation2 + $0xef] sm:$0x1] %vm311, %v1718
  %1735 = vst.msk [vmem:[#allocation2 + $0xff] sm:$0x1] %vm311, %v1719
  %v1736 = vld [vmem:[#allocation2] sm:$0xff]
  %v1737 = vld [vmem:[#allocation2 + $0x8] sm:$0xff]
  %v1738 = vld [vmem:[#allocation2 + $0x80] sm:$0xff]
  %v1739 = vld [vmem:[#allocation2 + $0x88] sm:$0xff]
  %s1740 = scalar_lea.vmem [#allocation2], 16
  %v1741 = vld [vmem:[%s1740] sm:$0xff]
  %v1742 = vld [vmem:[%s1740 + $0x8] sm:$0xff]
  %v1743 = vld [vmem:[%s1740 + $0x80] sm:$0xff]
  %v1744 = vld [vmem:[%s1740 + $0x88] sm:$0xff]
  %v1745 = vmul.f32 %v1741, 0.0
  %v1746 = vmul.f32 %v1742, 0.0
  %v1747 = vmul.f32 %v1743, 0.0
  %v1748 = vmul.f32 %v1744, 0.0
  %v1749 = vadd.f32 %v1736, %v1745
  %v1750 = vadd.f32 %v1737, %v1746
  %v1751 = vadd.f32 %v1738, %v1747
  %v1752 = vadd.f32 %v1739, %v1748
  %1757 = vrot.lane.b32.xlu0 %v1749, 4
  %v1758 = vpop.permute.xlu0 %1757
  %1759 = vrot.lane.b32.xlu0 %v1750, 4
  %v1760 = vpop.permute.xlu0 %1759
  %1761 = vrot.lane.b32.xlu0 %v1751, 4
  %v1762 = vpop.permute.xlu0 %1761
  %1763 = vrot.lane.b32.xlu0 %v1752, 4
  %v1764 = vpop.permute.xlu0 %1763
  %vm1769 = vcmask 64544
  %1770 = vst.msk [vmem:[%s181 + $0x1] sm:$0xff] %vm1769, %v1758
  %1771 = vst.msk [vmem:[%s181 + $0x9] sm:$0xff] %vm1769, %v1760
  %1772 = vst.msk [vmem:[%s181 + $0x1b1] sm:$0xff] %vm1769, %v1762
  %1773 = vst.msk [vmem:[%s181 + $0x1b9] sm:$0xff] %vm1769, %v1764
  %v1774 = vld [vmem:[#allocation2] sm:$0xff]
  %v1775 = vld [vmem:[#allocation2 + $0x8] sm:$0xff]
  %v1776 = vld [vmem:[#allocation2 + $0x80] sm:$0xff]
  %v1777 = vld [vmem:[#allocation2 + $0x88] sm:$0xff]
  %v1778 = vmul.f32 %v1774, 0.53333336
  %v1779 = vmul.f32 %v1775, 0.53333336
  %v1780 = vmul.f32 %v1776, 0.53333336
  %v1781 = vmul.f32 %v1777, 0.53333336
  %v1782 = vld [vmem:[%s1740] sm:$0xff]
  %v1783 = vld [vmem:[%s1740 + $0x8] sm:$0xff]
  %v1784 = vld [vmem:[%s1740 + $0x80] sm:$0xff]
  %v1785 = vld [vmem:[%s1740 + $0x88] sm:$0xff]
  %v1786 = vmul.f32 %v1782, 0.46666667
  %v1787 = vmul.f32 %v1783, 0.46666667
  %v1788 = vmul.f32 %v1784, 0.46666667
  %v1789 = vmul.f32 %v1785, 0.46666667
  %v1790 = vadd.f32 %v1778, %v1786
  %v1791 = vadd.f32 %v1779, %v1787
  %v1792 = vadd.f32 %v1780, %v1788
  %v1793 = vadd.f32 %v1781, %v1789
  %1798 = vrot.lane.b32.xlu0 %v1790, 4
  %v1799 = vpop.permute.xlu0 %1798
  %1800 = vrot.lane.b32.xlu0 %v1791, 4
  %v1801 = vpop.permute.xlu0 %1800
  %1802 = vrot.lane.b32.xlu0 %v1792, 4
  %v1803 = vpop.permute.xlu0 %1802
  %1804 = vrot.lane.b32.xlu0 %v1793, 4
  %v1805 = vpop.permute.xlu0 %1804
  %s1810 = scalar_lea.vmem [#allocation3], 48
  %1811 = vst.msk [vmem:[%s1810 + $0x1] sm:$0xff] %vm1769, %v1799
  %1812 = vst.msk [vmem:[%s1810 + $0x9] sm:$0xff] %vm1769, %v1801
  %1813 = vst.msk [vmem:[%s1810 + $0x1b1] sm:$0xff] %vm1769, %v1803
  %1814 = vst.msk [vmem:[%s1810 + $0x1b9] sm:$0xff] %vm1769, %v1805
  %v1815 = vld [vmem:[#allocation2] sm:$0xff]
  %v1816 = vld [vmem:[#allocation2 + $0x8] sm:$0xff]
  %v1817 = vld [vmem:[#allocation2 + $0x80] sm:$0xff]
  %v1818 = vld [vmem:[#allocation2 + $0x88] sm:$0xff]
  %v1819 = vmul.f32 %v1815, 0.06666667
  %v1820 = vmul.f32 %v1816, 0.06666667
  %v1821 = vmul.f32 %v1817, 0.06666667
  %v1822 = vmul.f32 %v1818, 0.06666667
  %v1823 = vld [vmem:[%s1740] sm:$0xff]
  %v1824 = vld [vmem:[%s1740 + $0x8] sm:$0xff]
  %v1825 = vld [vmem:[%s1740 + $0x80] sm:$0xff]
  %v1826 = vld [vmem:[%s1740 + $0x88] sm:$0xff]
  %v1827 = vmul.f32 %v1823, 0.93333334
  %v1828 = vmul.f32 %v1824, 0.93333334
  %v1829 = vmul.f32 %v1825, 0.93333334
  %v1830 = vmul.f32 %v1826, 0.93333334
  %v1831 = vadd.f32 %v1819, %v1827
  %v1832 = vadd.f32 %v1820, %v1828
  %v1833 = vadd.f32 %v1821, %v1829
  %v1834 = vadd.f32 %v1822, %v1830
  %1839 = vrot.lane.b32.xlu0 %v1831, 4
  %v1840 = vpop.permute.xlu0 %1839
  %1841 = vrot.lane.b32.xlu0 %v1832, 4
  %v1842 = vpop.permute.xlu0 %1841
  %1843 = vrot.lane.b32.xlu0 %v1833, 4
  %v1844 = vpop.permute.xlu0 %1843
  %1845 = vrot.lane.b32.xlu0 %v1834, 4
  %v1846 = vpop.permute.xlu0 %1845
  %s1851 = scalar_lea.vmem [#allocation3], 72
  %1852 = vst.msk [vmem:[%s1851 + $0x1] sm:$0xff] %vm1769, %v1840
  %1853 = vst.msk [vmem:[%s1851 + $0x9] sm:$0xff] %vm1769, %v1842
  %1854 = vst.msk [vmem:[%s1851 + $0x1b1] sm:$0xff] %vm1769, %v1844
  %1855 = vst.msk [vmem:[%s1851 + $0x1b9] sm:$0xff] %vm1769, %v1846
  %v1856 = vld [vmem:[%s1740] sm:$0xff]
  %v1857 = vld [vmem:[%s1740 + $0x8] sm:$0xff]
  %v1858 = vld [vmem:[%s1740 + $0x80] sm:$0xff]
  %v1859 = vld [vmem:[%s1740 + $0x88] sm:$0xff]
  %v1860 = vmul.f32 %v1856, 0.6
  %v1861 = vmul.f32 %v1857, 0.6
  %v1862 = vmul.f32 %v1858, 0.6
  %v1863 = vmul.f32 %v1859, 0.6
  %s1864 = scalar_lea.vmem [#allocation2], 32
  %v1865 = vld [vmem:[%s1864] sm:$0xff]
  %v1866 = vld [vmem:[%s1864 + $0x8] sm:$0xff]
  %v1867 = vld [vmem:[%s1864 + $0x80] sm:$0xff]
  %v1868 = vld [vmem:[%s1864 + $0x88] sm:$0xff]
  %v1869 = vmul.f32 %v1865, 0.4
  %v1870 = vmul.f32 %v1866, 0.4
  %v1871 = vmul.f32 %v1867, 0.4
  %v1872 = vmul.f32 %v1868, 0.4
  %v1873 = vadd.f32 %v1860, %v1869
  %v1874 = vadd.f32 %v1861, %v1870
  %v1875 = vadd.f32 %v1862, %v1871
  %v1876 = vadd.f32 %v1863, %v1872
  %1881 = vrot.lane.b32.xlu0 %v1873, 4
  %v1882 = vpop.permute.xlu0 %1881
  %1883 = vrot.lane.b32.xlu0 %v1874, 4
  %v1884 = vpop.permute.xlu0 %1883
  %1885 = vrot.lane.b32.xlu0 %v1875, 4
  %v1886 = vpop.permute.xlu0 %1885
  %1887 = vrot.lane.b32.xlu0 %v1876, 4
  %v1888 = vpop.permute.xlu0 %1887
  %s1893 = scalar_lea.vmem [#allocation3], 96
  %1894 = vst.msk [vmem:[%s1893 + $0x1] sm:$0xff] %vm1769, %v1882
  %1895 = vst.msk [vmem:[%s1893 + $0x9] sm:$0xff] %vm1769, %v1884
  %1896 = vst.msk [vmem:[%s1893 + $0x1b1] sm:$0xff] %vm1769, %v1886
  %1897 = vst.msk [vmem:[%s1893 + $0x1b9] sm:$0xff] %vm1769, %v1888
  %v1898 = vld [vmem:[%s1740] sm:$0xff]
  %v1899 = vld [vmem:[%s1740 + $0x8] sm:$0xff]
  %v1900 = vld [vmem:[%s1740 + $0x80] sm:$0xff]
  %v1901 = vld [vmem:[%s1740 + $0x88] sm:$0xff]
  %v1902 = vmul.f32 %v1898, 0.13333334
  %v1903 = vmul.f32 %v1899, 0.13333334
  %v1904 = vmul.f32 %v1900, 0.13333334
  %v1905 = vmul.f32 %v1901, 0.13333334
  %v1906 = vld [vmem:[%s1864] sm:$0xff]
  %v1907 = vld [vmem:[%s1864 + $0x8] sm:$0xff]
  %v1908 = vld [vmem:[%s1864 + $0x80] sm:$0xff]
  %v1909 = vld [vmem:[%s1864 + $0x88] sm:$0xff]
  %v1910 = vmul.f32 %v1906, 0.8666667
  %v1911 = vmul.f32 %v1907, 0.8666667
  %v1912 = vmul.f32 %v1908, 0.8666667
  %v1913 = vmul.f32 %v1909, 0.8666667
  %v1914 = vadd.f32 %v1902, %v1910
  %v1915 = vadd.f32 %v1903, %v1911
  %v1916 = vadd.f32 %v1904, %v1912
  %v1917 = vadd.f32 %v1905, %v1913
  %1922 = vrot.lane.b32.xlu0 %v1914, 4
  %v1923 = vpop.permute.xlu0 %1922
  %1924 = vrot.lane.b32.xlu0 %v1915, 4
  %v1925 = vpop.permute.xlu0 %1924
  %1926 = vrot.lane.b32.xlu0 %v1916, 4
  %v1927 = vpop.permute.xlu0 %1926
  %1928 = vrot.lane.b32.xlu0 %v1917, 4
  %v1929 = vpop.permute.xlu0 %1928
  %s1934 = scalar_lea.vmem [#allocation3], 120
  %1935 = vst.msk [vmem:[%s1934 + $0x1] sm:$0xff] %vm1769, %v1923
  %1936 = vst.msk [vmem:[%s1934 + $0x9] sm:$0xff] %vm1769, %v1925
  %1937 = vst.msk [vmem:[%s1934 + $0x1b1] sm:$0xff] %vm1769, %v1927
  %1938 = vst.msk [vmem:[%s1934 + $0x1b9] sm:$0xff] %vm1769, %v1929
  %v1939 = vld [vmem:[%s1864] sm:$0xff]
  %v1940 = vld [vmem:[%s1864 + $0x8] sm:$0xff]
  %v1941 = vld [vmem:[%s1864 + $0x80] sm:$0xff]
  %v1942 = vld [vmem:[%s1864 + $0x88] sm:$0xff]
  %v1943 = vmul.f32 %v1939, 0.6666667
  %v1944 = vmul.f32 %v1940, 0.6666667
  %v1945 = vmul.f32 %v1941, 0.6666667
  %v1946 = vmul.f32 %v1942, 0.6666667
  %s1947 = scalar_lea.vmem [#allocation2], 48
  %v1948 = vld [vmem:[%s1947] sm:$0xff]
  %v1949 = vld [vmem:[%s1947 + $0x8] sm:$0xff]
  %v1950 = vld [vmem:[%s1947 + $0x80] sm:$0xff]
  %v1951 = vld [vmem:[%s1947 + $0x88] sm:$0xff]
  %v1952 = vmul.f32 %v1948, 0.33333334
  %v1953 = vmul.f32 %v1949, 0.33333334
  %v1954 = vmul.f32 %v1950, 0.33333334
  %v1955 = vmul.f32 %v1951, 0.33333334
  %v1956 = vadd.f32 %v1943, %v1952
  %v1957 = vadd.f32 %v1944, %v1953
  %v1958 = vadd.f32 %v1945, %v1954
  %v1959 = vadd.f32 %v1946, %v1955
  %1964 = vrot.lane.b32.xlu0 %v1956, 4
  %v1965 = vpop.permute.xlu0 %1964
  %1966 = vrot.lane.b32.xlu0 %v1957, 4
  %v1967 = vpop.permute.xlu0 %1966
  %1968 = vrot.lane.b32.xlu0 %v1958, 4
  %v1969 = vpop.permute.xlu0 %1968
  %1970 = vrot.lane.b32.xlu0 %v1959, 4
  %v1971 = vpop.permute.xlu0 %1970
  %s1976 = scalar_lea.vmem [#allocation3], 144
  %1977 = vst.msk [vmem:[%s1976 + $0x1] sm:$0xff] %vm1769, %v1965
  %1978 = vst.msk [vmem:[%s1976 + $0x9] sm:$0xff] %vm1769, %v1967
  %1979 = vst.msk [vmem:[%s1976 + $0x1b1] sm:$0xff] %vm1769, %v1969
  %1980 = vst.msk [vmem:[%s1976 + $0x1b9] sm:$0xff] %vm1769, %v1971
  %v1981 = vld [vmem:[%s1864] sm:$0xff]
  %v1982 = vld [vmem:[%s1864 + $0x8] sm:$0xff]
  %v1983 = vld [vmem:[%s1864 + $0x80] sm:$0xff]
  %v1984 = vld [vmem:[%s1864 + $0x88] sm:$0xff]
  %v1985 = vmul.f32 %v1981, 0.2
  %v1986 = vmul.f32 %v1982, 0.2
  %v1987 = vmul.f32 %v1983, 0.2
  %v1988 = vmul.f32 %v1984, 0.2
  %v1989 = vld [vmem:[%s1947] sm:$0xff]
  %v1990 = vld [vmem:[%s1947 + $0x8] sm:$0xff]
  %v1991 = vld [vmem:[%s1947 + $0x80] sm:$0xff]
  %v1992 = vld [vmem:[%s1947 + $0x88] sm:$0xff]
  %v1993 = vmul.f32 %v1989, 0.8
  %v1994 = vmul.f32 %v1990, 0.8
  %v1995 = vmul.f32 %v1991, 0.8
  %v1996 = vmul.f32 %v1992, 0.8
  %v1997 = vadd.f32 %v1985, %v1993
  %v1998 = vadd.f32 %v1986, %v1994
  %v1999 = vadd.f32 %v1987, %v1995
  %v2000 = vadd.f32 %v1988, %v1996
  %2005 = vrot.lane.b32.xlu0 %v1997, 4
  %v2006 = vpop.permute.xlu0 %2005
  %2007 = vrot.lane.b32.xlu0 %v1998, 4
  %v2008 = vpop.permute.xlu0 %2007
  %2009 = vrot.lane.b32.xlu0 %v1999, 4
  %v2010 = vpop.permute.xlu0 %2009
  %2011 = vrot.lane.b32.xlu0 %v2000, 4
  %v2012 = vpop.permute.xlu0 %2011
  %s2017 = scalar_lea.vmem [#allocation3], 168
  %2018 = vst.msk [vmem:[%s2017 + $0x1] sm:$0xff] %vm1769, %v2006
  %2019 = vst.msk [vmem:[%s2017 + $0x9] sm:$0xff] %vm1769, %v2008
  %2020 = vst.msk [vmem:[%s2017 + $0x1b1] sm:$0xff] %vm1769, %v2010
  %2021 = vst.msk [vmem:[%s2017 + $0x1b9] sm:$0xff] %vm1769, %v2012
  %v2022 = vld [vmem:[%s1947] sm:$0xff]
  %v2023 = vld [vmem:[%s1947 + $0x8] sm:$0xff]
  %v2024 = vld [vmem:[%s1947 + $0x80] sm:$0xff]
  %v2025 = vld [vmem:[%s1947 + $0x88] sm:$0xff]
  %v2026 = vmul.f32 %v2022, 0.73333335
  %v2027 = vmul.f32 %v2023, 0.73333335
  %v2028 = vmul.f32 %v2024, 0.73333335
  %v2029 = vmul.f32 %v2025, 0.73333335
  %s2030 = scalar_lea.vmem [#allocation2], 64
  %v2031 = vld [vmem:[%s2030] sm:$0xff]
  %v2032 = vld [vmem:[%s2030 + $0x8] sm:$0xff]
  %v2033 = vld [vmem:[%s2030 + $0x80] sm:$0xff]
  %v2034 = vld [vmem:[%s2030 + $0x88] sm:$0xff]
  %v2035 = vmul.f32 %v2031, 0.26666668
  %v2036 = vmul.f32 %v2032, 0.26666668
  %v2037 = vmul.f32 %v2033, 0.26666668
  %v2038 = vmul.f32 %v2034, 0.26666668
  %v2039 = vadd.f32 %v2026, %v2035
  %v2040 = vadd.f32 %v2027, %v2036
  %v2041 = vadd.f32 %v2028, %v2037
  %v2042 = vadd.f32 %v2029, %v2038
  %2047 = vrot.lane.b32.xlu0 %v2039, 4
  %v2048 = vpop.permute.xlu0 %2047
  %2049 = vrot.lane.b32.xlu0 %v2040, 4
  %v2050 = vpop.permute.xlu0 %2049
  %2051 = vrot.lane.b32.xlu0 %v2041, 4
  %v2052 = vpop.permute.xlu0 %2051
  %2053 = vrot.lane.b32.xlu0 %v2042, 4
  %v2054 = vpop.permute.xlu0 %2053
  %s2059 = scalar_lea.vmem [#allocation3], 192
  %2060 = vst.msk [vmem:[%s2059 + $0x1] sm:$0xff] %vm1769, %v2048
  %2061 = vst.msk [vmem:[%s2059 + $0x9] sm:$0xff] %vm1769, %v2050
  %2062 = vst.msk [vmem:[%s2059 + $0x1b1] sm:$0xff] %vm1769, %v2052
  %2063 = vst.msk [vmem:[%s2059 + $0x1b9] sm:$0xff] %vm1769, %v2054
  %v2064 = vld [vmem:[%s1947] sm:$0xff]
  %v2065 = vld [vmem:[%s1947 + $0x8] sm:$0xff]
  %v2066 = vld [vmem:[%s1947 + $0x80] sm:$0xff]
  %v2067 = vld [vmem:[%s1947 + $0x88] sm:$0xff]
  %v2068 = vmul.f32 %v2064, 0.26666668
  %v2069 = vmul.f32 %v2065, 0.26666668
  %v2070 = vmul.f32 %v2066, 0.26666668
  %v2071 = vmul.f32 %v2067, 0.26666668
  %v2072 = vld [vmem:[%s2030] sm:$0xff]
  %v2073 = vld [vmem:[%s2030 + $0x8] sm:$0xff]
  %v2074 = vld [vmem:[%s2030 + $0x80] sm:$0xff]
  %v2075 = vld [vmem:[%s2030 + $0x88] sm:$0xff]
  %v2076 = vmul.f32 %v2072, 0.73333335
  %v2077 = vmul.f32 %v2073, 0.73333335
  %v2078 = vmul.f32 %v2074, 0.73333335
  %v2079 = vmul.f32 %v2075, 0.73333335
  %v2080 = vadd.f32 %v2068, %v2076
  %v2081 = vadd.f32 %v2069, %v2077
  %v2082 = vadd.f32 %v2070, %v2078
  %v2083 = vadd.f32 %v2071, %v2079
  %2088 = vrot.lane.b32.xlu0 %v2080, 4
  %v2089 = vpop.permute.xlu0 %2088
  %2090 = vrot.lane.b32.xlu0 %v2081, 4
  %v2091 = vpop.permute.xlu0 %2090
  %2092 = vrot.lane.b32.xlu0 %v2082, 4
  %v2093 = vpop.permute.xlu0 %2092
  %2094 = vrot.lane.b32.xlu0 %v2083, 4
  %v2095 = vpop.permute.xlu0 %2094
  %s2100 = scalar_lea.vmem [#allocation3], 216
  %2101 = vst.msk [vmem:[%s2100 + $0x1] sm:$0xff] %vm1769, %v2089
  %2102 = vst.msk [vmem:[%s2100 + $0x9] sm:$0xff] %vm1769, %v2091
  %2103 = vst.msk [vmem:[%s2100 + $0x1b1] sm:$0xff] %vm1769, %v2093
  %2104 = vst.msk [vmem:[%s2100 + $0x1b9] sm:$0xff] %vm1769, %v2095
  %v2105 = vld [vmem:[%s2030] sm:$0xff]
  %v2106 = vld [vmem:[%s2030 + $0x8] sm:$0xff]
  %v2107 = vld [vmem:[%s2030 + $0x80] sm:$0xff]
  %v2108 = vld [vmem:[%s2030 + $0x88] sm:$0xff]
  %v2109 = vmul.f32 %v2105, 0.8
  %v2110 = vmul.f32 %v2106, 0.8
  %v2111 = vmul.f32 %v2107, 0.8
  %v2112 = vmul.f32 %v2108, 0.8
  %s2113 = scalar_lea.vmem [#allocation2], 80
  %v2114 = vld [vmem:[%s2113] sm:$0xff]
  %v2115 = vld [vmem:[%s2113 + $0x8] sm:$0xff]
  %v2116 = vld [vmem:[%s2113 + $0x80] sm:$0xff]
  %v2117 = vld [vmem:[%s2113 + $0x88] sm:$0xff]
  %v2118 = vmul.f32 %v2114, 0.2
  %v2119 = vmul.f32 %v2115, 0.2
  %v2120 = vmul.f32 %v2116, 0.2
  %v2121 = vmul.f32 %v2117, 0.2
  %v2122 = vadd.f32 %v2109, %v2118
  %v2123 = vadd.f32 %v2110, %v2119
  %v2124 = vadd.f32 %v2111, %v2120
  %v2125 = vadd.f32 %v2112, %v2121
  %2130 = vrot.lane.b32.xlu0 %v2122, 4
  %v2131 = vpop.permute.xlu0 %2130
  %2132 = vrot.lane.b32.xlu0 %v2123, 4
  %v2133 = vpop.permute.xlu0 %2132
  %2134 = vrot.lane.b32.xlu0 %v2124, 4
  %v2135 = vpop.permute.xlu0 %2134
  %2136 = vrot.lane.b32.xlu0 %v2125, 4
  %v2137 = vpop.permute.xlu0 %2136
  %s2142 = scalar_lea.vmem [#allocation3], 240
  %2143 = vst.msk [vmem:[%s2142 + $0x1] sm:$0xff] %vm1769, %v2131
  %2144 = vst.msk [vmem:[%s2142 + $0x9] sm:$0xff] %vm1769, %v2133
  %2145 = vst.msk [vmem:[%s2142 + $0x1b1] sm:$0xff] %vm1769, %v2135
  %2146 = vst.msk [vmem:[%s2142 + $0x1b9] sm:$0xff] %vm1769, %v2137
  %v2147 = vld [vmem:[%s2030] sm:$0xff]
  %v2148 = vld [vmem:[%s2030 + $0x8] sm:$0xff]
  %v2149 = vld [vmem:[%s2030 + $0x80] sm:$0xff]
  %v2150 = vld [vmem:[%s2030 + $0x88] sm:$0xff]
  %v2151 = vmul.f32 %v2147, 0.33333334
  %v2152 = vmul.f32 %v2148, 0.33333334
  %v2153 = vmul.f32 %v2149, 0.33333334
  %v2154 = vmul.f32 %v2150, 0.33333334
  %v2155 = vld [vmem:[%s2113] sm:$0xff]
  %v2156 = vld [vmem:[%s2113 + $0x8] sm:$0xff]
  %v2157 = vld [vmem:[%s2113 + $0x80] sm:$0xff]
  %v2158 = vld [vmem:[%s2113 + $0x88] sm:$0xff]
  %v2159 = vmul.f32 %v2155, 0.6666667
  %v2160 = vmul.f32 %v2156, 0.6666667
  %v2161 = vmul.f32 %v2157, 0.6666667
  %v2162 = vmul.f32 %v2158, 0.6666667
  %v2163 = vadd.f32 %v2151, %v2159
  %v2164 = vadd.f32 %v2152, %v2160
  %v2165 = vadd.f32 %v2153, %v2161
  %v2166 = vadd.f32 %v2154, %v2162
  %2171 = vrot.lane.b32.xlu0 %v2163, 4
  %v2172 = vpop.permute.xlu0 %2171
  %2173 = vrot.lane.b32.xlu0 %v2164, 4
  %v2174 = vpop.permute.xlu0 %2173
  %2175 = vrot.lane.b32.xlu0 %v2165, 4
  %v2176 = vpop.permute.xlu0 %2175
  %2177 = vrot.lane.b32.xlu0 %v2166, 4
  %v2178 = vpop.permute.xlu0 %2177
  %s2183 = scalar_lea.vmem [#allocation3], 264
  %2184 = vst.msk [vmem:[%s2183 + $0x1] sm:$0xff] %vm1769, %v2172
  %2185 = vst.msk [vmem:[%s2183 + $0x9] sm:$0xff] %vm1769, %v2174
  %2186 = vst.msk [vmem:[%s2183 + $0x1b1] sm:$0xff] %vm1769, %v2176
  %2187 = vst.msk [vmem:[%s2183 + $0x1b9] sm:$0xff] %vm1769, %v2178
  %v2188 = vld [vmem:[%s2113] sm:$0xff]
  %v2189 = vld [vmem:[%s2113 + $0x8] sm:$0xff]
  %v2190 = vld [vmem:[%s2113 + $0x80] sm:$0xff]
  %v2191 = vld [vmem:[%s2113 + $0x88] sm:$0xff]
  %v2192 = vmul.f32 %v2188, 0.8666667
  %v2193 = vmul.f32 %v2189, 0.8666667
  %v2194 = vmul.f32 %v2190, 0.8666667
  %v2195 = vmul.f32 %v2191, 0.8666667
  %s2196 = scalar_lea.vmem [#allocation2], 96
  %v2197 = vld [vmem:[%s2196] sm:$0xff]
  %v2198 = vld [vmem:[%s2196 + $0x8] sm:$0xff]
  %v2199 = vld [vmem:[%s2196 + $0x80] sm:$0xff]
  %v2200 = vld [vmem:[%s2196 + $0x88] sm:$0xff]
  %v2201 = vmul.f32 %v2197, 0.13333334
  %v2202 = vmul.f32 %v2198, 0.13333334
  %v2203 = vmul.f32 %v2199, 0.13333334
  %v2204 = vmul.f32 %v2200, 0.13333334
  %v2205 = vadd.f32 %v2192, %v2201
  %v2206 = vadd.f32 %v2193, %v2202
  %v2207 = vadd.f32 %v2194, %v2203
  %v2208 = vadd.f32 %v2195, %v2204
  %2213 = vrot.lane.b32.xlu0 %v2205, 4
  %v2214 = vpop.permute.xlu0 %2213
  %2215 = vrot.lane.b32.xlu0 %v2206, 4
  %v2216 = vpop.permute.xlu0 %2215
  %2217 = vrot.lane.b32.xlu0 %v2207, 4
  %v2218 = vpop.permute.xlu0 %2217
  %2219 = vrot.lane.b32.xlu0 %v2208, 4
  %v2220 = vpop.permute.xlu0 %2219
  %s2225 = scalar_lea.vmem [#allocation3], 288
  %2226 = vst.msk [vmem:[%s2225 + $0x1] sm:$0xff] %vm1769, %v2214
  %2227 = vst.msk [vmem:[%s2225 + $0x9] sm:$0xff] %vm1769, %v2216
  %2228 = vst.msk [vmem:[%s2225 + $0x1b1] sm:$0xff] %vm1769, %v2218
  %2229 = vst.msk [vmem:[%s2225 + $0x1b9] sm:$0xff] %vm1769, %v2220
  %v2230 = vld [vmem:[%s2113] sm:$0xff]
  %v2231 = vld [vmem:[%s2113 + $0x8] sm:$0xff]
  %v2232 = vld [vmem:[%s2113 + $0x80] sm:$0xff]
  %v2233 = vld [vmem:[%s2113 + $0x88] sm:$0xff]
  %v2234 = vmul.f32 %v2230, 0.4
  %v2235 = vmul.f32 %v2231, 0.4
  %v2236 = vmul.f32 %v2232, 0.4
  %v2237 = vmul.f32 %v2233, 0.4
  %v2238 = vld [vmem:[%s2196] sm:$0xff]
  %v2239 = vld [vmem:[%s2196 + $0x8] sm:$0xff]
  %v2240 = vld [vmem:[%s2196 + $0x80] sm:$0xff]
  %v2241 = vld [vmem:[%s2196 + $0x88] sm:$0xff]
  %v2242 = vmul.f32 %v2238, 0.6
  %v2243 = vmul.f32 %v2239, 0.6
  %v2244 = vmul.f32 %v2240, 0.6
  %v2245 = vmul.f32 %v2241, 0.6
  %v2246 = vadd.f32 %v2234, %v2242
  %v2247 = vadd.f32 %v2235, %v2243
  %v2248 = vadd.f32 %v2236, %v2244
  %v2249 = vadd.f32 %v2237, %v2245
  %2254 = vrot.lane.b32.xlu0 %v2246, 4
  %v2255 = vpop.permute.xlu0 %2254
  %2256 = vrot.lane.b32.xlu0 %v2247, 4
  %v2257 = vpop.permute.xlu0 %2256
  %2258 = vrot.lane.b32.xlu0 %v2248, 4
  %v2259 = vpop.permute.xlu0 %2258
  %2260 = vrot.lane.b32.xlu0 %v2249, 4
  %v2261 = vpop.permute.xlu0 %2260
  %s2266 = scalar_lea.vmem [#allocation3], 312
  %2267 = vst.msk [vmem:[%s2266 + $0x1] sm:$0xff] %vm1769, %v2255
  %2268 = vst.msk [vmem:[%s2266 + $0x9] sm:$0xff] %vm1769, %v2257
  %2269 = vst.msk [vmem:[%s2266 + $0x1b1] sm:$0xff] %vm1769, %v2259
  %2270 = vst.msk [vmem:[%s2266 + $0x1b9] sm:$0xff] %vm1769, %v2261
  %v2271 = vld [vmem:[%s2196] sm:$0xff]
  %v2272 = vld [vmem:[%s2196 + $0x8] sm:$0xff]
  %v2273 = vld [vmem:[%s2196 + $0x80] sm:$0xff]
  %v2274 = vld [vmem:[%s2196 + $0x88] sm:$0xff]
  %v2275 = vmul.f32 %v2271, 0.93333334
  %v2276 = vmul.f32 %v2272, 0.93333334
  %v2277 = vmul.f32 %v2273, 0.93333334
  %v2278 = vmul.f32 %v2274, 0.93333334
  %s2279 = scalar_lea.vmem [#allocation2], 112
  %v2280 = vld [vmem:[%s2279] sm:$0xff]
  %v2281 = vld [vmem:[%s2279 + $0x8] sm:$0xff]
  %v2282 = vld [vmem:[%s2279 + $0x80] sm:$0xff]
  %v2283 = vld [vmem:[%s2279 + $0x88] sm:$0xff]
  %v2284 = vmul.f32 %v2280, 0.06666667
  %v2285 = vmul.f32 %v2281, 0.06666667
  %v2286 = vmul.f32 %v2282, 0.06666667
  %v2287 = vmul.f32 %v2283, 0.06666667
  %v2288 = vadd.f32 %v2275, %v2284
  %v2289 = vadd.f32 %v2276, %v2285
  %v2290 = vadd.f32 %v2277, %v2286
  %v2291 = vadd.f32 %v2278, %v2287
  %2296 = vrot.lane.b32.xlu0 %v2288, 4
  %v2297 = vpop.permute.xlu0 %2296
  %2298 = vrot.lane.b32.xlu0 %v2289, 4
  %v2299 = vpop.permute.xlu0 %2298
  %2300 = vrot.lane.b32.xlu0 %v2290, 4
  %v2301 = vpop.permute.xlu0 %2300
  %2302 = vrot.lane.b32.xlu0 %v2291, 4
  %v2303 = vpop.permute.xlu0 %2302
  %s2308 = scalar_lea.vmem [#allocation3], 336
  %2309 = vst.msk [vmem:[%s2308 + $0x1] sm:$0xff] %vm1769, %v2297
  %2310 = vst.msk [vmem:[%s2308 + $0x9] sm:$0xff] %vm1769, %v2299
  %2311 = vst.msk [vmem:[%s2308 + $0x1b1] sm:$0xff] %vm1769, %v2301
  %2312 = vst.msk [vmem:[%s2308 + $0x1b9] sm:$0xff] %vm1769, %v2303
  %v2313 = vld [vmem:[%s2196] sm:$0xff]
  %v2314 = vld [vmem:[%s2196 + $0x8] sm:$0xff]
  %v2315 = vld [vmem:[%s2196 + $0x80] sm:$0xff]
  %v2316 = vld [vmem:[%s2196 + $0x88] sm:$0xff]
  %v2317 = vmul.f32 %v2313, 0.46666667
  %v2318 = vmul.f32 %v2314, 0.46666667
  %v2319 = vmul.f32 %v2315, 0.46666667
  %v2320 = vmul.f32 %v2316, 0.46666667
  %v2321 = vld [vmem:[%s2279] sm:$0xff]
  %v2322 = vld [vmem:[%s2279 + $0x8] sm:$0xff]
  %v2323 = vld [vmem:[%s2279 + $0x80] sm:$0xff]
  %v2324 = vld [vmem:[%s2279 + $0x88] sm:$0xff]
  %v2325 = vmul.f32 %v2321, 0.53333336
  %v2326 = vmul.f32 %v2322, 0.53333336
  %v2327 = vmul.f32 %v2323, 0.53333336
  %v2328 = vmul.f32 %v2324, 0.53333336
  %v2329 = vadd.f32 %v2317, %v2325
  %v2330 = vadd.f32 %v2318, %v2326
  %v2331 = vadd.f32 %v2319, %v2327
  %v2332 = vadd.f32 %v2320, %v2328
  %2337 = vrot.lane.b32.xlu0 %v2329, 4
  %v2338 = vpop.permute.xlu0 %2337
  %2339 = vrot.lane.b32.xlu0 %v2330, 4
  %v2340 = vpop.permute.xlu0 %2339
  %2341 = vrot.lane.b32.xlu0 %v2331, 4
  %v2342 = vpop.permute.xlu0 %2341
  %2343 = vrot.lane.b32.xlu0 %v2332, 4
  %v2344 = vpop.permute.xlu0 %2343
  %s2349 = scalar_lea.vmem [#allocation3], 360
  %2350 = vst.msk [vmem:[%s2349 + $0x1] sm:$0xff] %vm1769, %v2338
  %2351 = vst.msk [vmem:[%s2349 + $0x9] sm:$0xff] %vm1769, %v2340
  %2352 = vst.msk [vmem:[%s2349 + $0x1b1] sm:$0xff] %vm1769, %v2342
  %2353 = vst.msk [vmem:[%s2349 + $0x1b9] sm:$0xff] %vm1769, %v2344
  %v2354 = vld [vmem:[%s2279] sm:$0xff]
  %v2355 = vld [vmem:[%s2279 + $0x8] sm:$0xff]
  %v2356 = vld [vmem:[%s2279 + $0x80] sm:$0xff]
  %v2357 = vld [vmem:[%s2279 + $0x88] sm:$0xff]
  %v2358 = vmul.f32 %v2354, 0.0
  %v2359 = vmul.f32 %v2355, 0.0
  %v2360 = vmul.f32 %v2356, 0.0
  %v2361 = vmul.f32 %v2357, 0.0
  %v2362 = vadd.f32 %v2354, %v2358
  %v2363 = vadd.f32 %v2355, %v2359
  %v2364 = vadd.f32 %v2356, %v2360
  %v2365 = vadd.f32 %v2357, %v2361
  %2370 = vrot.lane.b32.xlu0 %v2362, 4
  %v2371 = vpop.permute.xlu0 %2370
  %2372 = vrot.lane.b32.xlu0 %v2363, 4
  %v2373 = vpop.permute.xlu0 %2372
  %2374 = vrot.lane.b32.xlu0 %v2364, 4
  %v2375 = vpop.permute.xlu0 %2374
  %2376 = vrot.lane.b32.xlu0 %v2365, 4
  %v2377 = vpop.permute.xlu0 %2376
  %s2382 = scalar_lea.vmem [#allocation3], 384
  %2383 = vst.msk [vmem:[%s2382 + $0x1] sm:$0xff] %vm1769, %v2371
  %2384 = vst.msk [vmem:[%s2382 + $0x9] sm:$0xff] %vm1769, %v2373
  %2385 = vst.msk [vmem:[%s2382 + $0x1b1] sm:$0xff] %vm1769, %v2375
  %2386 = vst.msk [vmem:[%s2382 + $0x1b9] sm:$0xff] %vm1769, %v2377
  %v2387 = vld [vmem:[#allocation3] sm:$0xff]
  %v2388 = vld [vmem:[#allocation3 + $0x8] sm:$0xff]
  %v2389 = vld [vmem:[#allocation3 + $0x18] sm:$0xff]
  %v2390 = vld [vmem:[#allocation3 + $0x20] sm:$0xff]
  %v2391 = vld [vmem:[#allocation3 + $0x30] sm:$0xff]
  %v2392 = vld [vmem:[#allocation3 + $0x38] sm:$0xff]
  %v2393 = vld [vmem:[#allocation3 + $0x48] sm:$0xff]
  %v2394 = vld [vmem:[#allocation3 + $0x50] sm:$0xff]
  %v2395 = vld [vmem:[#allocation3 + $0x60] sm:$0xff]
  %v2396 = vld [vmem:[#allocation3 + $0x68] sm:$0xff]
  %v2397 = vld [vmem:[#allocation3 + $0x78] sm:$0xff]
  %v2398 = vld [vmem:[#allocation3 + $0x80] sm:$0xff]
  %v2399 = vld [vmem:[#allocation3 + $0x90] sm:$0xff]
  %v2400 = vld [vmem:[#allocation3 + $0x98] sm:$0xff]
  %v2401 = vld [vmem:[#allocation3 + $0xa8] sm:$0xff]
  %v2402 = vld [vmem:[#allocation3 + $0xb0] sm:$0xff]
  %v2403 = vld [vmem:[#allocation3 + $0xc0] sm:$0xff]
  %v2404 = vld [vmem:[#allocation3 + $0xc8] sm:$0xff]
  %v2405 = vld [vmem:[#allocation3 + $0xd8] sm:$0xff]
  %v2406 = vld [vmem:[#allocation3 + $0xe0] sm:$0xff]
  %v2407 = vld [vmem:[#allocation3 + $0xf0] sm:$0xff]
  %v2408 = vld [vmem:[#allocation3 + $0xf8] sm:$0xff]
  %v2409 = vld [vmem:[#allocation3 + $0x108] sm:$0xff]
  %v2410 = vld [vmem:[#allocation3 + $0x110] sm:$0xff]
  %v2411 = vld [vmem:[#allocation3 + $0x120] sm:$0xff]
  %v2412 = vld [vmem:[#allocation3 + $0x128] sm:$0xff]
  %v2413 = vld [vmem:[#allocation3 + $0x138] sm:$0xff]
  %v2414 = vld [vmem:[#allocation3 + $0x140] sm:$0xff]
  %v2415 = vld [vmem:[#allocation3 + $0x150] sm:$0xff]
  %v2416 = vld [vmem:[#allocation3 + $0x158] sm:$0xff]
  %v2417 = vld [vmem:[#allocation3 + $0x168] sm:$0xff]
  %v2418 = vld [vmem:[#allocation3 + $0x170] sm:$0xff]
  %v2419 = vld [vmem:[#allocation3 + $0x1b0] sm:$0xff]
  %v2420 = vld [vmem:[#allocation3 + $0x1b8] sm:$0xff]
  %v2421 = vld [vmem:[#allocation3 + $0x1c8] sm:$0xff]
  %v2422 = vld [vmem:[#allocation3 + $0x1d0] sm:$0xff]
  %v2423 = vld [vmem:[#allocation3 + $0x1e0] sm:$0xff]
  %v2424 = vld [vmem:[#allocation3 + $0x1e8] sm:$0xff]
  %v2425 = vld [vmem:[#allocation3 + $0x1f8] sm:$0xff]
  %v2426 = vld [vmem:[#allocation3 + $0x200] sm:$0xff]
  %v2427 = vld [vmem:[#allocation3 + $0x210] sm:$0xff]
  %v2428 = vld [vmem:[#allocation3 + $0x218] sm:$0xff]
  %v2429 = vld [vmem:[#allocation3 + $0x228] sm:$0xff]
  %v2430 = vld [vmem:[#allocation3 + $0x230] sm:$0xff]
  %v2431 = vld [vmem:[#allocation3 + $0x240] sm:$0xff]
  %v2432 = vld [vmem:[#allocation3 + $0x248] sm:$0xff]
  %v2433 = vld [vmem:[#allocation3 + $0x258] sm:$0xff]
  %v2434 = vld [vmem:[#allocation3 + $0x260] sm:$0xff]
  %v2435 = vld [vmem:[#allocation3 + $0x270] sm:$0xff]
  %v2436 = vld [vmem:[#allocation3 + $0x278] sm:$0xff]
  %v2437 = vld [vmem:[#allocation3 + $0x288] sm:$0xff]
  %v2438 = vld [vmem:[#allocation3 + $0x290] sm:$0xff]
  %v2439 = vld [vmem:[#allocation3 + $0x2a0] sm:$0xff]
  %v2440 = vld [vmem:[#allocation3 + $0x2a8] sm:$0xff]
  %v2441 = vld [vmem:[#allocation3 + $0x2b8] sm:$0xff]
  %v2442 = vld [vmem:[#allocation3 + $0x2c0] sm:$0xff]
  %v2443 = vld [vmem:[#allocation3 + $0x2d0] sm:$0xff]
  %v2444 = vld [vmem:[#allocation3 + $0x2d8] sm:$0xff]
  %v2445 = vld [vmem:[#allocation3 + $0x2e8] sm:$0xff]
  %v2446 = vld [vmem:[#allocation3 + $0x2f0] sm:$0xff]
  %v2447 = vld [vmem:[#allocation3 + $0x300] sm:$0xff]
  %v2448 = vld [vmem:[#allocation3 + $0x308] sm:$0xff]
  %v2449 = vld [vmem:[#allocation3 + $0x318] sm:$0xff]
  %v2450 = vld [vmem:[#allocation3 + $0x320] sm:$0xff]
  %2451 = vst.msk [vmem:[#allocation4] sm:$0xff] %vm29, %v2387
  %2452 = vst.msk [vmem:[#allocation4 + $0x8] sm:$0xff] %vm29, %v2388
  %2453 = vst.msk [vmem:[#allocation4 + $0x10] sm:$0xff] %vm29, %v2389
  %2454 = vst.msk [vmem:[#allocation4 + $0x18] sm:$0xff] %vm29, %v2390
  %2455 = vst.msk [vmem:[#allocation4 + $0x20] sm:$0xff] %vm29, %v2391
  %2456 = vst.msk [vmem:[#allocation4 + $0x28] sm:$0xff] %vm29, %v2392
  %2457 = vst.msk [vmem:[#allocation4 + $0x30] sm:$0xff] %vm29, %v2393
  %2458 = vst.msk [vmem:[#allocation4 + $0x38] sm:$0xff] %vm29, %v2394
  %2459 = vst.msk [vmem:[#allocation4 + $0x40] sm:$0xff] %vm29, %v2395
  %2460 = vst.msk [vmem:[#allocation4 + $0x48] sm:$0xff] %vm29, %v2396
  %2461 = vst.msk [vmem:[#allocation4 + $0x50] sm:$0xff] %vm29, %v2397
  %2462 = vst.msk [vmem:[#allocation4 + $0x58] sm:$0xff] %vm29, %v2398
  %2463 = vst.msk [vmem:[#allocation4 + $0x60] sm:$0xff] %vm29, %v2399
  %2464 = vst.msk [vmem:[#allocation4 + $0x68] sm:$0xff] %vm29, %v2400
  %2465 = vst.msk [vmem:[#allocation4 + $0x70] sm:$0xff] %vm29, %v2401
  %2466 = vst.msk [vmem:[#allocation4 + $0x78] sm:$0xff] %vm29, %v2402
  %2467 = vst.msk [vmem:[#allocation4 + $0x80] sm:$0xff] %vm29, %v2403
  %2468 = vst.msk [vmem:[#allocation4 + $0x88] sm:$0xff] %vm29, %v2404
  %2469 = vst.msk [vmem:[#allocation4 + $0x90] sm:$0xff] %vm29, %v2405
  %2470 = vst.msk [vmem:[#allocation4 + $0x98] sm:$0xff] %vm29, %v2406
  %2471 = vst.msk [vmem:[#allocation4 + $0xa0] sm:$0xff] %vm29, %v2407
  %2472 = vst.msk [vmem:[#allocation4 + $0xa8] sm:$0xff] %vm29, %v2408
  %2473 = vst.msk [vmem:[#allocation4 + $0xb0] sm:$0xff] %vm29, %v2409
  %2474 = vst.msk [vmem:[#allocation4 + $0xb8] sm:$0xff] %vm29, %v2410
  %2475 = vst.msk [vmem:[#allocation4 + $0xc0] sm:$0xff] %vm29, %v2411
  %2476 = vst.msk [vmem:[#allocation4 + $0xc8] sm:$0xff] %vm29, %v2412
  %2477 = vst.msk [vmem:[#allocation4 + $0xd0] sm:$0xff] %vm29, %v2413
  %2478 = vst.msk [vmem:[#allocation4 + $0xd8] sm:$0xff] %vm29, %v2414
  %2479 = vst.msk [vmem:[#allocation4 + $0xe0] sm:$0xff] %vm29, %v2415
  %2480 = vst.msk [vmem:[#allocation4 + $0xe8] sm:$0xff] %vm29, %v2416
  %2481 = vst.msk [vmem:[#allocation4 + $0xf0] sm:$0xff] %vm29, %v2417
  %2482 = vst.msk [vmem:[#allocation4 + $0xf8] sm:$0xff] %vm29, %v2418
  %2483 = vst.msk [vmem:[#allocation4 + $0x100] sm:$0xff] %vm29, %v2419
  %2484 = vst.msk [vmem:[#allocation4 + $0x108] sm:$0xff] %vm29, %v2420
  %2485 = vst.msk [vmem:[#allocation4 + $0x110] sm:$0xff] %vm29, %v2421
  %2486 = vst.msk [vmem:[#allocation4 + $0x118] sm:$0xff] %vm29, %v2422
  %2487 = vst.msk [vmem:[#allocation4 + $0x120] sm:$0xff] %vm29, %v2423
  %2488 = vst.msk [vmem:[#allocation4 + $0x128] sm:$0xff] %vm29, %v2424
  %2489 = vst.msk [vmem:[#allocation4 + $0x130] sm:$0xff] %vm29, %v2425
  %2490 = vst.msk [vmem:[#allocation4 + $0x138] sm:$0xff] %vm29, %v2426
  %2491 = vst.msk [vmem:[#allocation4 + $0x140] sm:$0xff] %vm29, %v2427
  %2492 = vst.msk [vmem:[#allocation4 + $0x148] sm:$0xff] %vm29, %v2428
  %2493 = vst.msk [vmem:[#allocation4 + $0x150] sm:$0xff] %vm29, %v2429
  %2494 = vst.msk [vmem:[#allocation4 + $0x158] sm:$0xff] %vm29, %v2430
  %2495 = vst.msk [vmem:[#allocation4 + $0x160] sm:$0xff] %vm29, %v2431
  %2496 = vst.msk [vmem:[#allocation4 + $0x168] sm:$0xff] %vm29, %v2432
  %2497 = vst.msk [vmem:[#allocation4 + $0x170] sm:$0xff] %vm29, %v2433
  %2498 = vst.msk [vmem:[#allocation4 + $0x178] sm:$0xff] %vm29, %v2434
  %2499 = vst.msk [vmem:[#allocation4 + $0x180] sm:$0xff] %vm29, %v2435
  %2500 = vst.msk [vmem:[#allocation4 + $0x188] sm:$0xff] %vm29, %v2436
  %2501 = vst.msk [vmem:[#allocation4 + $0x190] sm:$0xff] %vm29, %v2437
  %2502 = vst.msk [vmem:[#allocation4 + $0x198] sm:$0xff] %vm29, %v2438
  %2503 = vst.msk [vmem:[#allocation4 + $0x1a0] sm:$0xff] %vm29, %v2439
  %2504 = vst.msk [vmem:[#allocation4 + $0x1a8] sm:$0xff] %vm29, %v2440
  %2505 = vst.msk [vmem:[#allocation4 + $0x1b0] sm:$0xff] %vm29, %v2441
  %2506 = vst.msk [vmem:[#allocation4 + $0x1b8] sm:$0xff] %vm29, %v2442
  %2507 = vst.msk [vmem:[#allocation4 + $0x1c0] sm:$0xff] %vm29, %v2443
  %2508 = vst.msk [vmem:[#allocation4 + $0x1c8] sm:$0xff] %vm29, %v2444
  %2509 = vst.msk [vmem:[#allocation4 + $0x1d0] sm:$0xff] %vm29, %v2445
  %2510 = vst.msk [vmem:[#allocation4 + $0x1d8] sm:$0xff] %vm29, %v2446
  %2511 = vst.msk [vmem:[#allocation4 + $0x1e0] sm:$0xff] %vm29, %v2447
  %2512 = vst.msk [vmem:[#allocation4 + $0x1e8] sm:$0xff] %vm29, %v2448
  %2513 = vst.msk [vmem:[#allocation4 + $0x1f0] sm:$0xff] %vm29, %v2449
  %2514 = vst.msk [vmem:[#allocation4 + $0x1f8] sm:$0xff] %vm29, %v2450
  %v2515 = vld [vmem:[#allocation3 + $0x1] sm:$0xff]
  %v2516 = vld [vmem:[#allocation3 + $0x9] sm:$0xff]
  %v2517 = vld [vmem:[#allocation3 + $0x19] sm:$0xff]
  %v2518 = vld [vmem:[#allocation3 + $0x21] sm:$0xff]
  %v2519 = vld [vmem:[#allocation3 + $0x31] sm:$0xff]
  %v2520 = vld [vmem:[#allocation3 + $0x39] sm:$0xff]
  %v2521 = vld [vmem:[#allocation3 + $0x49] sm:$0xff]
  %v2522 = vld [vmem:[#allocation3 + $0x51] sm:$0xff]
  %v2523 = vld [vmem:[#allocation3 + $0x61] sm:$0xff]
  %v2524 = vld [vmem:[#allocation3 + $0x69] sm:$0xff]
  %v2525 = vld [vmem:[#allocation3 + $0x79] sm:$0xff]
  %v2526 = vld [vmem:[#allocation3 + $0x81] sm:$0xff]
  %v2527 = vld [vmem:[#allocation3 + $0x91] sm:$0xff]
  %v2528 = vld [vmem:[#allocation3 + $0x99] sm:$0xff]
  %v2529 = vld [vmem:[#allocation3 + $0xa9] sm:$0xff]
  %v2530 = vld [vmem:[#allocation3 + $0xb1] sm:$0xff]
  %v2531 = vld [vmem:[#allocation3 + $0xc1] sm:$0xff]
  %v2532 = vld [vmem:[#allocation3 + $0xc9] sm:$0xff]
  %v2533 = vld [vmem:[#allocation3 + $0xd9] sm:$0xff]
  %v2534 = vld [vmem:[#allocation3 + $0xe1] sm:$0xff]
  %v2535 = vld [vmem:[#allocation3 + $0xf1] sm:$0xff]
  %v2536 = vld [vmem:[#allocation3 + $0xf9] sm:$0xff]
  %v2537 = vld [vmem:[#allocation3 + $0x109] sm:$0xff]
  %v2538 = vld [vmem:[#allocation3 + $0x111] sm:$0xff]
  %v2539 = vld [vmem:[#allocation3 + $0x121] sm:$0xff]
  %v2540 = vld [vmem:[#allocation3 + $0x129] sm:$0xff]
  %v2541 = vld [vmem:[#allocation3 + $0x139] sm:$0xff]
  %v2542 = vld [vmem:[#allocation3 + $0x141] sm:$0xff]
  %v2543 = vld [vmem:[#allocation3 + $0x151] sm:$0xff]
  %v2544 = vld [vmem:[#allocation3 + $0x159] sm:$0xff]
  %v2545 = vld [vmem:[#allocation3 + $0x169] sm:$0xff]
  %v2546 = vld [vmem:[#allocation3 + $0x171] sm:$0xff]
  %v2547 = vld [vmem:[#allocation3 + $0x1b1] sm:$0xff]
  %v2548 = vld [vmem:[#allocation3 + $0x1b9] sm:$0xff]
  %v2549 = vld [vmem:[#allocation3 + $0x1c9] sm:$0xff]
  %v2550 = vld [vmem:[#allocation3 + $0x1d1] sm:$0xff]
  %v2551 = vld [vmem:[#allocation3 + $0x1e1] sm:$0xff]
  %v2552 = vld [vmem:[#allocation3 + $0x1e9] sm:$0xff]
  %v2553 = vld [vmem:[#allocation3 + $0x1f9] sm:$0xff]
  %v2554 = vld [vmem:[#allocation3 + $0x201] sm:$0xff]
  %v2555 = vld [vmem:[#allocation3 + $0x211] sm:$0xff]
  %v2556 = vld [vmem:[#allocation3 + $0x219] sm:$0xff]
  %v2557 = vld [vmem:[#allocation3 + $0x229] sm:$0xff]
  %v2558 = vld [vmem:[#allocation3 + $0x231] sm:$0xff]
  %v2559 = vld [vmem:[#allocation3 + $0x241] sm:$0xff]
  %v2560 = vld [vmem:[#allocation3 + $0x249] sm:$0xff]
  %v2561 = vld [vmem:[#allocation3 + $0x259] sm:$0xff]
  %v2562 = vld [vmem:[#allocation3 + $0x261] sm:$0xff]
  %v2563 = vld [vmem:[#allocation3 + $0x271] sm:$0xff]
  %v2564 = vld [vmem:[#allocation3 + $0x279] sm:$0xff]
  %v2565 = vld [vmem:[#allocation3 + $0x289] sm:$0xff]
  %v2566 = vld [vmem:[#allocation3 + $0x291] sm:$0xff]
  %v2567 = vld [vmem:[#allocation3 + $0x2a1] sm:$0xff]
  %v2568 = vld [vmem:[#allocation3 + $0x2a9] sm:$0xff]
  %v2569 = vld [vmem:[#allocation3 + $0x2b9] sm:$0xff]
  %v2570 = vld [vmem:[#allocation3 + $0x2c1] sm:$0xff]
  %v2571 = vld [vmem:[#allocation3 + $0x2d1] sm:$0xff]
  %v2572 = vld [vmem:[#allocation3 + $0x2d9] sm:$0xff]
  %v2573 = vld [vmem:[#allocation3 + $0x2e9] sm:$0xff]
  %v2574 = vld [vmem:[#allocation3 + $0x2f1] sm:$0xff]
  %v2575 = vld [vmem:[#allocation3 + $0x301] sm:$0xff]
  %v2576 = vld [vmem:[#allocation3 + $0x309] sm:$0xff]
  %v2577 = vld [vmem:[#allocation3 + $0x319] sm:$0xff]
  %v2578 = vld [vmem:[#allocation3 + $0x321] sm:$0xff]
  %2643 = vrot.lane.b32.xlu0 %v2515, 8
  %v2644 = vpop.permute.xlu0 %2643
  %2645 = vrot.lane.b32.xlu0 %v2516, 8
  %v2646 = vpop.permute.xlu0 %2645
  %2647 = vrot.lane.b32.xlu0 %v2517, 8
  %v2648 = vpop.permute.xlu0 %2647
  %2649 = vrot.lane.b32.xlu0 %v2518, 8
  %v2650 = vpop.permute.xlu0 %2649
  %2651 = vrot.lane.b32.xlu0 %v2519, 8
  %v2652 = vpop.permute.xlu0 %2651
  %2653 = vrot.lane.b32.xlu0 %v2520, 8
  %v2654 = vpop.permute.xlu0 %2653
  %2655 = vrot.lane.b32.xlu0 %v2521, 8
  %v2656 = vpop.permute.xlu0 %2655
  %2657 = vrot.lane.b32.xlu0 %v2522, 8
  %v2658 = vpop.permute.xlu0 %2657
  %2659 = vrot.lane.b32.xlu0 %v2523, 8
  %v2660 = vpop.permute.xlu0 %2659
  %2661 = vrot.lane.b32.xlu0 %v2524, 8
  %v2662 = vpop.permute.xlu0 %2661
  %2663 = vrot.lane.b32.xlu0 %v2525, 8
  %v2664 = vpop.permute.xlu0 %2663
  %2665 = vrot.lane.b32.xlu0 %v2526, 8
  %v2666 = vpop.permute.xlu0 %2665
  %2667 = vrot.lane.b32.xlu0 %v2527, 8
  %v2668 = vpop.permute.xlu0 %2667
  %2669 = vrot.lane.b32.xlu0 %v2528, 8
  %v2670 = vpop.permute.xlu0 %2669
  %2671 = vrot.lane.b32.xlu0 %v2529, 8
  %v2672 = vpop.permute.xlu0 %2671
  %2673 = vrot.lane.b32.xlu0 %v2530, 8
  %v2674 = vpop.permute.xlu0 %2673
  %2675 = vrot.lane.b32.xlu0 %v2531, 8
  %v2676 = vpop.permute.xlu0 %2675
  %2677 = vrot.lane.b32.xlu0 %v2532, 8
  %v2678 = vpop.permute.xlu0 %2677
  %2679 = vrot.lane.b32.xlu0 %v2533, 8
  %v2680 = vpop.permute.xlu0 %2679
  %2681 = vrot.lane.b32.xlu0 %v2534, 8
  %v2682 = vpop.permute.xlu0 %2681
  %2683 = vrot.lane.b32.xlu0 %v2535, 8
  %v2684 = vpop.permute.xlu0 %2683
  %2685 = vrot.lane.b32.xlu0 %v2536, 8
  %v2686 = vpop.permute.xlu0 %2685
  %2687 = vrot.lane.b32.xlu0 %v2537, 8
  %v2688 = vpop.permute.xlu0 %2687
  %2689 = vrot.lane.b32.xlu0 %v2538, 8
  %v2690 = vpop.permute.xlu0 %2689
  %2691 = vrot.lane.b32.xlu0 %v2539, 8
  %v2692 = vpop.permute.xlu0 %2691
  %2693 = vrot.lane.b32.xlu0 %v2540, 8
  %v2694 = vpop.permute.xlu0 %2693
  %2695 = vrot.lane.b32.xlu0 %v2541, 8
  %v2696 = vpop.permute.xlu0 %2695
  %2697 = vrot.lane.b32.xlu0 %v2542, 8
  %v2698 = vpop.permute.xlu0 %2697
  %2699 = vrot.lane.b32.xlu0 %v2543, 8
  %v2700 = vpop.permute.xlu0 %2699
  %2701 = vrot.lane.b32.xlu0 %v2544, 8
  %v2702 = vpop.permute.xlu0 %2701
  %2703 = vrot.lane.b32.xlu0 %v2545, 8
  %v2704 = vpop.permute.xlu0 %2703
  %2705 = vrot.lane.b32.xlu0 %v2546, 8
  %v2706 = vpop.permute.xlu0 %2705
  %2707 = vrot.lane.b32.xlu0 %v2547, 8
  %v2708 = vpop.permute.xlu0 %2707
  %2709 = vrot.lane.b32.xlu0 %v2548, 8
  %v2710 = vpop.permute.xlu0 %2709
  %2711 = vrot.lane.b32.xlu0 %v2549, 8
  %v2712 = vpop.permute.xlu0 %2711
  %2713 = vrot.lane.b32.xlu0 %v2550, 8
  %v2714 = vpop.permute.xlu0 %2713
  %2715 = vrot.lane.b32.xlu0 %v2551, 8
  %v2716 = vpop.permute.xlu0 %2715
  %2717 = vrot.lane.b32.xlu0 %v2552, 8
  %v2718 = vpop.permute.xlu0 %2717
  %2719 = vrot.lane.b32.xlu0 %v2553, 8
  %v2720 = vpop.permute.xlu0 %2719
  %2721 = vrot.lane.b32.xlu0 %v2554, 8
  %v2722 = vpop.permute.xlu0 %2721
  %2723 = vrot.lane.b32.xlu0 %v2555, 8
  %v2724 = vpop.permute.xlu0 %2723
  %2725 = vrot.lane.b32.xlu0 %v2556, 8
  %v2726 = vpop.permute.xlu0 %2725
  %2727 = vrot.lane.b32.xlu0 %v2557, 8
  %v2728 = vpop.permute.xlu0 %2727
  %2729 = vrot.lane.b32.xlu0 %v2558, 8
  %v2730 = vpop.permute.xlu0 %2729
  %2731 = vrot.lane.b32.xlu0 %v2559, 8
  %v2732 = vpop.permute.xlu0 %2731
  %2733 = vrot.lane.b32.xlu0 %v2560, 8
  %v2734 = vpop.permute.xlu0 %2733
  %2735 = vrot.lane.b32.xlu0 %v2561, 8
  %v2736 = vpop.permute.xlu0 %2735
  %2737 = vrot.lane.b32.xlu0 %v2562, 8
  %v2738 = vpop.permute.xlu0 %2737
  %2739 = vrot.lane.b32.xlu0 %v2563, 8
  %v2740 = vpop.permute.xlu0 %2739
  %2741 = vrot.lane.b32.xlu0 %v2564, 8
  %v2742 = vpop.permute.xlu0 %2741
  %2743 = vrot.lane.b32.xlu0 %v2565, 8
  %v2744 = vpop.permute.xlu0 %2743
  %2745 = vrot.lane.b32.xlu0 %v2566, 8
  %v2746 = vpop.permute.xlu0 %2745
  %2747 = vrot.lane.b32.xlu0 %v2567, 8
  %v2748 = vpop.permute.xlu0 %2747
  %2749 = vrot.lane.b32.xlu0 %v2568, 8
  %v2750 = vpop.permute.xlu0 %2749
  %2751 = vrot.lane.b32.xlu0 %v2569, 8
  %v2752 = vpop.permute.xlu0 %2751
  %2753 = vrot.lane.b32.xlu0 %v2570, 8
  %v2754 = vpop.permute.xlu0 %2753
  %2755 = vrot.lane.b32.xlu0 %v2571, 8
  %v2756 = vpop.permute.xlu0 %2755
  %2757 = vrot.lane.b32.xlu0 %v2572, 8
  %v2758 = vpop.permute.xlu0 %2757
  %2759 = vrot.lane.b32.xlu0 %v2573, 8
  %v2760 = vpop.permute.xlu0 %2759
  %2761 = vrot.lane.b32.xlu0 %v2574, 8
  %v2762 = vpop.permute.xlu0 %2761
  %2763 = vrot.lane.b32.xlu0 %v2575, 8
  %v2764 = vpop.permute.xlu0 %2763
  %2765 = vrot.lane.b32.xlu0 %v2576, 8
  %v2766 = vpop.permute.xlu0 %2765
  %2767 = vrot.lane.b32.xlu0 %v2577, 8
  %v2768 = vpop.permute.xlu0 %2767
  %2769 = vrot.lane.b32.xlu0 %v2578, 8
  %v2770 = vpop.permute.xlu0 %2769
  %vm2835 = vcmask 130112
  %2836 = vst.msk [vmem:[#allocation4] sm:$0xff] %vm2835, %v2644
  %2837 = vst.msk [vmem:[#allocation4 + $0x8] sm:$0xff] %vm2835, %v2646
  %2838 = vst.msk [vmem:[#allocation4 + $0x10] sm:$0xff] %vm2835, %v2648
  %2839 = vst.msk [vmem:[#allocation4 + $0x18] sm:$0xff] %vm2835, %v2650
  %2840 = vst.msk [vmem:[#allocation4 + $0x20] sm:$0xff] %vm2835, %v2652
  %2841 = vst.msk [vmem:[#allocation4 + $0x28] sm:$0xff] %vm2835, %v2654
  %2842 = vst.msk [vmem:[#allocation4 + $0x30] sm:$0xff] %vm2835, %v2656
  %2843 = vst.msk [vmem:[#allocation4 + $0x38] sm:$0xff] %vm2835, %v2658
  %2844 = vst.msk [vmem:[#allocation4 + $0x40] sm:$0xff] %vm2835, %v2660
  %2845 = vst.msk [vmem:[#allocation4 + $0x48] sm:$0xff] %vm2835, %v2662
  %2846 = vst.msk [vmem:[#allocation4 + $0x50] sm:$0xff] %vm2835, %v2664
  %2847 = vst.msk [vmem:[#allocation4 + $0x58] sm:$0xff] %vm2835, %v2666
  %2848 = vst.msk [vmem:[#allocation4 + $0x60] sm:$0xff] %vm2835, %v2668
  %2849 = vst.msk [vmem:[#allocation4 + $0x68] sm:$0xff] %vm2835, %v2670
  %2850 = vst.msk [vmem:[#allocation4 + $0x70] sm:$0xff] %vm2835, %v2672
  %2851 = vst.msk [vmem:[#allocation4 + $0x78] sm:$0xff] %vm2835, %v2674
  %2852 = vst.msk [vmem:[#allocation4 + $0x80] sm:$0xff] %vm2835, %v2676
  %2853 = vst.msk [vmem:[#allocation4 + $0x88] sm:$0xff] %vm2835, %v2678
  %2854 = vst.msk [vmem:[#allocation4 + $0x90] sm:$0xff] %vm2835, %v2680
  %2855 = vst.msk [vmem:[#allocation4 + $0x98] sm:$0xff] %vm2835, %v2682
  %2856 = vst.msk [vmem:[#allocation4 + $0xa0] sm:$0xff] %vm2835, %v2684
  %2857 = vst.msk [vmem:[#allocation4 + $0xa8] sm:$0xff] %vm2835, %v2686
  %2858 = vst.msk [vmem:[#allocation4 + $0xb0] sm:$0xff] %vm2835, %v2688
  %2859 = vst.msk [vmem:[#allocation4 + $0xb8] sm:$0xff] %vm2835, %v2690
  %2860 = vst.msk [vmem:[#allocation4 + $0xc0] sm:$0xff] %vm2835, %v2692
  %2861 = vst.msk [vmem:[#allocation4 + $0xc8] sm:$0xff] %vm2835, %v2694
  %2862 = vst.msk [vmem:[#allocation4 + $0xd0] sm:$0xff] %vm2835, %v2696
  %2863 = vst.msk [vmem:[#allocation4 + $0xd8] sm:$0xff] %vm2835, %v2698
  %2864 = vst.msk [vmem:[#allocation4 + $0xe0] sm:$0xff] %vm2835, %v2700
  %2865 = vst.msk [vmem:[#allocation4 + $0xe8] sm:$0xff] %vm2835, %v2702
  %2866 = vst.msk [vmem:[#allocation4 + $0xf0] sm:$0xff] %vm2835, %v2704
  %2867 = vst.msk [vmem:[#allocation4 + $0xf8] sm:$0xff] %vm2835, %v2706
  %2868 = vst.msk [vmem:[#allocation4 + $0x100] sm:$0xff] %vm2835, %v2708
  %2869 = vst.msk [vmem:[#allocation4 + $0x108] sm:$0xff] %vm2835, %v2710
  %2870 = vst.msk [vmem:[#allocation4 + $0x110] sm:$0xff] %vm2835, %v2712
  %2871 = vst.msk [vmem:[#allocation4 + $0x118] sm:$0xff] %vm2835, %v2714
  %2872 = vst.msk [vmem:[#allocation4 + $0x120] sm:$0xff] %vm2835, %v2716
  %2873 = vst.msk [vmem:[#allocation4 + $0x128] sm:$0xff] %vm2835, %v2718
  %2874 = vst.msk [vmem:[#allocation4 + $0x130] sm:$0xff] %vm2835, %v2720
  %2875 = vst.msk [vmem:[#allocation4 + $0x138] sm:$0xff] %vm2835, %v2722
  %2876 = vst.msk [vmem:[#allocation4 + $0x140] sm:$0xff] %vm2835, %v2724
  %2877 = vst.msk [vmem:[#allocation4 + $0x148] sm:$0xff] %vm2835, %v2726
  %2878 = vst.msk [vmem:[#allocation4 + $0x150] sm:$0xff] %vm2835, %v2728
  %2879 = vst.msk [vmem:[#allocation4 + $0x158] sm:$0xff] %vm2835, %v2730
  %2880 = vst.msk [vmem:[#allocation4 + $0x160] sm:$0xff] %vm2835, %v2732
  %2881 = vst.msk [vmem:[#allocation4 + $0x168] sm:$0xff] %vm2835, %v2734
  %2882 = vst.msk [vmem:[#allocation4 + $0x170] sm:$0xff] %vm2835, %v2736
  %2883 = vst.msk [vmem:[#allocation4 + $0x178] sm:$0xff] %vm2835, %v2738
  %2884 = vst.msk [vmem:[#allocation4 + $0x180] sm:$0xff] %vm2835, %v2740
  %2885 = vst.msk [vmem:[#allocation4 + $0x188] sm:$0xff] %vm2835, %v2742
  %2886 = vst.msk [vmem:[#allocation4 + $0x190] sm:$0xff] %vm2835, %v2744
  %2887 = vst.msk [vmem:[#allocation4 + $0x198] sm:$0xff] %vm2835, %v2746
  %2888 = vst.msk [vmem:[#allocation4 + $0x1a0] sm:$0xff] %vm2835, %v2748
  %2889 = vst.msk [vmem:[#allocation4 + $0x1a8] sm:$0xff] %vm2835, %v2750
  %2890 = vst.msk [vmem:[#allocation4 + $0x1b0] sm:$0xff] %vm2835, %v2752
  %2891 = vst.msk [vmem:[#allocation4 + $0x1b8] sm:$0xff] %vm2835, %v2754
  %2892 = vst.msk [vmem:[#allocation4 + $0x1c0] sm:$0xff] %vm2835, %v2756
  %2893 = vst.msk [vmem:[#allocation4 + $0x1c8] sm:$0xff] %vm2835, %v2758
  %2894 = vst.msk [vmem:[#allocation4 + $0x1d0] sm:$0xff] %vm2835, %v2760
  %2895 = vst.msk [vmem:[#allocation4 + $0x1d8] sm:$0xff] %vm2835, %v2762
  %2896 = vst.msk [vmem:[#allocation4 + $0x1e0] sm:$0xff] %vm2835, %v2764
  %2897 = vst.msk [vmem:[#allocation4 + $0x1e8] sm:$0xff] %vm2835, %v2766
  %2898 = vst.msk [vmem:[#allocation4 + $0x1f0] sm:$0xff] %vm2835, %v2768
  %2899 = vst.msk [vmem:[#allocation4 + $0x1f8] sm:$0xff] %vm2835, %v2770
  %v2900 = vld [vmem:[#allocation3 + $0x2] sm:$0xff]
  %v2901 = vld [vmem:[#allocation3 + $0xa] sm:$0xff]
  %v2902 = vld [vmem:[#allocation3 + $0x1a] sm:$0xff]
  %v2903 = vld [vmem:[#allocation3 + $0x22] sm:$0xff]
  %v2904 = vld [vmem:[#allocation3 + $0x32] sm:$0xff]
  %v2905 = vld [vmem:[#allocation3 + $0x3a] sm:$0xff]
  %v2906 = vld [vmem:[#allocation3 + $0x4a] sm:$0xff]
  %v2907 = vld [vmem:[#allocation3 + $0x52] sm:$0xff]
  %v2908 = vld [vmem:[#allocation3 + $0x62] sm:$0xff]
  %v2909 = vld [vmem:[#allocation3 + $0x6a] sm:$0xff]
  %v2910 = vld [vmem:[#allocation3 + $0x7a] sm:$0xff]
  %v2911 = vld [vmem:[#allocation3 + $0x82] sm:$0xff]
  %v2912 = vld [vmem:[#allocation3 + $0x92] sm:$0xff]
  %v2913 = vld [vmem:[#allocation3 + $0x9a] sm:$0xff]
  %v2914 = vld [vmem:[#allocation3 + $0xaa] sm:$0xff]
  %v2915 = vld [vmem:[#allocation3 + $0xb2] sm:$0xff]
  %v2916 = vld [vmem:[#allocation3 + $0xc2] sm:$0xff]
  %v2917 = vld [vmem:[#allocation3 + $0xca] sm:$0xff]
  %v2918 = vld [vmem:[#allocation3 + $0xda] sm:$0xff]
  %v2919 = vld [vmem:[#allocation3 + $0xe2] sm:$0xff]
  %v2920 = vld [vmem:[#allocation3 + $0xf2] sm:$0xff]
  %v2921 = vld [vmem:[#allocation3 + $0xfa] sm:$0xff]
  %v2922 = vld [vmem:[#allocation3 + $0x10a] sm:$0xff]
  %v2923 = vld [vmem:[#allocation3 + $0x112] sm:$0xff]
  %v2924 = vld [vmem:[#allocation3 + $0x122] sm:$0xff]
  %v2925 = vld [vmem:[#allocation3 + $0x12a] sm:$0xff]
  %v2926 = vld [vmem:[#allocation3 + $0x13a] sm:$0xff]
  %v2927 = vld [vmem:[#allocation3 + $0x142] sm:$0xff]
  %v2928 = vld [vmem:[#allocation3 + $0x152] sm:$0xff]
  %v2929 = vld [vmem:[#allocation3 + $0x15a] sm:$0xff]
  %v2930 = vld [vmem:[#allocation3 + $0x16a] sm:$0xff]
  %v2931 = vld [vmem:[#allocation3 + $0x172] sm:$0xff]
  %v2932 = vld [vmem:[#allocation3 + $0x1b2] sm:$0xff]
  %v2933 = vld [vmem:[#allocation3 + $0x1ba] sm:$0xff]
  %v2934 = vld [vmem:[#allocation3 + $0x1ca] sm:$0xff]
  %v2935 = vld [vmem:[#allocation3 + $0x1d2] sm:$0xff]
  %v2936 = vld [vmem:[#allocation3 + $0x1e2] sm:$0xff]
  %v2937 = vld [vmem:[#allocation3 + $0x1ea] sm:$0xff]
  %v2938 = vld [vmem:[#allocation3 + $0x1fa] sm:$0xff]
  %v2939 = vld [vmem:[#allocation3 + $0x202] sm:$0xff]
  %v2940 = vld [vmem:[#allocation3 + $0x212] sm:$0xff]
  %v2941 = vld [vmem:[#allocation3 + $0x21a] sm:$0xff]
  %v2942 = vld [vmem:[#allocation3 + $0x22a] sm:$0xff]
  %v2943 = vld [vmem:[#allocation3 + $0x232] sm:$0xff]
  %v2944 = vld [vmem:[#allocation3 + $0x242] sm:$0xff]
  %v2945 = vld [vmem:[#allocation3 + $0x24a] sm:$0xff]
  %v2946 = vld [vmem:[#allocation3 + $0x25a] sm:$0xff]
  %v2947 = vld [vmem:[#allocation3 + $0x262] sm:$0xff]
  %v2948 = vld [vmem:[#allocation3 + $0x272] sm:$0xff]
  %v2949 = vld [vmem:[#allocation3 + $0x27a] sm:$0xff]
  %v2950 = vld [vmem:[#allocation3 + $0x28a] sm:$0xff]
  %v2951 = vld [vmem:[#allocation3 + $0x292] sm:$0xff]
  %v2952 = vld [vmem:[#allocation3 + $0x2a2] sm:$0xff]
  %v2953 = vld [vmem:[#allocation3 + $0x2aa] sm:$0xff]
  %v2954 = vld [vmem:[#allocation3 + $0x2ba] sm:$0xff]
  %v2955 = vld [vmem:[#allocation3 + $0x2c2] sm:$0xff]
  %v2956 = vld [vmem:[#allocation3 + $0x2d2] sm:$0xff]
  %v2957 = vld [vmem:[#allocation3 + $0x2da] sm:$0xff]
  %v2958 = vld [vmem:[#allocation3 + $0x2ea] sm:$0xff]
  %v2959 = vld [vmem:[#allocation3 + $0x2f2] sm:$0xff]
  %v2960 = vld [vmem:[#allocation3 + $0x302] sm:$0xff]
  %v2961 = vld [vmem:[#allocation3 + $0x30a] sm:$0xff]
  %v2962 = vld [vmem:[#allocation3 + $0x31a] sm:$0xff]
  %v2963 = vld [vmem:[#allocation3 + $0x322] sm:$0xff]
  %3028 = vrot.lane.b32.xlu0 %v2900, 16
  %v3029 = vpop.permute.xlu0 %3028
  %3030 = vrot.lane.b32.xlu0 %v2901, 16
  %v3031 = vpop.permute.xlu0 %3030
  %3032 = vrot.lane.b32.xlu0 %v2902, 16
  %v3033 = vpop.permute.xlu0 %3032
  %3034 = vrot.lane.b32.xlu0 %v2903, 16
  %v3035 = vpop.permute.xlu0 %3034
  %3036 = vrot.lane.b32.xlu0 %v2904, 16
  %v3037 = vpop.permute.xlu0 %3036
  %3038 = vrot.lane.b32.xlu0 %v2905, 16
  %v3039 = vpop.permute.xlu0 %3038
  %3040 = vrot.lane.b32.xlu0 %v2906, 16
  %v3041 = vpop.permute.xlu0 %3040
  %3042 = vrot.lane.b32.xlu0 %v2907, 16
  %v3043 = vpop.permute.xlu0 %3042
  %3044 = vrot.lane.b32.xlu0 %v2908, 16
  %v3045 = vpop.permute.xlu0 %3044
  %3046 = vrot.lane.b32.xlu0 %v2909, 16
  %v3047 = vpop.permute.xlu0 %3046
  %3048 = vrot.lane.b32.xlu0 %v2910, 16
  %v3049 = vpop.permute.xlu0 %3048
  %3050 = vrot.lane.b32.xlu0 %v2911, 16
  %v3051 = vpop.permute.xlu0 %3050
  %3052 = vrot.lane.b32.xlu0 %v2912, 16
  %v3053 = vpop.permute.xlu0 %3052
  %3054 = vrot.lane.b32.xlu0 %v2913, 16
  %v3055 = vpop.permute.xlu0 %3054
  %3056 = vrot.lane.b32.xlu0 %v2914, 16
  %v3057 = vpop.permute.xlu0 %3056
  %3058 = vrot.lane.b32.xlu0 %v2915, 16
  %v3059 = vpop.permute.xlu0 %3058
  %3060 = vrot.lane.b32.xlu0 %v2916, 16
  %v3061 = vpop.permute.xlu0 %3060
  %3062 = vrot.lane.b32.xlu0 %v2917, 16
  %v3063 = vpop.permute.xlu0 %3062
  %3064 = vrot.lane.b32.xlu0 %v2918, 16
  %v3065 = vpop.permute.xlu0 %3064
  %3066 = vrot.lane.b32.xlu0 %v2919, 16
  %v3067 = vpop.permute.xlu0 %3066
  %3068 = vrot.lane.b32.xlu0 %v2920, 16
  %v3069 = vpop.permute.xlu0 %3068
  %3070 = vrot.lane.b32.xlu0 %v2921, 16
  %v3071 = vpop.permute.xlu0 %3070
  %3072 = vrot.lane.b32.xlu0 %v2922, 16
  %v3073 = vpop.permute.xlu0 %3072
  %3074 = vrot.lane.b32.xlu0 %v2923, 16
  %v3075 = vpop.permute.xlu0 %3074
  %3076 = vrot.lane.b32.xlu0 %v2924, 16
  %v3077 = vpop.permute.xlu0 %3076
  %3078 = vrot.lane.b32.xlu0 %v2925, 16
  %v3079 = vpop.permute.xlu0 %3078
  %3080 = vrot.lane.b32.xlu0 %v2926, 16
  %v3081 = vpop.permute.xlu0 %3080
  %3082 = vrot.lane.b32.xlu0 %v2927, 16
  %v3083 = vpop.permute.xlu0 %3082
  %3084 = vrot.lane.b32.xlu0 %v2928, 16
  %v3085 = vpop.permute.xlu0 %3084
  %3086 = vrot.lane.b32.xlu0 %v2929, 16
  %v3087 = vpop.permute.xlu0 %3086
  %3088 = vrot.lane.b32.xlu0 %v2930, 16
  %v3089 = vpop.permute.xlu0 %3088
  %3090 = vrot.lane.b32.xlu0 %v2931, 16
  %v3091 = vpop.permute.xlu0 %3090
  %3092 = vrot.lane.b32.xlu0 %v2932, 16
  %v3093 = vpop.permute.xlu0 %3092
  %3094 = vrot.lane.b32.xlu0 %v2933, 16
  %v3095 = vpop.permute.xlu0 %3094
  %3096 = vrot.lane.b32.xlu0 %v2934, 16
  %v3097 = vpop.permute.xlu0 %3096
  %3098 = vrot.lane.b32.xlu0 %v2935, 16
  %v3099 = vpop.permute.xlu0 %3098
  %3100 = vrot.lane.b32.xlu0 %v2936, 16
  %v3101 = vpop.permute.xlu0 %3100
  %3102 = vrot.lane.b32.xlu0 %v2937, 16
  %v3103 = vpop.permute.xlu0 %3102
  %3104 = vrot.lane.b32.xlu0 %v2938, 16
  %v3105 = vpop.permute.xlu0 %3104
  %3106 = vrot.lane.b32.xlu0 %v2939, 16
  %v3107 = vpop.permute.xlu0 %3106
  %3108 = vrot.lane.b32.xlu0 %v2940, 16
  %v3109 = vpop.permute.xlu0 %3108
  %3110 = vrot.lane.b32.xlu0 %v2941, 16
  %v3111 = vpop.permute.xlu0 %3110
  %3112 = vrot.lane.b32.xlu0 %v2942, 16
  %v3113 = vpop.permute.xlu0 %3112
  %3114 = vrot.lane.b32.xlu0 %v2943, 16
  %v3115 = vpop.permute.xlu0 %3114
  %3116 = vrot.lane.b32.xlu0 %v2944, 16
  %v3117 = vpop.permute.xlu0 %3116
  %3118 = vrot.lane.b32.xlu0 %v2945, 16
  %v3119 = vpop.permute.xlu0 %3118
  %3120 = vrot.lane.b32.xlu0 %v2946, 16
  %v3121 = vpop.permute.xlu0 %3120
  %3122 = vrot.lane.b32.xlu0 %v2947, 16
  %v3123 = vpop.permute.xlu0 %3122
  %3124 = vrot.lane.b32.xlu0 %v2948, 16
  %v3125 = vpop.permute.xlu0 %3124
  %3126 = vrot.lane.b32.xlu0 %v2949, 16
  %v3127 = vpop.permute.xlu0 %3126
  %3128 = vrot.lane.b32.xlu0 %v2950, 16
  %v3129 = vpop.permute.xlu0 %3128
  %3130 = vrot.lane.b32.xlu0 %v2951, 16
  %v3131 = vpop.permute.xlu0 %3130
  %3132 = vrot.lane.b32.xlu0 %v2952, 16
  %v3133 = vpop.permute.xlu0 %3132
  %3134 = vrot.lane.b32.xlu0 %v2953, 16
  %v3135 = vpop.permute.xlu0 %3134
  %3136 = vrot.lane.b32.xlu0 %v2954, 16
  %v3137 = vpop.permute.xlu0 %3136
  %3138 = vrot.lane.b32.xlu0 %v2955, 16
  %v3139 = vpop.permute.xlu0 %3138
  %3140 = vrot.lane.b32.xlu0 %v2956, 16
  %v3141 = vpop.permute.xlu0 %3140
  %3142 = vrot.lane.b32.xlu0 %v2957, 16
  %v3143 = vpop.permute.xlu0 %3142
  %3144 = vrot.lane.b32.xlu0 %v2958, 16
  %v3145 = vpop.permute.xlu0 %3144
  %3146 = vrot.lane.b32.xlu0 %v2959, 16
  %v3147 = vpop.permute.xlu0 %3146
  %3148 = vrot.lane.b32.xlu0 %v2960, 16
  %v3149 = vpop.permute.xlu0 %3148
  %3150 = vrot.lane.b32.xlu0 %v2961, 16
  %v3151 = vpop.permute.xlu0 %3150
  %3152 = vrot.lane.b32.xlu0 %v2962, 16
  %v3153 = vpop.permute.xlu0 %3152
  %3154 = vrot.lane.b32.xlu0 %v2963, 16
  %v3155 = vpop.permute.xlu0 %3154
  %vm3220 = vcmask 195712
  %3221 = vst.msk [vmem:[#allocation4] sm:$0xff] %vm3220, %v3029
  %3222 = vst.msk [vmem:[#allocation4 + $0x8] sm:$0xff] %vm3220, %v3031
  %3223 = vst.msk [vmem:[#allocation4 + $0x10] sm:$0xff] %vm3220, %v3033
  %3224 = vst.msk [vmem:[#allocation4 + $0x18] sm:$0xff] %vm3220, %v3035
  %3225 = vst.msk [vmem:[#allocation4 + $0x20] sm:$0xff] %vm3220, %v3037
  %3226 = vst.msk [vmem:[#allocation4 + $0x28] sm:$0xff] %vm3220, %v3039
  %3227 = vst.msk [vmem:[#allocation4 + $0x30] sm:$0xff] %vm3220, %v3041
  %3228 = vst.msk [vmem:[#allocation4 + $0x38] sm:$0xff] %vm3220, %v3043
  %3229 = vst.msk [vmem:[#allocation4 + $0x40] sm:$0xff] %vm3220, %v3045
  %3230 = vst.msk [vmem:[#allocation4 + $0x48] sm:$0xff] %vm3220, %v3047
  %3231 = vst.msk [vmem:[#allocation4 + $0x50] sm:$0xff] %vm3220, %v3049
  %3232 = vst.msk [vmem:[#allocation4 + $0x58] sm:$0xff] %vm3220, %v3051
  %3233 = vst.msk [vmem:[#allocation4 + $0x60] sm:$0xff] %vm3220, %v3053
  %3234 = vst.msk [vmem:[#allocation4 + $0x68] sm:$0xff] %vm3220, %v3055
  %3235 = vst.msk [vmem:[#allocation4 + $0x70] sm:$0xff] %vm3220, %v3057
  %3236 = vst.msk [vmem:[#allocation4 + $0x78] sm:$0xff] %vm3220, %v3059
  %3237 = vst.msk [vmem:[#allocation4 + $0x80] sm:$0xff] %vm3220, %v3061
  %3238 = vst.msk [vmem:[#allocation4 + $0x88] sm:$0xff] %vm3220, %v3063
  %3239 = vst.msk [vmem:[#allocation4 + $0x90] sm:$0xff] %vm3220, %v3065
  %3240 = vst.msk [vmem:[#allocation4 + $0x98] sm:$0xff] %vm3220, %v3067
  %3241 = vst.msk [vmem:[#allocation4 + $0xa0] sm:$0xff] %vm3220, %v3069
  %3242 = vst.msk [vmem:[#allocation4 + $0xa8] sm:$0xff] %vm3220, %v3071
  %3243 = vst.msk [vmem:[#allocation4 + $0xb0] sm:$0xff] %vm3220, %v3073
  %3244 = vst.msk [vmem:[#allocation4 + $0xb8] sm:$0xff] %vm3220, %v3075
  %3245 = vst.msk [vmem:[#allocation4 + $0xc0] sm:$0xff] %vm3220, %v3077
  %3246 = vst.msk [vmem:[#allocation4 + $0xc8] sm:$0xff] %vm3220, %v3079
  %3247 = vst.msk [vmem:[#allocation4 + $0xd0] sm:$0xff] %vm3220, %v3081
  %3248 = vst.msk [vmem:[#allocation4 + $0xd8] sm:$0xff] %vm3220, %v3083
  %3249 = vst.msk [vmem:[#allocation4 + $0xe0] sm:$0xff] %vm3220, %v3085
  %3250 = vst.msk [vmem:[#allocation4 + $0xe8] sm:$0xff] %vm3220, %v3087
  %3251 = vst.msk [vmem:[#allocation4 + $0xf0] sm:$0xff] %vm3220, %v3089
  %3252 = vst.msk [vmem:[#allocation4 + $0xf8] sm:$0xff] %vm3220, %v3091
  %3253 = vst.msk [vmem:[#allocation4 + $0x100] sm:$0xff] %vm3220, %v3093
  %3254 = vst.msk [vmem:[#allocation4 + $0x108] sm:$0xff] %vm3220, %v3095
  %3255 = vst.msk [vmem:[#allocation4 + $0x110] sm:$0xff] %vm3220, %v3097
  %3256 = vst.msk [vmem:[#allocation4 + $0x118] sm:$0xff] %vm3220, %v3099
  %3257 = vst.msk [vmem:[#allocation4 + $0x120] sm:$0xff] %vm3220, %v3101
  %3258 = vst.msk [vmem:[#allocation4 + $0x128] sm:$0xff] %vm3220, %v3103
  %3259 = vst.msk [vmem:[#allocation4 + $0x130] sm:$0xff] %vm3220, %v3105
  %3260 = vst.msk [vmem:[#allocation4 + $0x138] sm:$0xff] %vm3220, %v3107
  %3261 = vst.msk [vmem:[#allocation4 + $0x140] sm:$0xff] %vm3220, %v3109
  %3262 = vst.msk [vmem:[#allocation4 + $0x148] sm:$0xff] %vm3220, %v3111
  %3263 = vst.msk [vmem:[#allocation4 + $0x150] sm:$0xff] %vm3220, %v3113
  %3264 = vst.msk [vmem:[#allocation4 + $0x158] sm:$0xff] %vm3220, %v3115
  %3265 = vst.msk [vmem:[#allocation4 + $0x160] sm:$0xff] %vm3220, %v3117
  %3266 = vst.msk [vmem:[#allocation4 + $0x168] sm:$0xff] %vm3220, %v3119
  %3267 = vst.msk [vmem:[#allocation4 + $0x170] sm:$0xff] %vm3220, %v3121
  %3268 = vst.msk [vmem:[#allocation4 + $0x178] sm:$0xff] %vm3220, %v3123
  %3269 = vst.msk [vmem:[#allocation4 + $0x180] sm:$0xff] %vm3220, %v3125
  %3270 = vst.msk [vmem:[#allocation4 + $0x188] sm:$0xff] %vm3220, %v3127
  %3271 = vst.msk [vmem:[#allocation4 + $0x190] sm:$0xff] %vm3220, %v3129
  %3272 = vst.msk [vmem:[#allocation4 + $0x198] sm:$0xff] %vm3220, %v3131
  %3273 = vst.msk [vmem:[#allocation4 + $0x1a0] sm:$0xff] %vm3220, %v3133
  %3274 = vst.msk [vmem:[#allocation4 + $0x1a8] sm:$0xff] %vm3220, %v3135
  %3275 = vst.msk [vmem:[#allocation4 + $0x1b0] sm:$0xff] %vm3220, %v3137
  %3276 = vst.msk [vmem:[#allocation4 + $0x1b8] sm:$0xff] %vm3220, %v3139
  %3277 = vst.msk [vmem:[#allocation4 + $0x1c0] sm:$0xff] %vm3220, %v3141
  %3278 = vst.msk [vmem:[#allocation4 + $0x1c8] sm:$0xff] %vm3220, %v3143
  %3279 = vst.msk [vmem:[#allocation4 + $0x1d0] sm:$0xff] %vm3220, %v3145
  %3280 = vst.msk [vmem:[#allocation4 + $0x1d8] sm:$0xff] %vm3220, %v3147
  %3281 = vst.msk [vmem:[#allocation4 + $0x1e0] sm:$0xff] %vm3220, %v3149
  %3282 = vst.msk [vmem:[#allocation4 + $0x1e8] sm:$0xff] %vm3220, %v3151
  %3283 = vst.msk [vmem:[#allocation4 + $0x1f0] sm:$0xff] %vm3220, %v3153
  %3284 = vst.msk [vmem:[#allocation4 + $0x1f8] sm:$0xff] %vm3220, %v3155
  %v3285 = vld [vmem:[%s181] sm:$0xff]
  %v3286 = vld [vmem:[%s181 + $0x8] sm:$0xff]
  %v3287 = vld [vmem:[%s181 + $0x18] sm:$0xff]
  %v3288 = vld [vmem:[%s181 + $0x20] sm:$0xff]
  %v3289 = vld [vmem:[%s181 + $0x30] sm:$0xff]
  %v3290 = vld [vmem:[%s181 + $0x38] sm:$0xff]
  %v3291 = vld [vmem:[%s181 + $0x48] sm:$0xff]
  %v3292 = vld [vmem:[%s181 + $0x50] sm:$0xff]
  %v3293 = vld [vmem:[%s181 + $0x60] sm:$0xff]
  %v3294 = vld [vmem:[%s181 + $0x68] sm:$0xff]
  %v3295 = vld [vmem:[%s181 + $0x78] sm:$0xff]
  %v3296 = vld [vmem:[%s181 + $0x80] sm:$0xff]
  %v3297 = vld [vmem:[%s181 + $0x90] sm:$0xff]
  %v3298 = vld [vmem:[%s181 + $0x98] sm:$0xff]
  %v3299 = vld [vmem:[%s181 + $0xa8] sm:$0xff]
  %v3300 = vld [vmem:[%s181 + $0xb0] sm:$0xff]
  %v3301 = vld [vmem:[%s181 + $0xc0] sm:$0xff]
  %v3302 = vld [vmem:[%s181 + $0xc8] sm:$0xff]
  %v3303 = vld [vmem:[%s181 + $0xd8] sm:$0xff]
  %v3304 = vld [vmem:[%s181 + $0xe0] sm:$0xff]
  %v3305 = vld [vmem:[%s181 + $0xf0] sm:$0xff]
  %v3306 = vld [vmem:[%s181 + $0xf8] sm:$0xff]
  %v3307 = vld [vmem:[%s181 + $0x108] sm:$0xff]
  %v3308 = vld [vmem:[%s181 + $0x110] sm:$0xff]
  %v3309 = vld [vmem:[%s181 + $0x120] sm:$0xff]
  %v3310 = vld [vmem:[%s181 + $0x128] sm:$0xff]
  %v3311 = vld [vmem:[%s181 + $0x138] sm:$0xff]
  %v3312 = vld [vmem:[%s181 + $0x140] sm:$0xff]
  %v3313 = vld [vmem:[%s181 + $0x150] sm:$0xff]
  %v3314 = vld [vmem:[%s181 + $0x158] sm:$0xff]
  %v3315 = vld [vmem:[%s181 + $0x168] sm:$0xff]
  %v3316 = vld [vmem:[%s181 + $0x170] sm:$0xff]
  %v3317 = vld [vmem:[%s181 + $0x1b0] sm:$0xff]
  %v3318 = vld [vmem:[%s181 + $0x1b8] sm:$0xff]
  %v3319 = vld [vmem:[%s181 + $0x1c8] sm:$0xff]
  %v3320 = vld [vmem:[%s181 + $0x1d0] sm:$0xff]
  %v3321 = vld [vmem:[%s181 + $0x1e0] sm:$0xff]
  %v3322 = vld [vmem:[%s181 + $0x1e8] sm:$0xff]
  %v3323 = vld [vmem:[%s181 + $0x1f8] sm:$0xff]
  %v3324 = vld [vmem:[%s181 + $0x200] sm:$0xff]
  %v3325 = vld [vmem:[%s181 + $0x210] sm:$0xff]
  %v3326 = vld [vmem:[%s181 + $0x218] sm:$0xff]
  %v3327 = vld [vmem:[%s181 + $0x228] sm:$0xff]
  %v3328 = vld [vmem:[%s181 + $0x230] sm:$0xff]
  %v3329 = vld [vmem:[%s181 + $0x240] sm:$0xff]
  %v3330 = vld [vmem:[%s181 + $0x248] sm:$0xff]
  %v3331 = vld [vmem:[%s181 + $0x258] sm:$0xff]
  %v3332 = vld [vmem:[%s181 + $0x260] sm:$0xff]
  %v3333 = vld [vmem:[%s181 + $0x270] sm:$0xff]
  %v3334 = vld [vmem:[%s181 + $0x278] sm:$0xff]
  %v3335 = vld [vmem:[%s181 + $0x288] sm:$0xff]
  %v3336 = vld [vmem:[%s181 + $0x290] sm:$0xff]
  %v3337 = vld [vmem:[%s181 + $0x2a0] sm:$0xff]
  %v3338 = vld [vmem:[%s181 + $0x2a8] sm:$0xff]
  %v3339 = vld [vmem:[%s181 + $0x2b8] sm:$0xff]
  %v3340 = vld [vmem:[%s181 + $0x2c0] sm:$0xff]
  %v3341 = vld [vmem:[%s181 + $0x2d0] sm:$0xff]
  %v3342 = vld [vmem:[%s181 + $0x2d8] sm:$0xff]
  %v3343 = vld [vmem:[%s181 + $0x2e8] sm:$0xff]
  %v3344 = vld [vmem:[%s181 + $0x2f0] sm:$0xff]
  %v3345 = vld [vmem:[%s181 + $0x300] sm:$0xff]
  %v3346 = vld [vmem:[%s181 + $0x308] sm:$0xff]
  %v3347 = vld [vmem:[%s181 + $0x318] sm:$0xff]
  %v3348 = vld [vmem:[%s181 + $0x320] sm:$0xff]
  %3413 = vrot.lane.b32.xlu0 %v3285, 24
  %v3414 = vpop.permute.xlu0 %3413
  %3415 = vrot.lane.b32.xlu0 %v3286, 24
  %v3416 = vpop.permute.xlu0 %3415
  %3417 = vrot.lane.b32.xlu0 %v3287, 24
  %v3418 = vpop.permute.xlu0 %3417
  %3419 = vrot.lane.b32.xlu0 %v3288, 24
  %v3420 = vpop.permute.xlu0 %3419
  %3421 = vrot.lane.b32.xlu0 %v3289, 24
  %v3422 = vpop.permute.xlu0 %3421
  %3423 = vrot.lane.b32.xlu0 %v3290, 24
  %v3424 = vpop.permute.xlu0 %3423
  %3425 = vrot.lane.b32.xlu0 %v3291, 24
  %v3426 = vpop.permute.xlu0 %3425
  %3427 = vrot.lane.b32.xlu0 %v3292, 24
  %v3428 = vpop.permute.xlu0 %3427
  %3429 = vrot.lane.b32.xlu0 %v3293, 24
  %v3430 = vpop.permute.xlu0 %3429
  %3431 = vrot.lane.b32.xlu0 %v3294, 24
  %v3432 = vpop.permute.xlu0 %3431
  %3433 = vrot.lane.b32.xlu0 %v3295, 24
  %v3434 = vpop.permute.xlu0 %3433
  %3435 = vrot.lane.b32.xlu0 %v3296, 24
  %v3436 = vpop.permute.xlu0 %3435
  %3437 = vrot.lane.b32.xlu0 %v3297, 24
  %v3438 = vpop.permute.xlu0 %3437
  %3439 = vrot.lane.b32.xlu0 %v3298, 24
  %v3440 = vpop.permute.xlu0 %3439
  %3441 = vrot.lane.b32.xlu0 %v3299, 24
  %v3442 = vpop.permute.xlu0 %3441
  %3443 = vrot.lane.b32.xlu0 %v3300, 24
  %v3444 = vpop.permute.xlu0 %3443
  %3445 = vrot.lane.b32.xlu0 %v3301, 24
  %v3446 = vpop.permute.xlu0 %3445
  %3447 = vrot.lane.b32.xlu0 %v3302, 24
  %v3448 = vpop.permute.xlu0 %3447
  %3449 = vrot.lane.b32.xlu0 %v3303, 24
  %v3450 = vpop.permute.xlu0 %3449
  %3451 = vrot.lane.b32.xlu0 %v3304, 24
  %v3452 = vpop.permute.xlu0 %3451
  %3453 = vrot.lane.b32.xlu0 %v3305, 24
  %v3454 = vpop.permute.xlu0 %3453
  %3455 = vrot.lane.b32.xlu0 %v3306, 24
  %v3456 = vpop.permute.xlu0 %3455
  %3457 = vrot.lane.b32.xlu0 %v3307, 24
  %v3458 = vpop.permute.xlu0 %3457
  %3459 = vrot.lane.b32.xlu0 %v3308, 24
  %v3460 = vpop.permute.xlu0 %3459
  %3461 = vrot.lane.b32.xlu0 %v3309, 24
  %v3462 = vpop.permute.xlu0 %3461
  %3463 = vrot.lane.b32.xlu0 %v3310, 24
  %v3464 = vpop.permute.xlu0 %3463
  %3465 = vrot.lane.b32.xlu0 %v3311, 24
  %v3466 = vpop.permute.xlu0 %3465
  %3467 = vrot.lane.b32.xlu0 %v3312, 24
  %v3468 = vpop.permute.xlu0 %3467
  %3469 = vrot.lane.b32.xlu0 %v3313, 24
  %v3470 = vpop.permute.xlu0 %3469
  %3471 = vrot.lane.b32.xlu0 %v3314, 24
  %v3472 = vpop.permute.xlu0 %3471
  %3473 = vrot.lane.b32.xlu0 %v3315, 24
  %v3474 = vpop.permute.xlu0 %3473
  %3475 = vrot.lane.b32.xlu0 %v3316, 24
  %v3476 = vpop.permute.xlu0 %3475
  %3477 = vrot.lane.b32.xlu0 %v3317, 24
  %v3478 = vpop.permute.xlu0 %3477
  %3479 = vrot.lane.b32.xlu0 %v3318, 24
  %v3480 = vpop.permute.xlu0 %3479
  %3481 = vrot.lane.b32.xlu0 %v3319, 24
  %v3482 = vpop.permute.xlu0 %3481
  %3483 = vrot.lane.b32.xlu0 %v3320, 24
  %v3484 = vpop.permute.xlu0 %3483
  %3485 = vrot.lane.b32.xlu0 %v3321, 24
  %v3486 = vpop.permute.xlu0 %3485
  %3487 = vrot.lane.b32.xlu0 %v3322, 24
  %v3488 = vpop.permute.xlu0 %3487
  %3489 = vrot.lane.b32.xlu0 %v3323, 24
  %v3490 = vpop.permute.xlu0 %3489
  %3491 = vrot.lane.b32.xlu0 %v3324, 24
  %v3492 = vpop.permute.xlu0 %3491
  %3493 = vrot.lane.b32.xlu0 %v3325, 24
  %v3494 = vpop.permute.xlu0 %3493
  %3495 = vrot.lane.b32.xlu0 %v3326, 24
  %v3496 = vpop.permute.xlu0 %3495
  %3497 = vrot.lane.b32.xlu0 %v3327, 24
  %v3498 = vpop.permute.xlu0 %3497
  %3499 = vrot.lane.b32.xlu0 %v3328, 24
  %v3500 = vpop.permute.xlu0 %3499
  %3501 = vrot.lane.b32.xlu0 %v3329, 24
  %v3502 = vpop.permute.xlu0 %3501
  %3503 = vrot.lane.b32.xlu0 %v3330, 24
  %v3504 = vpop.permute.xlu0 %3503
  %3505 = vrot.lane.b32.xlu0 %v3331, 24
  %v3506 = vpop.permute.xlu0 %3505
  %3507 = vrot.lane.b32.xlu0 %v3332, 24
  %v3508 = vpop.permute.xlu0 %3507
  %3509 = vrot.lane.b32.xlu0 %v3333, 24
  %v3510 = vpop.permute.xlu0 %3509
  %3511 = vrot.lane.b32.xlu0 %v3334, 24
  %v3512 = vpop.permute.xlu0 %3511
  %3513 = vrot.lane.b32.xlu0 %v3335, 24
  %v3514 = vpop.permute.xlu0 %3513
  %3515 = vrot.lane.b32.xlu0 %v3336, 24
  %v3516 = vpop.permute.xlu0 %3515
  %3517 = vrot.lane.b32.xlu0 %v3337, 24
  %v3518 = vpop.permute.xlu0 %3517
  %3519 = vrot.lane.b32.xlu0 %v3338, 24
  %v3520 = vpop.permute.xlu0 %3519
  %3521 = vrot.lane.b32.xlu0 %v3339, 24
  %v3522 = vpop.permute.xlu0 %3521
  %3523 = vrot.lane.b32.xlu0 %v3340, 24
  %v3524 = vpop.permute.xlu0 %3523
  %3525 = vrot.lane.b32.xlu0 %v3341, 24
  %v3526 = vpop.permute.xlu0 %3525
  %3527 = vrot.lane.b32.xlu0 %v3342, 24
  %v3528 = vpop.permute.xlu0 %3527
  %3529 = vrot.lane.b32.xlu0 %v3343, 24
  %v3530 = vpop.permute.xlu0 %3529
  %3531 = vrot.lane.b32.xlu0 %v3344, 24
  %v3532 = vpop.permute.xlu0 %3531
  %3533 = vrot.lane.b32.xlu0 %v3345, 24
  %v3534 = vpop.permute.xlu0 %3533
  %3535 = vrot.lane.b32.xlu0 %v3346, 24
  %v3536 = vpop.permute.xlu0 %3535
  %3537 = vrot.lane.b32.xlu0 %v3347, 24
  %v3538 = vpop.permute.xlu0 %3537
  %3539 = vrot.lane.b32.xlu0 %v3348, 24
  %v3540 = vpop.permute.xlu0 %3539
  %vm3605 = vcmask 261312
  %3606 = vst.msk [vmem:[#allocation4] sm:$0xff] %vm3605, %v3414
  %3607 = vst.msk [vmem:[#allocation4 + $0x8] sm:$0xff] %vm3605, %v3416
  %3608 = vst.msk [vmem:[#allocation4 + $0x10] sm:$0xff] %vm3605, %v3418
  %3609 = vst.msk [vmem:[#allocation4 + $0x18] sm:$0xff] %vm3605, %v3420
  %3610 = vst.msk [vmem:[#allocation4 + $0x20] sm:$0xff] %vm3605, %v3422
  %3611 = vst.msk [vmem:[#allocation4 + $0x28] sm:$0xff] %vm3605, %v3424
  %3612 = vst.msk [vmem:[#allocation4 + $0x30] sm:$0xff] %vm3605, %v3426
  %3613 = vst.msk [vmem:[#allocation4 + $0x38] sm:$0xff] %vm3605, %v3428
  %3614 = vst.msk [vmem:[#allocation4 + $0x40] sm:$0xff] %vm3605, %v3430
  %3615 = vst.msk [vmem:[#allocation4 + $0x48] sm:$0xff] %vm3605, %v3432
  %3616 = vst.msk [vmem:[#allocation4 + $0x50] sm:$0xff] %vm3605, %v3434
  %3617 = vst.msk [vmem:[#allocation4 + $0x58] sm:$0xff] %vm3605, %v3436
  %3618 = vst.msk [vmem:[#allocation4 + $0x60] sm:$0xff] %vm3605, %v3438
  %3619 = vst.msk [vmem:[#allocation4 + $0x68] sm:$0xff] %vm3605, %v3440
  %3620 = vst.msk [vmem:[#allocation4 + $0x70] sm:$0xff] %vm3605, %v3442
  %3621 = vst.msk [vmem:[#allocation4 + $0x78] sm:$0xff] %vm3605, %v3444
  %3622 = vst.msk [vmem:[#allocation4 + $0x80] sm:$0xff] %vm3605, %v3446
  %3623 = vst.msk [vmem:[#allocation4 + $0x88] sm:$0xff] %vm3605, %v3448
  %3624 = vst.msk [vmem:[#allocation4 + $0x90] sm:$0xff] %vm3605, %v3450
  %3625 = vst.msk [vmem:[#allocation4 + $0x98] sm:$0xff] %vm3605, %v3452
  %3626 = vst.msk [vmem:[#allocation4 + $0xa0] sm:$0xff] %vm3605, %v3454
  %3627 = vst.msk [vmem:[#allocation4 + $0xa8] sm:$0xff] %vm3605, %v3456
  %3628 = vst.msk [vmem:[#allocation4 + $0xb0] sm:$0xff] %vm3605, %v3458
  %3629 = vst.msk [vmem:[#allocation4 + $0xb8] sm:$0xff] %vm3605, %v3460
  %3630 = vst.msk [vmem:[#allocation4 + $0xc0] sm:$0xff] %vm3605, %v3462
  %3631 = vst.msk [vmem:[#allocation4 + $0xc8] sm:$0xff] %vm3605, %v3464
  %3632 = vst.msk [vmem:[#allocation4 + $0xd0] sm:$0xff] %vm3605, %v3466
  %3633 = vst.msk [vmem:[#allocation4 + $0xd8] sm:$0xff] %vm3605, %v3468
  %3634 = vst.msk [vmem:[#allocation4 + $0xe0] sm:$0xff] %vm3605, %v3470
  %3635 = vst.msk [vmem:[#allocation4 + $0xe8] sm:$0xff] %vm3605, %v3472
  %3636 = vst.msk [vmem:[#allocation4 + $0xf0] sm:$0xff] %vm3605, %v3474
  %3637 = vst.msk [vmem:[#allocation4 + $0xf8] sm:$0xff] %vm3605, %v3476
  %3638 = vst.msk [vmem:[#allocation4 + $0x100] sm:$0xff] %vm3605, %v3478
  %3639 = vst.msk [vmem:[#allocation4 + $0x108] sm:$0xff] %vm3605, %v3480
  %3640 = vst.msk [vmem:[#allocation4 + $0x110] sm:$0xff] %vm3605, %v3482
  %3641 = vst.msk [vmem:[#allocation4 + $0x118] sm:$0xff] %vm3605, %v3484
  %3642 = vst.msk [vmem:[#allocation4 + $0x120] sm:$0xff] %vm3605, %v3486
  %3643 = vst.msk [vmem:[#allocation4 + $0x128] sm:$0xff] %vm3605, %v3488
  %3644 = vst.msk [vmem:[#allocation4 + $0x130] sm:$0xff] %vm3605, %v3490
  %3645 = vst.msk [vmem:[#allocation4 + $0x138] sm:$0xff] %vm3605, %v3492
  %3646 = vst.msk [vmem:[#allocation4 + $0x140] sm:$0xff] %vm3605, %v3494
  %3647 = vst.msk [vmem:[#allocation4 + $0x148] sm:$0xff] %vm3605, %v3496
  %3648 = vst.msk [vmem:[#allocation4 + $0x150] sm:$0xff] %vm3605, %v3498
  %3649 = vst.msk [vmem:[#allocation4 + $0x158] sm:$0xff] %vm3605, %v3500
  %3650 = vst.msk [vmem:[#allocation4 + $0x160] sm:$0xff] %vm3605, %v3502
  %3651 = vst.msk [vmem:[#allocation4 + $0x168] sm:$0xff] %vm3605, %v3504
  %3652 = vst.msk [vmem:[#allocation4 + $0x170] sm:$0xff] %vm3605, %v3506
  %3653 = vst.msk [vmem:[#allocation4 + $0x178] sm:$0xff] %vm3605, %v3508
  %3654 = vst.msk [vmem:[#allocation4 + $0x180] sm:$0xff] %vm3605, %v3510
  %3655 = vst.msk [vmem:[#allocation4 + $0x188] sm:$0xff] %vm3605, %v3512
  %3656 = vst.msk [vmem:[#allocation4 + $0x190] sm:$0xff] %vm3605, %v3514
  %3657 = vst.msk [vmem:[#allocation4 + $0x198] sm:$0xff] %vm3605, %v3516
  %3658 = vst.msk [vmem:[#allocation4 + $0x1a0] sm:$0xff] %vm3605, %v3518
  %3659 = vst.msk [vmem:[#allocation4 + $0x1a8] sm:$0xff] %vm3605, %v3520
  %3660 = vst.msk [vmem:[#allocation4 + $0x1b0] sm:$0xff] %vm3605, %v3522
  %3661 = vst.msk [vmem:[#allocation4 + $0x1b8] sm:$0xff] %vm3605, %v3524
  %3662 = vst.msk [vmem:[#allocation4 + $0x1c0] sm:$0xff] %vm3605, %v3526
  %3663 = vst.msk [vmem:[#allocation4 + $0x1c8] sm:$0xff] %vm3605, %v3528
  %3664 = vst.msk [vmem:[#allocation4 + $0x1d0] sm:$0xff] %vm3605, %v3530
  %3665 = vst.msk [vmem:[#allocation4 + $0x1d8] sm:$0xff] %vm3605, %v3532
  %3666 = vst.msk [vmem:[#allocation4 + $0x1e0] sm:$0xff] %vm3605, %v3534
  %3667 = vst.msk [vmem:[#allocation4 + $0x1e8] sm:$0xff] %vm3605, %v3536
  %3668 = vst.msk [vmem:[#allocation4 + $0x1f0] sm:$0xff] %vm3605, %v3538
  %3669 = vst.msk [vmem:[#allocation4 + $0x1f8] sm:$0xff] %vm3605, %v3540
  %v3670 = vld [vmem:[%s181 + $0x1] sm:$0xff]
  %v3671 = vld [vmem:[%s181 + $0x9] sm:$0xff]
  %v3672 = vld [vmem:[%s181 + $0x19] sm:$0xff]
  %v3673 = vld [vmem:[%s181 + $0x21] sm:$0xff]
  %v3674 = vld [vmem:[%s181 + $0x31] sm:$0xff]
  %v3675 = vld [vmem:[%s181 + $0x39] sm:$0xff]
  %v3676 = vld [vmem:[%s181 + $0x49] sm:$0xff]
  %v3677 = vld [vmem:[%s181 + $0x51] sm:$0xff]
  %v3678 = vld [vmem:[%s181 + $0x61] sm:$0xff]
  %v3679 = vld [vmem:[%s181 + $0x69] sm:$0xff]
  %v3680 = vld [vmem:[%s181 + $0x79] sm:$0xff]
  %v3681 = vld [vmem:[%s181 + $0x81] sm:$0xff]
  %v3682 = vld [vmem:[%s181 + $0x91] sm:$0xff]
  %v3683 = vld [vmem:[%s181 + $0x99] sm:$0xff]
  %v3684 = vld [vmem:[%s181 + $0xa9] sm:$0xff]
  %v3685 = vld [vmem:[%s181 + $0xb1] sm:$0xff]
  %v3686 = vld [vmem:[%s181 + $0xc1] sm:$0xff]
  %v3687 = vld [vmem:[%s181 + $0xc9] sm:$0xff]
  %v3688 = vld [vmem:[%s181 + $0xd9] sm:$0xff]
  %v3689 = vld [vmem:[%s181 + $0xe1] sm:$0xff]
  %v3690 = vld [vmem:[%s181 + $0xf1] sm:$0xff]
  %v3691 = vld [vmem:[%s181 + $0xf9] sm:$0xff]
  %v3692 = vld [vmem:[%s181 + $0x109] sm:$0xff]
  %v3693 = vld [vmem:[%s181 + $0x111] sm:$0xff]
  %v3694 = vld [vmem:[%s181 + $0x121] sm:$0xff]
  %v3695 = vld [vmem:[%s181 + $0x129] sm:$0xff]
  %v3696 = vld [vmem:[%s181 + $0x139] sm:$0xff]
  %v3697 = vld [vmem:[%s181 + $0x141] sm:$0xff]
  %v3698 = vld [vmem:[%s181 + $0x151] sm:$0xff]
  %v3699 = vld [vmem:[%s181 + $0x159] sm:$0xff]
  %v3700 = vld [vmem:[%s181 + $0x169] sm:$0xff]
  %v3701 = vld [vmem:[%s181 + $0x171] sm:$0xff]
  %v3702 = vld [vmem:[%s181 + $0x1b1] sm:$0xff]
  %v3703 = vld [vmem:[%s181 + $0x1b9] sm:$0xff]
  %v3704 = vld [vmem:[%s181 + $0x1c9] sm:$0xff]
  %v3705 = vld [vmem:[%s181 + $0x1d1] sm:$0xff]
  %v3706 = vld [vmem:[%s181 + $0x1e1] sm:$0xff]
  %v3707 = vld [vmem:[%s181 + $0x1e9] sm:$0xff]
  %v3708 = vld [vmem:[%s181 + $0x1f9] sm:$0xff]
  %v3709 = vld [vmem:[%s181 + $0x201] sm:$0xff]
  %v3710 = vld [vmem:[%s181 + $0x211] sm:$0xff]
  %v3711 = vld [vmem:[%s181 + $0x219] sm:$0xff]
  %v3712 = vld [vmem:[%s181 + $0x229] sm:$0xff]
  %v3713 = vld [vmem:[%s181 + $0x231] sm:$0xff]
  %v3714 = vld [vmem:[%s181 + $0x241] sm:$0xff]
  %v3715 = vld [vmem:[%s181 + $0x249] sm:$0xff]
  %v3716 = vld [vmem:[%s181 + $0x259] sm:$0xff]
  %v3717 = vld [vmem:[%s181 + $0x261] sm:$0xff]
  %v3718 = vld [vmem:[%s181 + $0x271] sm:$0xff]
  %v3719 = vld [vmem:[%s181 + $0x279] sm:$0xff]
  %v3720 = vld [vmem:[%s181 + $0x289] sm:$0xff]
  %v3721 = vld [vmem:[%s181 + $0x291] sm:$0xff]
  %v3722 = vld [vmem:[%s181 + $0x2a1] sm:$0xff]
  %v3723 = vld [vmem:[%s181 + $0x2a9] sm:$0xff]
  %v3724 = vld [vmem:[%s181 + $0x2b9] sm:$0xff]
  %v3725 = vld [vmem:[%s181 + $0x2c1] sm:$0xff]
  %v3726 = vld [vmem:[%s181 + $0x2d1] sm:$0xff]
  %v3727 = vld [vmem:[%s181 + $0x2d9] sm:$0xff]
  %v3728 = vld [vmem:[%s181 + $0x2e9] sm:$0xff]
  %v3729 = vld [vmem:[%s181 + $0x2f1] sm:$0xff]
  %v3730 = vld [vmem:[%s181 + $0x301] sm:$0xff]
  %v3731 = vld [vmem:[%s181 + $0x309] sm:$0xff]
  %v3732 = vld [vmem:[%s181 + $0x319] sm:$0xff]
  %v3733 = vld [vmem:[%s181 + $0x321] sm:$0xff]
  %3798 = vrot.lane.b32.xlu0 %v3670, 32
  %v3799 = vpop.permute.xlu0 %3798
  %3800 = vrot.lane.b32.xlu0 %v3671, 32
  %v3801 = vpop.permute.xlu0 %3800
  %3802 = vrot.lane.b32.xlu0 %v3672, 32
  %v3803 = vpop.permute.xlu0 %3802
  %3804 = vrot.lane.b32.xlu0 %v3673, 32
  %v3805 = vpop.permute.xlu0 %3804
  %3806 = vrot.lane.b32.xlu0 %v3674, 32
  %v3807 = vpop.permute.xlu0 %3806
  %3808 = vrot.lane.b32.xlu0 %v3675, 32
  %v3809 = vpop.permute.xlu0 %3808
  %3810 = vrot.lane.b32.xlu0 %v3676, 32
  %v3811 = vpop.permute.xlu0 %3810
  %3812 = vrot.lane.b32.xlu0 %v3677, 32
  %v3813 = vpop.permute.xlu0 %3812
  %3814 = vrot.lane.b32.xlu0 %v3678, 32
  %v3815 = vpop.permute.xlu0 %3814
  %3816 = vrot.lane.b32.xlu0 %v3679, 32
  %v3817 = vpop.permute.xlu0 %3816
  %3818 = vrot.lane.b32.xlu0 %v3680, 32
  %v3819 = vpop.permute.xlu0 %3818
  %3820 = vrot.lane.b32.xlu0 %v3681, 32
  %v3821 = vpop.permute.xlu0 %3820
  %3822 = vrot.lane.b32.xlu0 %v3682, 32
  %v3823 = vpop.permute.xlu0 %3822
  %3824 = vrot.lane.b32.xlu0 %v3683, 32
  %v3825 = vpop.permute.xlu0 %3824
  %3826 = vrot.lane.b32.xlu0 %v3684, 32
  %v3827 = vpop.permute.xlu0 %3826
  %3828 = vrot.lane.b32.xlu0 %v3685, 32
  %v3829 = vpop.permute.xlu0 %3828
  %3830 = vrot.lane.b32.xlu0 %v3686, 32
  %v3831 = vpop.permute.xlu0 %3830
  %3832 = vrot.lane.b32.xlu0 %v3687, 32
  %v3833 = vpop.permute.xlu0 %3832
  %3834 = vrot.lane.b32.xlu0 %v3688, 32
  %v3835 = vpop.permute.xlu0 %3834
  %3836 = vrot.lane.b32.xlu0 %v3689, 32
  %v3837 = vpop.permute.xlu0 %3836
  %3838 = vrot.lane.b32.xlu0 %v3690, 32
  %v3839 = vpop.permute.xlu0 %3838
  %3840 = vrot.lane.b32.xlu0 %v3691, 32
  %v3841 = vpop.permute.xlu0 %3840
  %3842 = vrot.lane.b32.xlu0 %v3692, 32
  %v3843 = vpop.permute.xlu0 %3842
  %3844 = vrot.lane.b32.xlu0 %v3693, 32
  %v3845 = vpop.permute.xlu0 %3844
  %3846 = vrot.lane.b32.xlu0 %v3694, 32
  %v3847 = vpop.permute.xlu0 %3846
  %3848 = vrot.lane.b32.xlu0 %v3695, 32
  %v3849 = vpop.permute.xlu0 %3848
  %3850 = vrot.lane.b32.xlu0 %v3696, 32
  %v3851 = vpop.permute.xlu0 %3850
  %3852 = vrot.lane.b32.xlu0 %v3697, 32
  %v3853 = vpop.permute.xlu0 %3852
  %3854 = vrot.lane.b32.xlu0 %v3698, 32
  %v3855 = vpop.permute.xlu0 %3854
  %3856 = vrot.lane.b32.xlu0 %v3699, 32
  %v3857 = vpop.permute.xlu0 %3856
  %3858 = vrot.lane.b32.xlu0 %v3700, 32
  %v3859 = vpop.permute.xlu0 %3858
  %3860 = vrot.lane.b32.xlu0 %v3701, 32
  %v3861 = vpop.permute.xlu0 %3860
  %3862 = vrot.lane.b32.xlu0 %v3702, 32
  %v3863 = vpop.permute.xlu0 %3862
  %3864 = vrot.lane.b32.xlu0 %v3703, 32
  %v3865 = vpop.permute.xlu0 %3864
  %3866 = vrot.lane.b32.xlu0 %v3704, 32
  %v3867 = vpop.permute.xlu0 %3866
  %3868 = vrot.lane.b32.xlu0 %v3705, 32
  %v3869 = vpop.permute.xlu0 %3868
  %3870 = vrot.lane.b32.xlu0 %v3706, 32
  %v3871 = vpop.permute.xlu0 %3870
  %3872 = vrot.lane.b32.xlu0 %v3707, 32
  %v3873 = vpop.permute.xlu0 %3872
  %3874 = vrot.lane.b32.xlu0 %v3708, 32
  %v3875 = vpop.permute.xlu0 %3874
  %3876 = vrot.lane.b32.xlu0 %v3709, 32
  %v3877 = vpop.permute.xlu0 %3876
  %3878 = vrot.lane.b32.xlu0 %v3710, 32
  %v3879 = vpop.permute.xlu0 %3878
  %3880 = vrot.lane.b32.xlu0 %v3711, 32
  %v3881 = vpop.permute.xlu0 %3880
  %3882 = vrot.lane.b32.xlu0 %v3712, 32
  %v3883 = vpop.permute.xlu0 %3882
  %3884 = vrot.lane.b32.xlu0 %v3713, 32
  %v3885 = vpop.permute.xlu0 %3884
  %3886 = vrot.lane.b32.xlu0 %v3714, 32
  %v3887 = vpop.permute.xlu0 %3886
  %3888 = vrot.lane.b32.xlu0 %v3715, 32
  %v3889 = vpop.permute.xlu0 %3888
  %3890 = vrot.lane.b32.xlu0 %v3716, 32
  %v3891 = vpop.permute.xlu0 %3890
  %3892 = vrot.lane.b32.xlu0 %v3717, 32
  %v3893 = vpop.permute.xlu0 %3892
  %3894 = vrot.lane.b32.xlu0 %v3718, 32
  %v3895 = vpop.permute.xlu0 %3894
  %3896 = vrot.lane.b32.xlu0 %v3719, 32
  %v3897 = vpop.permute.xlu0 %3896
  %3898 = vrot.lane.b32.xlu0 %v3720, 32
  %v3899 = vpop.permute.xlu0 %3898
  %3900 = vrot.lane.b32.xlu0 %v3721, 32
  %v3901 = vpop.permute.xlu0 %3900
  %3902 = vrot.lane.b32.xlu0 %v3722, 32
  %v3903 = vpop.permute.xlu0 %3902
  %3904 = vrot.lane.b32.xlu0 %v3723, 32
  %v3905 = vpop.permute.xlu0 %3904
  %3906 = vrot.lane.b32.xlu0 %v3724, 32
  %v3907 = vpop.permute.xlu0 %3906
  %3908 = vrot.lane.b32.xlu0 %v3725, 32
  %v3909 = vpop.permute.xlu0 %3908
  %3910 = vrot.lane.b32.xlu0 %v3726, 32
  %v3911 = vpop.permute.xlu0 %3910
  %3912 = vrot.lane.b32.xlu0 %v3727, 32
  %v3913 = vpop.permute.xlu0 %3912
  %3914 = vrot.lane.b32.xlu0 %v3728, 32
  %v3915 = vpop.permute.xlu0 %3914
  %3916 = vrot.lane.b32.xlu0 %v3729, 32
  %v3917 = vpop.permute.xlu0 %3916
  %3918 = vrot.lane.b32.xlu0 %v3730, 32
  %v3919 = vpop.permute.xlu0 %3918
  %3920 = vrot.lane.b32.xlu0 %v3731, 32
  %v3921 = vpop.permute.xlu0 %3920
  %3922 = vrot.lane.b32.xlu0 %v3732, 32
  %v3923 = vpop.permute.xlu0 %3922
  %3924 = vrot.lane.b32.xlu0 %v3733, 32
  %v3925 = vpop.permute.xlu0 %3924
  %vm3990 = vcmask 326912
  %3991 = vst.msk [vmem:[#allocation4] sm:$0xff] %vm3990, %v3799
  %3992 = vst.msk [vmem:[#allocation4 + $0x8] sm:$0xff] %vm3990, %v3801
  %3993 = vst.msk [vmem:[#allocation4 + $0x10] sm:$0xff] %vm3990, %v3803
  %3994 = vst.msk [vmem:[#allocation4 + $0x18] sm:$0xff] %vm3990, %v3805
  %3995 = vst.msk [vmem:[#allocation4 + $0x20] sm:$0xff] %vm3990, %v3807
  %3996 = vst.msk [vmem:[#allocation4 + $0x28] sm:$0xff] %vm3990, %v3809
  %3997 = vst.msk [vmem:[#allocation4 + $0x30] sm:$0xff] %vm3990, %v3811
  %3998 = vst.msk [vmem:[#allocation4 + $0x38] sm:$0xff] %vm3990, %v3813
  %3999 = vst.msk [vmem:[#allocation4 + $0x40] sm:$0xff] %vm3990, %v3815
  %4000 = vst.msk [vmem:[#allocation4 + $0x48] sm:$0xff] %vm3990, %v3817
  %4001 = vst.msk [vmem:[#allocation4 + $0x50] sm:$0xff] %vm3990, %v3819
  %4002 = vst.msk [vmem:[#allocation4 + $0x58] sm:$0xff] %vm3990, %v3821
  %4003 = vst.msk [vmem:[#allocation4 + $0x60] sm:$0xff] %vm3990, %v3823
  %4004 = vst.msk [vmem:[#allocation4 + $0x68] sm:$0xff] %vm3990, %v3825
  %4005 = vst.msk [vmem:[#allocation4 + $0x70] sm:$0xff] %vm3990, %v3827
  %4006 = vst.msk [vmem:[#allocation4 + $0x78] sm:$0xff] %vm3990, %v3829
  %4007 = vst.msk [vmem:[#allocation4 + $0x80] sm:$0xff] %vm3990, %v3831
  %4008 = vst.msk [vmem:[#allocation4 + $0x88] sm:$0xff] %vm3990, %v3833
  %4009 = vst.msk [vmem:[#allocation4 + $0x90] sm:$0xff] %vm3990, %v3835
  %4010 = vst.msk [vmem:[#allocation4 + $0x98] sm:$0xff] %vm3990, %v3837
  %4011 = vst.msk [vmem:[#allocation4 + $0xa0] sm:$0xff] %vm3990, %v3839
  %4012 = vst.msk [vmem:[#allocation4 + $0xa8] sm:$0xff] %vm3990, %v3841
  %4013 = vst.msk [vmem:[#allocation4 + $0xb0] sm:$0xff] %vm3990, %v3843
  %4014 = vst.msk [vmem:[#allocation4 + $0xb8] sm:$0xff] %vm3990, %v3845
  %4015 = vst.msk [vmem:[#allocation4 + $0xc0] sm:$0xff] %vm3990, %v3847
  %4016 = vst.msk [vmem:[#allocation4 + $0xc8] sm:$0xff] %vm3990, %v3849
  %4017 = vst.msk [vmem:[#allocation4 + $0xd0] sm:$0xff] %vm3990, %v3851
  %4018 = vst.msk [vmem:[#allocation4 + $0xd8] sm:$0xff] %vm3990, %v3853
  %4019 = vst.msk [vmem:[#allocation4 + $0xe0] sm:$0xff] %vm3990, %v3855
  %4020 = vst.msk [vmem:[#allocation4 + $0xe8] sm:$0xff] %vm3990, %v3857
  %4021 = vst.msk [vmem:[#allocation4 + $0xf0] sm:$0xff] %vm3990, %v3859
  %4022 = vst.msk [vmem:[#allocation4 + $0xf8] sm:$0xff] %vm3990, %v3861
  %4023 = vst.msk [vmem:[#allocation4 + $0x100] sm:$0xff] %vm3990, %v3863
  %4024 = vst.msk [vmem:[#allocation4 + $0x108] sm:$0xff] %vm3990, %v3865
  %4025 = vst.msk [vmem:[#allocation4 + $0x110] sm:$0xff] %vm3990, %v3867
  %4026 = vst.msk [vmem:[#allocation4 + $0x118] sm:$0xff] %vm3990, %v3869
  %4027 = vst.msk [vmem:[#allocation4 + $0x120] sm:$0xff] %vm3990, %v3871
  %4028 = vst.msk [vmem:[#allocation4 + $0x128] sm:$0xff] %vm3990, %v3873
  %4029 = vst.msk [vmem:[#allocation4 + $0x130] sm:$0xff] %vm3990, %v3875
  %4030 = vst.msk [vmem:[#allocation4 + $0x138] sm:$0xff] %vm3990, %v3877
  %4031 = vst.msk [vmem:[#allocation4 + $0x140] sm:$0xff] %vm3990, %v3879
  %4032 = vst.msk [vmem:[#allocation4 + $0x148] sm:$0xff] %vm3990, %v3881
  %4033 = vst.msk [vmem:[#allocation4 + $0x150] sm:$0xff] %vm3990, %v3883
  %4034 = vst.msk [vmem:[#allocation4 + $0x158] sm:$0xff] %vm3990, %v3885
  %4035 = vst.msk [vmem:[#allocation4 + $0x160] sm:$0xff] %vm3990, %v3887
  %4036 = vst.msk [vmem:[#allocation4 + $0x168] sm:$0xff] %vm3990, %v3889
  %4037 = vst.msk [vmem:[#allocation4 + $0x170] sm:$0xff] %vm3990, %v3891
  %4038 = vst.msk [vmem:[#allocation4 + $0x178] sm:$0xff] %vm3990, %v3893
  %4039 = vst.msk [vmem:[#allocation4 + $0x180] sm:$0xff] %vm3990, %v3895
  %4040 = vst.msk [vmem:[#allocation4 + $0x188] sm:$0xff] %vm3990, %v3897
  %4041 = vst.msk [vmem:[#allocation4 + $0x190] sm:$0xff] %vm3990, %v3899
  %4042 = vst.msk [vmem:[#allocation4 + $0x198] sm:$0xff] %vm3990, %v3901
  %4043 = vst.msk [vmem:[#allocation4 + $0x1a0] sm:$0xff] %vm3990, %v3903
  %4044 = vst.msk [vmem:[#allocation4 + $0x1a8] sm:$0xff] %vm3990, %v3905
  %4045 = vst.msk [vmem:[#allocation4 + $0x1b0] sm:$0xff] %vm3990, %v3907
  %4046 = vst.msk [vmem:[#allocation4 + $0x1b8] sm:$0xff] %vm3990, %v3909
  %4047 = vst.msk [vmem:[#allocation4 + $0x1c0] sm:$0xff] %vm3990, %v3911
  %4048 = vst.msk [vmem:[#allocation4 + $0x1c8] sm:$0xff] %vm3990, %v3913
  %4049 = vst.msk [vmem:[#allocation4 + $0x1d0] sm:$0xff] %vm3990, %v3915
  %4050 = vst.msk [vmem:[#allocation4 + $0x1d8] sm:$0xff] %vm3990, %v3917
  %4051 = vst.msk [vmem:[#allocation4 + $0x1e0] sm:$0xff] %vm3990, %v3919
  %4052 = vst.msk [vmem:[#allocation4 + $0x1e8] sm:$0xff] %vm3990, %v3921
  %4053 = vst.msk [vmem:[#allocation4 + $0x1f0] sm:$0xff] %vm3990, %v3923
  %4054 = vst.msk [vmem:[#allocation4 + $0x1f8] sm:$0xff] %vm3990, %v3925
  %v4055 = vld [vmem:[%s181 + $0x2] sm:$0xff]
  %v4056 = vld [vmem:[%s181 + $0xa] sm:$0xff]
  %v4057 = vld [vmem:[%s181 + $0x1a] sm:$0xff]
  %v4058 = vld [vmem:[%s181 + $0x22] sm:$0xff]
  %v4059 = vld [vmem:[%s181 + $0x32] sm:$0xff]
  %v4060 = vld [vmem:[%s181 + $0x3a] sm:$0xff]
  %v4061 = vld [vmem:[%s181 + $0x4a] sm:$0xff]
  %v4062 = vld [vmem:[%s181 + $0x52] sm:$0xff]
  %v4063 = vld [vmem:[%s181 + $0x62] sm:$0xff]
  %v4064 = vld [vmem:[%s181 + $0x6a] sm:$0xff]
  %v4065 = vld [vmem:[%s181 + $0x7a] sm:$0xff]
  %v4066 = vld [vmem:[%s181 + $0x82] sm:$0xff]
  %v4067 = vld [vmem:[%s181 + $0x92] sm:$0xff]
  %v4068 = vld [vmem:[%s181 + $0x9a] sm:$0xff]
  %v4069 = vld [vmem:[%s181 + $0xaa] sm:$0xff]
  %v4070 = vld [vmem:[%s181 + $0xb2] sm:$0xff]
  %v4071 = vld [vmem:[%s181 + $0xc2] sm:$0xff]
  %v4072 = vld [vmem:[%s181 + $0xca] sm:$0xff]
  %v4073 = vld [vmem:[%s181 + $0xda] sm:$0xff]
  %v4074 = vld [vmem:[%s181 + $0xe2] sm:$0xff]
  %v4075 = vld [vmem:[%s181 + $0xf2] sm:$0xff]
  %v4076 = vld [vmem:[%s181 + $0xfa] sm:$0xff]
  %v4077 = vld [vmem:[%s181 + $0x10a] sm:$0xff]
  %v4078 = vld [vmem:[%s181 + $0x112] sm:$0xff]
  %v4079 = vld [vmem:[%s181 + $0x122] sm:$0xff]
  %v4080 = vld [vmem:[%s181 + $0x12a] sm:$0xff]
  %v4081 = vld [vmem:[%s181 + $0x13a] sm:$0xff]
  %v4082 = vld [vmem:[%s181 + $0x142] sm:$0xff]
  %v4083 = vld [vmem:[%s181 + $0x152] sm:$0xff]
  %v4084 = vld [vmem:[%s181 + $0x15a] sm:$0xff]
  %v4085 = vld [vmem:[%s181 + $0x16a] sm:$0xff]
  %v4086 = vld [vmem:[%s181 + $0x172] sm:$0xff]
  %v4087 = vld [vmem:[%s181 + $0x1b2] sm:$0xff]
  %v4088 = vld [vmem:[%s181 + $0x1ba] sm:$0xff]
  %v4089 = vld [vmem:[%s181 + $0x1ca] sm:$0xff]
  %v4090 = vld [vmem:[%s181 + $0x1d2] sm:$0xff]
  %v4091 = vld [vmem:[%s181 + $0x1e2] sm:$0xff]
  %v4092 = vld [vmem:[%s181 + $0x1ea] sm:$0xff]
  %v4093 = vld [vmem:[%s181 + $0x1fa] sm:$0xff]
  %v4094 = vld [vmem:[%s181 + $0x202] sm:$0xff]
  %v4095 = vld [vmem:[%s181 + $0x212] sm:$0xff]
  %v4096 = vld [vmem:[%s181 + $0x21a] sm:$0xff]
  %v4097 = vld [vmem:[%s181 + $0x22a] sm:$0xff]
  %v4098 = vld [vmem:[%s181 + $0x232] sm:$0xff]
  %v4099 = vld [vmem:[%s181 + $0x242] sm:$0xff]
  %v4100 = vld [vmem:[%s181 + $0x24a] sm:$0xff]
  %v4101 = vld [vmem:[%s181 + $0x25a] sm:$0xff]
  %v4102 = vld [vmem:[%s181 + $0x262] sm:$0xff]
  %v4103 = vld [vmem:[%s181 + $0x272] sm:$0xff]
  %v4104 = vld [vmem:[%s181 + $0x27a] sm:$0xff]
  %v4105 = vld [vmem:[%s181 + $0x28a] sm:$0xff]
  %v4106 = vld [vmem:[%s181 + $0x292] sm:$0xff]
  %v4107 = vld [vmem:[%s181 + $0x2a2] sm:$0xff]
  %v4108 = vld [vmem:[%s181 + $0x2aa] sm:$0xff]
  %v4109 = vld [vmem:[%s181 + $0x2ba] sm:$0xff]
  %v4110 = vld [vmem:[%s181 + $0x2c2] sm:$0xff]
  %v4111 = vld [vmem:[%s181 + $0x2d2] sm:$0xff]
  %v4112 = vld [vmem:[%s181 + $0x2da] sm:$0xff]
  %v4113 = vld [vmem:[%s181 + $0x2ea] sm:$0xff]
  %v4114 = vld [vmem:[%s181 + $0x2f2] sm:$0xff]
  %v4115 = vld [vmem:[%s181 + $0x302] sm:$0xff]
  %v4116 = vld [vmem:[%s181 + $0x30a] sm:$0xff]
  %v4117 = vld [vmem:[%s181 + $0x31a] sm:$0xff]
  %v4118 = vld [vmem:[%s181 + $0x322] sm:$0xff]
  %4183 = vrot.lane.b32.xlu0 %v4055, 40
  %v4184 = vpop.permute.xlu0 %4183
  %4185 = vrot.lane.b32.xlu0 %v4056, 40
  %v4186 = vpop.permute.xlu0 %4185
  %4187 = vrot.lane.b32.xlu0 %v4057, 40
  %v4188 = vpop.permute.xlu0 %4187
  %4189 = vrot.lane.b32.xlu0 %v4058, 40
  %v4190 = vpop.permute.xlu0 %4189
  %4191 = vrot.lane.b32.xlu0 %v4059, 40
  %v4192 = vpop.permute.xlu0 %4191
  %4193 = vrot.lane.b32.xlu0 %v4060, 40
  %v4194 = vpop.permute.xlu0 %4193
  %4195 = vrot.lane.b32.xlu0 %v4061, 40
  %v4196 = vpop.permute.xlu0 %4195
  %4197 = vrot.lane.b32.xlu0 %v4062, 40
  %v4198 = vpop.permute.xlu0 %4197
  %4199 = vrot.lane.b32.xlu0 %v4063, 40
  %v4200 = vpop.permute.xlu0 %4199
  %4201 = vrot.lane.b32.xlu0 %v4064, 40
  %v4202 = vpop.permute.xlu0 %4201
  %4203 = vrot.lane.b32.xlu0 %v4065, 40
  %v4204 = vpop.permute.xlu0 %4203
  %4205 = vrot.lane.b32.xlu0 %v4066, 40
  %v4206 = vpop.permute.xlu0 %4205
  %4207 = vrot.lane.b32.xlu0 %v4067, 40
  %v4208 = vpop.permute.xlu0 %4207
  %4209 = vrot.lane.b32.xlu0 %v4068, 40
  %v4210 = vpop.permute.xlu0 %4209
  %4211 = vrot.lane.b32.xlu0 %v4069, 40
  %v4212 = vpop.permute.xlu0 %4211
  %4213 = vrot.lane.b32.xlu0 %v4070, 40
  %v4214 = vpop.permute.xlu0 %4213
  %4215 = vrot.lane.b32.xlu0 %v4071, 40
  %v4216 = vpop.permute.xlu0 %4215
  %4217 = vrot.lane.b32.xlu0 %v4072, 40
  %v4218 = vpop.permute.xlu0 %4217
  %4219 = vrot.lane.b32.xlu0 %v4073, 40
  %v4220 = vpop.permute.xlu0 %4219
  %4221 = vrot.lane.b32.xlu0 %v4074, 40
  %v4222 = vpop.permute.xlu0 %4221
  %4223 = vrot.lane.b32.xlu0 %v4075, 40
  %v4224 = vpop.permute.xlu0 %4223
  %4225 = vrot.lane.b32.xlu0 %v4076, 40
  %v4226 = vpop.permute.xlu0 %4225
  %4227 = vrot.lane.b32.xlu0 %v4077, 40
  %v4228 = vpop.permute.xlu0 %4227
  %4229 = vrot.lane.b32.xlu0 %v4078, 40
  %v4230 = vpop.permute.xlu0 %4229
  %4231 = vrot.lane.b32.xlu0 %v4079, 40
  %v4232 = vpop.permute.xlu0 %4231
  %4233 = vrot.lane.b32.xlu0 %v4080, 40
  %v4234 = vpop.permute.xlu0 %4233
  %4235 = vrot.lane.b32.xlu0 %v4081, 40
  %v4236 = vpop.permute.xlu0 %4235
  %4237 = vrot.lane.b32.xlu0 %v4082, 40
  %v4238 = vpop.permute.xlu0 %4237
  %4239 = vrot.lane.b32.xlu0 %v4083, 40
  %v4240 = vpop.permute.xlu0 %4239
  %4241 = vrot.lane.b32.xlu0 %v4084, 40
  %v4242 = vpop.permute.xlu0 %4241
  %4243 = vrot.lane.b32.xlu0 %v4085, 40
  %v4244 = vpop.permute.xlu0 %4243
  %4245 = vrot.lane.b32.xlu0 %v4086, 40
  %v4246 = vpop.permute.xlu0 %4245
  %4247 = vrot.lane.b32.xlu0 %v4087, 40
  %v4248 = vpop.permute.xlu0 %4247
  %4249 = vrot.lane.b32.xlu0 %v4088, 40
  %v4250 = vpop.permute.xlu0 %4249
  %4251 = vrot.lane.b32.xlu0 %v4089, 40
  %v4252 = vpop.permute.xlu0 %4251
  %4253 = vrot.lane.b32.xlu0 %v4090, 40
  %v4254 = vpop.permute.xlu0 %4253
  %4255 = vrot.lane.b32.xlu0 %v4091, 40
  %v4256 = vpop.permute.xlu0 %4255
  %4257 = vrot.lane.b32.xlu0 %v4092, 40
  %v4258 = vpop.permute.xlu0 %4257
  %4259 = vrot.lane.b32.xlu0 %v4093, 40
  %v4260 = vpop.permute.xlu0 %4259
  %4261 = vrot.lane.b32.xlu0 %v4094, 40
  %v4262 = vpop.permute.xlu0 %4261
  %4263 = vrot.lane.b32.xlu0 %v4095, 40
  %v4264 = vpop.permute.xlu0 %4263
  %4265 = vrot.lane.b32.xlu0 %v4096, 40
  %v4266 = vpop.permute.xlu0 %4265
  %4267 = vrot.lane.b32.xlu0 %v4097, 40
  %v4268 = vpop.permute.xlu0 %4267
  %4269 = vrot.lane.b32.xlu0 %v4098, 40
  %v4270 = vpop.permute.xlu0 %4269
  %4271 = vrot.lane.b32.xlu0 %v4099, 40
  %v4272 = vpop.permute.xlu0 %4271
  %4273 = vrot.lane.b32.xlu0 %v4100, 40
  %v4274 = vpop.permute.xlu0 %4273
  %4275 = vrot.lane.b32.xlu0 %v4101, 40
  %v4276 = vpop.permute.xlu0 %4275
  %4277 = vrot.lane.b32.xlu0 %v4102, 40
  %v4278 = vpop.permute.xlu0 %4277
  %4279 = vrot.lane.b32.xlu0 %v4103, 40
  %v4280 = vpop.permute.xlu0 %4279
  %4281 = vrot.lane.b32.xlu0 %v4104, 40
  %v4282 = vpop.permute.xlu0 %4281
  %4283 = vrot.lane.b32.xlu0 %v4105, 40
  %v4284 = vpop.permute.xlu0 %4283
  %4285 = vrot.lane.b32.xlu0 %v4106, 40
  %v4286 = vpop.permute.xlu0 %4285
  %4287 = vrot.lane.b32.xlu0 %v4107, 40
  %v4288 = vpop.permute.xlu0 %4287
  %4289 = vrot.lane.b32.xlu0 %v4108, 40
  %v4290 = vpop.permute.xlu0 %4289
  %4291 = vrot.lane.b32.xlu0 %v4109, 40
  %v4292 = vpop.permute.xlu0 %4291
  %4293 = vrot.lane.b32.xlu0 %v4110, 40
  %v4294 = vpop.permute.xlu0 %4293
  %4295 = vrot.lane.b32.xlu0 %v4111, 40
  %v4296 = vpop.permute.xlu0 %4295
  %4297 = vrot.lane.b32.xlu0 %v4112, 40
  %v4298 = vpop.permute.xlu0 %4297
  %4299 = vrot.lane.b32.xlu0 %v4113, 40
  %v4300 = vpop.permute.xlu0 %4299
  %4301 = vrot.lane.b32.xlu0 %v4114, 40
  %v4302 = vpop.permute.xlu0 %4301
  %4303 = vrot.lane.b32.xlu0 %v4115, 40
  %v4304 = vpop.permute.xlu0 %4303
  %4305 = vrot.lane.b32.xlu0 %v4116, 40
  %v4306 = vpop.permute.xlu0 %4305
  %4307 = vrot.lane.b32.xlu0 %v4117, 40
  %v4308 = vpop.permute.xlu0 %4307
  %4309 = vrot.lane.b32.xlu0 %v4118, 40
  %v4310 = vpop.permute.xlu0 %4309
  %vm4375 = vcmask 392512
  %4376 = vst.msk [vmem:[#allocation4] sm:$0xff] %vm4375, %v4184
  %4377 = vst.msk [vmem:[#allocation4 + $0x8] sm:$0xff] %vm4375, %v4186
  %4378 = vst.msk [vmem:[#allocation4 + $0x10] sm:$0xff] %vm4375, %v4188
  %4379 = vst.msk [vmem:[#allocation4 + $0x18] sm:$0xff] %vm4375, %v4190
  %4380 = vst.msk [vmem:[#allocation4 + $0x20] sm:$0xff] %vm4375, %v4192
  %4381 = vst.msk [vmem:[#allocation4 + $0x28] sm:$0xff] %vm4375, %v4194
  %4382 = vst.msk [vmem:[#allocation4 + $0x30] sm:$0xff] %vm4375, %v4196
  %4383 = vst.msk [vmem:[#allocation4 + $0x38] sm:$0xff] %vm4375, %v4198
  %4384 = vst.msk [vmem:[#allocation4 + $0x40] sm:$0xff] %vm4375, %v4200
  %4385 = vst.msk [vmem:[#allocation4 + $0x48] sm:$0xff] %vm4375, %v4202
  %4386 = vst.msk [vmem:[#allocation4 + $0x50] sm:$0xff] %vm4375, %v4204
  %4387 = vst.msk [vmem:[#allocation4 + $0x58] sm:$0xff] %vm4375, %v4206
  %4388 = vst.msk [vmem:[#allocation4 + $0x60] sm:$0xff] %vm4375, %v4208
  %4389 = vst.msk [vmem:[#allocation4 + $0x68] sm:$0xff] %vm4375, %v4210
  %4390 = vst.msk [vmem:[#allocation4 + $0x70] sm:$0xff] %vm4375, %v4212
  %4391 = vst.msk [vmem:[#allocation4 + $0x78] sm:$0xff] %vm4375, %v4214
  %4392 = vst.msk [vmem:[#allocation4 + $0x80] sm:$0xff] %vm4375, %v4216
  %4393 = vst.msk [vmem:[#allocation4 + $0x88] sm:$0xff] %vm4375, %v4218
  %4394 = vst.msk [vmem:[#allocation4 + $0x90] sm:$0xff] %vm4375, %v4220
  %4395 = vst.msk [vmem:[#allocation4 + $0x98] sm:$0xff] %vm4375, %v4222
  %4396 = vst.msk [vmem:[#allocation4 + $0xa0] sm:$0xff] %vm4375, %v4224
  %4397 = vst.msk [vmem:[#allocation4 + $0xa8] sm:$0xff] %vm4375, %v4226
  %4398 = vst.msk [vmem:[#allocation4 + $0xb0] sm:$0xff] %vm4375, %v4228
  %4399 = vst.msk [vmem:[#allocation4 + $0xb8] sm:$0xff] %vm4375, %v4230
  %4400 = vst.msk [vmem:[#allocation4 + $0xc0] sm:$0xff] %vm4375, %v4232
  %4401 = vst.msk [vmem:[#allocation4 + $0xc8] sm:$0xff] %vm4375, %v4234
  %4402 = vst.msk [vmem:[#allocation4 + $0xd0] sm:$0xff] %vm4375, %v4236
  %4403 = vst.msk [vmem:[#allocation4 + $0xd8] sm:$0xff] %vm4375, %v4238
  %4404 = vst.msk [vmem:[#allocation4 + $0xe0] sm:$0xff] %vm4375, %v4240
  %4405 = vst.msk [vmem:[#allocation4 + $0xe8] sm:$0xff] %vm4375, %v4242
  %4406 = vst.msk [vmem:[#allocation4 + $0xf0] sm:$0xff] %vm4375, %v4244
  %4407 = vst.msk [vmem:[#allocation4 + $0xf8] sm:$0xff] %vm4375, %v4246
  %4408 = vst.msk [vmem:[#allocation4 + $0x100] sm:$0xff] %vm4375, %v4248
  %4409 = vst.msk [vmem:[#allocation4 + $0x108] sm:$0xff] %vm4375, %v4250
  %4410 = vst.msk [vmem:[#allocation4 + $0x110] sm:$0xff] %vm4375, %v4252
  %4411 = vst.msk [vmem:[#allocation4 + $0x118] sm:$0xff] %vm4375, %v4254
  %4412 = vst.msk [vmem:[#allocation4 + $0x120] sm:$0xff] %vm4375, %v4256
  %4413 = vst.msk [vmem:[#allocation4 + $0x128] sm:$0xff] %vm4375, %v4258
  %4414 = vst.msk [vmem:[#allocation4 + $0x130] sm:$0xff] %vm4375, %v4260
  %4415 = vst.msk [vmem:[#allocation4 + $0x138] sm:$0xff] %vm4375, %v4262
  %4416 = vst.msk [vmem:[#allocation4 + $0x140] sm:$0xff] %vm4375, %v4264
  %4417 = vst.msk [vmem:[#allocation4 + $0x148] sm:$0xff] %vm4375, %v4266
  %4418 = vst.msk [vmem:[#allocation4 + $0x150] sm:$0xff] %vm4375, %v4268
  %4419 = vst.msk [vmem:[#allocation4 + $0x158] sm:$0xff] %vm4375, %v4270
  %4420 = vst.msk [vmem:[#allocation4 + $0x160] sm:$0xff] %vm4375, %v4272
  %4421 = vst.msk [vmem:[#allocation4 + $0x168] sm:$0xff] %vm4375, %v4274
  %4422 = vst.msk [vmem:[#allocation4 + $0x170] sm:$0xff] %vm4375, %v4276
  %4423 = vst.msk [vmem:[#allocation4 + $0x178] sm:$0xff] %vm4375, %v4278
  %4424 = vst.msk [vmem:[#allocation4 + $0x180] sm:$0xff] %vm4375, %v4280
  %4425 = vst.msk [vmem:[#allocation4 + $0x188] sm:$0xff] %vm4375, %v4282
  %4426 = vst.msk [vmem:[#allocation4 + $0x190] sm:$0xff] %vm4375, %v4284
  %4427 = vst.msk [vmem:[#allocation4 + $0x198] sm:$0xff] %vm4375, %v4286
  %4428 = vst.msk [vmem:[#allocation4 + $0x1a0] sm:$0xff] %vm4375, %v4288
  %4429 = vst.msk [vmem:[#allocation4 + $0x1a8] sm:$0xff] %vm4375, %v4290
  %4430 = vst.msk [vmem:[#allocation4 + $0x1b0] sm:$0xff] %vm4375, %v4292
  %4431 = vst.msk [vmem:[#allocation4 + $0x1b8] sm:$0xff] %vm4375, %v4294
  %4432 = vst.msk [vmem:[#allocation4 + $0x1c0] sm:$0xff] %vm4375, %v4296
  %4433 = vst.msk [vmem:[#allocation4 + $0x1c8] sm:$0xff] %vm4375, %v4298
  %4434 = vst.msk [vmem:[#allocation4 + $0x1d0] sm:$0xff] %vm4375, %v4300
  %4435 = vst.msk [vmem:[#allocation4 + $0x1d8] sm:$0xff] %vm4375, %v4302
  %4436 = vst.msk [vmem:[#allocation4 + $0x1e0] sm:$0xff] %vm4375, %v4304
  %4437 = vst.msk [vmem:[#allocation4 + $0x1e8] sm:$0xff] %vm4375, %v4306
  %4438 = vst.msk [vmem:[#allocation4 + $0x1f0] sm:$0xff] %vm4375, %v4308
  %4439 = vst.msk [vmem:[#allocation4 + $0x1f8] sm:$0xff] %vm4375, %v4310
  %v4440 = vld [vmem:[%s1810] sm:$0xff]
  %v4441 = vld [vmem:[%s1810 + $0x8] sm:$0xff]
  %v4442 = vld [vmem:[%s1810 + $0x18] sm:$0xff]
  %v4443 = vld [vmem:[%s1810 + $0x20] sm:$0xff]
  %v4444 = vld [vmem:[%s1810 + $0x30] sm:$0xff]
  %v4445 = vld [vmem:[%s1810 + $0x38] sm:$0xff]
  %v4446 = vld [vmem:[%s1810 + $0x48] sm:$0xff]
  %v4447 = vld [vmem:[%s1810 + $0x50] sm:$0xff]
  %v4448 = vld [vmem:[%s1810 + $0x60] sm:$0xff]
  %v4449 = vld [vmem:[%s1810 + $0x68] sm:$0xff]
  %v4450 = vld [vmem:[%s1810 + $0x78] sm:$0xff]
  %v4451 = vld [vmem:[%s1810 + $0x80] sm:$0xff]
  %v4452 = vld [vmem:[%s1810 + $0x90] sm:$0xff]
  %v4453 = vld [vmem:[%s1810 + $0x98] sm:$0xff]
  %v4454 = vld [vmem:[%s1810 + $0xa8] sm:$0xff]
  %v4455 = vld [vmem:[%s1810 + $0xb0] sm:$0xff]
  %v4456 = vld [vmem:[%s1810 + $0xc0] sm:$0xff]
  %v4457 = vld [vmem:[%s1810 + $0xc8] sm:$0xff]
  %v4458 = vld [vmem:[%s1810 + $0xd8] sm:$0xff]
  %v4459 = vld [vmem:[%s1810 + $0xe0] sm:$0xff]
  %v4460 = vld [vmem:[%s1810 + $0xf0] sm:$0xff]
  %v4461 = vld [vmem:[%s1810 + $0xf8] sm:$0xff]
  %v4462 = vld [vmem:[%s1810 + $0x108] sm:$0xff]
  %v4463 = vld [vmem:[%s1810 + $0x110] sm:$0xff]
  %v4464 = vld [vmem:[%s1810 + $0x120] sm:$0xff]
  %v4465 = vld [vmem:[%s1810 + $0x128] sm:$0xff]
  %v4466 = vld [vmem:[%s1810 + $0x138] sm:$0xff]
  %v4467 = vld [vmem:[%s1810 + $0x140] sm:$0xff]
  %v4468 = vld [vmem:[%s1810 + $0x150] sm:$0xff]
  %v4469 = vld [vmem:[%s1810 + $0x158] sm:$0xff]
  %v4470 = vld [vmem:[%s1810 + $0x168] sm:$0xff]
  %v4471 = vld [vmem:[%s1810 + $0x170] sm:$0xff]
  %v4472 = vld [vmem:[%s1810 + $0x1b0] sm:$0xff]
  %v4473 = vld [vmem:[%s1810 + $0x1b8] sm:$0xff]
  %v4474 = vld [vmem:[%s1810 + $0x1c8] sm:$0xff]
  %v4475 = vld [vmem:[%s1810 + $0x1d0] sm:$0xff]
  %v4476 = vld [vmem:[%s1810 + $0x1e0] sm:$0xff]
  %v4477 = vld [vmem:[%s1810 + $0x1e8] sm:$0xff]
  %v4478 = vld [vmem:[%s1810 + $0x1f8] sm:$0xff]
  %v4479 = vld [vmem:[%s1810 + $0x200] sm:$0xff]
  %v4480 = vld [vmem:[%s1810 + $0x210] sm:$0xff]
  %v4481 = vld [vmem:[%s1810 + $0x218] sm:$0xff]
  %v4482 = vld [vmem:[%s1810 + $0x228] sm:$0xff]
  %v4483 = vld [vmem:[%s1810 + $0x230] sm:$0xff]
  %v4484 = vld [vmem:[%s1810 + $0x240] sm:$0xff]
  %v4485 = vld [vmem:[%s1810 + $0x248] sm:$0xff]
  %v4486 = vld [vmem:[%s1810 + $0x258] sm:$0xff]
  %v4487 = vld [vmem:[%s1810 + $0x260] sm:$0xff]
  %v4488 = vld [vmem:[%s1810 + $0x270] sm:$0xff]
  %v4489 = vld [vmem:[%s1810 + $0x278] sm:$0xff]
  %v4490 = vld [vmem:[%s1810 + $0x288] sm:$0xff]
  %v4491 = vld [vmem:[%s1810 + $0x290] sm:$0xff]
  %v4492 = vld [vmem:[%s1810 + $0x2a0] sm:$0xff]
  %v4493 = vld [vmem:[%s1810 + $0x2a8] sm:$0xff]
  %v4494 = vld [vmem:[%s1810 + $0x2b8] sm:$0xff]
  %v4495 = vld [vmem:[%s1810 + $0x2c0] sm:$0xff]
  %v4496 = vld [vmem:[%s1810 + $0x2d0] sm:$0xff]
  %v4497 = vld [vmem:[%s1810 + $0x2d8] sm:$0xff]
  %v4498 = vld [vmem:[%s1810 + $0x2e8] sm:$0xff]
  %v4499 = vld [vmem:[%s1810 + $0x2f0] sm:$0xff]
  %v4500 = vld [vmem:[%s1810 + $0x300] sm:$0xff]
  %v4501 = vld [vmem:[%s1810 + $0x308] sm:$0xff]
  %v4502 = vld [vmem:[%s1810 + $0x318] sm:$0xff]
  %v4503 = vld [vmem:[%s1810 + $0x320] sm:$0xff]
  %4568 = vrot.lane.b32.xlu0 %v4440, 48
  %v4569 = vpop.permute.xlu0 %4568
  %4570 = vrot.lane.b32.xlu0 %v4441, 48
  %v4571 = vpop.permute.xlu0 %4570
  %4572 = vrot.lane.b32.xlu0 %v4442, 48
  %v4573 = vpop.permute.xlu0 %4572
  %4574 = vrot.lane.b32.xlu0 %v4443, 48
  %v4575 = vpop.permute.xlu0 %4574
  %4576 = vrot.lane.b32.xlu0 %v4444, 48
  %v4577 = vpop.permute.xlu0 %4576
  %4578 = vrot.lane.b32.xlu0 %v4445, 48
  %v4579 = vpop.permute.xlu0 %4578
  %4580 = vrot.lane.b32.xlu0 %v4446, 48
  %v4581 = vpop.permute.xlu0 %4580
  %4582 = vrot.lane.b32.xlu0 %v4447, 48
  %v4583 = vpop.permute.xlu0 %4582
  %4584 = vrot.lane.b32.xlu0 %v4448, 48
  %v4585 = vpop.permute.xlu0 %4584
  %4586 = vrot.lane.b32.xlu0 %v4449, 48
  %v4587 = vpop.permute.xlu0 %4586
  %4588 = vrot.lane.b32.xlu0 %v4450, 48
  %v4589 = vpop.permute.xlu0 %4588
  %4590 = vrot.lane.b32.xlu0 %v4451, 48
  %v4591 = vpop.permute.xlu0 %4590
  %4592 = vrot.lane.b32.xlu0 %v4452, 48
  %v4593 = vpop.permute.xlu0 %4592
  %4594 = vrot.lane.b32.xlu0 %v4453, 48
  %v4595 = vpop.permute.xlu0 %4594
  %4596 = vrot.lane.b32.xlu0 %v4454, 48
  %v4597 = vpop.permute.xlu0 %4596
  %4598 = vrot.lane.b32.xlu0 %v4455, 48
  %v4599 = vpop.permute.xlu0 %4598
  %4600 = vrot.lane.b32.xlu0 %v4456, 48
  %v4601 = vpop.permute.xlu0 %4600
  %4602 = vrot.lane.b32.xlu0 %v4457, 48
  %v4603 = vpop.permute.xlu0 %4602
  %4604 = vrot.lane.b32.xlu0 %v4458, 48
  %v4605 = vpop.permute.xlu0 %4604
  %4606 = vrot.lane.b32.xlu0 %v4459, 48
  %v4607 = vpop.permute.xlu0 %4606
  %4608 = vrot.lane.b32.xlu0 %v4460, 48
  %v4609 = vpop.permute.xlu0 %4608
  %4610 = vrot.lane.b32.xlu0 %v4461, 48
  %v4611 = vpop.permute.xlu0 %4610
  %4612 = vrot.lane.b32.xlu0 %v4462, 48
  %v4613 = vpop.permute.xlu0 %4612
  %4614 = vrot.lane.b32.xlu0 %v4463, 48
  %v4615 = vpop.permute.xlu0 %4614
  %4616 = vrot.lane.b32.xlu0 %v4464, 48
  %v4617 = vpop.permute.xlu0 %4616
  %4618 = vrot.lane.b32.xlu0 %v4465, 48
  %v4619 = vpop.permute.xlu0 %4618
  %4620 = vrot.lane.b32.xlu0 %v4466, 48
  %v4621 = vpop.permute.xlu0 %4620
  %4622 = vrot.lane.b32.xlu0 %v4467, 48
  %v4623 = vpop.permute.xlu0 %4622
  %4624 = vrot.lane.b32.xlu0 %v4468, 48
  %v4625 = vpop.permute.xlu0 %4624
  %4626 = vrot.lane.b32.xlu0 %v4469, 48
  %v4627 = vpop.permute.xlu0 %4626
  %4628 = vrot.lane.b32.xlu0 %v4470, 48
  %v4629 = vpop.permute.xlu0 %4628
  %4630 = vrot.lane.b32.xlu0 %v4471, 48
  %v4631 = vpop.permute.xlu0 %4630
  %4632 = vrot.lane.b32.xlu0 %v4472, 48
  %v4633 = vpop.permute.xlu0 %4632
  %4634 = vrot.lane.b32.xlu0 %v4473, 48
  %v4635 = vpop.permute.xlu0 %4634
  %4636 = vrot.lane.b32.xlu0 %v4474, 48
  %v4637 = vpop.permute.xlu0 %4636
  %4638 = vrot.lane.b32.xlu0 %v4475, 48
  %v4639 = vpop.permute.xlu0 %4638
  %4640 = vrot.lane.b32.xlu0 %v4476, 48
  %v4641 = vpop.permute.xlu0 %4640
  %4642 = vrot.lane.b32.xlu0 %v4477, 48
  %v4643 = vpop.permute.xlu0 %4642
  %4644 = vrot.lane.b32.xlu0 %v4478, 48
  %v4645 = vpop.permute.xlu0 %4644
  %4646 = vrot.lane.b32.xlu0 %v4479, 48
  %v4647 = vpop.permute.xlu0 %4646
  %4648 = vrot.lane.b32.xlu0 %v4480, 48
  %v4649 = vpop.permute.xlu0 %4648
  %4650 = vrot.lane.b32.xlu0 %v4481, 48
  %v4651 = vpop.permute.xlu0 %4650
  %4652 = vrot.lane.b32.xlu0 %v4482, 48
  %v4653 = vpop.permute.xlu0 %4652
  %4654 = vrot.lane.b32.xlu0 %v4483, 48
  %v4655 = vpop.permute.xlu0 %4654
  %4656 = vrot.lane.b32.xlu0 %v4484, 48
  %v4657 = vpop.permute.xlu0 %4656
  %4658 = vrot.lane.b32.xlu0 %v4485, 48
  %v4659 = vpop.permute.xlu0 %4658
  %4660 = vrot.lane.b32.xlu0 %v4486, 48
  %v4661 = vpop.permute.xlu0 %4660
  %4662 = vrot.lane.b32.xlu0 %v4487, 48
  %v4663 = vpop.permute.xlu0 %4662
  %4664 = vrot.lane.b32.xlu0 %v4488, 48
  %v4665 = vpop.permute.xlu0 %4664
  %4666 = vrot.lane.b32.xlu0 %v4489, 48
  %v4667 = vpop.permute.xlu0 %4666
  %4668 = vrot.lane.b32.xlu0 %v4490, 48
  %v4669 = vpop.permute.xlu0 %4668
  %4670 = vrot.lane.b32.xlu0 %v4491, 48
  %v4671 = vpop.permute.xlu0 %4670
  %4672 = vrot.lane.b32.xlu0 %v4492, 48
  %v4673 = vpop.permute.xlu0 %4672
  %4674 = vrot.lane.b32.xlu0 %v4493, 48
  %v4675 = vpop.permute.xlu0 %4674
  %4676 = vrot.lane.b32.xlu0 %v4494, 48
  %v4677 = vpop.permute.xlu0 %4676
  %4678 = vrot.lane.b32.xlu0 %v4495, 48
  %v4679 = vpop.permute.xlu0 %4678
  %4680 = vrot.lane.b32.xlu0 %v4496, 48
  %v4681 = vpop.permute.xlu0 %4680
  %4682 = vrot.lane.b32.xlu0 %v4497, 48
  %v4683 = vpop.permute.xlu0 %4682
  %4684 = vrot.lane.b32.xlu0 %v4498, 48
  %v4685 = vpop.permute.xlu0 %4684
  %4686 = vrot.lane.b32.xlu0 %v4499, 48
  %v4687 = vpop.permute.xlu0 %4686
  %4688 = vrot.lane.b32.xlu0 %v4500, 48
  %v4689 = vpop.permute.xlu0 %4688
  %4690 = vrot.lane.b32.xlu0 %v4501, 48
  %v4691 = vpop.permute.xlu0 %4690
  %4692 = vrot.lane.b32.xlu0 %v4502, 48
  %v4693 = vpop.permute.xlu0 %4692
  %4694 = vrot.lane.b32.xlu0 %v4503, 48
  %v4695 = vpop.permute.xlu0 %4694
  %vm4760 = vcmask 458112
  %4761 = vst.msk [vmem:[#allocation4] sm:$0xff] %vm4760, %v4569
  %4762 = vst.msk [vmem:[#allocation4 + $0x8] sm:$0xff] %vm4760, %v4571
  %4763 = vst.msk [vmem:[#allocation4 + $0x10] sm:$0xff] %vm4760, %v4573
  %4764 = vst.msk [vmem:[#allocation4 + $0x18] sm:$0xff] %vm4760, %v4575
  %4765 = vst.msk [vmem:[#allocation4 + $0x20] sm:$0xff] %vm4760, %v4577
  %4766 = vst.msk [vmem:[#allocation4 + $0x28] sm:$0xff] %vm4760, %v4579
  %4767 = vst.msk [vmem:[#allocation4 + $0x30] sm:$0xff] %vm4760, %v4581
  %4768 = vst.msk [vmem:[#allocation4 + $0x38] sm:$0xff] %vm4760, %v4583
  %4769 = vst.msk [vmem:[#allocation4 + $0x40] sm:$0xff] %vm4760, %v4585
  %4770 = vst.msk [vmem:[#allocation4 + $0x48] sm:$0xff] %vm4760, %v4587
  %4771 = vst.msk [vmem:[#allocation4 + $0x50] sm:$0xff] %vm4760, %v4589
  %4772 = vst.msk [vmem:[#allocation4 + $0x58] sm:$0xff] %vm4760, %v4591
  %4773 = vst.msk [vmem:[#allocation4 + $0x60] sm:$0xff] %vm4760, %v4593
  %4774 = vst.msk [vmem:[#allocation4 + $0x68] sm:$0xff] %vm4760, %v4595
  %4775 = vst.msk [vmem:[#allocation4 + $0x70] sm:$0xff] %vm4760, %v4597
  %4776 = vst.msk [vmem:[#allocation4 + $0x78] sm:$0xff] %vm4760, %v4599
  %4777 = vst.msk [vmem:[#allocation4 + $0x80] sm:$0xff] %vm4760, %v4601
  %4778 = vst.msk [vmem:[#allocation4 + $0x88] sm:$0xff] %vm4760, %v4603
  %4779 = vst.msk [vmem:[#allocation4 + $0x90] sm:$0xff] %vm4760, %v4605
  %4780 = vst.msk [vmem:[#allocation4 + $0x98] sm:$0xff] %vm4760, %v4607
  %4781 = vst.msk [vmem:[#allocation4 + $0xa0] sm:$0xff] %vm4760, %v4609
  %4782 = vst.msk [vmem:[#allocation4 + $0xa8] sm:$0xff] %vm4760, %v4611
  %4783 = vst.msk [vmem:[#allocation4 + $0xb0] sm:$0xff] %vm4760, %v4613
  %4784 = vst.msk [vmem:[#allocation4 + $0xb8] sm:$0xff] %vm4760, %v4615
  %4785 = vst.msk [vmem:[#allocation4 + $0xc0] sm:$0xff] %vm4760, %v4617
  %4786 = vst.msk [vmem:[#allocation4 + $0xc8] sm:$0xff] %vm4760, %v4619
  %4787 = vst.msk [vmem:[#allocation4 + $0xd0] sm:$0xff] %vm4760, %v4621
  %4788 = vst.msk [vmem:[#allocation4 + $0xd8] sm:$0xff] %vm4760, %v4623
  %4789 = vst.msk [vmem:[#allocation4 + $0xe0] sm:$0xff] %vm4760, %v4625
  %4790 = vst.msk [vmem:[#allocation4 + $0xe8] sm:$0xff] %vm4760, %v4627
  %4791 = vst.msk [vmem:[#allocation4 + $0xf0] sm:$0xff] %vm4760, %v4629
  %4792 = vst.msk [vmem:[#allocation4 + $0xf8] sm:$0xff] %vm4760, %v4631
  %4793 = vst.msk [vmem:[#allocation4 + $0x100] sm:$0xff] %vm4760, %v4633
  %4794 = vst.msk [vmem:[#allocation4 + $0x108] sm:$0xff] %vm4760, %v4635
  %4795 = vst.msk [vmem:[#allocation4 + $0x110] sm:$0xff] %vm4760, %v4637
  %4796 = vst.msk [vmem:[#allocation4 + $0x118] sm:$0xff] %vm4760, %v4639
  %4797 = vst.msk [vmem:[#allocation4 + $0x120] sm:$0xff] %vm4760, %v4641
  %4798 = vst.msk [vmem:[#allocation4 + $0x128] sm:$0xff] %vm4760, %v4643
  %4799 = vst.msk [vmem:[#allocation4 + $0x130] sm:$0xff] %vm4760, %v4645
  %4800 = vst.msk [vmem:[#allocation4 + $0x138] sm:$0xff] %vm4760, %v4647
  %4801 = vst.msk [vmem:[#allocation4 + $0x140] sm:$0xff] %vm4760, %v4649
  %4802 = vst.msk [vmem:[#allocation4 + $0x148] sm:$0xff] %vm4760, %v4651
  %4803 = vst.msk [vmem:[#allocation4 + $0x150] sm:$0xff] %vm4760, %v4653
  %4804 = vst.msk [vmem:[#allocation4 + $0x158] sm:$0xff] %vm4760, %v4655
  %4805 = vst.msk [vmem:[#allocation4 + $0x160] sm:$0xff] %vm4760, %v4657
  %4806 = vst.msk [vmem:[#allocation4 + $0x168] sm:$0xff] %vm4760, %v4659
  %4807 = vst.msk [vmem:[#allocation4 + $0x170] sm:$0xff] %vm4760, %v4661
  %4808 = vst.msk [vmem:[#allocation4 + $0x178] sm:$0xff] %vm4760, %v4663
  %4809 = vst.msk [vmem:[#allocation4 + $0x180] sm:$0xff] %vm4760, %v4665
  %4810 = vst.msk [vmem:[#allocation4 + $0x188] sm:$0xff] %vm4760, %v4667
  %4811 = vst.msk [vmem:[#allocation4 + $0x190] sm:$0xff] %vm4760, %v4669
  %4812 = vst.msk [vmem:[#allocation4 + $0x198] sm:$0xff] %vm4760, %v4671
  %4813 = vst.msk [vmem:[#allocation4 + $0x1a0] sm:$0xff] %vm4760, %v4673
  %4814 = vst.msk [vmem:[#allocation4 + $0x1a8] sm:$0xff] %vm4760, %v4675
  %4815 = vst.msk [vmem:[#allocation4 + $0x1b0] sm:$0xff] %vm4760, %v4677
  %4816 = vst.msk [vmem:[#allocation4 + $0x1b8] sm:$0xff] %vm4760, %v4679
  %4817 = vst.msk [vmem:[#allocation4 + $0x1c0] sm:$0xff] %vm4760, %v4681
  %4818 = vst.msk [vmem:[#allocation4 + $0x1c8] sm:$0xff] %vm4760, %v4683
  %4819 = vst.msk [vmem:[#allocation4 + $0x1d0] sm:$0xff] %vm4760, %v4685
  %4820 = vst.msk [vmem:[#allocation4 + $0x1d8] sm:$0xff] %vm4760, %v4687
  %4821 = vst.msk [vmem:[#allocation4 + $0x1e0] sm:$0xff] %vm4760, %v4689
  %4822 = vst.msk [vmem:[#allocation4 + $0x1e8] sm:$0xff] %vm4760, %v4691
  %4823 = vst.msk [vmem:[#allocation4 + $0x1f0] sm:$0xff] %vm4760, %v4693
  %4824 = vst.msk [vmem:[#allocation4 + $0x1f8] sm:$0xff] %vm4760, %v4695
  %v4825 = vld [vmem:[%s1810 + $0x1] sm:$0xff]
  %v4826 = vld [vmem:[%s1810 + $0x9] sm:$0xff]
  %v4827 = vld [vmem:[%s1810 + $0x19] sm:$0xff]
  %v4828 = vld [vmem:[%s1810 + $0x21] sm:$0xff]
  %v4829 = vld [vmem:[%s1810 + $0x31] sm:$0xff]
  %v4830 = vld [vmem:[%s1810 + $0x39] sm:$0xff]
  %v4831 = vld [vmem:[%s1810 + $0x49] sm:$0xff]
  %v4832 = vld [vmem:[%s1810 + $0x51] sm:$0xff]
  %v4833 = vld [vmem:[%s1810 + $0x61] sm:$0xff]
  %v4834 = vld [vmem:[%s1810 + $0x69] sm:$0xff]
  %v4835 = vld [vmem:[%s1810 + $0x79] sm:$0xff]
  %v4836 = vld [vmem:[%s1810 + $0x81] sm:$0xff]
  %v4837 = vld [vmem:[%s1810 + $0x91] sm:$0xff]
  %v4838 = vld [vmem:[%s1810 + $0x99] sm:$0xff]
  %v4839 = vld [vmem:[%s1810 + $0xa9] sm:$0xff]
  %v4840 = vld [vmem:[%s1810 + $0xb1] sm:$0xff]
  %v4841 = vld [vmem:[%s1810 + $0xc1] sm:$0xff]
  %v4842 = vld [vmem:[%s1810 + $0xc9] sm:$0xff]
  %v4843 = vld [vmem:[%s1810 + $0xd9] sm:$0xff]
  %v4844 = vld [vmem:[%s1810 + $0xe1] sm:$0xff]
  %v4845 = vld [vmem:[%s1810 + $0xf1] sm:$0xff]
  %v4846 = vld [vmem:[%s1810 + $0xf9] sm:$0xff]
  %v4847 = vld [vmem:[%s1810 + $0x109] sm:$0xff]
  %v4848 = vld [vmem:[%s1810 + $0x111] sm:$0xff]
  %v4849 = vld [vmem:[%s1810 + $0x121] sm:$0xff]
  %v4850 = vld [vmem:[%s1810 + $0x129] sm:$0xff]
  %v4851 = vld [vmem:[%s1810 + $0x139] sm:$0xff]
  %v4852 = vld [vmem:[%s1810 + $0x141] sm:$0xff]
  %v4853 = vld [vmem:[%s1810 + $0x151] sm:$0xff]
  %v4854 = vld [vmem:[%s1810 + $0x159] sm:$0xff]
  %v4855 = vld [vmem:[%s1810 + $0x169] sm:$0xff]
  %v4856 = vld [vmem:[%s1810 + $0x171] sm:$0xff]
  %v4857 = vld [vmem:[%s1810 + $0x1b1] sm:$0xff]
  %v4858 = vld [vmem:[%s1810 + $0x1b9] sm:$0xff]
  %v4859 = vld [vmem:[%s1810 + $0x1c9] sm:$0xff]
  %v4860 = vld [vmem:[%s1810 + $0x1d1] sm:$0xff]
  %v4861 = vld [vmem:[%s1810 + $0x1e1] sm:$0xff]
  %v4862 = vld [vmem:[%s1810 + $0x1e9] sm:$0xff]
  %v4863 = vld [vmem:[%s1810 + $0x1f9] sm:$0xff]
  %v4864 = vld [vmem:[%s1810 + $0x201] sm:$0xff]
  %v4865 = vld [vmem:[%s1810 + $0x211] sm:$0xff]
  %v4866 = vld [vmem:[%s1810 + $0x219] sm:$0xff]
  %v4867 = vld [vmem:[%s1810 + $0x229] sm:$0xff]
  %v4868 = vld [vmem:[%s1810 + $0x231] sm:$0xff]
  %v4869 = vld [vmem:[%s1810 + $0x241] sm:$0xff]
  %v4870 = vld [vmem:[%s1810 + $0x249] sm:$0xff]
  %v4871 = vld [vmem:[%s1810 + $0x259] sm:$0xff]
  %v4872 = vld [vmem:[%s1810 + $0x261] sm:$0xff]
  %v4873 = vld [vmem:[%s1810 + $0x271] sm:$0xff]
  %v4874 = vld [vmem:[%s1810 + $0x279] sm:$0xff]
  %v4875 = vld [vmem:[%s1810 + $0x289] sm:$0xff]
  %v4876 = vld [vmem:[%s1810 + $0x291] sm:$0xff]
  %v4877 = vld [vmem:[%s1810 + $0x2a1] sm:$0xff]
  %v4878 = vld [vmem:[%s1810 + $0x2a9] sm:$0xff]
  %v4879 = vld [vmem:[%s1810 + $0x2b9] sm:$0xff]
  %v4880 = vld [vmem:[%s1810 + $0x2c1] sm:$0xff]
  %v4881 = vld [vmem:[%s1810 + $0x2d1] sm:$0xff]
  %v4882 = vld [vmem:[%s1810 + $0x2d9] sm:$0xff]
  %v4883 = vld [vmem:[%s1810 + $0x2e9] sm:$0xff]
  %v4884 = vld [vmem:[%s1810 + $0x2f1] sm:$0xff]
  %v4885 = vld [vmem:[%s1810 + $0x301] sm:$0xff]
  %v4886 = vld [vmem:[%s1810 + $0x309] sm:$0xff]
  %v4887 = vld [vmem:[%s1810 + $0x319] sm:$0xff]
  %v4888 = vld [vmem:[%s1810 + $0x321] sm:$0xff]
  %4953 = vrot.lane.b32.xlu0 %v4825, 56
  %v4954 = vpop.permute.xlu0 %4953
  %4955 = vrot.lane.b32.xlu0 %v4826, 56
  %v4956 = vpop.permute.xlu0 %4955
  %4957 = vrot.lane.b32.xlu0 %v4827, 56
  %v4958 = vpop.permute.xlu0 %4957
  %4959 = vrot.lane.b32.xlu0 %v4828, 56
  %v4960 = vpop.permute.xlu0 %4959
  %4961 = vrot.lane.b32.xlu0 %v4829, 56
  %v4962 = vpop.permute.xlu0 %4961
  %4963 = vrot.lane.b32.xlu0 %v4830, 56
  %v4964 = vpop.permute.xlu0 %4963
  %4965 = vrot.lane.b32.xlu0 %v4831, 56
  %v4966 = vpop.permute.xlu0 %4965
  %4967 = vrot.lane.b32.xlu0 %v4832, 56
  %v4968 = vpop.permute.xlu0 %4967
  %4969 = vrot.lane.b32.xlu0 %v4833, 56
  %v4970 = vpop.permute.xlu0 %4969
  %4971 = vrot.lane.b32.xlu0 %v4834, 56
  %v4972 = vpop.permute.xlu0 %4971
  %4973 = vrot.lane.b32.xlu0 %v4835, 56
  %v4974 = vpop.permute.xlu0 %4973
  %4975 = vrot.lane.b32.xlu0 %v4836, 56
  %v4976 = vpop.permute.xlu0 %4975
  %4977 = vrot.lane.b32.xlu0 %v4837, 56
  %v4978 = vpop.permute.xlu0 %4977
  %4979 = vrot.lane.b32.xlu0 %v4838, 56
  %v4980 = vpop.permute.xlu0 %4979
  %4981 = vrot.lane.b32.xlu0 %v4839, 56
  %v4982 = vpop.permute.xlu0 %4981
  %4983 = vrot.lane.b32.xlu0 %v4840, 56
  %v4984 = vpop.permute.xlu0 %4983
  %4985 = vrot.lane.b32.xlu0 %v4841, 56
  %v4986 = vpop.permute.xlu0 %4985
  %4987 = vrot.lane.b32.xlu0 %v4842, 56
  %v4988 = vpop.permute.xlu0 %4987
  %4989 = vrot.lane.b32.xlu0 %v4843, 56
  %v4990 = vpop.permute.xlu0 %4989
  %4991 = vrot.lane.b32.xlu0 %v4844, 56
  %v4992 = vpop.permute.xlu0 %4991
  %4993 = vrot.lane.b32.xlu0 %v4845, 56
  %v4994 = vpop.permute.xlu0 %4993
  %4995 = vrot.lane.b32.xlu0 %v4846, 56
  %v4996 = vpop.permute.xlu0 %4995
  %4997 = vrot.lane.b32.xlu0 %v4847, 56
  %v4998 = vpop.permute.xlu0 %4997
  %4999 = vrot.lane.b32.xlu0 %v4848, 56
  %v5000 = vpop.permute.xlu0 %4999
  %5001 = vrot.lane.b32.xlu0 %v4849, 56
  %v5002 = vpop.permute.xlu0 %5001
  %5003 = vrot.lane.b32.xlu0 %v4850, 56
  %v5004 = vpop.permute.xlu0 %5003
  %5005 = vrot.lane.b32.xlu0 %v4851, 56
  %v5006 = vpop.permute.xlu0 %5005
  %5007 = vrot.lane.b32.xlu0 %v4852, 56
  %v5008 = vpop.permute.xlu0 %5007
  %5009 = vrot.lane.b32.xlu0 %v4853, 56
  %v5010 = vpop.permute.xlu0 %5009
  %5011 = vrot.lane.b32.xlu0 %v4854, 56
  %v5012 = vpop.permute.xlu0 %5011
  %5013 = vrot.lane.b32.xlu0 %v4855, 56
  %v5014 = vpop.permute.xlu0 %5013
  %5015 = vrot.lane.b32.xlu0 %v4856, 56
  %v5016 = vpop.permute.xlu0 %5015
  %5017 = vrot.lane.b32.xlu0 %v4857, 56
  %v5018 = vpop.permute.xlu0 %5017
  %5019 = vrot.lane.b32.xlu0 %v4858, 56
  %v5020 = vpop.permute.xlu0 %5019
  %5021 = vrot.lane.b32.xlu0 %v4859, 56
  %v5022 = vpop.permute.xlu0 %5021
  %5023 = vrot.lane.b32.xlu0 %v4860, 56
  %v5024 = vpop.permute.xlu0 %5023
  %5025 = vrot.lane.b32.xlu0 %v4861, 56
  %v5026 = vpop.permute.xlu0 %5025
  %5027 = vrot.lane.b32.xlu0 %v4862, 56
  %v5028 = vpop.permute.xlu0 %5027
  %5029 = vrot.lane.b32.xlu0 %v4863, 56
  %v5030 = vpop.permute.xlu0 %5029
  %5031 = vrot.lane.b32.xlu0 %v4864, 56
  %v5032 = vpop.permute.xlu0 %5031
  %5033 = vrot.lane.b32.xlu0 %v4865, 56
  %v5034 = vpop.permute.xlu0 %5033
  %5035 = vrot.lane.b32.xlu0 %v4866, 56
  %v5036 = vpop.permute.xlu0 %5035
  %5037 = vrot.lane.b32.xlu0 %v4867, 56
  %v5038 = vpop.permute.xlu0 %5037
  %5039 = vrot.lane.b32.xlu0 %v4868, 56
  %v5040 = vpop.permute.xlu0 %5039
  %5041 = vrot.lane.b32.xlu0 %v4869, 56
  %v5042 = vpop.permute.xlu0 %5041
  %5043 = vrot.lane.b32.xlu0 %v4870, 56
  %v5044 = vpop.permute.xlu0 %5043
  %5045 = vrot.lane.b32.xlu0 %v4871, 56
  %v5046 = vpop.permute.xlu0 %5045
  %5047 = vrot.lane.b32.xlu0 %v4872, 56
  %v5048 = vpop.permute.xlu0 %5047
  %5049 = vrot.lane.b32.xlu0 %v4873, 56
  %v5050 = vpop.permute.xlu0 %5049
  %5051 = vrot.lane.b32.xlu0 %v4874, 56
  %v5052 = vpop.permute.xlu0 %5051
  %5053 = vrot.lane.b32.xlu0 %v4875, 56
  %v5054 = vpop.permute.xlu0 %5053
  %5055 = vrot.lane.b32.xlu0 %v4876, 56
  %v5056 = vpop.permute.xlu0 %5055
  %5057 = vrot.lane.b32.xlu0 %v4877, 56
  %v5058 = vpop.permute.xlu0 %5057
  %5059 = vrot.lane.b32.xlu0 %v4878, 56
  %v5060 = vpop.permute.xlu0 %5059
  %5061 = vrot.lane.b32.xlu0 %v4879, 56
  %v5062 = vpop.permute.xlu0 %5061
  %5063 = vrot.lane.b32.xlu0 %v4880, 56
  %v5064 = vpop.permute.xlu0 %5063
  %5065 = vrot.lane.b32.xlu0 %v4881, 56
  %v5066 = vpop.permute.xlu0 %5065
  %5067 = vrot.lane.b32.xlu0 %v4882, 56
  %v5068 = vpop.permute.xlu0 %5067
  %5069 = vrot.lane.b32.xlu0 %v4883, 56
  %v5070 = vpop.permute.xlu0 %5069
  %5071 = vrot.lane.b32.xlu0 %v4884, 56
  %v5072 = vpop.permute.xlu0 %5071
  %5073 = vrot.lane.b32.xlu0 %v4885, 56
  %v5074 = vpop.permute.xlu0 %5073
  %5075 = vrot.lane.b32.xlu0 %v4886, 56
  %v5076 = vpop.permute.xlu0 %5075
  %5077 = vrot.lane.b32.xlu0 %v4887, 56
  %v5078 = vpop.permute.xlu0 %5077
  %5079 = vrot.lane.b32.xlu0 %v4888, 56
  %v5080 = vpop.permute.xlu0 %5079
  %vm5145 = vcmask 523712
  %5146 = vst.msk [vmem:[#allocation4] sm:$0xff] %vm5145, %v4954
  %5147 = vst.msk [vmem:[#allocation4 + $0x8] sm:$0xff] %vm5145, %v4956
  %5148 = vst.msk [vmem:[#allocation4 + $0x10] sm:$0xff] %vm5145, %v4958
  %5149 = vst.msk [vmem:[#allocation4 + $0x18] sm:$0xff] %vm5145, %v4960
  %5150 = vst.msk [vmem:[#allocation4 + $0x20] sm:$0xff] %vm5145, %v4962
  %5151 = vst.msk [vmem:[#allocation4 + $0x28] sm:$0xff] %vm5145, %v4964
  %5152 = vst.msk [vmem:[#allocation4 + $0x30] sm:$0xff] %vm5145, %v4966
  %5153 = vst.msk [vmem:[#allocation4 + $0x38] sm:$0xff] %vm5145, %v4968
  %5154 = vst.msk [vmem:[#allocation4 + $0x40] sm:$0xff] %vm5145, %v4970
  %5155 = vst.msk [vmem:[#allocation4 + $0x48] sm:$0xff] %vm5145, %v4972
  %5156 = vst.msk [vmem:[#allocation4 + $0x50] sm:$0xff] %vm5145, %v4974
  %5157 = vst.msk [vmem:[#allocation4 + $0x58] sm:$0xff] %vm5145, %v4976
  %5158 = vst.msk [vmem:[#allocation4 + $0x60] sm:$0xff] %vm5145, %v4978
  %5159 = vst.msk [vmem:[#allocation4 + $0x68] sm:$0xff] %vm5145, %v4980
  %5160 = vst.msk [vmem:[#allocation4 + $0x70] sm:$0xff] %vm5145, %v4982
  %5161 = vst.msk [vmem:[#allocation4 + $0x78] sm:$0xff] %vm5145, %v4984
  %5162 = vst.msk [vmem:[#allocation4 + $0x80] sm:$0xff] %vm5145, %v4986
  %5163 = vst.msk [vmem:[#allocation4 + $0x88] sm:$0xff] %vm5145, %v4988
  %5164 = vst.msk [vmem:[#allocation4 + $0x90] sm:$0xff] %vm5145, %v4990
  %5165 = vst.msk [vmem:[#allocation4 + $0x98] sm:$0xff] %vm5145, %v4992
  %5166 = vst.msk [vmem:[#allocation4 + $0xa0] sm:$0xff] %vm5145, %v4994
  %5167 = vst.msk [vmem:[#allocation4 + $0xa8] sm:$0xff] %vm5145, %v4996
  %5168 = vst.msk [vmem:[#allocation4 + $0xb0] sm:$0xff] %vm5145, %v4998
  %5169 = vst.msk [vmem:[#allocation4 + $0xb8] sm:$0xff] %vm5145, %v5000
  %5170 = vst.msk [vmem:[#allocation4 + $0xc0] sm:$0xff] %vm5145, %v5002
  %5171 = vst.msk [vmem:[#allocation4 + $0xc8] sm:$0xff] %vm5145, %v5004
  %5172 = vst.msk [vmem:[#allocation4 + $0xd0] sm:$0xff] %vm5145, %v5006
  %5173 = vst.msk [vmem:[#allocation4 + $0xd8] sm:$0xff] %vm5145, %v5008
  %5174 = vst.msk [vmem:[#allocation4 + $0xe0] sm:$0xff] %vm5145, %v5010
  %5175 = vst.msk [vmem:[#allocation4 + $0xe8] sm:$0xff] %vm5145, %v5012
  %5176 = vst.msk [vmem:[#allocation4 + $0xf0] sm:$0xff] %vm5145, %v5014
  %5177 = vst.msk [vmem:[#allocation4 + $0xf8] sm:$0xff] %vm5145, %v5016
  %5178 = vst.msk [vmem:[#allocation4 + $0x100] sm:$0xff] %vm5145, %v5018
  %5179 = vst.msk [vmem:[#allocation4 + $0x108] sm:$0xff] %vm5145, %v5020
  %5180 = vst.msk [vmem:[#allocation4 + $0x110] sm:$0xff] %vm5145, %v5022
  %5181 = vst.msk [vmem:[#allocation4 + $0x118] sm:$0xff] %vm5145, %v5024
  %5182 = vst.msk [vmem:[#allocation4 + $0x120] sm:$0xff] %vm5145, %v5026
  %5183 = vst.msk [vmem:[#allocation4 + $0x128] sm:$0xff] %vm5145, %v5028
  %5184 = vst.msk [vmem:[#allocation4 + $0x130] sm:$0xff] %vm5145, %v5030
  %5185 = vst.msk [vmem:[#allocation4 + $0x138] sm:$0xff] %vm5145, %v5032
  %5186 = vst.msk [vmem:[#allocation4 + $0x140] sm:$0xff] %vm5145, %v5034
  %5187 = vst.msk [vmem:[#allocation4 + $0x148] sm:$0xff] %vm5145, %v5036
  %5188 = vst.msk [vmem:[#allocation4 + $0x150] sm:$0xff] %vm5145, %v5038
  %5189 = vst.msk [vmem:[#allocation4 + $0x158] sm:$0xff] %vm5145, %v5040
  %5190 = vst.msk [vmem:[#allocation4 + $0x160] sm:$0xff] %vm5145, %v5042
  %5191 = vst.msk [vmem:[#allocation4 + $0x168] sm:$0xff] %vm5145, %v5044
  %5192 = vst.msk [vmem:[#allocation4 + $0x170] sm:$0xff] %vm5145, %v5046
  %5193 = vst.msk [vmem:[#allocation4 + $0x178] sm:$0xff] %vm5145, %v5048
  %5194 = vst.msk [vmem:[#allocation4 + $0x180] sm:$0xff] %vm5145, %v5050
  %5195 = vst.msk [vmem:[#allocation4 + $0x188] sm:$0xff] %vm5145, %v5052
  %5196 = vst.msk [vmem:[#allocation4 + $0x190] sm:$0xff] %vm5145, %v5054
  %5197 = vst.msk [vmem:[#allocation4 + $0x198] sm:$0xff] %vm5145, %v5056
  %5198 = vst.msk [vmem:[#allocation4 + $0x1a0] sm:$0xff] %vm5145, %v5058
  %5199 = vst.msk [vmem:[#allocation4 + $0x1a8] sm:$0xff] %vm5145, %v5060
  %5200 = vst.msk [vmem:[#allocation4 + $0x1b0] sm:$0xff] %vm5145, %v5062
  %5201 = vst.msk [vmem:[#allocation4 + $0x1b8] sm:$0xff] %vm5145, %v5064
  %5202 = vst.msk [vmem:[#allocation4 + $0x1c0] sm:$0xff] %vm5145, %v5066
  %5203 = vst.msk [vmem:[#allocation4 + $0x1c8] sm:$0xff] %vm5145, %v5068
  %5204 = vst.msk [vmem:[#allocation4 + $0x1d0] sm:$0xff] %vm5145, %v5070
  %5205 = vst.msk [vmem:[#allocation4 + $0x1d8] sm:$0xff] %vm5145, %v5072
  %5206 = vst.msk [vmem:[#allocation4 + $0x1e0] sm:$0xff] %vm5145, %v5074
  %5207 = vst.msk [vmem:[#allocation4 + $0x1e8] sm:$0xff] %vm5145, %v5076
  %5208 = vst.msk [vmem:[#allocation4 + $0x1f0] sm:$0xff] %vm5145, %v5078
  %5209 = vst.msk [vmem:[#allocation4 + $0x1f8] sm:$0xff] %vm5145, %v5080
  %v5210 = vld [vmem:[%s1810 + $0x2] sm:$0xff]
  %v5211 = vld [vmem:[%s1810 + $0xa] sm:$0xff]
  %v5212 = vld [vmem:[%s1810 + $0x1a] sm:$0xff]
  %v5213 = vld [vmem:[%s1810 + $0x22] sm:$0xff]
  %v5214 = vld [vmem:[%s1810 + $0x32] sm:$0xff]
  %v5215 = vld [vmem:[%s1810 + $0x3a] sm:$0xff]
  %v5216 = vld [vmem:[%s1810 + $0x4a] sm:$0xff]
  %v5217 = vld [vmem:[%s1810 + $0x52] sm:$0xff]
  %v5218 = vld [vmem:[%s1810 + $0x62] sm:$0xff]
  %v5219 = vld [vmem:[%s1810 + $0x6a] sm:$0xff]
  %v5220 = vld [vmem:[%s1810 + $0x7a] sm:$0xff]
  %v5221 = vld [vmem:[%s1810 + $0x82] sm:$0xff]
  %v5222 = vld [vmem:[%s1810 + $0x92] sm:$0xff]
  %v5223 = vld [vmem:[%s1810 + $0x9a] sm:$0xff]
  %v5224 = vld [vmem:[%s1810 + $0xaa] sm:$0xff]
  %v5225 = vld [vmem:[%s1810 + $0xb2] sm:$0xff]
  %v5226 = vld [vmem:[%s1810 + $0xc2] sm:$0xff]
  %v5227 = vld [vmem:[%s1810 + $0xca] sm:$0xff]
  %v5228 = vld [vmem:[%s1810 + $0xda] sm:$0xff]
  %v5229 = vld [vmem:[%s1810 + $0xe2] sm:$0xff]
  %v5230 = vld [vmem:[%s1810 + $0xf2] sm:$0xff]
  %v5231 = vld [vmem:[%s1810 + $0xfa] sm:$0xff]
  %v5232 = vld [vmem:[%s1810 + $0x10a] sm:$0xff]
  %v5233 = vld [vmem:[%s1810 + $0x112] sm:$0xff]
  %v5234 = vld [vmem:[%s1810 + $0x122] sm:$0xff]
  %v5235 = vld [vmem:[%s1810 + $0x12a] sm:$0xff]
  %v5236 = vld [vmem:[%s1810 + $0x13a] sm:$0xff]
  %v5237 = vld [vmem:[%s1810 + $0x142] sm:$0xff]
  %v5238 = vld [vmem:[%s1810 + $0x152] sm:$0xff]
  %v5239 = vld [vmem:[%s1810 + $0x15a] sm:$0xff]
  %v5240 = vld [vmem:[%s1810 + $0x16a] sm:$0xff]
  %v5241 = vld [vmem:[%s1810 + $0x172] sm:$0xff]
  %v5242 = vld [vmem:[%s1810 + $0x1b2] sm:$0xff]
  %v5243 = vld [vmem:[%s1810 + $0x1ba] sm:$0xff]
  %v5244 = vld [vmem:[%s1810 + $0x1ca] sm:$0xff]
  %v5245 = vld [vmem:[%s1810 + $0x1d2] sm:$0xff]
  %v5246 = vld [vmem:[%s1810 + $0x1e2] sm:$0xff]
  %v5247 = vld [vmem:[%s1810 + $0x1ea] sm:$0xff]
  %v5248 = vld [vmem:[%s1810 + $0x1fa] sm:$0xff]
  %v5249 = vld [vmem:[%s1810 + $0x202] sm:$0xff]
  %v5250 = vld [vmem:[%s1810 + $0x212] sm:$0xff]
  %v5251 = vld [vmem:[%s1810 + $0x21a] sm:$0xff]
  %v5252 = vld [vmem:[%s1810 + $0x22a] sm:$0xff]
  %v5253 = vld [vmem:[%s1810 + $0x232] sm:$0xff]
  %v5254 = vld [vmem:[%s1810 + $0x242] sm:$0xff]
  %v5255 = vld [vmem:[%s1810 + $0x24a] sm:$0xff]
  %v5256 = vld [vmem:[%s1810 + $0x25a] sm:$0xff]
  %v5257 = vld [vmem:[%s1810 + $0x262] sm:$0xff]
  %v5258 = vld [vmem:[%s1810 + $0x272] sm:$0xff]
  %v5259 = vld [vmem:[%s1810 + $0x27a] sm:$0xff]
  %v5260 = vld [vmem:[%s1810 + $0x28a] sm:$0xff]
  %v5261 = vld [vmem:[%s1810 + $0x292] sm:$0xff]
  %v5262 = vld [vmem:[%s1810 + $0x2a2] sm:$0xff]
  %v5263 = vld [vmem:[%s1810 + $0x2aa] sm:$0xff]
  %v5264 = vld [vmem:[%s1810 + $0x2ba] sm:$0xff]
  %v5265 = vld [vmem:[%s1810 + $0x2c2] sm:$0xff]
  %v5266 = vld [vmem:[%s1810 + $0x2d2] sm:$0xff]
  %v5267 = vld [vmem:[%s1810 + $0x2da] sm:$0xff]
  %v5268 = vld [vmem:[%s1810 + $0x2ea] sm:$0xff]
  %v5269 = vld [vmem:[%s1810 + $0x2f2] sm:$0xff]
  %v5270 = vld [vmem:[%s1810 + $0x302] sm:$0xff]
  %v5271 = vld [vmem:[%s1810 + $0x30a] sm:$0xff]
  %v5272 = vld [vmem:[%s1810 + $0x31a] sm:$0xff]
  %v5273 = vld [vmem:[%s1810 + $0x322] sm:$0xff]
  %5338 = vrot.lane.b32.xlu0 %v5210, 64
  %v5339 = vpop.permute.xlu0 %5338
  %5340 = vrot.lane.b32.xlu0 %v5211, 64
  %v5341 = vpop.permute.xlu0 %5340
  %5342 = vrot.lane.b32.xlu0 %v5212, 64
  %v5343 = vpop.permute.xlu0 %5342
  %5344 = vrot.lane.b32.xlu0 %v5213, 64
  %v5345 = vpop.permute.xlu0 %5344
  %5346 = vrot.lane.b32.xlu0 %v5214, 64
  %v5347 = vpop.permute.xlu0 %5346
  %5348 = vrot.lane.b32.xlu0 %v5215, 64
  %v5349 = vpop.permute.xlu0 %5348
  %5350 = vrot.lane.b32.xlu0 %v5216, 64
  %v5351 = vpop.permute.xlu0 %5350
  %5352 = vrot.lane.b32.xlu0 %v5217, 64
  %v5353 = vpop.permute.xlu0 %5352
  %5354 = vrot.lane.b32.xlu0 %v5218, 64
  %v5355 = vpop.permute.xlu0 %5354
  %5356 = vrot.lane.b32.xlu0 %v5219, 64
  %v5357 = vpop.permute.xlu0 %5356
  %5358 = vrot.lane.b32.xlu0 %v5220, 64
  %v5359 = vpop.permute.xlu0 %5358
  %5360 = vrot.lane.b32.xlu0 %v5221, 64
  %v5361 = vpop.permute.xlu0 %5360
  %5362 = vrot.lane.b32.xlu0 %v5222, 64
  %v5363 = vpop.permute.xlu0 %5362
  %5364 = vrot.lane.b32.xlu0 %v5223, 64
  %v5365 = vpop.permute.xlu0 %5364
  %5366 = vrot.lane.b32.xlu0 %v5224, 64
  %v5367 = vpop.permute.xlu0 %5366
  %5368 = vrot.lane.b32.xlu0 %v5225, 64
  %v5369 = vpop.permute.xlu0 %5368
  %5370 = vrot.lane.b32.xlu0 %v5226, 64
  %v5371 = vpop.permute.xlu0 %5370
  %5372 = vrot.lane.b32.xlu0 %v5227, 64
  %v5373 = vpop.permute.xlu0 %5372
  %5374 = vrot.lane.b32.xlu0 %v5228, 64
  %v5375 = vpop.permute.xlu0 %5374
  %5376 = vrot.lane.b32.xlu0 %v5229, 64
  %v5377 = vpop.permute.xlu0 %5376
  %5378 = vrot.lane.b32.xlu0 %v5230, 64
  %v5379 = vpop.permute.xlu0 %5378
  %5380 = vrot.lane.b32.xlu0 %v5231, 64
  %v5381 = vpop.permute.xlu0 %5380
  %5382 = vrot.lane.b32.xlu0 %v5232, 64
  %v5383 = vpop.permute.xlu0 %5382
  %5384 = vrot.lane.b32.xlu0 %v5233, 64
  %v5385 = vpop.permute.xlu0 %5384
  %5386 = vrot.lane.b32.xlu0 %v5234, 64
  %v5387 = vpop.permute.xlu0 %5386
  %5388 = vrot.lane.b32.xlu0 %v5235, 64
  %v5389 = vpop.permute.xlu0 %5388
  %5390 = vrot.lane.b32.xlu0 %v5236, 64
  %v5391 = vpop.permute.xlu0 %5390
  %5392 = vrot.lane.b32.xlu0 %v5237, 64
  %v5393 = vpop.permute.xlu0 %5392
  %5394 = vrot.lane.b32.xlu0 %v5238, 64
  %v5395 = vpop.permute.xlu0 %5394
  %5396 = vrot.lane.b32.xlu0 %v5239, 64
  %v5397 = vpop.permute.xlu0 %5396
  %5398 = vrot.lane.b32.xlu0 %v5240, 64
  %v5399 = vpop.permute.xlu0 %5398
  %5400 = vrot.lane.b32.xlu0 %v5241, 64
  %v5401 = vpop.permute.xlu0 %5400
  %5402 = vrot.lane.b32.xlu0 %v5242, 64
  %v5403 = vpop.permute.xlu0 %5402
  %5404 = vrot.lane.b32.xlu0 %v5243, 64
  %v5405 = vpop.permute.xlu0 %5404
  %5406 = vrot.lane.b32.xlu0 %v5244, 64
  %v5407 = vpop.permute.xlu0 %5406
  %5408 = vrot.lane.b32.xlu0 %v5245, 64
  %v5409 = vpop.permute.xlu0 %5408
  %5410 = vrot.lane.b32.xlu0 %v5246, 64
  %v5411 = vpop.permute.xlu0 %5410
  %5412 = vrot.lane.b32.xlu0 %v5247, 64
  %v5413 = vpop.permute.xlu0 %5412
  %5414 = vrot.lane.b32.xlu0 %v5248, 64
  %v5415 = vpop.permute.xlu0 %5414
  %5416 = vrot.lane.b32.xlu0 %v5249, 64
  %v5417 = vpop.permute.xlu0 %5416
  %5418 = vrot.lane.b32.xlu0 %v5250, 64
  %v5419 = vpop.permute.xlu0 %5418
  %5420 = vrot.lane.b32.xlu0 %v5251, 64
  %v5421 = vpop.permute.xlu0 %5420
  %5422 = vrot.lane.b32.xlu0 %v5252, 64
  %v5423 = vpop.permute.xlu0 %5422
  %5424 = vrot.lane.b32.xlu0 %v5253, 64
  %v5425 = vpop.permute.xlu0 %5424
  %5426 = vrot.lane.b32.xlu0 %v5254, 64
  %v5427 = vpop.permute.xlu0 %5426
  %5428 = vrot.lane.b32.xlu0 %v5255, 64
  %v5429 = vpop.permute.xlu0 %5428
  %5430 = vrot.lane.b32.xlu0 %v5256, 64
  %v5431 = vpop.permute.xlu0 %5430
  %5432 = vrot.lane.b32.xlu0 %v5257, 64
  %v5433 = vpop.permute.xlu0 %5432
  %5434 = vrot.lane.b32.xlu0 %v5258, 64
  %v5435 = vpop.permute.xlu0 %5434
  %5436 = vrot.lane.b32.xlu0 %v5259, 64
  %v5437 = vpop.permute.xlu0 %5436
  %5438 = vrot.lane.b32.xlu0 %v5260, 64
  %v5439 = vpop.permute.xlu0 %5438
  %5440 = vrot.lane.b32.xlu0 %v5261, 64
  %v5441 = vpop.permute.xlu0 %5440
  %5442 = vrot.lane.b32.xlu0 %v5262, 64
  %v5443 = vpop.permute.xlu0 %5442
  %5444 = vrot.lane.b32.xlu0 %v5263, 64
  %v5445 = vpop.permute.xlu0 %5444
  %5446 = vrot.lane.b32.xlu0 %v5264, 64
  %v5447 = vpop.permute.xlu0 %5446
  %5448 = vrot.lane.b32.xlu0 %v5265, 64
  %v5449 = vpop.permute.xlu0 %5448
  %5450 = vrot.lane.b32.xlu0 %v5266, 64
  %v5451 = vpop.permute.xlu0 %5450
  %5452 = vrot.lane.b32.xlu0 %v5267, 64
  %v5453 = vpop.permute.xlu0 %5452
  %5454 = vrot.lane.b32.xlu0 %v5268, 64
  %v5455 = vpop.permute.xlu0 %5454
  %5456 = vrot.lane.b32.xlu0 %v5269, 64
  %v5457 = vpop.permute.xlu0 %5456
  %5458 = vrot.lane.b32.xlu0 %v5270, 64
  %v5459 = vpop.permute.xlu0 %5458
  %5460 = vrot.lane.b32.xlu0 %v5271, 64
  %v5461 = vpop.permute.xlu0 %5460
  %5462 = vrot.lane.b32.xlu0 %v5272, 64
  %v5463 = vpop.permute.xlu0 %5462
  %5464 = vrot.lane.b32.xlu0 %v5273, 64
  %v5465 = vpop.permute.xlu0 %5464
  %vm5530 = vcmask 589312
  %5531 = vst.msk [vmem:[#allocation4] sm:$0xff] %vm5530, %v5339
  %5532 = vst.msk [vmem:[#allocation4 + $0x8] sm:$0xff] %vm5530, %v5341
  %5533 = vst.msk [vmem:[#allocation4 + $0x10] sm:$0xff] %vm5530, %v5343
  %5534 = vst.msk [vmem:[#allocation4 + $0x18] sm:$0xff] %vm5530, %v5345
  %5535 = vst.msk [vmem:[#allocation4 + $0x20] sm:$0xff] %vm5530, %v5347
  %5536 = vst.msk [vmem:[#allocation4 + $0x28] sm:$0xff] %vm5530, %v5349
  %5537 = vst.msk [vmem:[#allocation4 + $0x30] sm:$0xff] %vm5530, %v5351
  %5538 = vst.msk [vmem:[#allocation4 + $0x38] sm:$0xff] %vm5530, %v5353
  %5539 = vst.msk [vmem:[#allocation4 + $0x40] sm:$0xff] %vm5530, %v5355
  %5540 = vst.msk [vmem:[#allocation4 + $0x48] sm:$0xff] %vm5530, %v5357
  %5541 = vst.msk [vmem:[#allocation4 + $0x50] sm:$0xff] %vm5530, %v5359
  %5542 = vst.msk [vmem:[#allocation4 + $0x58] sm:$0xff] %vm5530, %v5361
  %5543 = vst.msk [vmem:[#allocation4 + $0x60] sm:$0xff] %vm5530, %v5363
  %5544 = vst.msk [vmem:[#allocation4 + $0x68] sm:$0xff] %vm5530, %v5365
  %5545 = vst.msk [vmem:[#allocation4 + $0x70] sm:$0xff] %vm5530, %v5367
  %5546 = vst.msk [vmem:[#allocation4 + $0x78] sm:$0xff] %vm5530, %v5369
  %5547 = vst.msk [vmem:[#allocation4 + $0x80] sm:$0xff] %vm5530, %v5371
  %5548 = vst.msk [vmem:[#allocation4 + $0x88] sm:$0xff] %vm5530, %v5373
  %5549 = vst.msk [vmem:[#allocation4 + $0x90] sm:$0xff] %vm5530, %v5375
  %5550 = vst.msk [vmem:[#allocation4 + $0x98] sm:$0xff] %vm5530, %v5377
  %5551 = vst.msk [vmem:[#allocation4 + $0xa0] sm:$0xff] %vm5530, %v5379
  %5552 = vst.msk [vmem:[#allocation4 + $0xa8] sm:$0xff] %vm5530, %v5381
  %5553 = vst.msk [vmem:[#allocation4 + $0xb0] sm:$0xff] %vm5530, %v5383
  %5554 = vst.msk [vmem:[#allocation4 + $0xb8] sm:$0xff] %vm5530, %v5385
  %5555 = vst.msk [vmem:[#allocation4 + $0xc0] sm:$0xff] %vm5530, %v5387
  %5556 = vst.msk [vmem:[#allocation4 + $0xc8] sm:$0xff] %vm5530, %v5389
  %5557 = vst.msk [vmem:[#allocation4 + $0xd0] sm:$0xff] %vm5530, %v5391
  %5558 = vst.msk [vmem:[#allocation4 + $0xd8] sm:$0xff] %vm5530, %v5393
  %5559 = vst.msk [vmem:[#allocation4 + $0xe0] sm:$0xff] %vm5530, %v5395
  %5560 = vst.msk [vmem:[#allocation4 + $0xe8] sm:$0xff] %vm5530, %v5397
  %5561 = vst.msk [vmem:[#allocation4 + $0xf0] sm:$0xff] %vm5530, %v5399
  %5562 = vst.msk [vmem:[#allocation4 + $0xf8] sm:$0xff] %vm5530, %v5401
  %5563 = vst.msk [vmem:[#allocation4 + $0x100] sm:$0xff] %vm5530, %v5403
  %5564 = vst.msk [vmem:[#allocation4 + $0x108] sm:$0xff] %vm5530, %v5405
  %5565 = vst.msk [vmem:[#allocation4 + $0x110] sm:$0xff] %vm5530, %v5407
  %5566 = vst.msk [vmem:[#allocation4 + $0x118] sm:$0xff] %vm5530, %v5409
  %5567 = vst.msk [vmem:[#allocation4 + $0x120] sm:$0xff] %vm5530, %v5411
  %5568 = vst.msk [vmem:[#allocation4 + $0x128] sm:$0xff] %vm5530, %v5413
  %5569 = vst.msk [vmem:[#allocation4 + $0x130] sm:$0xff] %vm5530, %v5415
  %5570 = vst.msk [vmem:[#allocation4 + $0x138] sm:$0xff] %vm5530, %v5417
  %5571 = vst.msk [vmem:[#allocation4 + $0x140] sm:$0xff] %vm5530, %v5419
  %5572 = vst.msk [vmem:[#allocation4 + $0x148] sm:$0xff] %vm5530, %v5421
  %5573 = vst.msk [vmem:[#allocation4 + $0x150] sm:$0xff] %vm5530, %v5423
  %5574 = vst.msk [vmem:[#allocation4 + $0x158] sm:$0xff] %vm5530, %v5425
  %5575 = vst.msk [vmem:[#allocation4 + $0x160] sm:$0xff] %vm5530, %v5427
  %5576 = vst.msk [vmem:[#allocation4 + $0x168] sm:$0xff] %vm5530, %v5429
  %5577 = vst.msk [vmem:[#allocation4 + $0x170] sm:$0xff] %vm5530, %v5431
  %5578 = vst.msk [vmem:[#allocation4 + $0x178] sm:$0xff] %vm5530, %v5433
  %5579 = vst.msk [vmem:[#allocation4 + $0x180] sm:$0xff] %vm5530, %v5435
  %5580 = vst.msk [vmem:[#allocation4 + $0x188] sm:$0xff] %vm5530, %v5437
  %5581 = vst.msk [vmem:[#allocation4 + $0x190] sm:$0xff] %vm5530, %v5439
  %5582 = vst.msk [vmem:[#allocation4 + $0x198] sm:$0xff] %vm5530, %v5441
  %5583 = vst.msk [vmem:[#allocation4 + $0x1a0] sm:$0xff] %vm5530, %v5443
  %5584 = vst.msk [vmem:[#allocation4 + $0x1a8] sm:$0xff] %vm5530, %v5445
  %5585 = vst.msk [vmem:[#allocation4 + $0x1b0] sm:$0xff] %vm5530, %v5447
  %5586 = vst.msk [vmem:[#allocation4 + $0x1b8] sm:$0xff] %vm5530, %v5449
  %5587 = vst.msk [vmem:[#allocation4 + $0x1c0] sm:$0xff] %vm5530, %v5451
  %5588 = vst.msk [vmem:[#allocation4 + $0x1c8] sm:$0xff] %vm5530, %v5453
  %5589 = vst.msk [vmem:[#allocation4 + $0x1d0] sm:$0xff] %vm5530, %v5455
  %5590 = vst.msk [vmem:[#allocation4 + $0x1d8] sm:$0xff] %vm5530, %v5457
  %5591 = vst.msk [vmem:[#allocation4 + $0x1e0] sm:$0xff] %vm5530, %v5459
  %5592 = vst.msk [vmem:[#allocation4 + $0x1e8] sm:$0xff] %vm5530, %v5461
  %5593 = vst.msk [vmem:[#allocation4 + $0x1f0] sm:$0xff] %vm5530, %v5463
  %5594 = vst.msk [vmem:[#allocation4 + $0x1f8] sm:$0xff] %vm5530, %v5465
  %v5595 = vld [vmem:[#allocation4] sm:$0xff]
  %v5596 = vld [vmem:[#allocation4 + $0x8] sm:$0xff]
  %v5597 = vld [vmem:[#allocation4 + $0x10] sm:$0xff]
  %v5598 = vld [vmem:[#allocation4 + $0x18] sm:$0xff]
  %v5599 = vld [vmem:[#allocation4 + $0x20] sm:$0xff]
  %v5600 = vld [vmem:[#allocation4 + $0x28] sm:$0xff]
  %v5601 = vld [vmem:[#allocation4 + $0x30] sm:$0xff]
  %v5602 = vld [vmem:[#allocation4 + $0x38] sm:$0xff]
  %v5603 = vld [vmem:[#allocation4 + $0x40] sm:$0xff]
  %v5604 = vld [vmem:[#allocation4 + $0x48] sm:$0xff]
  %v5605 = vld [vmem:[#allocation4 + $0x50] sm:$0xff]
  %v5606 = vld [vmem:[#allocation4 + $0x58] sm:$0xff]
  %v5607 = vld [vmem:[#allocation4 + $0x60] sm:$0xff]
  %v5608 = vld [vmem:[#allocation4 + $0x68] sm:$0xff]
  %v5609 = vld [vmem:[#allocation4 + $0x70] sm:$0xff]
  %v5610 = vld [vmem:[#allocation4 + $0x78] sm:$0xff]
  %v5611 = vld [vmem:[#allocation4 + $0x80] sm:$0xff]
  %v5612 = vld [vmem:[#allocation4 + $0x88] sm:$0xff]
  %v5613 = vld [vmem:[#allocation4 + $0x90] sm:$0xff]
  %v5614 = vld [vmem:[#allocation4 + $0x98] sm:$0xff]
  %v5615 = vld [vmem:[#allocation4 + $0xa0] sm:$0xff]
  %v5616 = vld [vmem:[#allocation4 + $0xa8] sm:$0xff]
  %v5617 = vld [vmem:[#allocation4 + $0xb0] sm:$0xff]
  %v5618 = vld [vmem:[#allocation4 + $0xb8] sm:$0xff]
  %v5619 = vld [vmem:[#allocation4 + $0xc0] sm:$0xff]
  %v5620 = vld [vmem:[#allocation4 + $0xc8] sm:$0xff]
  %v5621 = vld [vmem:[#allocation4 + $0xd0] sm:$0xff]
  %v5622 = vld [vmem:[#allocation4 + $0xd8] sm:$0xff]
  %v5623 = vld [vmem:[#allocation4 + $0xe0] sm:$0xff]
  %v5624 = vld [vmem:[#allocation4 + $0xe8] sm:$0xff]
  %v5625 = vld [vmem:[#allocation4 + $0xf0] sm:$0xff]
  %v5626 = vld [vmem:[#allocation4 + $0xf8] sm:$0xff]
  %v5627 = vld [vmem:[#allocation4 + $0x100] sm:$0xff]
  %v5628 = vld [vmem:[#allocation4 + $0x108] sm:$0xff]
  %v5629 = vld [vmem:[#allocation4 + $0x110] sm:$0xff]
  %v5630 = vld [vmem:[#allocation4 + $0x118] sm:$0xff]
  %v5631 = vld [vmem:[#allocation4 + $0x120] sm:$0xff]
  %v5632 = vld [vmem:[#allocation4 + $0x128] sm:$0xff]
  %v5633 = vld [vmem:[#allocation4 + $0x130] sm:$0xff]
  %v5634 = vld [vmem:[#allocation4 + $0x138] sm:$0xff]
  %v5635 = vld [vmem:[#allocation4 + $0x140] sm:$0xff]
  %v5636 = vld [vmem:[#allocation4 + $0x148] sm:$0xff]
  %v5637 = vld [vmem:[#allocation4 + $0x150] sm:$0xff]
  %v5638 = vld [vmem:[#allocation4 + $0x158] sm:$0xff]
  %v5639 = vld [vmem:[#allocation4 + $0x160] sm:$0xff]
  %v5640 = vld [vmem:[#allocation4 + $0x168] sm:$0xff]
  %v5641 = vld [vmem:[#allocation4 + $0x170] sm:$0xff]
  %v5642 = vld [vmem:[#allocation4 + $0x178] sm:$0xff]
  %v5643 = vld [vmem:[#allocation4 + $0x180] sm:$0xff]
  %v5644 = vld [vmem:[#allocation4 + $0x188] sm:$0xff]
  %v5645 = vld [vmem:[#allocation4 + $0x190] sm:$0xff]
  %v5646 = vld [vmem:[#allocation4 + $0x198] sm:$0xff]
  %v5647 = vld [vmem:[#allocation4 + $0x1a0] sm:$0xff]
  %v5648 = vld [vmem:[#allocation4 + $0x1a8] sm:$0xff]
  %v5649 = vld [vmem:[#allocation4 + $0x1b0] sm:$0xff]
  %v5650 = vld [vmem:[#allocation4 + $0x1b8] sm:$0xff]
  %v5651 = vld [vmem:[#allocation4 + $0x1c0] sm:$0xff]
  %v5652 = vld [vmem:[#allocation4 + $0x1c8] sm:$0xff]
  %v5653 = vld [vmem:[#allocation4 + $0x1d0] sm:$0xff]
  %v5654 = vld [vmem:[#allocation4 + $0x1d8] sm:$0xff]
  %v5655 = vld [vmem:[#allocation4 + $0x1e0] sm:$0xff]
  %v5656 = vld [vmem:[#allocation4 + $0x1e8] sm:$0xff]
  %v5657 = vld [vmem:[#allocation4 + $0x1f0] sm:$0xff]
  %v5658 = vld [vmem:[#allocation4 + $0x1f8] sm:$0xff]
  %v5659 = vld [vmem:[%s2] sm:$0xff]
  %v5660 = vld [vmem:[%s2 + $0x8] sm:$0xff]
  %v5661 = vld [vmem:[%s2 + $0x10] sm:$0xff]
  %v5662 = vld [vmem:[%s2 + $0x18] sm:$0xff]
  %v5663 = vld [vmem:[%s2 + $0x20] sm:$0xff]
  %v5664 = vld [vmem:[%s2 + $0x28] sm:$0xff]
  %v5665 = vld [vmem:[%s2 + $0x30] sm:$0xff]
  %v5666 = vld [vmem:[%s2 + $0x38] sm:$0xff]
  %v5667 = vld [vmem:[%s2 + $0x40] sm:$0xff]
  %vm5668 = vcmask 588800
  %v5670 = vsel %vm5668, %v5595, 0
  %v5673 = vsel %vm5668, %v5596, 0
  %v5676 = vsel %vm5668, %v5597, 0
  %v5679 = vsel %vm5668, %v5598, 0
  %v5682 = vsel %vm5668, %v5599, 0
  %v5685 = vsel %vm5668, %v5600, 0
  %v5688 = vsel %vm5668, %v5601, 0
  %v5691 = vsel %vm5668, %v5602, 0
  %v5694 = vsel %vm5668, %v5603, 0
  %v5697 = vsel %vm5668, %v5604, 0
  %v5700 = vsel %vm5668, %v5605, 0
  %v5703 = vsel %vm5668, %v5606, 0
  %v5706 = vsel %vm5668, %v5607, 0
  %v5709 = vsel %vm5668, %v5608, 0
  %v5712 = vsel %vm5668, %v5609, 0
  %v5715 = vsel %vm5668, %v5610, 0
  %v5718 = vsel %vm5668, %v5611, 0
  %v5721 = vsel %vm5668, %v5612, 0
  %v5724 = vsel %vm5668, %v5613, 0
  %v5727 = vsel %vm5668, %v5614, 0
  %v5730 = vsel %vm5668, %v5615, 0
  %v5733 = vsel %vm5668, %v5616, 0
  %v5736 = vsel %vm5668, %v5617, 0
  %v5739 = vsel %vm5668, %v5618, 0
  %v5742 = vsel %vm5668, %v5619, 0
  %v5745 = vsel %vm5668, %v5620, 0
  %v5748 = vsel %vm5668, %v5621, 0
  %v5751 = vsel %vm5668, %v5622, 0
  %v5754 = vsel %vm5668, %v5623, 0
  %v5757 = vsel %vm5668, %v5624, 0
  %v5760 = vsel %vm5668, %v5625, 0
  %v5763 = vsel %vm5668, %v5626, 0
  %v5766 = vsel %vm5668, %v5627, 0
  %v5769 = vsel %vm5668, %v5628, 0
  %v5772 = vsel %vm5668, %v5629, 0
  %v5775 = vsel %vm5668, %v5630, 0
  %v5778 = vsel %vm5668, %v5631, 0
  %v5781 = vsel %vm5668, %v5632, 0
  %v5784 = vsel %vm5668, %v5633, 0
  %v5787 = vsel %vm5668, %v5634, 0
  %v5790 = vsel %vm5668, %v5635, 0
  %v5793 = vsel %vm5668, %v5636, 0
  %v5796 = vsel %vm5668, %v5637, 0
  %v5799 = vsel %vm5668, %v5638, 0
  %v5802 = vsel %vm5668, %v5639, 0
  %v5805 = vsel %vm5668, %v5640, 0
  %v5808 = vsel %vm5668, %v5641, 0
  %v5811 = vsel %vm5668, %v5642, 0
  %v5814 = vsel %vm5668, %v5643, 0
  %v5817 = vsel %vm5668, %v5644, 0
  %v5820 = vsel %vm5668, %v5645, 0
  %v5823 = vsel %vm5668, %v5646, 0
  %v5826 = vsel %vm5668, %v5647, 0
  %v5829 = vsel %vm5668, %v5648, 0
  %v5832 = vsel %vm5668, %v5649, 0
  %v5835 = vsel %vm5668, %v5650, 0
  %v5838 = vsel %vm5668, %v5651, 0
  %v5841 = vsel %vm5668, %v5652, 0
  %v5844 = vsel %vm5668, %v5653, 0
  %v5847 = vsel %vm5668, %v5654, 0
  %v5850 = vsel %vm5668, %v5655, 0
  %v5853 = vsel %vm5668, %v5656, 0
  %v5856 = vsel %vm5668, %v5657, 0
  %v5859 = vsel %vm5668, %v5658, 0
  %5861 = vmatpush.msra.mxu0 0.0
  %5862 = vmatpush.msra.mxu0 0.0
  %5863 = vmatpush.msra.mxu0 0.0
  %5864 = vmatpush.msra.mxu0 0.0
  %5865 = vmatpush.msra.mxu0 0.0
  %5866 = vmatpush.msra.mxu0 0.0
  %5867 = vmatpush.msra.mxu0 0.0
  %5868 = vmatpush.msra.mxu0 %v5667
  %5869 = vmatpush.msra.mxu0 %v5666
  %5870 = vmatpush.msra.mxu0 %v5665
  %5871 = vmatpush.msra.mxu0 %v5664
  %5872 = vmatpush.msra.mxu0 %v5663
  %5873 = vmatpush.msra.mxu0 %v5662
  %5874 = vmatpush.msra.mxu0 %v5661
  %5875 = vmatpush.msra.mxu0 %v5660
  %5876 = vmatpush.msra.mxu0 %v5659
  %5877 = vmatmul.f32.gmra.mxu0 %v5670
  %v5878 = vpop.f32.mrf.mxu0
  %v5879 = vadd.f32 0.0, %v5878
  %5880 = vmatmul.f32.gmra.mxu0 %v5673
  %v5881 = vpop.f32.mrf.mxu0
  %v5882 = vadd.f32 0.0, %v5881
  %5883 = vmatmul.f32.gmra.mxu0 %v5676
  %v5884 = vpop.f32.mrf.mxu0
  %v5885 = vadd.f32 0.0, %v5884
  %5886 = vmatmul.f32.gmra.mxu0 %v5679
  %v5887 = vpop.f32.mrf.mxu0
  %v5888 = vadd.f32 0.0, %v5887
  %5889 = vmatmul.f32.gmra.mxu0 %v5682
  %v5890 = vpop.f32.mrf.mxu0
  %v5891 = vadd.f32 0.0, %v5890
  %5892 = vmatmul.f32.gmra.mxu0 %v5685
  %v5893 = vpop.f32.mrf.mxu0
  %v5894 = vadd.f32 0.0, %v5893
  %5895 = vmatmul.f32.gmra.mxu0 %v5688
  %v5896 = vpop.f32.mrf.mxu0
  %v5897 = vadd.f32 0.0, %v5896
  %5898 = vmatmul.f32.gmra.mxu0 %v5691
  %v5899 = vpop.f32.mrf.mxu0
  %v5900 = vadd.f32 0.0, %v5899
  %5901 = vmatmul.f32.gmra.mxu0 %v5694
  %v5902 = vpop.f32.mrf.mxu0
  %v5903 = vadd.f32 0.0, %v5902
  %5904 = vmatmul.f32.gmra.mxu0 %v5697
  %v5905 = vpop.f32.mrf.mxu0
  %v5906 = vadd.f32 0.0, %v5905
  %5907 = vmatmul.f32.gmra.mxu0 %v5700
  %v5908 = vpop.f32.mrf.mxu0
  %v5909 = vadd.f32 0.0, %v5908
  %5910 = vmatmul.f32.gmra.mxu0 %v5703
  %v5911 = vpop.f32.mrf.mxu0
  %v5912 = vadd.f32 0.0, %v5911
  %5913 = vmatmul.f32.gmra.mxu0 %v5706
  %v5914 = vpop.f32.mrf.mxu0
  %v5915 = vadd.f32 0.0, %v5914
  %5916 = vmatmul.f32.gmra.mxu0 %v5709
  %v5917 = vpop.f32.mrf.mxu0
  %v5918 = vadd.f32 0.0, %v5917
  %5919 = vmatmul.f32.gmra.mxu0 %v5712
  %v5920 = vpop.f32.mrf.mxu0
  %v5921 = vadd.f32 0.0, %v5920
  %5922 = vmatmul.f32.gmra.mxu0 %v5715
  %v5923 = vpop.f32.mrf.mxu0
  %v5924 = vadd.f32 0.0, %v5923
  %5925 = vmatmul.f32.gmra.mxu0 %v5718
  %v5926 = vpop.f32.mrf.mxu0
  %v5927 = vadd.f32 0.0, %v5926
  %5928 = vmatmul.f32.gmra.mxu0 %v5721
  %v5929 = vpop.f32.mrf.mxu0
  %v5930 = vadd.f32 0.0, %v5929
  %5931 = vmatmul.f32.gmra.mxu0 %v5724
  %v5932 = vpop.f32.mrf.mxu0
  %v5933 = vadd.f32 0.0, %v5932
  %5934 = vmatmul.f32.gmra.mxu0 %v5727
  %v5935 = vpop.f32.mrf.mxu0
  %v5936 = vadd.f32 0.0, %v5935
  %5937 = vmatmul.f32.gmra.mxu0 %v5730
  %v5938 = vpop.f32.mrf.mxu0
  %v5939 = vadd.f32 0.0, %v5938
  %5940 = vmatmul.f32.gmra.mxu0 %v5733
  %v5941 = vpop.f32.mrf.mxu0
  %v5942 = vadd.f32 0.0, %v5941
  %5943 = vmatmul.f32.gmra.mxu0 %v5736
  %v5944 = vpop.f32.mrf.mxu0
  %v5945 = vadd.f32 0.0, %v5944
  %5946 = vmatmul.f32.gmra.mxu0 %v5739
  %v5947 = vpop.f32.mrf.mxu0
  %v5948 = vadd.f32 0.0, %v5947
  %5949 = vmatmul.f32.gmra.mxu0 %v5742
  %v5950 = vpop.f32.mrf.mxu0
  %v5951 = vadd.f32 0.0, %v5950
  %5952 = vmatmul.f32.gmra.mxu0 %v5745
  %v5953 = vpop.f32.mrf.mxu0
  %v5954 = vadd.f32 0.0, %v5953
  %5955 = vmatmul.f32.gmra.mxu0 %v5748
  %v5956 = vpop.f32.mrf.mxu0
  %v5957 = vadd.f32 0.0, %v5956
  %5958 = vmatmul.f32.gmra.mxu0 %v5751
  %v5959 = vpop.f32.mrf.mxu0
  %v5960 = vadd.f32 0.0, %v5959
  %5961 = vmatmul.f32.gmra.mxu0 %v5754
  %v5962 = vpop.f32.mrf.mxu0
  %v5963 = vadd.f32 0.0, %v5962
  %5964 = vmatmul.f32.gmra.mxu0 %v5757
  %v5965 = vpop.f32.mrf.mxu0
  %v5966 = vadd.f32 0.0, %v5965
  %5967 = vmatmul.f32.gmra.mxu0 %v5760
  %v5968 = vpop.f32.mrf.mxu0
  %v5969 = vadd.f32 0.0, %v5968
  %5970 = vmatmul.f32.gmra.mxu0 %v5763
  %v5971 = vpop.f32.mrf.mxu0
  %v5972 = vadd.f32 0.0, %v5971
  %5973 = vmatmul.f32.gmra.mxu0 %v5766
  %v5974 = vpop.f32.mrf.mxu0
  %v5975 = vadd.f32 0.0, %v5974
  %5976 = vmatmul.f32.gmra.mxu0 %v5769
  %v5977 = vpop.f32.mrf.mxu0
  %v5978 = vadd.f32 0.0, %v5977
  %5979 = vmatmul.f32.gmra.mxu0 %v5772
  %v5980 = vpop.f32.mrf.mxu0
  %v5981 = vadd.f32 0.0, %v5980
  %5982 = vmatmul.f32.gmra.mxu0 %v5775
  %v5983 = vpop.f32.mrf.mxu0
  %v5984 = vadd.f32 0.0, %v5983
  %5985 = vmatmul.f32.gmra.mxu0 %v5778
  %v5986 = vpop.f32.mrf.mxu0
  %v5987 = vadd.f32 0.0, %v5986
  %5988 = vmatmul.f32.gmra.mxu0 %v5781
  %v5989 = vpop.f32.mrf.mxu0
  %v5990 = vadd.f32 0.0, %v5989
  %5991 = vmatmul.f32.gmra.mxu0 %v5784
  %v5992 = vpop.f32.mrf.mxu0
  %v5993 = vadd.f32 0.0, %v5992
  %5994 = vmatmul.f32.gmra.mxu0 %v5787
  %v5995 = vpop.f32.mrf.mxu0
  %v5996 = vadd.f32 0.0, %v5995
  %5997 = vmatmul.f32.gmra.mxu0 %v5790
  %v5998 = vpop.f32.mrf.mxu0
  %v5999 = vadd.f32 0.0, %v5998
  %6000 = vmatmul.f32.gmra.mxu0 %v5793
  %v6001 = vpop.f32.mrf.mxu0
  %v6002 = vadd.f32 0.0, %v6001
  %6003 = vmatmul.f32.gmra.mxu0 %v5796
  %v6004 = vpop.f32.mrf.mxu0
  %v6005 = vadd.f32 0.0, %v6004
  %6006 = vmatmul.f32.gmra.mxu0 %v5799
  %v6007 = vpop.f32.mrf.mxu0
  %v6008 = vadd.f32 0.0, %v6007
  %6009 = vmatmul.f32.gmra.mxu0 %v5802
  %v6010 = vpop.f32.mrf.mxu0
  %v6011 = vadd.f32 0.0, %v6010
  %6012 = vmatmul.f32.gmra.mxu0 %v5805
  %v6013 = vpop.f32.mrf.mxu0
  %v6014 = vadd.f32 0.0, %v6013
  %6015 = vmatmul.f32.gmra.mxu0 %v5808
  %v6016 = vpop.f32.mrf.mxu0
  %v6017 = vadd.f32 0.0, %v6016
  %6018 = vmatmul.f32.gmra.mxu0 %v5811
  %v6019 = vpop.f32.mrf.mxu0
  %v6020 = vadd.f32 0.0, %v6019
  %6021 = vmatmul.f32.gmra.mxu0 %v5814
  %v6022 = vpop.f32.mrf.mxu0
  %v6023 = vadd.f32 0.0, %v6022
  %6024 = vmatmul.f32.gmra.mxu0 %v5817
  %v6025 = vpop.f32.mrf.mxu0
  %v6026 = vadd.f32 0.0, %v6025
  %6027 = vmatmul.f32.gmra.mxu0 %v5820
  %v6028 = vpop.f32.mrf.mxu0
  %v6029 = vadd.f32 0.0, %v6028
  %6030 = vmatmul.f32.gmra.mxu0 %v5823
  %v6031 = vpop.f32.mrf.mxu0
  %v6032 = vadd.f32 0.0, %v6031
  %6033 = vmatmul.f32.gmra.mxu0 %v5826
  %v6034 = vpop.f32.mrf.mxu0
  %v6035 = vadd.f32 0.0, %v6034
  %6036 = vmatmul.f32.gmra.mxu0 %v5829
  %v6037 = vpop.f32.mrf.mxu0
  %v6038 = vadd.f32 0.0, %v6037
  %6039 = vmatmul.f32.gmra.mxu0 %v5832
  %v6040 = vpop.f32.mrf.mxu0
  %v6041 = vadd.f32 0.0, %v6040
  %6042 = vmatmul.f32.gmra.mxu0 %v5835
  %v6043 = vpop.f32.mrf.mxu0
  %v6044 = vadd.f32 0.0, %v6043
  %6045 = vmatmul.f32.gmra.mxu0 %v5838
  %v6046 = vpop.f32.mrf.mxu0
  %v6047 = vadd.f32 0.0, %v6046
  %6048 = vmatmul.f32.gmra.mxu0 %v5841
  %v6049 = vpop.f32.mrf.mxu0
  %v6050 = vadd.f32 0.0, %v6049
  %6051 = vmatmul.f32.gmra.mxu0 %v5844
  %v6052 = vpop.f32.mrf.mxu0
  %v6053 = vadd.f32 0.0, %v6052
  %6054 = vmatmul.f32.gmra.mxu0 %v5847
  %v6055 = vpop.f32.mrf.mxu0
  %v6056 = vadd.f32 0.0, %v6055
  %6057 = vmatmul.f32.gmra.mxu0 %v5850
  %v6058 = vpop.f32.mrf.mxu0
  %v6059 = vadd.f32 0.0, %v6058
  %6060 = vmatmul.f32.gmra.mxu0 %v5853
  %v6061 = vpop.f32.mrf.mxu0
  %v6062 = vadd.f32 0.0, %v6061
  %6063 = vmatmul.f32.gmra.mxu0 %v5856
  %v6064 = vpop.f32.mrf.mxu0
  %v6065 = vadd.f32 0.0, %v6064
  %6066 = vmatmul.f32.gmra.mxu0 %v5859
  %v6067 = vpop.f32.mrf.mxu0
  %v6068 = vadd.f32 0.0, %v6067
  %6069 = vdwg.mxu0
  %v6070 = vld [vmem:[%s3] sm:$0x1]
  %v6071 = vld [vmem:[%s4] sm:$0x1]
  %v6072 = vsel %vm182, %v5879, 0.0
  %v6073 = vsel %vm182, %v5882, 0.0
  %v6074 = vadd.f32 %v6072, %v6073
  %v6075 = vsel %vm182, %v5885, 0.0
  %v6076 = vadd.f32 %v6074, %v6075
  %v6077 = vsel %vm182, %v5888, 0.0
  %v6078 = vadd.f32 %v6076, %v6077
  %v6079 = vsel %vm182, %v5891, 0.0
  %v6080 = vadd.f32 %v6078, %v6079
  %v6081 = vsel %vm182, %v5894, 0.0
  %v6082 = vadd.f32 %v6080, %v6081
  %v6083 = vsel %vm182, %v5897, 0.0
  %v6084 = vadd.f32 %v6082, %v6083
  %v6085 = vsel %vm182, %v5900, 0.0
  %v6086 = vadd.f32 %v6084, %v6085
  %v6087 = vsel %vm182, %v5903, 0.0
  %v6088 = vadd.f32 %v6086, %v6087
  %v6089 = vsel %vm182, %v5906, 0.0
  %v6090 = vadd.f32 %v6088, %v6089
  %v6091 = vsel %vm182, %v5909, 0.0
  %v6092 = vadd.f32 %v6090, %v6091
  %v6093 = vsel %vm182, %v5912, 0.0
  %v6094 = vadd.f32 %v6092, %v6093
  %v6095 = vsel %vm182, %v5915, 0.0
  %v6096 = vadd.f32 %v6094, %v6095
  %v6097 = vsel %vm182, %v5918, 0.0
  %v6098 = vadd.f32 %v6096, %v6097
  %v6099 = vsel %vm182, %v5921, 0.0
  %v6100 = vadd.f32 %v6098, %v6099
  %v6101 = vsel %vm182, %v5924, 0.0
  %v6102 = vadd.f32 %v6100, %v6101
  %v6103 = vsel %vm182, %v5927, 0.0
  %v6104 = vadd.f32 %v6102, %v6103
  %v6105 = vsel %vm182, %v5930, 0.0
  %v6106 = vadd.f32 %v6104, %v6105
  %v6107 = vsel %vm182, %v5933, 0.0
  %v6108 = vadd.f32 %v6106, %v6107
  %v6109 = vsel %vm182, %v5936, 0.0
  %v6110 = vadd.f32 %v6108, %v6109
  %v6111 = vsel %vm182, %v5939, 0.0
  %v6112 = vadd.f32 %v6110, %v6111
  %v6113 = vsel %vm182, %v5942, 0.0
  %v6114 = vadd.f32 %v6112, %v6113
  %v6115 = vsel %vm182, %v5945, 0.0
  %v6116 = vadd.f32 %v6114, %v6115
  %v6117 = vsel %vm182, %v5948, 0.0
  %v6118 = vadd.f32 %v6116, %v6117
  %v6119 = vsel %vm182, %v5951, 0.0
  %v6120 = vadd.f32 %v6118, %v6119
  %v6121 = vsel %vm182, %v5954, 0.0
  %v6122 = vadd.f32 %v6120, %v6121
  %v6123 = vsel %vm182, %v5957, 0.0
  %v6124 = vadd.f32 %v6122, %v6123
  %v6125 = vsel %vm182, %v5960, 0.0
  %v6126 = vadd.f32 %v6124, %v6125
  %v6127 = vsel %vm182, %v5963, 0.0
  %v6128 = vadd.f32 %v6126, %v6127
  %v6129 = vsel %vm182, %v5966, 0.0
  %v6130 = vadd.f32 %v6128, %v6129
  %v6131 = vsel %vm182, %v5969, 0.0
  %v6132 = vadd.f32 %v6130, %v6131
  %v6133 = vsel %vm182, %v5972, 0.0
  %v6134 = vadd.f32 %v6132, %v6133
  %v6135 = vsel %vm182, %v5975, 0.0
  %v6136 = vadd.f32 %v6134, %v6135
  %v6137 = vsel %vm182, %v5978, 0.0
  %v6138 = vadd.f32 %v6136, %v6137
  %v6139 = vsel %vm182, %v5981, 0.0
  %v6140 = vadd.f32 %v6138, %v6139
  %v6141 = vsel %vm182, %v5984, 0.0
  %v6142 = vadd.f32 %v6140, %v6141
  %v6143 = vsel %vm182, %v5987, 0.0
  %v6144 = vadd.f32 %v6142, %v6143
  %v6145 = vsel %vm182, %v5990, 0.0
  %v6146 = vadd.f32 %v6144, %v6145
  %v6147 = vsel %vm182, %v5993, 0.0
  %v6148 = vadd.f32 %v6146, %v6147
  %v6149 = vsel %vm182, %v5996, 0.0
  %v6150 = vadd.f32 %v6148, %v6149
  %v6151 = vsel %vm182, %v5999, 0.0
  %v6152 = vadd.f32 %v6150, %v6151
  %v6153 = vsel %vm182, %v6002, 0.0
  %v6154 = vadd.f32 %v6152, %v6153
  %v6155 = vsel %vm182, %v6005, 0.0
  %v6156 = vadd.f32 %v6154, %v6155
  %v6157 = vsel %vm182, %v6008, 0.0
  %v6158 = vadd.f32 %v6156, %v6157
  %v6159 = vsel %vm182, %v6011, 0.0
  %v6160 = vadd.f32 %v6158, %v6159
  %v6161 = vsel %vm182, %v6014, 0.0
  %v6162 = vadd.f32 %v6160, %v6161
  %v6163 = vsel %vm182, %v6017, 0.0
  %v6164 = vadd.f32 %v6162, %v6163
  %v6165 = vsel %vm182, %v6020, 0.0
  %v6166 = vadd.f32 %v6164, %v6165
  %v6167 = vsel %vm182, %v6023, 0.0
  %v6168 = vadd.f32 %v6166, %v6167
  %v6169 = vsel %vm182, %v6026, 0.0
  %v6170 = vadd.f32 %v6168, %v6169
  %v6171 = vsel %vm182, %v6029, 0.0
  %v6172 = vadd.f32 %v6170, %v6171
  %v6173 = vsel %vm182, %v6032, 0.0
  %v6174 = vadd.f32 %v6172, %v6173
  %v6175 = vsel %vm182, %v6035, 0.0
  %v6176 = vadd.f32 %v6174, %v6175
  %v6177 = vsel %vm182, %v6038, 0.0
  %v6178 = vadd.f32 %v6176, %v6177
  %v6179 = vsel %vm182, %v6041, 0.0
  %v6180 = vadd.f32 %v6178, %v6179
  %v6181 = vsel %vm182, %v6044, 0.0
  %v6182 = vadd.f32 %v6180, %v6181
  %v6183 = vsel %vm182, %v6047, 0.0
  %v6184 = vadd.f32 %v6182, %v6183
  %v6185 = vsel %vm182, %v6050, 0.0
  %v6186 = vadd.f32 %v6184, %v6185
  %v6187 = vsel %vm182, %v6053, 0.0
  %v6188 = vadd.f32 %v6186, %v6187
  %v6189 = vsel %vm182, %v6056, 0.0
  %v6190 = vadd.f32 %v6188, %v6189
  %v6191 = vsel %vm182, %v6059, 0.0
  %v6192 = vadd.f32 %v6190, %v6191
  %v6193 = vsel %vm182, %v6062, 0.0
  %v6194 = vadd.f32 %v6192, %v6193
  %v6195 = vsel %vm182, %v6065, 0.0
  %v6196 = vadd.f32 %v6194, %v6195
  %v6197 = vsel %vm182, %v6068, 0.0
  %v6198 = vadd.f32 %v6196, %v6197
  %v6199 = vrot.slane %v6198, 4
  %v6200 = vadd.f32 %v6198, %v6199
  %v6201 = vrot.slane %v6200, 2
  %v6202 = vadd.f32 %v6200, %v6201
  %v6203 = vrot.slane %v6202, 1
  %v6204 = vadd.f32 %v6202, %v6203
  %v6205 = vmul.f32 %v5879, %v5879
  %v6206 = vmul.f32 %v5882, %v5882
  %v6207 = vmul.f32 %v5885, %v5885
  %v6208 = vmul.f32 %v5888, %v5888
  %v6209 = vmul.f32 %v5891, %v5891
  %v6210 = vmul.f32 %v5894, %v5894
  %v6211 = vmul.f32 %v5897, %v5897
  %v6212 = vmul.f32 %v5900, %v5900
  %v6213 = vmul.f32 %v5903, %v5903
  %v6214 = vmul.f32 %v5906, %v5906
  %v6215 = vmul.f32 %v5909, %v5909
  %v6216 = vmul.f32 %v5912, %v5912
  %v6217 = vmul.f32 %v5915, %v5915
  %v6218 = vmul.f32 %v5918, %v5918
  %v6219 = vmul.f32 %v5921, %v5921
  %v6220 = vmul.f32 %v5924, %v5924
  %v6221 = vmul.f32 %v5927, %v5927
  %v6222 = vmul.f32 %v5930, %v5930
  %v6223 = vmul.f32 %v5933, %v5933
  %v6224 = vmul.f32 %v5936, %v5936
  %v6225 = vmul.f32 %v5939, %v5939
  %v6226 = vmul.f32 %v5942, %v5942
  %v6227 = vmul.f32 %v5945, %v5945
  %v6228 = vmul.f32 %v5948, %v5948
  %v6229 = vmul.f32 %v5951, %v5951
  %v6230 = vmul.f32 %v5954, %v5954
  %v6231 = vmul.f32 %v5957, %v5957
  %v6232 = vmul.f32 %v5960, %v5960
  %v6233 = vmul.f32 %v5963, %v5963
  %v6234 = vmul.f32 %v5966, %v5966
  %v6235 = vmul.f32 %v5969, %v5969
  %v6236 = vmul.f32 %v5972, %v5972
  %v6237 = vmul.f32 %v5975, %v5975
  %v6238 = vmul.f32 %v5978, %v5978
  %v6239 = vmul.f32 %v5981, %v5981
  %v6240 = vmul.f32 %v5984, %v5984
  %v6241 = vmul.f32 %v5987, %v5987
  %v6242 = vmul.f32 %v5990, %v5990
  %v6243 = vmul.f32 %v5993, %v5993
  %v6244 = vmul.f32 %v5996, %v5996
  %v6245 = vmul.f32 %v5999, %v5999
  %v6246 = vmul.f32 %v6002, %v6002
  %v6247 = vmul.f32 %v6005, %v6005
  %v6248 = vmul.f32 %v6008, %v6008
  %v6249 = vmul.f32 %v6011, %v6011
  %v6250 = vmul.f32 %v6014, %v6014
  %v6251 = vmul.f32 %v6017, %v6017
  %v6252 = vmul.f32 %v6020, %v6020
  %v6253 = vmul.f32 %v6023, %v6023
  %v6254 = vmul.f32 %v6026, %v6026
  %v6255 = vmul.f32 %v6029, %v6029
  %v6256 = vmul.f32 %v6032, %v6032
  %v6257 = vmul.f32 %v6035, %v6035
  %v6258 = vmul.f32 %v6038, %v6038
  %v6259 = vmul.f32 %v6041, %v6041
  %v6260 = vmul.f32 %v6044, %v6044
  %v6261 = vmul.f32 %v6047, %v6047
  %v6262 = vmul.f32 %v6050, %v6050
  %v6263 = vmul.f32 %v6053, %v6053
  %v6264 = vmul.f32 %v6056, %v6056
  %v6265 = vmul.f32 %v6059, %v6059
  %v6266 = vmul.f32 %v6062, %v6062
  %v6267 = vmul.f32 %v6065, %v6065
  %v6268 = vmul.f32 %v6068, %v6068
  %v6269 = vsel %vm182, %v6205, 0.0
  %v6270 = vsel %vm182, %v6206, 0.0
  %v6271 = vadd.f32 %v6269, %v6270
  %v6272 = vsel %vm182, %v6207, 0.0
  %v6273 = vadd.f32 %v6271, %v6272
  %v6274 = vsel %vm182, %v6208, 0.0
  %v6275 = vadd.f32 %v6273, %v6274
  %v6276 = vsel %vm182, %v6209, 0.0
  %v6277 = vadd.f32 %v6275, %v6276
  %v6278 = vsel %vm182, %v6210, 0.0
  %v6279 = vadd.f32 %v6277, %v6278
  %v6280 = vsel %vm182, %v6211, 0.0
  %v6281 = vadd.f32 %v6279, %v6280
  %v6282 = vsel %vm182, %v6212, 0.0
  %v6283 = vadd.f32 %v6281, %v6282
  %v6284 = vsel %vm182, %v6213, 0.0
  %v6285 = vadd.f32 %v6283, %v6284
  %v6286 = vsel %vm182, %v6214, 0.0
  %v6287 = vadd.f32 %v6285, %v6286
  %v6288 = vsel %vm182, %v6215, 0.0
  %v6289 = vadd.f32 %v6287, %v6288
  %v6290 = vsel %vm182, %v6216, 0.0
  %v6291 = vadd.f32 %v6289, %v6290
  %v6292 = vsel %vm182, %v6217, 0.0
  %v6293 = vadd.f32 %v6291, %v6292
  %v6294 = vsel %vm182, %v6218, 0.0
  %v6295 = vadd.f32 %v6293, %v6294
  %v6296 = vsel %vm182, %v6219, 0.0
  %v6297 = vadd.f32 %v6295, %v6296
  %v6298 = vsel %vm182, %v6220, 0.0
  %v6299 = vadd.f32 %v6297, %v6298
  %v6300 = vsel %vm182, %v6221, 0.0
  %v6301 = vadd.f32 %v6299, %v6300
  %v6302 = vsel %vm182, %v6222, 0.0
  %v6303 = vadd.f32 %v6301, %v6302
  %v6304 = vsel %vm182, %v6223, 0.0
  %v6305 = vadd.f32 %v6303, %v6304
  %v6306 = vsel %vm182, %v6224, 0.0
  %v6307 = vadd.f32 %v6305, %v6306
  %v6308 = vsel %vm182, %v6225, 0.0
  %v6309 = vadd.f32 %v6307, %v6308
  %v6310 = vsel %vm182, %v6226, 0.0
  %v6311 = vadd.f32 %v6309, %v6310
  %v6312 = vsel %vm182, %v6227, 0.0
  %v6313 = vadd.f32 %v6311, %v6312
  %v6314 = vsel %vm182, %v6228, 0.0
  %v6315 = vadd.f32 %v6313, %v6314
  %v6316 = vsel %vm182, %v6229, 0.0
  %v6317 = vadd.f32 %v6315, %v6316
  %v6318 = vsel %vm182, %v6230, 0.0
  %v6319 = vadd.f32 %v6317, %v6318
  %v6320 = vsel %vm182, %v6231, 0.0
  %v6321 = vadd.f32 %v6319, %v6320
  %v6322 = vsel %vm182, %v6232, 0.0
  %v6323 = vadd.f32 %v6321, %v6322
  %v6324 = vsel %vm182, %v6233, 0.0
  %v6325 = vadd.f32 %v6323, %v6324
  %v6326 = vsel %vm182, %v6234, 0.0
  %v6327 = vadd.f32 %v6325, %v6326
  %v6328 = vsel %vm182, %v6235, 0.0
  %v6329 = vadd.f32 %v6327, %v6328
  %v6330 = vsel %vm182, %v6236, 0.0
  %v6331 = vadd.f32 %v6329, %v6330
  %v6332 = vsel %vm182, %v6237, 0.0
  %v6333 = vadd.f32 %v6331, %v6332
  %v6334 = vsel %vm182, %v6238, 0.0
  %v6335 = vadd.f32 %v6333, %v6334
  %v6336 = vsel %vm182, %v6239, 0.0
  %v6337 = vadd.f32 %v6335, %v6336
  %v6338 = vsel %vm182, %v6240, 0.0
  %v6339 = vadd.f32 %v6337, %v6338
  %v6340 = vsel %vm182, %v6241, 0.0
  %v6341 = vadd.f32 %v6339, %v6340
  %v6342 = vsel %vm182, %v6242, 0.0
  %v6343 = vadd.f32 %v6341, %v6342
  %v6344 = vsel %vm182, %v6243, 0.0
  %v6345 = vadd.f32 %v6343, %v6344
  %v6346 = vsel %vm182, %v6244, 0.0
  %v6347 = vadd.f32 %v6345, %v6346
  %v6348 = vsel %vm182, %v6245, 0.0
  %v6349 = vadd.f32 %v6347, %v6348
  %v6350 = vsel %vm182, %v6246, 0.0
  %v6351 = vadd.f32 %v6349, %v6350
  %v6352 = vsel %vm182, %v6247, 0.0
  %v6353 = vadd.f32 %v6351, %v6352
  %v6354 = vsel %vm182, %v6248, 0.0
  %v6355 = vadd.f32 %v6353, %v6354
  %v6356 = vsel %vm182, %v6249, 0.0
  %v6357 = vadd.f32 %v6355, %v6356
  %v6358 = vsel %vm182, %v6250, 0.0
  %v6359 = vadd.f32 %v6357, %v6358
  %v6360 = vsel %vm182, %v6251, 0.0
  %v6361 = vadd.f32 %v6359, %v6360
  %v6362 = vsel %vm182, %v6252, 0.0
  %v6363 = vadd.f32 %v6361, %v6362
  %v6364 = vsel %vm182, %v6253, 0.0
  %v6365 = vadd.f32 %v6363, %v6364
  %v6366 = vsel %vm182, %v6254, 0.0
  %v6367 = vadd.f32 %v6365, %v6366
  %v6368 = vsel %vm182, %v6255, 0.0
  %v6369 = vadd.f32 %v6367, %v6368
  %v6370 = vsel %vm182, %v6256, 0.0
  %v6371 = vadd.f32 %v6369, %v6370
  %v6372 = vsel %vm182, %v6257, 0.0
  %v6373 = vadd.f32 %v6371, %v6372
  %v6374 = vsel %vm182, %v6258, 0.0
  %v6375 = vadd.f32 %v6373, %v6374
  %v6376 = vsel %vm182, %v6259, 0.0
  %v6377 = vadd.f32 %v6375, %v6376
  %v6378 = vsel %vm182, %v6260, 0.0
  %v6379 = vadd.f32 %v6377, %v6378
  %v6380 = vsel %vm182, %v6261, 0.0
  %v6381 = vadd.f32 %v6379, %v6380
  %v6382 = vsel %vm182, %v6262, 0.0
  %v6383 = vadd.f32 %v6381, %v6382
  %v6384 = vsel %vm182, %v6263, 0.0
  %v6385 = vadd.f32 %v6383, %v6384
  %v6386 = vsel %vm182, %v6264, 0.0
  %v6387 = vadd.f32 %v6385, %v6386
  %v6388 = vsel %vm182, %v6265, 0.0
  %v6389 = vadd.f32 %v6387, %v6388
  %v6390 = vsel %vm182, %v6266, 0.0
  %v6391 = vadd.f32 %v6389, %v6390
  %v6392 = vsel %vm182, %v6267, 0.0
  %v6393 = vadd.f32 %v6391, %v6392
  %v6394 = vsel %vm182, %v6268, 0.0
  %v6395 = vadd.f32 %v6393, %v6394
  %v6396 = vrot.slane %v6395, 4
  %v6397 = vadd.f32 %v6395, %v6396
  %v6398 = vrot.slane %v6397, 2
  %v6399 = vadd.f32 %v6397, %v6398
  %v6400 = vrot.slane %v6399, 1
  %v6401 = vadd.f32 %v6399, %v6400
  %v6402 = vmul.f32 %v6204, 0.001953125
  %v6403 = vmul.f32 %v6401, 0.001953125
  %v6404 = vmul.f32 %v6402, %v6402
  %v6405 = vsub.f32 %v6403, %v6404
  %v6406 = vadd.f32 %v6405, 1e-05
  %v6407 = vrsqrt.pop %v6406
  %v6408 = vmul.f32 %v6407, %v6406
  %v6409 = vmul.f32 %v6408, %v6407
  %v6410 = vmul.f32 0.5, %v6409
  %v6411 = vsub.f32 1.5, %v6410
  %v6412 = vmul.f32 %v6407, %v6411
  %vm6413 = vweird.f32 %v6406
  %vm6414 = vweird.f32 %v6407
  %vm6415 = vmor %vm6413, %vm6414
  %v6416 = vsel %vm6415, %v6407, %v6412
  %v6417 = vmul.f32 %v6070, %v6416
  %v6418 = vmul.f32 %v6402, %v6417
  %v6419 = vsub.f32 %v6071, %v6418
  %v6421 = vperm.slane %v6417, 0
  %v6423 = vmul.f32 %v5879, %v6421
  %v6424 = vmul.f32 %v5882, %v6421
  %v6425 = vmul.f32 %v5885, %v6421
  %v6426 = vmul.f32 %v5888, %v6421
  %v6427 = vmul.f32 %v5891, %v6421
  %v6428 = vmul.f32 %v5894, %v6421
  %v6429 = vmul.f32 %v5897, %v6421
  %v6430 = vmul.f32 %v5900, %v6421
  %v6431 = vmul.f32 %v5903, %v6421
  %v6432 = vmul.f32 %v5906, %v6421
  %v6433 = vmul.f32 %v5909, %v6421
  %v6434 = vmul.f32 %v5912, %v6421
  %v6435 = vmul.f32 %v5915, %v6421
  %v6436 = vmul.f32 %v5918, %v6421
  %v6437 = vmul.f32 %v5921, %v6421
  %v6438 = vmul.f32 %v5924, %v6421
  %v6439 = vmul.f32 %v5927, %v6421
  %v6440 = vmul.f32 %v5930, %v6421
  %v6441 = vmul.f32 %v5933, %v6421
  %v6442 = vmul.f32 %v5936, %v6421
  %v6443 = vmul.f32 %v5939, %v6421
  %v6444 = vmul.f32 %v5942, %v6421
  %v6445 = vmul.f32 %v5945, %v6421
  %v6446 = vmul.f32 %v5948, %v6421
  %v6447 = vmul.f32 %v5951, %v6421
  %v6448 = vmul.f32 %v5954, %v6421
  %v6449 = vmul.f32 %v5957, %v6421
  %v6450 = vmul.f32 %v5960, %v6421
  %v6451 = vmul.f32 %v5963, %v6421
  %v6452 = vmul.f32 %v5966, %v6421
  %v6453 = vmul.f32 %v5969, %v6421
  %v6454 = vmul.f32 %v5972, %v6421
  %v6455 = vmul.f32 %v5975, %v6421
  %v6456 = vmul.f32 %v5978, %v6421
  %v6457 = vmul.f32 %v5981, %v6421
  %v6458 = vmul.f32 %v5984, %v6421
  %v6459 = vmul.f32 %v5987, %v6421
  %v6460 = vmul.f32 %v5990, %v6421
  %v6461 = vmul.f32 %v5993, %v6421
  %v6462 = vmul.f32 %v5996, %v6421
  %v6463 = vmul.f32 %v5999, %v6421
  %v6464 = vmul.f32 %v6002, %v6421
  %v6465 = vmul.f32 %v6005, %v6421
  %v6466 = vmul.f32 %v6008, %v6421
  %v6467 = vmul.f32 %v6011, %v6421
  %v6468 = vmul.f32 %v6014, %v6421
  %v6469 = vmul.f32 %v6017, %v6421
  %v6470 = vmul.f32 %v6020, %v6421
  %v6471 = vmul.f32 %v6023, %v6421
  %v6472 = vmul.f32 %v6026, %v6421
  %v6473 = vmul.f32 %v6029, %v6421
  %v6474 = vmul.f32 %v6032, %v6421
  %v6475 = vmul.f32 %v6035, %v6421
  %v6476 = vmul.f32 %v6038, %v6421
  %v6477 = vmul.f32 %v6041, %v6421
  %v6478 = vmul.f32 %v6044, %v6421
  %v6479 = vmul.f32 %v6047, %v6421
  %v6480 = vmul.f32 %v6050, %v6421
  %v6481 = vmul.f32 %v6053, %v6421
  %v6482 = vmul.f32 %v6056, %v6421
  %v6483 = vmul.f32 %v6059, %v6421
  %v6484 = vmul.f32 %v6062, %v6421
  %v6485 = vmul.f32 %v6065, %v6421
  %v6486 = vmul.f32 %v6068, %v6421
  %v6488 = vperm.slane %v6419, 0
  %v6490 = vadd.f32 %v6423, %v6488
  %v6491 = vadd.f32 %v6424, %v6488
  %v6492 = vadd.f32 %v6425, %v6488
  %v6493 = vadd.f32 %v6426, %v6488
  %v6494 = vadd.f32 %v6427, %v6488
  %v6495 = vadd.f32 %v6428, %v6488
  %v6496 = vadd.f32 %v6429, %v6488
  %v6497 = vadd.f32 %v6430, %v6488
  %v6498 = vadd.f32 %v6431, %v6488
  %v6499 = vadd.f32 %v6432, %v6488
  %v6500 = vadd.f32 %v6433, %v6488
  %v6501 = vadd.f32 %v6434, %v6488
  %v6502 = vadd.f32 %v6435, %v6488
  %v6503 = vadd.f32 %v6436, %v6488
  %v6504 = vadd.f32 %v6437, %v6488
  %v6505 = vadd.f32 %v6438, %v6488
  %v6506 = vadd.f32 %v6439, %v6488
  %v6507 = vadd.f32 %v6440, %v6488
  %v6508 = vadd.f32 %v6441, %v6488
  %v6509 = vadd.f32 %v6442, %v6488
  %v6510 = vadd.f32 %v6443, %v6488
  %v6511 = vadd.f32 %v6444, %v6488
  %v6512 = vadd.f32 %v6445, %v6488
  %v6513 = vadd.f32 %v6446, %v6488
  %v6514 = vadd.f32 %v6447, %v6488
  %v6515 = vadd.f32 %v6448, %v6488
  %v6516 = vadd.f32 %v6449, %v6488
  %v6517 = vadd.f32 %v6450, %v6488
  %v6518 = vadd.f32 %v6451, %v6488
  %v6519 = vadd.f32 %v6452, %v6488
  %v6520 = vadd.f32 %v6453, %v6488
  %v6521 = vadd.f32 %v6454, %v6488
  %v6522 = vadd.f32 %v6455, %v6488
  %v6523 = vadd.f32 %v6456, %v6488
  %v6524 = vadd.f32 %v6457, %v6488
  %v6525 = vadd.f32 %v6458, %v6488
  %v6526 = vadd.f32 %v6459, %v6488
  %v6527 = vadd.f32 %v6460, %v6488
  %v6528 = vadd.f32 %v6461, %v6488
  %v6529 = vadd.f32 %v6462, %v6488
  %v6530 = vadd.f32 %v6463, %v6488
  %v6531 = vadd.f32 %v6464, %v6488
  %v6532 = vadd.f32 %v6465, %v6488
  %v6533 = vadd.f32 %v6466, %v6488
  %v6534 = vadd.f32 %v6467, %v6488
  %v6535 = vadd.f32 %v6468, %v6488
  %v6536 = vadd.f32 %v6469, %v6488
  %v6537 = vadd.f32 %v6470, %v6488
  %v6538 = vadd.f32 %v6471, %v6488
  %v6539 = vadd.f32 %v6472, %v6488
  %v6540 = vadd.f32 %v6473, %v6488
  %v6541 = vadd.f32 %v6474, %v6488
  %v6542 = vadd.f32 %v6475, %v6488
  %v6543 = vadd.f32 %v6476, %v6488
  %v6544 = vadd.f32 %v6477, %v6488
  %v6545 = vadd.f32 %v6478, %v6488
  %v6546 = vadd.f32 %v6479, %v6488
  %v6547 = vadd.f32 %v6480, %v6488
  %v6548 = vadd.f32 %v6481, %v6488
  %v6549 = vadd.f32 %v6482, %v6488
  %v6550 = vadd.f32 %v6483, %v6488
  %v6551 = vadd.f32 %v6484, %v6488
  %v6552 = vadd.f32 %v6485, %v6488
  %v6553 = vadd.f32 %v6486, %v6488
  %v6554 = vmax.f32 %v6490, 0.0
  %v6555 = vmax.f32 %v6491, 0.0
  %v6556 = vmax.f32 %v6492, 0.0
  %v6557 = vmax.f32 %v6493, 0.0
  %v6558 = vmax.f32 %v6494, 0.0
  %v6559 = vmax.f32 %v6495, 0.0
  %v6560 = vmax.f32 %v6496, 0.0
  %v6561 = vmax.f32 %v6497, 0.0
  %v6562 = vmax.f32 %v6498, 0.0
  %v6563 = vmax.f32 %v6499, 0.0
  %v6564 = vmax.f32 %v6500, 0.0
  %v6565 = vmax.f32 %v6501, 0.0
  %v6566 = vmax.f32 %v6502, 0.0
  %v6567 = vmax.f32 %v6503, 0.0
  %v6568 = vmax.f32 %v6504, 0.0
  %v6569 = vmax.f32 %v6505, 0.0
  %v6570 = vmax.f32 %v6506, 0.0
  %v6571 = vmax.f32 %v6507, 0.0
  %v6572 = vmax.f32 %v6508, 0.0
  %v6573 = vmax.f32 %v6509, 0.0
  %v6574 = vmax.f32 %v6510, 0.0
  %v6575 = vmax.f32 %v6511, 0.0
  %v6576 = vmax.f32 %v6512, 0.0
  %v6577 = vmax.f32 %v6513, 0.0
  %v6578 = vmax.f32 %v6514, 0.0
  %v6579 = vmax.f32 %v6515, 0.0
  %v6580 = vmax.f32 %v6516, 0.0
  %v6581 = vmax.f32 %v6517, 0.0
  %v6582 = vmax.f32 %v6518, 0.0
  %v6583 = vmax.f32 %v6519, 0.0
  %v6584 = vmax.f32 %v6520, 0.0
  %v6585 = vmax.f32 %v6521, 0.0
  %v6586 = vmax.f32 %v6522, 0.0
  %v6587 = vmax.f32 %v6523, 0.0
  %v6588 = vmax.f32 %v6524, 0.0
  %v6589 = vmax.f32 %v6525, 0.0
  %v6590 = vmax.f32 %v6526, 0.0
  %v6591 = vmax.f32 %v6527, 0.0
  %v6592 = vmax.f32 %v6528, 0.0
  %v6593 = vmax.f32 %v6529, 0.0
  %v6594 = vmax.f32 %v6530, 0.0
  %v6595 = vmax.f32 %v6531, 0.0
  %v6596 = vmax.f32 %v6532, 0.0
  %v6597 = vmax.f32 %v6533, 0.0
  %v6598 = vmax.f32 %v6534, 0.0
  %v6599 = vmax.f32 %v6535, 0.0
  %v6600 = vmax.f32 %v6536, 0.0
  %v6601 = vmax.f32 %v6537, 0.0
  %v6602 = vmax.f32 %v6538, 0.0
  %v6603 = vmax.f32 %v6539, 0.0
  %v6604 = vmax.f32 %v6540, 0.0
  %v6605 = vmax.f32 %v6541, 0.0
  %v6606 = vmax.f32 %v6542, 0.0
  %v6607 = vmax.f32 %v6543, 0.0
  %v6608 = vmax.f32 %v6544, 0.0
  %v6609 = vmax.f32 %v6545, 0.0
  %v6610 = vmax.f32 %v6546, 0.0
  %v6611 = vmax.f32 %v6547, 0.0
  %v6612 = vmax.f32 %v6548, 0.0
  %v6613 = vmax.f32 %v6549, 0.0
  %v6614 = vmax.f32 %v6550, 0.0
  %v6615 = vmax.f32 %v6551, 0.0
  %v6616 = vmax.f32 %v6552, 0.0
  %v6617 = vmax.f32 %v6553, 0.0
  %6618 = vst.msk [vmem:[%s181 + $0x1] sm:$0xff] %vm182, %v6554
  %6619 = vst.msk [vmem:[%s181 + $0x9] sm:$0xff] %vm182, %v6555
  %6620 = vst.msk [vmem:[%s181 + $0x19] sm:$0xff] %vm182, %v6556
  %6621 = vst.msk [vmem:[%s181 + $0x21] sm:$0xff] %vm182, %v6557
  %6622 = vst.msk [vmem:[%s181 + $0x31] sm:$0xff] %vm182, %v6558
  %6623 = vst.msk [vmem:[%s181 + $0x39] sm:$0xff] %vm182, %v6559
  %6624 = vst.msk [vmem:[%s181 + $0x49] sm:$0xff] %vm182, %v6560
  %6625 = vst.msk [vmem:[%s181 + $0x51] sm:$0xff] %vm182, %v6561
  %6626 = vst.msk [vmem:[%s181 + $0x61] sm:$0xff] %vm182, %v6562
  %6627 = vst.msk [vmem:[%s181 + $0x69] sm:$0xff] %vm182, %v6563
  %6628 = vst.msk [vmem:[%s181 + $0x79] sm:$0xff] %vm182, %v6564
  %6629 = vst.msk [vmem:[%s181 + $0x81] sm:$0xff] %vm182, %v6565
  %6630 = vst.msk [vmem:[%s181 + $0x91] sm:$0xff] %vm182, %v6566
  %6631 = vst.msk [vmem:[%s181 + $0x99] sm:$0xff] %vm182, %v6567
  %6632 = vst.msk [vmem:[%s181 + $0xa9] sm:$0xff] %vm182, %v6568
  %6633 = vst.msk [vmem:[%s181 + $0xb1] sm:$0xff] %vm182, %v6569
  %6634 = vst.msk [vmem:[%s181 + $0xc1] sm:$0xff] %vm182, %v6570
  %6635 = vst.msk [vmem:[%s181 + $0xc9] sm:$0xff] %vm182, %v6571
  %6636 = vst.msk [vmem:[%s181 + $0xd9] sm:$0xff] %vm182, %v6572
  %6637 = vst.msk [vmem:[%s181 + $0xe1] sm:$0xff] %vm182, %v6573
  %6638 = vst.msk [vmem:[%s181 + $0xf1] sm:$0xff] %vm182, %v6574
  %6639 = vst.msk [vmem:[%s181 + $0xf9] sm:$0xff] %vm182, %v6575
  %6640 = vst.msk [vmem:[%s181 + $0x109] sm:$0xff] %vm182, %v6576
  %6641 = vst.msk [vmem:[%s181 + $0x111] sm:$0xff] %vm182, %v6577
  %6642 = vst.msk [vmem:[%s181 + $0x121] sm:$0xff] %vm182, %v6578
  %6643 = vst.msk [vmem:[%s181 + $0x129] sm:$0xff] %vm182, %v6579
  %6644 = vst.msk [vmem:[%s181 + $0x139] sm:$0xff] %vm182, %v6580
  %6645 = vst.msk [vmem:[%s181 + $0x141] sm:$0xff] %vm182, %v6581
  %6646 = vst.msk [vmem:[%s181 + $0x151] sm:$0xff] %vm182, %v6582
  %6647 = vst.msk [vmem:[%s181 + $0x159] sm:$0xff] %vm182, %v6583
  %6648 = vst.msk [vmem:[%s181 + $0x169] sm:$0xff] %vm182, %v6584
  %6649 = vst.msk [vmem:[%s181 + $0x171] sm:$0xff] %vm182, %v6585
  %6650 = vst.msk [vmem:[%s181 + $0x1b1] sm:$0xff] %vm182, %v6586
  %6651 = vst.msk [vmem:[%s181 + $0x1b9] sm:$0xff] %vm182, %v6587
  %6652 = vst.msk [vmem:[%s181 + $0x1c9] sm:$0xff] %vm182, %v6588
  %6653 = vst.msk [vmem:[%s181 + $0x1d1] sm:$0xff] %vm182, %v6589
  %6654 = vst.msk [vmem:[%s181 + $0x1e1] sm:$0xff] %vm182, %v6590
  %6655 = vst.msk [vmem:[%s181 + $0x1e9] sm:$0xff] %vm182, %v6591
  %6656 = vst.msk [vmem:[%s181 + $0x1f9] sm:$0xff] %vm182, %v6592
  %6657 = vst.msk [vmem:[%s181 + $0x201] sm:$0xff] %vm182, %v6593
  %6658 = vst.msk [vmem:[%s181 + $0x211] sm:$0xff] %vm182, %v6594
  %6659 = vst.msk [vmem:[%s181 + $0x219] sm:$0xff] %vm182, %v6595
  %6660 = vst.msk [vmem:[%s181 + $0x229] sm:$0xff] %vm182, %v6596
  %6661 = vst.msk [vmem:[%s181 + $0x231] sm:$0xff] %vm182, %v6597
  %6662 = vst.msk [vmem:[%s181 + $0x241] sm:$0xff] %vm182, %v6598
  %6663 = vst.msk [vmem:[%s181 + $0x249] sm:$0xff] %vm182, %v6599
  %6664 = vst.msk [vmem:[%s181 + $0x259] sm:$0xff] %vm182, %v6600
  %6665 = vst.msk [vmem:[%s181 + $0x261] sm:$0xff] %vm182, %v6601
  %6666 = vst.msk [vmem:[%s181 + $0x271] sm:$0xff] %vm182, %v6602
  %6667 = vst.msk [vmem:[%s181 + $0x279] sm:$0xff] %vm182, %v6603
  %6668 = vst.msk [vmem:[%s181 + $0x289] sm:$0xff] %vm182, %v6604
  %6669 = vst.msk [vmem:[%s181 + $0x291] sm:$0xff] %vm182, %v6605
  %6670 = vst.msk [vmem:[%s181 + $0x2a1] sm:$0xff] %vm182, %v6606
  %6671 = vst.msk [vmem:[%s181 + $0x2a9] sm:$0xff] %vm182, %v6607
  %6672 = vst.msk [vmem:[%s181 + $0x2b9] sm:$0xff] %vm182, %v6608
  %6673 = vst.msk [vmem:[%s181 + $0x2c1] sm:$0xff] %vm182, %v6609
  %6674 = vst.msk [vmem:[%s181 + $0x2d1] sm:$0xff] %vm182, %v6610
  %6675 = vst.msk [vmem:[%s181 + $0x2d9] sm:$0xff] %vm182, %v6611
  %6676 = vst.msk [vmem:[%s181 + $0x2e9] sm:$0xff] %vm182, %v6612
  %6677 = vst.msk [vmem:[%s181 + $0x2f1] sm:$0xff] %vm182, %v6613
  %6678 = vst.msk [vmem:[%s181 + $0x301] sm:$0xff] %vm182, %v6614
  %6679 = vst.msk [vmem:[%s181 + $0x309] sm:$0xff] %vm182, %v6615
  %6680 = vst.msk [vmem:[%s181 + $0x319] sm:$0xff] %vm182, %v6616
  %6681 = vst.msk [vmem:[%s181 + $0x321] sm:$0xff] %vm182, %v6617
  %v6682 = vld [vmem:[#allocation3] sm:$0xff]
  %v6683 = vld [vmem:[#allocation3 + $0x8] sm:$0xff]
  %v6684 = vld [vmem:[#allocation3 + $0x18] sm:$0xff]
  %v6685 = vld [vmem:[#allocation3 + $0x20] sm:$0xff]
  %v6686 = vld [vmem:[#allocation3 + $0x30] sm:$0xff]
  %v6687 = vld [vmem:[#allocation3 + $0x38] sm:$0xff]
  %v6688 = vld [vmem:[#allocation3 + $0x48] sm:$0xff]
  %v6689 = vld [vmem:[#allocation3 + $0x50] sm:$0xff]
  %v6690 = vld [vmem:[#allocation3 + $0x60] sm:$0xff]
  %v6691 = vld [vmem:[#allocation3 + $0x68] sm:$0xff]
  %v6692 = vld [vmem:[#allocation3 + $0x78] sm:$0xff]
  %v6693 = vld [vmem:[#allocation3 + $0x80] sm:$0xff]
  %v6694 = vld [vmem:[#allocation3 + $0x90] sm:$0xff]
  %v6695 = vld [vmem:[#allocation3 + $0x98] sm:$0xff]
  %v6696 = vld [vmem:[#allocation3 + $0xa8] sm:$0xff]
  %v6697 = vld [vmem:[#allocation3 + $0xb0] sm:$0xff]
  %v6698 = vld [vmem:[#allocation3 + $0xc0] sm:$0xff]
  %v6699 = vld [vmem:[#allocation3 + $0xc8] sm:$0xff]
  %v6700 = vld [vmem:[#allocation3 + $0xd8] sm:$0xff]
  %v6701 = vld [vmem:[#allocation3 + $0xe0] sm:$0xff]
  %v6702 = vld [vmem:[#allocation3 + $0xf0] sm:$0xff]
  %v6703 = vld [vmem:[#allocation3 + $0xf8] sm:$0xff]
  %v6704 = vld [vmem:[#allocation3 + $0x108] sm:$0xff]
  %v6705 = vld [vmem:[#allocation3 + $0x110] sm:$0xff]
  %v6706 = vld [vmem:[#allocation3 + $0x120] sm:$0xff]
  %v6707 = vld [vmem:[#allocation3 + $0x128] sm:$0xff]
  %v6708 = vld [vmem:[#allocation3 + $0x138] sm:$0xff]
  %v6709 = vld [vmem:[#allocation3 + $0x140] sm:$0xff]
  %v6710 = vld [vmem:[#allocation3 + $0x150] sm:$0xff]
  %v6711 = vld [vmem:[#allocation3 + $0x158] sm:$0xff]
  %v6712 = vld [vmem:[#allocation3 + $0x168] sm:$0xff]
  %v6713 = vld [vmem:[#allocation3 + $0x170] sm:$0xff]
  %v6714 = vld [vmem:[#allocation3 + $0x1b0] sm:$0xff]
  %v6715 = vld [vmem:[#allocation3 + $0x1b8] sm:$0xff]
  %v6716 = vld [vmem:[#allocation3 + $0x1c8] sm:$0xff]
  %v6717 = vld [vmem:[#allocation3 + $0x1d0] sm:$0xff]
  %v6718 = vld [vmem:[#allocation3 + $0x1e0] sm:$0xff]
  %v6719 = vld [vmem:[#allocation3 + $0x1e8] sm:$0xff]
  %v6720 = vld [vmem:[#allocation3 + $0x1f8] sm:$0xff]
  %v6721 = vld [vmem:[#allocation3 + $0x200] sm:$0xff]
  %v6722 = vld [vmem:[#allocation3 + $0x210] sm:$0xff]
  %v6723 = vld [vmem:[#allocation3 + $0x218] sm:$0xff]
  %v6724 = vld [vmem:[#allocation3 + $0x228] sm:$0xff]
  %v6725 = vld [vmem:[#allocation3 + $0x230] sm:$0xff]
  %v6726 = vld [vmem:[#allocation3 + $0x240] sm:$0xff]
  %v6727 = vld [vmem:[#allocation3 + $0x248] sm:$0xff]
  %v6728 = vld [vmem:[#allocation3 + $0x258] sm:$0xff]
  %v6729 = vld [vmem:[#allocation3 + $0x260] sm:$0xff]
  %v6730 = vld [vmem:[#allocation3 + $0x270] sm:$0xff]
  %v6731 = vld [vmem:[#allocation3 + $0x278] sm:$0xff]
  %v6732 = vld [vmem:[#allocation3 + $0x288] sm:$0xff]
  %v6733 = vld [vmem:[#allocation3 + $0x290] sm:$0xff]
  %v6734 = vld [vmem:[#allocation3 + $0x2a0] sm:$0xff]
  %v6735 = vld [vmem:[#allocation3 + $0x2a8] sm:$0xff]
  %v6736 = vld [vmem:[#allocation3 + $0x2b8] sm:$0xff]
  %v6737 = vld [vmem:[#allocation3 + $0x2c0] sm:$0xff]
  %v6738 = vld [vmem:[#allocation3 + $0x2d0] sm:$0xff]
  %v6739 = vld [vmem:[#allocation3 + $0x2d8] sm:$0xff]
  %v6740 = vld [vmem:[#allocation3 + $0x2e8] sm:$0xff]
  %v6741 = vld [vmem:[#allocation3 + $0x2f0] sm:$0xff]
  %v6742 = vld [vmem:[#allocation3 + $0x300] sm:$0xff]
  %v6743 = vld [vmem:[#allocation3 + $0x308] sm:$0xff]
  %v6744 = vld [vmem:[#allocation3 + $0x318] sm:$0xff]
  %v6745 = vld [vmem:[#allocation3 + $0x320] sm:$0xff]
  %6746 = vst.msk [vmem:[#allocation4] sm:$0xff] %vm182, %v6682
  %6747 = vst.msk [vmem:[#allocation4 + $0x8] sm:$0xff] %vm182, %v6683
  %6748 = vst.msk [vmem:[#allocation4 + $0x10] sm:$0xff] %vm182, %v6684
  %6749 = vst.msk [vmem:[#allocation4 + $0x18] sm:$0xff] %vm182, %v6685
  %6750 = vst.msk [vmem:[#allocation4 + $0x20] sm:$0xff] %vm182, %v6686
  %6751 = vst.msk [vmem:[#allocation4 + $0x28] sm:$0xff] %vm182, %v6687
  %6752 = vst.msk [vmem:[#allocation4 + $0x30] sm:$0xff] %vm182, %v6688
  %6753 = vst.msk [vmem:[#allocation4 + $0x38] sm:$0xff] %vm182, %v6689
  %6754 = vst.msk [vmem:[#allocation4 + $0x40] sm:$0xff] %vm182, %v6690
  %6755 = vst.msk [vmem:[#allocation4 + $0x48] sm:$0xff] %vm182, %v6691
  %6756 = vst.msk [vmem:[#allocation4 + $0x50] sm:$0xff] %vm182, %v6692
  %6757 = vst.msk [vmem:[#allocation4 + $0x58] sm:$0xff] %vm182, %v6693
  %6758 = vst.msk [vmem:[#allocation4 + $0x60] sm:$0xff] %vm182, %v6694
  %6759 = vst.msk [vmem:[#allocation4 + $0x68] sm:$0xff] %vm182, %v6695
  %6760 = vst.msk [vmem:[#allocation4 + $0x70] sm:$0xff] %vm182, %v6696
  %6761 = vst.msk [vmem:[#allocation4 + $0x78] sm:$0xff] %vm182, %v6697
  %6762 = vst.msk [vmem:[#allocation4 + $0x80] sm:$0xff] %vm182, %v6698
  %6763 = vst.msk [vmem:[#allocation4 + $0x88] sm:$0xff] %vm182, %v6699
  %6764 = vst.msk [vmem:[#allocation4 + $0x90] sm:$0xff] %vm182, %v6700
  %6765 = vst.msk [vmem:[#allocation4 + $0x98] sm:$0xff] %vm182, %v6701
  %6766 = vst.msk [vmem:[#allocation4 + $0xa0] sm:$0xff] %vm182, %v6702
  %6767 = vst.msk [vmem:[#allocation4 + $0xa8] sm:$0xff] %vm182, %v6703
  %6768 = vst.msk [vmem:[#allocation4 + $0xb0] sm:$0xff] %vm182, %v6704
  %6769 = vst.msk [vmem:[#allocation4 + $0xb8] sm:$0xff] %vm182, %v6705
  %6770 = vst.msk [vmem:[#allocation4 + $0xc0] sm:$0xff] %vm182, %v6706
  %6771 = vst.msk [vmem:[#allocation4 + $0xc8] sm:$0xff] %vm182, %v6707
  %6772 = vst.msk [vmem:[#allocation4 + $0xd0] sm:$0xff] %vm182, %v6708
  %6773 = vst.msk [vmem:[#allocation4 + $0xd8] sm:$0xff] %vm182, %v6709
  %6774 = vst.msk [vmem:[#allocation4 + $0xe0] sm:$0xff] %vm182, %v6710
  %6775 = vst.msk [vmem:[#allocation4 + $0xe8] sm:$0xff] %vm182, %v6711
  %6776 = vst.msk [vmem:[#allocation4 + $0xf0] sm:$0xff] %vm182, %v6712
  %6777 = vst.msk [vmem:[#allocation4 + $0xf8] sm:$0xff] %vm182, %v6713
  %6778 = vst.msk [vmem:[#allocation4 + $0x100] sm:$0xff] %vm182, %v6714
  %6779 = vst.msk [vmem:[#allocation4 + $0x108] sm:$0xff] %vm182, %v6715
  %6780 = vst.msk [vmem:[#allocation4 + $0x110] sm:$0xff] %vm182, %v6716
  %6781 = vst.msk [vmem:[#allocation4 + $0x118] sm:$0xff] %vm182, %v6717
  %6782 = vst.msk [vmem:[#allocation4 + $0x120] sm:$0xff] %vm182, %v6718
  %6783 = vst.msk [vmem:[#allocation4 + $0x128] sm:$0xff] %vm182, %v6719
  %6784 = vst.msk [vmem:[#allocation4 + $0x130] sm:$0xff] %vm182, %v6720
  %6785 = vst.msk [vmem:[#allocation4 + $0x138] sm:$0xff] %vm182, %v6721
  %6786 = vst.msk [vmem:[#allocation4 + $0x140] sm:$0xff] %vm182, %v6722
  %6787 = vst.msk [vmem:[#allocation4 + $0x148] sm:$0xff] %vm182, %v6723
  %6788 = vst.msk [vmem:[#allocation4 + $0x150] sm:$0xff] %vm182, %v6724
  %6789 = vst.msk [vmem:[#allocation4 + $0x158] sm:$0xff] %vm182, %v6725
  %6790 = vst.msk [vmem:[#allocation4 + $0x160] sm:$0xff] %vm182, %v6726
  %6791 = vst.msk [vmem:[#allocation4 + $0x168] sm:$0xff] %vm182, %v6727
  %6792 = vst.msk [vmem:[#allocation4 + $0x170] sm:$0xff] %vm182, %v6728
  %6793 = vst.msk [vmem:[#allocation4 + $0x178] sm:$0xff] %vm182, %v6729
  %6794 = vst.msk [vmem:[#allocation4 + $0x180] sm:$0xff] %vm182, %v6730
  %6795 = vst.msk [vmem:[#allocation4 + $0x188] sm:$0xff] %vm182, %v6731
  %6796 = vst.msk [vmem:[#allocation4 + $0x190] sm:$0xff] %vm182, %v6732
  %6797 = vst.msk [vmem:[#allocation4 + $0x198] sm:$0xff] %vm182, %v6733
  %6798 = vst.msk [vmem:[#allocation4 + $0x1a0] sm:$0xff] %vm182, %v6734
  %6799 = vst.msk [vmem:[#allocation4 + $0x1a8] sm:$0xff] %vm182, %v6735
  %6800 = vst.msk [vmem:[#allocation4 + $0x1b0] sm:$0xff] %vm182, %v6736
  %6801 = vst.msk [vmem:[#allocation4 + $0x1b8] sm:$0xff] %vm182, %v6737
  %6802 = vst.msk [vmem:[#allocation4 + $0x1c0] sm:$0xff] %vm182, %v6738
  %6803 = vst.msk [vmem:[#allocation4 + $0x1c8] sm:$0xff] %vm182, %v6739
  %6804 = vst.msk [vmem:[#allocation4 + $0x1d0] sm:$0xff] %vm182, %v6740
  %6805 = vst.msk [vmem:[#allocation4 + $0x1d8] sm:$0xff] %vm182, %v6741
  %6806 = vst.msk [vmem:[#allocation4 + $0x1e0] sm:$0xff] %vm182, %v6742
  %6807 = vst.msk [vmem:[#allocation4 + $0x1e8] sm:$0xff] %vm182, %v6743
  %6808 = vst.msk [vmem:[#allocation4 + $0x1f0] sm:$0xff] %vm182, %v6744
  %6809 = vst.msk [vmem:[#allocation4 + $0x1f8] sm:$0xff] %vm182, %v6745
  %v6810 = vld [vmem:[#allocation3 + $0x1] sm:$0xff]
  %v6811 = vld [vmem:[#allocation3 + $0x9] sm:$0xff]
  %v6812 = vld [vmem:[#allocation3 + $0x19] sm:$0xff]
  %v6813 = vld [vmem:[#allocation3 + $0x21] sm:$0xff]
  %v6814 = vld [vmem:[#allocation3 + $0x31] sm:$0xff]
  %v6815 = vld [vmem:[#allocation3 + $0x39] sm:$0xff]
  %v6816 = vld [vmem:[#allocation3 + $0x49] sm:$0xff]
  %v6817 = vld [vmem:[#allocation3 + $0x51] sm:$0xff]
  %v6818 = vld [vmem:[#allocation3 + $0x61] sm:$0xff]
  %v6819 = vld [vmem:[#allocation3 + $0x69] sm:$0xff]
  %v6820 = vld [vmem:[#allocation3 + $0x79] sm:$0xff]
  %v6821 = vld [vmem:[#allocation3 + $0x81] sm:$0xff]
  %v6822 = vld [vmem:[#allocation3 + $0x91] sm:$0xff]
  %v6823 = vld [vmem:[#allocation3 + $0x99] sm:$0xff]
  %v6824 = vld [vmem:[#allocation3 + $0xa9] sm:$0xff]
  %v6825 = vld [vmem:[#allocation3 + $0xb1] sm:$0xff]
  %v6826 = vld [vmem:[#allocation3 + $0xc1] sm:$0xff]
  %v6827 = vld [vmem:[#allocation3 + $0xc9] sm:$0xff]
  %v6828 = vld [vmem:[#allocation3 + $0xd9] sm:$0xff]
  %v6829 = vld [vmem:[#allocation3 + $0xe1] sm:$0xff]
  %v6830 = vld [vmem:[#allocation3 + $0xf1] sm:$0xff]
  %v6831 = vld [vmem:[#allocation3 + $0xf9] sm:$0xff]
  %v6832 = vld [vmem:[#allocation3 + $0x109] sm:$0xff]
  %v6833 = vld [vmem:[#allocation3 + $0x111] sm:$0xff]
  %v6834 = vld [vmem:[#allocation3 + $0x121] sm:$0xff]
  %v6835 = vld [vmem:[#allocation3 + $0x129] sm:$0xff]
  %v6836 = vld [vmem:[#allocation3 + $0x139] sm:$0xff]
  %v6837 = vld [vmem:[#allocation3 + $0x141] sm:$0xff]
  %v6838 = vld [vmem:[#allocation3 + $0x151] sm:$0xff]
  %v6839 = vld [vmem:[#allocation3 + $0x159] sm:$0xff]
  %v6840 = vld [vmem:[#allocation3 + $0x169] sm:$0xff]
  %v6841 = vld [vmem:[#allocation3 + $0x171] sm:$0xff]
  %v6842 = vld [vmem:[#allocation3 + $0x1b1] sm:$0xff]
  %v6843 = vld [vmem:[#allocation3 + $0x1b9] sm:$0xff]
  %v6844 = vld [vmem:[#allocation3 + $0x1c9] sm:$0xff]
  %v6845 = vld [vmem:[#allocation3 + $0x1d1] sm:$0xff]
  %v6846 = vld [vmem:[#allocation3 + $0x1e1] sm:$0xff]
  %v6847 = vld [vmem:[#allocation3 + $0x1e9] sm:$0xff]
  %v6848 = vld [vmem:[#allocation3 + $0x1f9] sm:$0xff]
  %v6849 = vld [vmem:[#allocation3 + $0x201] sm:$0xff]
  %v6850 = vld [vmem:[#allocation3 + $0x211] sm:$0xff]
  %v6851 = vld [vmem:[#allocation3 + $0x219] sm:$0xff]
  %v6852 = vld [vmem:[#allocation3 + $0x229] sm:$0xff]
  %v6853 = vld [vmem:[#allocation3 + $0x231] sm:$0xff]
  %v6854 = vld [vmem:[#allocation3 + $0x241] sm:$0xff]
  %v6855 = vld [vmem:[#allocation3 + $0x249] sm:$0xff]
  %v6856 = vld [vmem:[#allocation3 + $0x259] sm:$0xff]
  %v6857 = vld [vmem:[#allocation3 + $0x261] sm:$0xff]
  %v6858 = vld [vmem:[#allocation3 + $0x271] sm:$0xff]
  %v6859 = vld [vmem:[#allocation3 + $0x279] sm:$0xff]
  %v6860 = vld [vmem:[#allocation3 + $0x289] sm:$0xff]
  %v6861 = vld [vmem:[#allocation3 + $0x291] sm:$0xff]
  %v6862 = vld [vmem:[#allocation3 + $0x2a1] sm:$0xff]
  %v6863 = vld [vmem:[#allocation3 + $0x2a9] sm:$0xff]
  %v6864 = vld [vmem:[#allocation3 + $0x2b9] sm:$0xff]
  %v6865 = vld [vmem:[#allocation3 + $0x2c1] sm:$0xff]
  %v6866 = vld [vmem:[#allocation3 + $0x2d1] sm:$0xff]
  %v6867 = vld [vmem:[#allocation3 + $0x2d9] sm:$0xff]
  %v6868 = vld [vmem:[#allocation3 + $0x2e9] sm:$0xff]
  %v6869 = vld [vmem:[#allocation3 + $0x2f1] sm:$0xff]
  %v6870 = vld [vmem:[#allocation3 + $0x301] sm:$0xff]
  %v6871 = vld [vmem:[#allocation3 + $0x309] sm:$0xff]
  %v6872 = vld [vmem:[#allocation3 + $0x319] sm:$0xff]
  %v6873 = vld [vmem:[#allocation3 + $0x321] sm:$0xff]
  %6938 = vrot.lane.b32.xlu0 %v6810, 4
  %v6939 = vpop.permute.xlu0 %6938
  %6940 = vrot.lane.b32.xlu0 %v6811, 4
  %v6941 = vpop.permute.xlu0 %6940
  %6942 = vrot.lane.b32.xlu0 %v6812, 4
  %v6943 = vpop.permute.xlu0 %6942
  %6944 = vrot.lane.b32.xlu0 %v6813, 4
  %v6945 = vpop.permute.xlu0 %6944
  %6946 = vrot.lane.b32.xlu0 %v6814, 4
  %v6947 = vpop.permute.xlu0 %6946
  %6948 = vrot.lane.b32.xlu0 %v6815, 4
  %v6949 = vpop.permute.xlu0 %6948
  %6950 = vrot.lane.b32.xlu0 %v6816, 4
  %v6951 = vpop.permute.xlu0 %6950
  %6952 = vrot.lane.b32.xlu0 %v6817, 4
  %v6953 = vpop.permute.xlu0 %6952
  %6954 = vrot.lane.b32.xlu0 %v6818, 4
  %v6955 = vpop.permute.xlu0 %6954
  %6956 = vrot.lane.b32.xlu0 %v6819, 4
  %v6957 = vpop.permute.xlu0 %6956
  %6958 = vrot.lane.b32.xlu0 %v6820, 4
  %v6959 = vpop.permute.xlu0 %6958
  %6960 = vrot.lane.b32.xlu0 %v6821, 4
  %v6961 = vpop.permute.xlu0 %6960
  %6962 = vrot.lane.b32.xlu0 %v6822, 4
  %v6963 = vpop.permute.xlu0 %6962
  %6964 = vrot.lane.b32.xlu0 %v6823, 4
  %v6965 = vpop.permute.xlu0 %6964
  %6966 = vrot.lane.b32.xlu0 %v6824, 4
  %v6967 = vpop.permute.xlu0 %6966
  %6968 = vrot.lane.b32.xlu0 %v6825, 4
  %v6969 = vpop.permute.xlu0 %6968
  %6970 = vrot.lane.b32.xlu0 %v6826, 4
  %v6971 = vpop.permute.xlu0 %6970
  %6972 = vrot.lane.b32.xlu0 %v6827, 4
  %v6973 = vpop.permute.xlu0 %6972
  %6974 = vrot.lane.b32.xlu0 %v6828, 4
  %v6975 = vpop.permute.xlu0 %6974
  %6976 = vrot.lane.b32.xlu0 %v6829, 4
  %v6977 = vpop.permute.xlu0 %6976
  %6978 = vrot.lane.b32.xlu0 %v6830, 4
  %v6979 = vpop.permute.xlu0 %6978
  %6980 = vrot.lane.b32.xlu0 %v6831, 4
  %v6981 = vpop.permute.xlu0 %6980
  %6982 = vrot.lane.b32.xlu0 %v6832, 4
  %v6983 = vpop.permute.xlu0 %6982
  %6984 = vrot.lane.b32.xlu0 %v6833, 4
  %v6985 = vpop.permute.xlu0 %6984
  %6986 = vrot.lane.b32.xlu0 %v6834, 4
  %v6987 = vpop.permute.xlu0 %6986
  %6988 = vrot.lane.b32.xlu0 %v6835, 4
  %v6989 = vpop.permute.xlu0 %6988
  %6990 = vrot.lane.b32.xlu0 %v6836, 4
  %v6991 = vpop.permute.xlu0 %6990
  %6992 = vrot.lane.b32.xlu0 %v6837, 4
  %v6993 = vpop.permute.xlu0 %6992
  %6994 = vrot.lane.b32.xlu0 %v6838, 4
  %v6995 = vpop.permute.xlu0 %6994
  %6996 = vrot.lane.b32.xlu0 %v6839, 4
  %v6997 = vpop.permute.xlu0 %6996
  %6998 = vrot.lane.b32.xlu0 %v6840, 4
  %v6999 = vpop.permute.xlu0 %6998
  %7000 = vrot.lane.b32.xlu0 %v6841, 4
  %v7001 = vpop.permute.xlu0 %7000
  %7002 = vrot.lane.b32.xlu0 %v6842, 4
  %v7003 = vpop.permute.xlu0 %7002
  %7004 = vrot.lane.b32.xlu0 %v6843, 4
  %v7005 = vpop.permute.xlu0 %7004
  %7006 = vrot.lane.b32.xlu0 %v6844, 4
  %v7007 = vpop.permute.xlu0 %7006
  %7008 = vrot.lane.b32.xlu0 %v6845, 4
  %v7009 = vpop.permute.xlu0 %7008
  %7010 = vrot.lane.b32.xlu0 %v6846, 4
  %v7011 = vpop.permute.xlu0 %7010
  %7012 = vrot.lane.b32.xlu0 %v6847, 4
  %v7013 = vpop.permute.xlu0 %7012
  %7014 = vrot.lane.b32.xlu0 %v6848, 4
  %v7015 = vpop.permute.xlu0 %7014
  %7016 = vrot.lane.b32.xlu0 %v6849, 4
  %v7017 = vpop.permute.xlu0 %7016
  %7018 = vrot.lane.b32.xlu0 %v6850, 4
  %v7019 = vpop.permute.xlu0 %7018
  %7020 = vrot.lane.b32.xlu0 %v6851, 4
  %v7021 = vpop.permute.xlu0 %7020
  %7022 = vrot.lane.b32.xlu0 %v6852, 4
  %v7023 = vpop.permute.xlu0 %7022
  %7024 = vrot.lane.b32.xlu0 %v6853, 4
  %v7025 = vpop.permute.xlu0 %7024
  %7026 = vrot.lane.b32.xlu0 %v6854, 4
  %v7027 = vpop.permute.xlu0 %7026
  %7028 = vrot.lane.b32.xlu0 %v6855, 4
  %v7029 = vpop.permute.xlu0 %7028
  %7030 = vrot.lane.b32.xlu0 %v6856, 4
  %v7031 = vpop.permute.xlu0 %7030
  %7032 = vrot.lane.b32.xlu0 %v6857, 4
  %v7033 = vpop.permute.xlu0 %7032
  %7034 = vrot.lane.b32.xlu0 %v6858, 4
  %v7035 = vpop.permute.xlu0 %7034
  %7036 = vrot.lane.b32.xlu0 %v6859, 4
  %v7037 = vpop.permute.xlu0 %7036
  %7038 = vrot.lane.b32.xlu0 %v6860, 4
  %v7039 = vpop.permute.xlu0 %7038
  %7040 = vrot.lane.b32.xlu0 %v6861, 4
  %v7041 = vpop.permute.xlu0 %7040
  %7042 = vrot.lane.b32.xlu0 %v6862, 4
  %v7043 = vpop.permute.xlu0 %7042
  %7044 = vrot.lane.b32.xlu0 %v6863, 4
  %v7045 = vpop.permute.xlu0 %7044
  %7046 = vrot.lane.b32.xlu0 %v6864, 4
  %v7047 = vpop.permute.xlu0 %7046
  %7048 = vrot.lane.b32.xlu0 %v6865, 4
  %v7049 = vpop.permute.xlu0 %7048
  %7050 = vrot.lane.b32.xlu0 %v6866, 4
  %v7051 = vpop.permute.xlu0 %7050
  %7052 = vrot.lane.b32.xlu0 %v6867, 4
  %v7053 = vpop.permute.xlu0 %7052
  %7054 = vrot.lane.b32.xlu0 %v6868, 4
  %v7055 = vpop.permute.xlu0 %7054
  %7056 = vrot.lane.b32.xlu0 %v6869, 4
  %v7057 = vpop.permute.xlu0 %7056
  %7058 = vrot.lane.b32.xlu0 %v6870, 4
  %v7059 = vpop.permute.xlu0 %7058
  %7060 = vrot.lane.b32.xlu0 %v6871, 4
  %v7061 = vpop.permute.xlu0 %7060
  %7062 = vrot.lane.b32.xlu0 %v6872, 4
  %v7063 = vpop.permute.xlu0 %7062
  %7064 = vrot.lane.b32.xlu0 %v6873, 4
  %v7065 = vpop.permute.xlu0 %7064
  %7130 = vst.msk [vmem:[#allocation4] sm:$0xff] %vm1769, %v6939
  %7131 = vst.msk [vmem:[#allocation4 + $0x8] sm:$0xff] %vm1769, %v6941
  %7132 = vst.msk [vmem:[#allocation4 + $0x10] sm:$0xff] %vm1769, %v6943
  %7133 = vst.msk [vmem:[#allocation4 + $0x18] sm:$0xff] %vm1769, %v6945
  %7134 = vst.msk [vmem:[#allocation4 + $0x20] sm:$0xff] %vm1769, %v6947
  %7135 = vst.msk [vmem:[#allocation4 + $0x28] sm:$0xff] %vm1769, %v6949
  %7136 = vst.msk [vmem:[#allocation4 + $0x30] sm:$0xff] %vm1769, %v6951
  %7137 = vst.msk [vmem:[#allocation4 + $0x38] sm:$0xff] %vm1769, %v6953
  %7138 = vst.msk [vmem:[#allocation4 + $0x40] sm:$0xff] %vm1769, %v6955
  %7139 = vst.msk [vmem:[#allocation4 + $0x48] sm:$0xff] %vm1769, %v6957
  %7140 = vst.msk [vmem:[#allocation4 + $0x50] sm:$0xff] %vm1769, %v6959
  %7141 = vst.msk [vmem:[#allocation4 + $0x58] sm:$0xff] %vm1769, %v6961
  %7142 = vst.msk [vmem:[#allocation4 + $0x60] sm:$0xff] %vm1769, %v6963
  %7143 = vst.msk [vmem:[#allocation4 + $0x68] sm:$0xff] %vm1769, %v6965
  %7144 = vst.msk [vmem:[#allocation4 + $0x70] sm:$0xff] %vm1769, %v6967
  %7145 = vst.msk [vmem:[#allocation4 + $0x78] sm:$0xff] %vm1769, %v6969
  %7146 = vst.msk [vmem:[#allocation4 + $0x80] sm:$0xff] %vm1769, %v6971
  %7147 = vst.msk [vmem:[#allocation4 + $0x88] sm:$0xff] %vm1769, %v6973
  %7148 = vst.msk [vmem:[#allocation4 + $0x90] sm:$0xff] %vm1769, %v6975
  %7149 = vst.msk [vmem:[#allocation4 + $0x98] sm:$0xff] %vm1769, %v6977
  %7150 = vst.msk [vmem:[#allocation4 + $0xa0] sm:$0xff] %vm1769, %v6979
  %7151 = vst.msk [vmem:[#allocation4 + $0xa8] sm:$0xff] %vm1769, %v6981
  %7152 = vst.msk [vmem:[#allocation4 + $0xb0] sm:$0xff] %vm1769, %v6983
  %7153 = vst.msk [vmem:[#allocation4 + $0xb8] sm:$0xff] %vm1769, %v6985
  %7154 = vst.msk [vmem:[#allocation4 + $0xc0] sm:$0xff] %vm1769, %v6987
  %7155 = vst.msk [vmem:[#allocation4 + $0xc8] sm:$0xff] %vm1769, %v6989
  %7156 = vst.msk [vmem:[#allocation4 + $0xd0] sm:$0xff] %vm1769, %v6991
  %7157 = vst.msk [vmem:[#allocation4 + $0xd8] sm:$0xff] %vm1769, %v6993
  %7158 = vst.msk [vmem:[#allocation4 + $0xe0] sm:$0xff] %vm1769, %v6995
  %7159 = vst.msk [vmem:[#allocation4 + $0xe8] sm:$0xff] %vm1769, %v6997
  %7160 = vst.msk [vmem:[#allocation4 + $0xf0] sm:$0xff] %vm1769, %v6999
  %7161 = vst.msk [vmem:[#allocation4 + $0xf8] sm:$0xff] %vm1769, %v7001
  %7162 = vst.msk [vmem:[#allocation4 + $0x100] sm:$0xff] %vm1769, %v7003
  %7163 = vst.msk [vmem:[#allocation4 + $0x108] sm:$0xff] %vm1769, %v7005
  %7164 = vst.msk [vmem:[#allocation4 + $0x110] sm:$0xff] %vm1769, %v7007
  %7165 = vst.msk [vmem:[#allocation4 + $0x118] sm:$0xff] %vm1769, %v7009
  %7166 = vst.msk [vmem:[#allocation4 + $0x120] sm:$0xff] %vm1769, %v7011
  %7167 = vst.msk [vmem:[#allocation4 + $0x128] sm:$0xff] %vm1769, %v7013
  %7168 = vst.msk [vmem:[#allocation4 + $0x130] sm:$0xff] %vm1769, %v7015
  %7169 = vst.msk [vmem:[#allocation4 + $0x138] sm:$0xff] %vm1769, %v7017
  %7170 = vst.msk [vmem:[#allocation4 + $0x140] sm:$0xff] %vm1769, %v7019
  %7171 = vst.msk [vmem:[#allocation4 + $0x148] sm:$0xff] %vm1769, %v7021
  %7172 = vst.msk [vmem:[#allocation4 + $0x150] sm:$0xff] %vm1769, %v7023
  %7173 = vst.msk [vmem:[#allocation4 + $0x158] sm:$0xff] %vm1769, %v7025
  %7174 = vst.msk [vmem:[#allocation4 + $0x160] sm:$0xff] %vm1769, %v7027
  %7175 = vst.msk [vmem:[#allocation4 + $0x168] sm:$0xff] %vm1769, %v7029
  %7176 = vst.msk [vmem:[#allocation4 + $0x170] sm:$0xff] %vm1769, %v7031
  %7177 = vst.msk [vmem:[#allocation4 + $0x178] sm:$0xff] %vm1769, %v7033
  %7178 = vst.msk [vmem:[#allocation4 + $0x180] sm:$0xff] %vm1769, %v7035
  %7179 = vst.msk [vmem:[#allocation4 + $0x188] sm:$0xff] %vm1769, %v7037
  %7180 = vst.msk [vmem:[#allocation4 + $0x190] sm:$0xff] %vm1769, %v7039
  %7181 = vst.msk [vmem:[#allocation4 + $0x198] sm:$0xff] %vm1769, %v7041
  %7182 = vst.msk [vmem:[#allocation4 + $0x1a0] sm:$0xff] %vm1769, %v7043
  %7183 = vst.msk [vmem:[#allocation4 + $0x1a8] sm:$0xff] %vm1769, %v7045
  %7184 = vst.msk [vmem:[#allocation4 + $0x1b0] sm:$0xff] %vm1769, %v7047
  %7185 = vst.msk [vmem:[#allocation4 + $0x1b8] sm:$0xff] %vm1769, %v7049
  %7186 = vst.msk [vmem:[#allocation4 + $0x1c0] sm:$0xff] %vm1769, %v7051
  %7187 = vst.msk [vmem:[#allocation4 + $0x1c8] sm:$0xff] %vm1769, %v7053
  %7188 = vst.msk [vmem:[#allocation4 + $0x1d0] sm:$0xff] %vm1769, %v7055
  %7189 = vst.msk [vmem:[#allocation4 + $0x1d8] sm:$0xff] %vm1769, %v7057
  %7190 = vst.msk [vmem:[#allocation4 + $0x1e0] sm:$0xff] %vm1769, %v7059
  %7191 = vst.msk [vmem:[#allocation4 + $0x1e8] sm:$0xff] %vm1769, %v7061
  %7192 = vst.msk [vmem:[#allocation4 + $0x1f0] sm:$0xff] %vm1769, %v7063
  %7193 = vst.msk [vmem:[#allocation4 + $0x1f8] sm:$0xff] %vm1769, %v7065
  %v7194 = vld [vmem:[#allocation3 + $0x2] sm:$0xff]
  %v7195 = vld [vmem:[#allocation3 + $0xa] sm:$0xff]
  %v7196 = vld [vmem:[#allocation3 + $0x1a] sm:$0xff]
  %v7197 = vld [vmem:[#allocation3 + $0x22] sm:$0xff]
  %v7198 = vld [vmem:[#allocation3 + $0x32] sm:$0xff]
  %v7199 = vld [vmem:[#allocation3 + $0x3a] sm:$0xff]
  %v7200 = vld [vmem:[#allocation3 + $0x4a] sm:$0xff]
  %v7201 = vld [vmem:[#allocation3 + $0x52] sm:$0xff]
  %v7202 = vld [vmem:[#allocation3 + $0x62] sm:$0xff]
  %v7203 = vld [vmem:[#allocation3 + $0x6a] sm:$0xff]
  %v7204 = vld [vmem:[#allocation3 + $0x7a] sm:$0xff]
  %v7205 = vld [vmem:[#allocation3 + $0x82] sm:$0xff]
  %v7206 = vld [vmem:[#allocation3 + $0x92] sm:$0xff]
  %v7207 = vld [vmem:[#allocation3 + $0x9a] sm:$0xff]
  %v7208 = vld [vmem:[#allocation3 + $0xaa] sm:$0xff]
  %v7209 = vld [vmem:[#allocation3 + $0xb2] sm:$0xff]
  %v7210 = vld [vmem:[#allocation3 + $0xc2] sm:$0xff]
  %v7211 = vld [vmem:[#allocation3 + $0xca] sm:$0xff]
  %v7212 = vld [vmem:[#allocation3 + $0xda] sm:$0xff]
  %v7213 = vld [vmem:[#allocation3 + $0xe2] sm:$0xff]
  %v7214 = vld [vmem:[#allocation3 + $0xf2] sm:$0xff]
  %v7215 = vld [vmem:[#allocation3 + $0xfa] sm:$0xff]
  %v7216 = vld [vmem:[#allocation3 + $0x10a] sm:$0xff]
  %v7217 = vld [vmem:[#allocation3 + $0x112] sm:$0xff]
  %v7218 = vld [vmem:[#allocation3 + $0x122] sm:$0xff]
  %v7219 = vld [vmem:[#allocation3 + $0x12a] sm:$0xff]
  %v7220 = vld [vmem:[#allocation3 + $0x13a] sm:$0xff]
  %v7221 = vld [vmem:[#allocation3 + $0x142] sm:$0xff]
  %v7222 = vld [vmem:[#allocation3 + $0x152] sm:$0xff]
  %v7223 = vld [vmem:[#allocation3 + $0x15a] sm:$0xff]
  %v7224 = vld [vmem:[#allocation3 + $0x16a] sm:$0xff]
  %v7225 = vld [vmem:[#allocation3 + $0x172] sm:$0xff]
  %v7226 = vld [vmem:[#allocation3 + $0x1b2] sm:$0xff]
  %v7227 = vld [vmem:[#allocation3 + $0x1ba] sm:$0xff]
  %v7228 = vld [vmem:[#allocation3 + $0x1ca] sm:$0xff]
  %v7229 = vld [vmem:[#allocation3 + $0x1d2] sm:$0xff]
  %v7230 = vld [vmem:[#allocation3 + $0x1e2] sm:$0xff]
  %v7231 = vld [vmem:[#allocation3 + $0x1ea] sm:$0xff]
  %v7232 = vld [vmem:[#allocation3 + $0x1fa] sm:$0xff]
  %v7233 = vld [vmem:[#allocation3 + $0x202] sm:$0xff]
  %v7234 = vld [vmem:[#allocation3 + $0x212] sm:$0xff]
  %v7235 = vld [vmem:[#allocation3 + $0x21a] sm:$0xff]
  %v7236 = vld [vmem:[#allocation3 + $0x22a] sm:$0xff]
  %v7237 = vld [vmem:[#allocation3 + $0x232] sm:$0xff]
  %v7238 = vld [vmem:[#allocation3 + $0x242] sm:$0xff]
  %v7239 = vld [vmem:[#allocation3 + $0x24a] sm:$0xff]
  %v7240 = vld [vmem:[#allocation3 + $0x25a] sm:$0xff]
  %v7241 = vld [vmem:[#allocation3 + $0x262] sm:$0xff]
  %v7242 = vld [vmem:[#allocation3 + $0x272] sm:$0xff]
  %v7243 = vld [vmem:[#allocation3 + $0x27a] sm:$0xff]
  %v7244 = vld [vmem:[#allocation3 + $0x28a] sm:$0xff]
  %v7245 = vld [vmem:[#allocation3 + $0x292] sm:$0xff]
  %v7246 = vld [vmem:[#allocation3 + $0x2a2] sm:$0xff]
  %v7247 = vld [vmem:[#allocation3 + $0x2aa] sm:$0xff]
  %v7248 = vld [vmem:[#allocation3 + $0x2ba] sm:$0xff]
  %v7249 = vld [vmem:[#allocation3 + $0x2c2] sm:$0xff]
  %v7250 = vld [vmem:[#allocation3 + $0x2d2] sm:$0xff]
  %v7251 = vld [vmem:[#allocation3 + $0x2da] sm:$0xff]
  %v7252 = vld [vmem:[#allocation3 + $0x2ea] sm:$0xff]
  %v7253 = vld [vmem:[#allocation3 + $0x2f2] sm:$0xff]
  %v7254 = vld [vmem:[#allocation3 + $0x302] sm:$0xff]
  %v7255 = vld [vmem:[#allocation3 + $0x30a] sm:$0xff]
  %v7256 = vld [vmem:[#allocation3 + $0x31a] sm:$0xff]
  %v7257 = vld [vmem:[#allocation3 + $0x322] sm:$0xff]
  %7322 = vrot.lane.b32.xlu0 %v7194, 8
  %v7323 = vpop.permute.xlu0 %7322
  %7324 = vrot.lane.b32.xlu0 %v7195, 8
  %v7325 = vpop.permute.xlu0 %7324
  %7326 = vrot.lane.b32.xlu0 %v7196, 8
  %v7327 = vpop.permute.xlu0 %7326
  %7328 = vrot.lane.b32.xlu0 %v7197, 8
  %v7329 = vpop.permute.xlu0 %7328
  %7330 = vrot.lane.b32.xlu0 %v7198, 8
  %v7331 = vpop.permute.xlu0 %7330
  %7332 = vrot.lane.b32.xlu0 %v7199, 8
  %v7333 = vpop.permute.xlu0 %7332
  %7334 = vrot.lane.b32.xlu0 %v7200, 8
  %v7335 = vpop.permute.xlu0 %7334
  %7336 = vrot.lane.b32.xlu0 %v7201, 8
  %v7337 = vpop.permute.xlu0 %7336
  %7338 = vrot.lane.b32.xlu0 %v7202, 8
  %v7339 = vpop.permute.xlu0 %7338
  %7340 = vrot.lane.b32.xlu0 %v7203, 8
  %v7341 = vpop.permute.xlu0 %7340
  %7342 = vrot.lane.b32.xlu0 %v7204, 8
  %v7343 = vpop.permute.xlu0 %7342
  %7344 = vrot.lane.b32.xlu0 %v7205, 8
  %v7345 = vpop.permute.xlu0 %7344
  %7346 = vrot.lane.b32.xlu0 %v7206, 8
  %v7347 = vpop.permute.xlu0 %7346
  %7348 = vrot.lane.b32.xlu0 %v7207, 8
  %v7349 = vpop.permute.xlu0 %7348
  %7350 = vrot.lane.b32.xlu0 %v7208, 8
  %v7351 = vpop.permute.xlu0 %7350
  %7352 = vrot.lane.b32.xlu0 %v7209, 8
  %v7353 = vpop.permute.xlu0 %7352
  %7354 = vrot.lane.b32.xlu0 %v7210, 8
  %v7355 = vpop.permute.xlu0 %7354
  %7356 = vrot.lane.b32.xlu0 %v7211, 8
  %v7357 = vpop.permute.xlu0 %7356
  %7358 = vrot.lane.b32.xlu0 %v7212, 8
  %v7359 = vpop.permute.xlu0 %7358
  %7360 = vrot.lane.b32.xlu0 %v7213, 8
  %v7361 = vpop.permute.xlu0 %7360
  %7362 = vrot.lane.b32.xlu0 %v7214, 8
  %v7363 = vpop.permute.xlu0 %7362
  %7364 = vrot.lane.b32.xlu0 %v7215, 8
  %v7365 = vpop.permute.xlu0 %7364
  %7366 = vrot.lane.b32.xlu0 %v7216, 8
  %v7367 = vpop.permute.xlu0 %7366
  %7368 = vrot.lane.b32.xlu0 %v7217, 8
  %v7369 = vpop.permute.xlu0 %7368
  %7370 = vrot.lane.b32.xlu0 %v7218, 8
  %v7371 = vpop.permute.xlu0 %7370
  %7372 = vrot.lane.b32.xlu0 %v7219, 8
  %v7373 = vpop.permute.xlu0 %7372
  %7374 = vrot.lane.b32.xlu0 %v7220, 8
  %v7375 = vpop.permute.xlu0 %7374
  %7376 = vrot.lane.b32.xlu0 %v7221, 8
  %v7377 = vpop.permute.xlu0 %7376
  %7378 = vrot.lane.b32.xlu0 %v7222, 8
  %v7379 = vpop.permute.xlu0 %7378
  %7380 = vrot.lane.b32.xlu0 %v7223, 8
  %v7381 = vpop.permute.xlu0 %7380
  %7382 = vrot.lane.b32.xlu0 %v7224, 8
  %v7383 = vpop.permute.xlu0 %7382
  %7384 = vrot.lane.b32.xlu0 %v7225, 8
  %v7385 = vpop.permute.xlu0 %7384
  %7386 = vrot.lane.b32.xlu0 %v7226, 8
  %v7387 = vpop.permute.xlu0 %7386
  %7388 = vrot.lane.b32.xlu0 %v7227, 8
  %v7389 = vpop.permute.xlu0 %7388
  %7390 = vrot.lane.b32.xlu0 %v7228, 8
  %v7391 = vpop.permute.xlu0 %7390
  %7392 = vrot.lane.b32.xlu0 %v7229, 8
  %v7393 = vpop.permute.xlu0 %7392
  %7394 = vrot.lane.b32.xlu0 %v7230, 8
  %v7395 = vpop.permute.xlu0 %7394
  %7396 = vrot.lane.b32.xlu0 %v7231, 8
  %v7397 = vpop.permute.xlu0 %7396
  %7398 = vrot.lane.b32.xlu0 %v7232, 8
  %v7399 = vpop.permute.xlu0 %7398
  %7400 = vrot.lane.b32.xlu0 %v7233, 8
  %v7401 = vpop.permute.xlu0 %7400
  %7402 = vrot.lane.b32.xlu0 %v7234, 8
  %v7403 = vpop.permute.xlu0 %7402
  %7404 = vrot.lane.b32.xlu0 %v7235, 8
  %v7405 = vpop.permute.xlu0 %7404
  %7406 = vrot.lane.b32.xlu0 %v7236, 8
  %v7407 = vpop.permute.xlu0 %7406
  %7408 = vrot.lane.b32.xlu0 %v7237, 8
  %v7409 = vpop.permute.xlu0 %7408
  %7410 = vrot.lane.b32.xlu0 %v7238, 8
  %v7411 = vpop.permute.xlu0 %7410
  %7412 = vrot.lane.b32.xlu0 %v7239, 8
  %v7413 = vpop.permute.xlu0 %7412
  %7414 = vrot.lane.b32.xlu0 %v7240, 8
  %v7415 = vpop.permute.xlu0 %7414
  %7416 = vrot.lane.b32.xlu0 %v7241, 8
  %v7417 = vpop.permute.xlu0 %7416
  %7418 = vrot.lane.b32.xlu0 %v7242, 8
  %v7419 = vpop.permute.xlu0 %7418
  %7420 = vrot.lane.b32.xlu0 %v7243, 8
  %v7421 = vpop.permute.xlu0 %7420
  %7422 = vrot.lane.b32.xlu0 %v7244, 8
  %v7423 = vpop.permute.xlu0 %7422
  %7424 = vrot.lane.b32.xlu0 %v7245, 8
  %v7425 = vpop.permute.xlu0 %7424
  %7426 = vrot.lane.b32.xlu0 %v7246, 8
  %v7427 = vpop.permute.xlu0 %7426
  %7428 = vrot.lane.b32.xlu0 %v7247, 8
  %v7429 = vpop.permute.xlu0 %7428
  %7430 = vrot.lane.b32.xlu0 %v7248, 8
  %v7431 = vpop.permute.xlu0 %7430
  %7432 = vrot.lane.b32.xlu0 %v7249, 8
  %v7433 = vpop.permute.xlu0 %7432
  %7434 = vrot.lane.b32.xlu0 %v7250, 8
  %v7435 = vpop.permute.xlu0 %7434
  %7436 = vrot.lane.b32.xlu0 %v7251, 8
  %v7437 = vpop.permute.xlu0 %7436
  %7438 = vrot.lane.b32.xlu0 %v7252, 8
  %v7439 = vpop.permute.xlu0 %7438
  %7440 = vrot.lane.b32.xlu0 %v7253, 8
  %v7441 = vpop.permute.xlu0 %7440
  %7442 = vrot.lane.b32.xlu0 %v7254, 8
  %v7443 = vpop.permute.xlu0 %7442
  %7444 = vrot.lane.b32.xlu0 %v7255, 8
  %v7445 = vpop.permute.xlu0 %7444
  %7446 = vrot.lane.b32.xlu0 %v7256, 8
  %v7447 = vpop.permute.xlu0 %7446
  %7448 = vrot.lane.b32.xlu0 %v7257, 8
  %v7449 = vpop.permute.xlu0 %7448
  %vm7514 = vcmask 97344
  %7515 = vst.msk [vmem:[#allocation4] sm:$0xff] %vm7514, %v7323
  %7516 = vst.msk [vmem:[#allocation4 + $0x8] sm:$0xff] %vm7514, %v7325
  %7517 = vst.msk [vmem:[#allocation4 + $0x10] sm:$0xff] %vm7514, %v7327
  %7518 = vst.msk [vmem:[#allocation4 + $0x18] sm:$0xff] %vm7514, %v7329
  %7519 = vst.msk [vmem:[#allocation4 + $0x20] sm:$0xff] %vm7514, %v7331
  %7520 = vst.msk [vmem:[#allocation4 + $0x28] sm:$0xff] %vm7514, %v7333
  %7521 = vst.msk [vmem:[#allocation4 + $0x30] sm:$0xff] %vm7514, %v7335
  %7522 = vst.msk [vmem:[#allocation4 + $0x38] sm:$0xff] %vm7514, %v7337
  %7523 = vst.msk [vmem:[#allocation4 + $0x40] sm:$0xff] %vm7514, %v7339
  %7524 = vst.msk [vmem:[#allocation4 + $0x48] sm:$0xff] %vm7514, %v7341
  %7525 = vst.msk [vmem:[#allocation4 + $0x50] sm:$0xff] %vm7514, %v7343
  %7526 = vst.msk [vmem:[#allocation4 + $0x58] sm:$0xff] %vm7514, %v7345
  %7527 = vst.msk [vmem:[#allocation4 + $0x60] sm:$0xff] %vm7514, %v7347
  %7528 = vst.msk [vmem:[#allocation4 + $0x68] sm:$0xff] %vm7514, %v7349
  %7529 = vst.msk [vmem:[#allocation4 + $0x70] sm:$0xff] %vm7514, %v7351
  %7530 = vst.msk [vmem:[#allocation4 + $0x78] sm:$0xff] %vm7514, %v7353
  %7531 = vst.msk [vmem:[#allocation4 + $0x80] sm:$0xff] %vm7514, %v7355
  %7532 = vst.msk [vmem:[#allocation4 + $0x88] sm:$0xff] %vm7514, %v7357
  %7533 = vst.msk [vmem:[#allocation4 + $0x90] sm:$0xff] %vm7514, %v7359
  %7534 = vst.msk [vmem:[#allocation4 + $0x98] sm:$0xff] %vm7514, %v7361
  %7535 = vst.msk [vmem:[#allocation4 + $0xa0] sm:$0xff] %vm7514, %v7363
  %7536 = vst.msk [vmem:[#allocation4 + $0xa8] sm:$0xff] %vm7514, %v7365
  %7537 = vst.msk [vmem:[#allocation4 + $0xb0] sm:$0xff] %vm7514, %v7367
  %7538 = vst.msk [vmem:[#allocation4 + $0xb8] sm:$0xff] %vm7514, %v7369
  %7539 = vst.msk [vmem:[#allocation4 + $0xc0] sm:$0xff] %vm7514, %v7371
  %7540 = vst.msk [vmem:[#allocation4 + $0xc8] sm:$0xff] %vm7514, %v7373
  %7541 = vst.msk [vmem:[#allocation4 + $0xd0] sm:$0xff] %vm7514, %v7375
  %7542 = vst.msk [vmem:[#allocation4 + $0xd8] sm:$0xff] %vm7514, %v7377
  %7543 = vst.msk [vmem:[#allocation4 + $0xe0] sm:$0xff] %vm7514, %v7379
  %7544 = vst.msk [vmem:[#allocation4 + $0xe8] sm:$0xff] %vm7514, %v7381
  %7545 = vst.msk [vmem:[#allocation4 + $0xf0] sm:$0xff] %vm7514, %v7383
  %7546 = vst.msk [vmem:[#allocation4 + $0xf8] sm:$0xff] %vm7514, %v7385
  %7547 = vst.msk [vmem:[#allocation4 + $0x100] sm:$0xff] %vm7514, %v7387
  %7548 = vst.msk [vmem:[#allocation4 + $0x108] sm:$0xff] %vm7514, %v7389
  %7549 = vst.msk [vmem:[#allocation4 + $0x110] sm:$0xff] %vm7514, %v7391
  %7550 = vst.msk [vmem:[#allocation4 + $0x118] sm:$0xff] %vm7514, %v7393
  %7551 = vst.msk [vmem:[#allocation4 + $0x120] sm:$0xff] %vm7514, %v7395
  %7552 = vst.msk [vmem:[#allocation4 + $0x128] sm:$0xff] %vm7514, %v7397
  %7553 = vst.msk [vmem:[#allocation4 + $0x130] sm:$0xff] %vm7514, %v7399
  %7554 = vst.msk [vmem:[#allocation4 + $0x138] sm:$0xff] %vm7514, %v7401
  %7555 = vst.msk [vmem:[#allocation4 + $0x140] sm:$0xff] %vm7514, %v7403
  %7556 = vst.msk [vmem:[#allocation4 + $0x148] sm:$0xff] %vm7514, %v7405
  %7557 = vst.msk [vmem:[#allocation4 + $0x150] sm:$0xff] %vm7514, %v7407
  %7558 = vst.msk [vmem:[#allocation4 + $0x158] sm:$0xff] %vm7514, %v7409
  %7559 = vst.msk [vmem:[#allocation4 + $0x160] sm:$0xff] %vm7514, %v7411
  %7560 = vst.msk [vmem:[#allocation4 + $0x168] sm:$0xff] %vm7514, %v7413
  %7561 = vst.msk [vmem:[#allocation4 + $0x170] sm:$0xff] %vm7514, %v7415
  %7562 = vst.msk [vmem:[#allocation4 + $0x178] sm:$0xff] %vm7514, %v7417
  %7563 = vst.msk [vmem:[#allocation4 + $0x180] sm:$0xff] %vm7514, %v7419
  %7564 = vst.msk [vmem:[#allocation4 + $0x188] sm:$0xff] %vm7514, %v7421
  %7565 = vst.msk [vmem:[#allocation4 + $0x190] sm:$0xff] %vm7514, %v7423
  %7566 = vst.msk [vmem:[#allocation4 + $0x198] sm:$0xff] %vm7514, %v7425
  %7567 = vst.msk [vmem:[#allocation4 + $0x1a0] sm:$0xff] %vm7514, %v7427
  %7568 = vst.msk [vmem:[#allocation4 + $0x1a8] sm:$0xff] %vm7514, %v7429
  %7569 = vst.msk [vmem:[#allocation4 + $0x1b0] sm:$0xff] %vm7514, %v7431
  %7570 = vst.msk [vmem:[#allocation4 + $0x1b8] sm:$0xff] %vm7514, %v7433
  %7571 = vst.msk [vmem:[#allocation4 + $0x1c0] sm:$0xff] %vm7514, %v7435
  %7572 = vst.msk [vmem:[#allocation4 + $0x1c8] sm:$0xff] %vm7514, %v7437
  %7573 = vst.msk [vmem:[#allocation4 + $0x1d0] sm:$0xff] %vm7514, %v7439
  %7574 = vst.msk [vmem:[#allocation4 + $0x1d8] sm:$0xff] %vm7514, %v7441
  %7575 = vst.msk [vmem:[#allocation4 + $0x1e0] sm:$0xff] %vm7514, %v7443
  %7576 = vst.msk [vmem:[#allocation4 + $0x1e8] sm:$0xff] %vm7514, %v7445
  %7577 = vst.msk [vmem:[#allocation4 + $0x1f0] sm:$0xff] %vm7514, %v7447
  %7578 = vst.msk [vmem:[#allocation4 + $0x1f8] sm:$0xff] %vm7514, %v7449
  %v7579 = vld [vmem:[%s181] sm:$0xff]
  %v7580 = vld [vmem:[%s181 + $0x8] sm:$0xff]
  %v7581 = vld [vmem:[%s181 + $0x18] sm:$0xff]
  %v7582 = vld [vmem:[%s181 + $0x20] sm:$0xff]
  %v7583 = vld [vmem:[%s181 + $0x30] sm:$0xff]
  %v7584 = vld [vmem:[%s181 + $0x38] sm:$0xff]
  %v7585 = vld [vmem:[%s181 + $0x48] sm:$0xff]
  %v7586 = vld [vmem:[%s181 + $0x50] sm:$0xff]
  %v7587 = vld [vmem:[%s181 + $0x60] sm:$0xff]
  %v7588 = vld [vmem:[%s181 + $0x68] sm:$0xff]
  %v7589 = vld [vmem:[%s181 + $0x78] sm:$0xff]
  %v7590 = vld [vmem:[%s181 + $0x80] sm:$0xff]
  %v7591 = vld [vmem:[%s181 + $0x90] sm:$0xff]
  %v7592 = vld [vmem:[%s181 + $0x98] sm:$0xff]
  %v7593 = vld [vmem:[%s181 + $0xa8] sm:$0xff]
  %v7594 = vld [vmem:[%s181 + $0xb0] sm:$0xff]
  %v7595 = vld [vmem:[%s181 + $0xc0] sm:$0xff]
  %v7596 = vld [vmem:[%s181 + $0xc8] sm:$0xff]
  %v7597 = vld [vmem:[%s181 + $0xd8] sm:$0xff]
  %v7598 = vld [vmem:[%s181 + $0xe0] sm:$0xff]
  %v7599 = vld [vmem:[%s181 + $0xf0] sm:$0xff]
  %v7600 = vld [vmem:[%s181 + $0xf8] sm:$0xff]
  %v7601 = vld [vmem:[%s181 + $0x108] sm:$0xff]
  %v7602 = vld [vmem:[%s181 + $0x110] sm:$0xff]
  %v7603 = vld [vmem:[%s181 + $0x120] sm:$0xff]
  %v7604 = vld [vmem:[%s181 + $0x128] sm:$0xff]
  %v7605 = vld [vmem:[%s181 + $0x138] sm:$0xff]
  %v7606 = vld [vmem:[%s181 + $0x140] sm:$0xff]
  %v7607 = vld [vmem:[%s181 + $0x150] sm:$0xff]
  %v7608 = vld [vmem:[%s181 + $0x158] sm:$0xff]
  %v7609 = vld [vmem:[%s181 + $0x168] sm:$0xff]
  %v7610 = vld [vmem:[%s181 + $0x170] sm:$0xff]
  %v7611 = vld [vmem:[%s181 + $0x1b0] sm:$0xff]
  %v7612 = vld [vmem:[%s181 + $0x1b8] sm:$0xff]
  %v7613 = vld [vmem:[%s181 + $0x1c8] sm:$0xff]
  %v7614 = vld [vmem:[%s181 + $0x1d0] sm:$0xff]
  %v7615 = vld [vmem:[%s181 + $0x1e0] sm:$0xff]
  %v7616 = vld [vmem:[%s181 + $0x1e8] sm:$0xff]
  %v7617 = vld [vmem:[%s181 + $0x1f8] sm:$0xff]
  %v7618 = vld [vmem:[%s181 + $0x200] sm:$0xff]
  %v7619 = vld [vmem:[%s181 + $0x210] sm:$0xff]
  %v7620 = vld [vmem:[%s181 + $0x218] sm:$0xff]
  %v7621 = vld [vmem:[%s181 + $0x228] sm:$0xff]
  %v7622 = vld [vmem:[%s181 + $0x230] sm:$0xff]
  %v7623 = vld [vmem:[%s181 + $0x240] sm:$0xff]
  %v7624 = vld [vmem:[%s181 + $0x248] sm:$0xff]
  %v7625 = vld [vmem:[%s181 + $0x258] sm:$0xff]
  %v7626 = vld [vmem:[%s181 + $0x260] sm:$0xff]
  %v7627 = vld [vmem:[%s181 + $0x270] sm:$0xff]
  %v7628 = vld [vmem:[%s181 + $0x278] sm:$0xff]
  %v7629 = vld [vmem:[%s181 + $0x288] sm:$0xff]
  %v7630 = vld [vmem:[%s181 + $0x290] sm:$0xff]
  %v7631 = vld [vmem:[%s181 + $0x2a0] sm:$0xff]
  %v7632 = vld [vmem:[%s181 + $0x2a8] sm:$0xff]
  %v7633 = vld [vmem:[%s181 + $0x2b8] sm:$0xff]
  %v7634 = vld [vmem:[%s181 + $0x2c0] sm:$0xff]
  %v7635 = vld [vmem:[%s181 + $0x2d0] sm:$0xff]
  %v7636 = vld [vmem:[%s181 + $0x2d8] sm:$0xff]
  %v7637 = vld [vmem:[%s181 + $0x2e8] sm:$0xff]
  %v7638 = vld [vmem:[%s181 + $0x2f0] sm:$0xff]
  %v7639 = vld [vmem:[%s181 + $0x300] sm:$0xff]
  %v7640 = vld [vmem:[%s181 + $0x308] sm:$0xff]
  %v7641 = vld [vmem:[%s181 + $0x318] sm:$0xff]
  %v7642 = vld [vmem:[%s181 + $0x320] sm:$0xff]
  %7707 = vrot.lane.b32.xlu0 %v7579, 12
  %v7708 = vpop.permute.xlu0 %7707
  %7709 = vrot.lane.b32.xlu0 %v7580, 12
  %v7710 = vpop.permute.xlu0 %7709
  %7711 = vrot.lane.b32.xlu0 %v7581, 12
  %v7712 = vpop.permute.xlu0 %7711
  %7713 = vrot.lane.b32.xlu0 %v7582, 12
  %v7714 = vpop.permute.xlu0 %7713
  %7715 = vrot.lane.b32.xlu0 %v7583, 12
  %v7716 = vpop.permute.xlu0 %7715
  %7717 = vrot.lane.b32.xlu0 %v7584, 12
  %v7718 = vpop.permute.xlu0 %7717
  %7719 = vrot.lane.b32.xlu0 %v7585, 12
  %v7720 = vpop.permute.xlu0 %7719
  %7721 = vrot.lane.b32.xlu0 %v7586, 12
  %v7722 = vpop.permute.xlu0 %7721
  %7723 = vrot.lane.b32.xlu0 %v7587, 12
  %v7724 = vpop.permute.xlu0 %7723
  %7725 = vrot.lane.b32.xlu0 %v7588, 12
  %v7726 = vpop.permute.xlu0 %7725
  %7727 = vrot.lane.b32.xlu0 %v7589, 12
  %v7728 = vpop.permute.xlu0 %7727
  %7729 = vrot.lane.b32.xlu0 %v7590, 12
  %v7730 = vpop.permute.xlu0 %7729
  %7731 = vrot.lane.b32.xlu0 %v7591, 12
  %v7732 = vpop.permute.xlu0 %7731
  %7733 = vrot.lane.b32.xlu0 %v7592, 12
  %v7734 = vpop.permute.xlu0 %7733
  %7735 = vrot.lane.b32.xlu0 %v7593, 12
  %v7736 = vpop.permute.xlu0 %7735
  %7737 = vrot.lane.b32.xlu0 %v7594, 12
  %v7738 = vpop.permute.xlu0 %7737
  %7739 = vrot.lane.b32.xlu0 %v7595, 12
  %v7740 = vpop.permute.xlu0 %7739
  %7741 = vrot.lane.b32.xlu0 %v7596, 12
  %v7742 = vpop.permute.xlu0 %7741
  %7743 = vrot.lane.b32.xlu0 %v7597, 12
  %v7744 = vpop.permute.xlu0 %7743
  %7745 = vrot.lane.b32.xlu0 %v7598, 12
  %v7746 = vpop.permute.xlu0 %7745
  %7747 = vrot.lane.b32.xlu0 %v7599, 12
  %v7748 = vpop.permute.xlu0 %7747
  %7749 = vrot.lane.b32.xlu0 %v7600, 12
  %v7750 = vpop.permute.xlu0 %7749
  %7751 = vrot.lane.b32.xlu0 %v7601, 12
  %v7752 = vpop.permute.xlu0 %7751
  %7753 = vrot.lane.b32.xlu0 %v7602, 12
  %v7754 = vpop.permute.xlu0 %7753
  %7755 = vrot.lane.b32.xlu0 %v7603, 12
  %v7756 = vpop.permute.xlu0 %7755
  %7757 = vrot.lane.b32.xlu0 %v7604, 12
  %v7758 = vpop.permute.xlu0 %7757
  %7759 = vrot.lane.b32.xlu0 %v7605, 12
  %v7760 = vpop.permute.xlu0 %7759
  %7761 = vrot.lane.b32.xlu0 %v7606, 12
  %v7762 = vpop.permute.xlu0 %7761
  %7763 = vrot.lane.b32.xlu0 %v7607, 12
  %v7764 = vpop.permute.xlu0 %7763
  %7765 = vrot.lane.b32.xlu0 %v7608, 12
  %v7766 = vpop.permute.xlu0 %7765
  %7767 = vrot.lane.b32.xlu0 %v7609, 12
  %v7768 = vpop.permute.xlu0 %7767
  %7769 = vrot.lane.b32.xlu0 %v7610, 12
  %v7770 = vpop.permute.xlu0 %7769
  %7771 = vrot.lane.b32.xlu0 %v7611, 12
  %v7772 = vpop.permute.xlu0 %7771
  %7773 = vrot.lane.b32.xlu0 %v7612, 12
  %v7774 = vpop.permute.xlu0 %7773
  %7775 = vrot.lane.b32.xlu0 %v7613, 12
  %v7776 = vpop.permute.xlu0 %7775
  %7777 = vrot.lane.b32.xlu0 %v7614, 12
  %v7778 = vpop.permute.xlu0 %7777
  %7779 = vrot.lane.b32.xlu0 %v7615, 12
  %v7780 = vpop.permute.xlu0 %7779
  %7781 = vrot.lane.b32.xlu0 %v7616, 12
  %v7782 = vpop.permute.xlu0 %7781
  %7783 = vrot.lane.b32.xlu0 %v7617, 12
  %v7784 = vpop.permute.xlu0 %7783
  %7785 = vrot.lane.b32.xlu0 %v7618, 12
  %v7786 = vpop.permute.xlu0 %7785
  %7787 = vrot.lane.b32.xlu0 %v7619, 12
  %v7788 = vpop.permute.xlu0 %7787
  %7789 = vrot.lane.b32.xlu0 %v7620, 12
  %v7790 = vpop.permute.xlu0 %7789
  %7791 = vrot.lane.b32.xlu0 %v7621, 12
  %v7792 = vpop.permute.xlu0 %7791
  %7793 = vrot.lane.b32.xlu0 %v7622, 12
  %v7794 = vpop.permute.xlu0 %7793
  %7795 = vrot.lane.b32.xlu0 %v7623, 12
  %v7796 = vpop.permute.xlu0 %7795
  %7797 = vrot.lane.b32.xlu0 %v7624, 12
  %v7798 = vpop.permute.xlu0 %7797
  %7799 = vrot.lane.b32.xlu0 %v7625, 12
  %v7800 = vpop.permute.xlu0 %7799
  %7801 = vrot.lane.b32.xlu0 %v7626, 12
  %v7802 = vpop.permute.xlu0 %7801
  %7803 = vrot.lane.b32.xlu0 %v7627, 12
  %v7804 = vpop.permute.xlu0 %7803
  %7805 = vrot.lane.b32.xlu0 %v7628, 12
  %v7806 = vpop.permute.xlu0 %7805
  %7807 = vrot.lane.b32.xlu0 %v7629, 12
  %v7808 = vpop.permute.xlu0 %7807
  %7809 = vrot.lane.b32.xlu0 %v7630, 12
  %v7810 = vpop.permute.xlu0 %7809
  %7811 = vrot.lane.b32.xlu0 %v7631, 12
  %v7812 = vpop.permute.xlu0 %7811
  %7813 = vrot.lane.b32.xlu0 %v7632, 12
  %v7814 = vpop.permute.xlu0 %7813
  %7815 = vrot.lane.b32.xlu0 %v7633, 12
  %v7816 = vpop.permute.xlu0 %7815
  %7817 = vrot.lane.b32.xlu0 %v7634, 12
  %v7818 = vpop.permute.xlu0 %7817
  %7819 = vrot.lane.b32.xlu0 %v7635, 12
  %v7820 = vpop.permute.xlu0 %7819
  %7821 = vrot.lane.b32.xlu0 %v7636, 12
  %v7822 = vpop.permute.xlu0 %7821
  %7823 = vrot.lane.b32.xlu0 %v7637, 12
  %v7824 = vpop.permute.xlu0 %7823
  %7825 = vrot.lane.b32.xlu0 %v7638, 12
  %v7826 = vpop.permute.xlu0 %7825
  %7827 = vrot.lane.b32.xlu0 %v7639, 12
  %v7828 = vpop.permute.xlu0 %7827
  %7829 = vrot.lane.b32.xlu0 %v7640, 12
  %v7830 = vpop.permute.xlu0 %7829
  %7831 = vrot.lane.b32.xlu0 %v7641, 12
  %v7832 = vpop.permute.xlu0 %7831
  %7833 = vrot.lane.b32.xlu0 %v7642, 12
  %v7834 = vpop.permute.xlu0 %7833
  %vm7899 = vcmask 130144
  %7900 = vst.msk [vmem:[#allocation4] sm:$0xff] %vm7899, %v7708
  %7901 = vst.msk [vmem:[#allocation4 + $0x8] sm:$0xff] %vm7899, %v7710
  %7902 = vst.msk [vmem:[#allocation4 + $0x10] sm:$0xff] %vm7899, %v7712
  %7903 = vst.msk [vmem:[#allocation4 + $0x18] sm:$0xff] %vm7899, %v7714
  %7904 = vst.msk [vmem:[#allocation4 + $0x20] sm:$0xff] %vm7899, %v7716
  %7905 = vst.msk [vmem:[#allocation4 + $0x28] sm:$0xff] %vm7899, %v7718
  %7906 = vst.msk [vmem:[#allocation4 + $0x30] sm:$0xff] %vm7899, %v7720
  %7907 = vst.msk [vmem:[#allocation4 + $0x38] sm:$0xff] %vm7899, %v7722
  %7908 = vst.msk [vmem:[#allocation4 + $0x40] sm:$0xff] %vm7899, %v7724
  %7909 = vst.msk [vmem:[#allocation4 + $0x48] sm:$0xff] %vm7899, %v7726
  %7910 = vst.msk [vmem:[#allocation4 + $0x50] sm:$0xff] %vm7899, %v7728
  %7911 = vst.msk [vmem:[#allocation4 + $0x58] sm:$0xff] %vm7899, %v7730
  %7912 = vst.msk [vmem:[#allocation4 + $0x60] sm:$0xff] %vm7899, %v7732
  %7913 = vst.msk [vmem:[#allocation4 + $0x68] sm:$0xff] %vm7899, %v7734
  %7914 = vst.msk [vmem:[#allocation4 + $0x70] sm:$0xff] %vm7899, %v7736
  %7915 = vst.msk [vmem:[#allocation4 + $0x78] sm:$0xff] %vm7899, %v7738
  %7916 = vst.msk [vmem:[#allocation4 + $0x80] sm:$0xff] %vm7899, %v7740
  %7917 = vst.msk [vmem:[#allocation4 + $0x88] sm:$0xff] %vm7899, %v7742
  %7918 = vst.msk [vmem:[#allocation4 + $0x90] sm:$0xff] %vm7899, %v7744
  %7919 = vst.msk [vmem:[#allocation4 + $0x98] sm:$0xff] %vm7899, %v7746
  %7920 = vst.msk [vmem:[#allocation4 + $0xa0] sm:$0xff] %vm7899, %v7748
  %7921 = vst.msk [vmem:[#allocation4 + $0xa8] sm:$0xff] %vm7899, %v7750
  %7922 = vst.msk [vmem:[#allocation4 + $0xb0] sm:$0xff] %vm7899, %v7752
  %7923 = vst.msk [vmem:[#allocation4 + $0xb8] sm:$0xff] %vm7899, %v7754
  %7924 = vst.msk [vmem:[#allocation4 + $0xc0] sm:$0xff] %vm7899, %v7756
  %7925 = vst.msk [vmem:[#allocation4 + $0xc8] sm:$0xff] %vm7899, %v7758
  %7926 = vst.msk [vmem:[#allocation4 + $0xd0] sm:$0xff] %vm7899, %v7760
  %7927 = vst.msk [vmem:[#allocation4 + $0xd8] sm:$0xff] %vm7899, %v7762
  %7928 = vst.msk [vmem:[#allocation4 + $0xe0] sm:$0xff] %vm7899, %v7764
  %7929 = vst.msk [vmem:[#allocation4 + $0xe8] sm:$0xff] %vm7899, %v7766
  %7930 = vst.msk [vmem:[#allocation4 + $0xf0] sm:$0xff] %vm7899, %v7768
  %7931 = vst.msk [vmem:[#allocation4 + $0xf8] sm:$0xff] %vm7899, %v7770
  %7932 = vst.msk [vmem:[#allocation4 + $0x100] sm:$0xff] %vm7899, %v7772
  %7933 = vst.msk [vmem:[#allocation4 + $0x108] sm:$0xff] %vm7899, %v7774
  %7934 = vst.msk [vmem:[#allocation4 + $0x110] sm:$0xff] %vm7899, %v7776
  %7935 = vst.msk [vmem:[#allocation4 + $0x118] sm:$0xff] %vm7899, %v7778
  %7936 = vst.msk [vmem:[#allocation4 + $0x120] sm:$0xff] %vm7899, %v7780
  %7937 = vst.msk [vmem:[#allocation4 + $0x128] sm:$0xff] %vm7899, %v7782
  %7938 = vst.msk [vmem:[#allocation4 + $0x130] sm:$0xff] %vm7899, %v7784
  %7939 = vst.msk [vmem:[#allocation4 + $0x138] sm:$0xff] %vm7899, %v7786
  %7940 = vst.msk [vmem:[#allocation4 + $0x140] sm:$0xff] %vm7899, %v7788
  %7941 = vst.msk [vmem:[#allocation4 + $0x148] sm:$0xff] %vm7899, %v7790
  %7942 = vst.msk [vmem:[#allocation4 + $0x150] sm:$0xff] %vm7899, %v7792
  %7943 = vst.msk [vmem:[#allocation4 + $0x158] sm:$0xff] %vm7899, %v7794
  %7944 = vst.msk [vmem:[#allocation4 + $0x160] sm:$0xff] %vm7899, %v7796
  %7945 = vst.msk [vmem:[#allocation4 + $0x168] sm:$0xff] %vm7899, %v7798
  %7946 = vst.msk [vmem:[#allocation4 + $0x170] sm:$0xff] %vm7899, %v7800
  %7947 = vst.msk [vmem:[#allocation4 + $0x178] sm:$0xff] %vm7899, %v7802
  %7948 = vst.msk [vmem:[#allocation4 + $0x180] sm:$0xff] %vm7899, %v7804
  %7949 = vst.msk [vmem:[#allocation4 + $0x188] sm:$0xff] %vm7899, %v7806
  %7950 = vst.msk [vmem:[#allocation4 + $0x190] sm:$0xff] %vm7899, %v7808
  %7951 = vst.msk [vmem:[#allocation4 + $0x198] sm:$0xff] %vm7899, %v7810
  %7952 = vst.msk [vmem:[#allocation4 + $0x1a0] sm:$0xff] %vm7899, %v7812
  %7953 = vst.msk [vmem:[#allocation4 + $0x1a8] sm:$0xff] %vm7899, %v7814
  %7954 = vst.msk [vmem:[#allocation4 + $0x1b0] sm:$0xff] %vm7899, %v7816
  %7955 = vst.msk [vmem:[#allocation4 + $0x1b8] sm:$0xff] %vm7899, %v7818
  %7956 = vst.msk [vmem:[#allocation4 + $0x1c0] sm:$0xff] %vm7899, %v7820
  %7957 = vst.msk [vmem:[#allocation4 + $0x1c8] sm:$0xff] %vm7899, %v7822
  %7958 = vst.msk [vmem:[#allocation4 + $0x1d0] sm:$0xff] %vm7899, %v7824
  %7959 = vst.msk [vmem:[#allocation4 + $0x1d8] sm:$0xff] %vm7899, %v7826
  %7960 = vst.msk [vmem:[#allocation4 + $0x1e0] sm:$0xff] %vm7899, %v7828
  %7961 = vst.msk [vmem:[#allocation4 + $0x1e8] sm:$0xff] %vm7899, %v7830
  %7962 = vst.msk [vmem:[#allocation4 + $0x1f0] sm:$0xff] %vm7899, %v7832
  %7963 = vst.msk [vmem:[#allocation4 + $0x1f8] sm:$0xff] %vm7899, %v7834
  %v7964 = vld [vmem:[%s181 + $0x1] sm:$0xff]
  %v7965 = vld [vmem:[%s181 + $0x9] sm:$0xff]
  %v7966 = vld [vmem:[%s181 + $0x19] sm:$0xff]
  %v7967 = vld [vmem:[%s181 + $0x21] sm:$0xff]
  %v7968 = vld [vmem:[%s181 + $0x31] sm:$0xff]
  %v7969 = vld [vmem:[%s181 + $0x39] sm:$0xff]
  %v7970 = vld [vmem:[%s181 + $0x49] sm:$0xff]
  %v7971 = vld [vmem:[%s181 + $0x51] sm:$0xff]
  %v7972 = vld [vmem:[%s181 + $0x61] sm:$0xff]
  %v7973 = vld [vmem:[%s181 + $0x69] sm:$0xff]
  %v7974 = vld [vmem:[%s181 + $0x79] sm:$0xff]
  %v7975 = vld [vmem:[%s181 + $0x81] sm:$0xff]
  %v7976 = vld [vmem:[%s181 + $0x91] sm:$0xff]
  %v7977 = vld [vmem:[%s181 + $0x99] sm:$0xff]
  %v7978 = vld [vmem:[%s181 + $0xa9] sm:$0xff]
  %v7979 = vld [vmem:[%s181 + $0xb1] sm:$0xff]
  %v7980 = vld [vmem:[%s181 + $0xc1] sm:$0xff]
  %v7981 = vld [vmem:[%s181 + $0xc9] sm:$0xff]
  %v7982 = vld [vmem:[%s181 + $0xd9] sm:$0xff]
  %v7983 = vld [vmem:[%s181 + $0xe1] sm:$0xff]
  %v7984 = vld [vmem:[%s181 + $0xf1] sm:$0xff]
  %v7985 = vld [vmem:[%s181 + $0xf9] sm:$0xff]
  %v7986 = vld [vmem:[%s181 + $0x109] sm:$0xff]
  %v7987 = vld [vmem:[%s181 + $0x111] sm:$0xff]
  %v7988 = vld [vmem:[%s181 + $0x121] sm:$0xff]
  %v7989 = vld [vmem:[%s181 + $0x129] sm:$0xff]
  %v7990 = vld [vmem:[%s181 + $0x139] sm:$0xff]
  %v7991 = vld [vmem:[%s181 + $0x141] sm:$0xff]
  %v7992 = vld [vmem:[%s181 + $0x151] sm:$0xff]
  %v7993 = vld [vmem:[%s181 + $0x159] sm:$0xff]
  %v7994 = vld [vmem:[%s181 + $0x169] sm:$0xff]
  %v7995 = vld [vmem:[%s181 + $0x171] sm:$0xff]
  %v7996 = vld [vmem:[%s181 + $0x1b1] sm:$0xff]
  %v7997 = vld [vmem:[%s181 + $0x1b9] sm:$0xff]
  %v7998 = vld [vmem:[%s181 + $0x1c9] sm:$0xff]
  %v7999 = vld [vmem:[%s181 + $0x1d1] sm:$0xff]
  %v8000 = vld [vmem:[%s181 + $0x1e1] sm:$0xff]
  %v8001 = vld [vmem:[%s181 + $0x1e9] sm:$0xff]
  %v8002 = vld [vmem:[%s181 + $0x1f9] sm:$0xff]
  %v8003 = vld [vmem:[%s181 + $0x201] sm:$0xff]
  %v8004 = vld [vmem:[%s181 + $0x211] sm:$0xff]
  %v8005 = vld [vmem:[%s181 + $0x219] sm:$0xff]
  %v8006 = vld [vmem:[%s181 + $0x229] sm:$0xff]
  %v8007 = vld [vmem:[%s181 + $0x231] sm:$0xff]
  %v8008 = vld [vmem:[%s181 + $0x241] sm:$0xff]
  %v8009 = vld [vmem:[%s181 + $0x249] sm:$0xff]
  %v8010 = vld [vmem:[%s181 + $0x259] sm:$0xff]
  %v8011 = vld [vmem:[%s181 + $0x261] sm:$0xff]
  %v8012 = vld [vmem:[%s181 + $0x271] sm:$0xff]
  %v8013 = vld [vmem:[%s181 + $0x279] sm:$0xff]
  %v8014 = vld [vmem:[%s181 + $0x289] sm:$0xff]
  %v8015 = vld [vmem:[%s181 + $0x291] sm:$0xff]
  %v8016 = vld [vmem:[%s181 + $0x2a1] sm:$0xff]
  %v8017 = vld [vmem:[%s181 + $0x2a9] sm:$0xff]
  %v8018 = vld [vmem:[%s181 + $0x2b9] sm:$0xff]
  %v8019 = vld [vmem:[%s181 + $0x2c1] sm:$0xff]
  %v8020 = vld [vmem:[%s181 + $0x2d1] sm:$0xff]
  %v8021 = vld [vmem:[%s181 + $0x2d9] sm:$0xff]
  %v8022 = vld [vmem:[%s181 + $0x2e9] sm:$0xff]
  %v8023 = vld [vmem:[%s181 + $0x2f1] sm:$0xff]
  %v8024 = vld [vmem:[%s181 + $0x301] sm:$0xff]
  %v8025 = vld [vmem:[%s181 + $0x309] sm:$0xff]
  %v8026 = vld [vmem:[%s181 + $0x319] sm:$0xff]
  %v8027 = vld [vmem:[%s181 + $0x321] sm:$0xff]
  %8092 = vrot.lane.b32.xlu0 %v7964, 16
  %v8093 = vpop.permute.xlu0 %8092
  %8094 = vrot.lane.b32.xlu0 %v7965, 16
  %v8095 = vpop.permute.xlu0 %8094
  %8096 = vrot.lane.b32.xlu0 %v7966, 16
  %v8097 = vpop.permute.xlu0 %8096
  %8098 = vrot.lane.b32.xlu0 %v7967, 16
  %v8099 = vpop.permute.xlu0 %8098
  %8100 = vrot.lane.b32.xlu0 %v7968, 16
  %v8101 = vpop.permute.xlu0 %8100
  %8102 = vrot.lane.b32.xlu0 %v7969, 16
  %v8103 = vpop.permute.xlu0 %8102
  %8104 = vrot.lane.b32.xlu0 %v7970, 16
  %v8105 = vpop.permute.xlu0 %8104
  %8106 = vrot.lane.b32.xlu0 %v7971, 16
  %v8107 = vpop.permute.xlu0 %8106
  %8108 = vrot.lane.b32.xlu0 %v7972, 16
  %v8109 = vpop.permute.xlu0 %8108
  %8110 = vrot.lane.b32.xlu0 %v7973, 16
  %v8111 = vpop.permute.xlu0 %8110
  %8112 = vrot.lane.b32.xlu0 %v7974, 16
  %v8113 = vpop.permute.xlu0 %8112
  %8114 = vrot.lane.b32.xlu0 %v7975, 16
  %v8115 = vpop.permute.xlu0 %8114
  %8116 = vrot.lane.b32.xlu0 %v7976, 16
  %v8117 = vpop.permute.xlu0 %8116
  %8118 = vrot.lane.b32.xlu0 %v7977, 16
  %v8119 = vpop.permute.xlu0 %8118
  %8120 = vrot.lane.b32.xlu0 %v7978, 16
  %v8121 = vpop.permute.xlu0 %8120
  %8122 = vrot.lane.b32.xlu0 %v7979, 16
  %v8123 = vpop.permute.xlu0 %8122
  %8124 = vrot.lane.b32.xlu0 %v7980, 16
  %v8125 = vpop.permute.xlu0 %8124
  %8126 = vrot.lane.b32.xlu0 %v7981, 16
  %v8127 = vpop.permute.xlu0 %8126
  %8128 = vrot.lane.b32.xlu0 %v7982, 16
  %v8129 = vpop.permute.xlu0 %8128
  %8130 = vrot.lane.b32.xlu0 %v7983, 16
  %v8131 = vpop.permute.xlu0 %8130
  %8132 = vrot.lane.b32.xlu0 %v7984, 16
  %v8133 = vpop.permute.xlu0 %8132
  %8134 = vrot.lane.b32.xlu0 %v7985, 16
  %v8135 = vpop.permute.xlu0 %8134
  %8136 = vrot.lane.b32.xlu0 %v7986, 16
  %v8137 = vpop.permute.xlu0 %8136
  %8138 = vrot.lane.b32.xlu0 %v7987, 16
  %v8139 = vpop.permute.xlu0 %8138
  %8140 = vrot.lane.b32.xlu0 %v7988, 16
  %v8141 = vpop.permute.xlu0 %8140
  %8142 = vrot.lane.b32.xlu0 %v7989, 16
  %v8143 = vpop.permute.xlu0 %8142
  %8144 = vrot.lane.b32.xlu0 %v7990, 16
  %v8145 = vpop.permute.xlu0 %8144
  %8146 = vrot.lane.b32.xlu0 %v7991, 16
  %v8147 = vpop.permute.xlu0 %8146
  %8148 = vrot.lane.b32.xlu0 %v7992, 16
  %v8149 = vpop.permute.xlu0 %8148
  %8150 = vrot.lane.b32.xlu0 %v7993, 16
  %v8151 = vpop.permute.xlu0 %8150
  %8152 = vrot.lane.b32.xlu0 %v7994, 16
  %v8153 = vpop.permute.xlu0 %8152
  %8154 = vrot.lane.b32.xlu0 %v7995, 16
  %v8155 = vpop.permute.xlu0 %8154
  %8156 = vrot.lane.b32.xlu0 %v7996, 16
  %v8157 = vpop.permute.xlu0 %8156
  %8158 = vrot.lane.b32.xlu0 %v7997, 16
  %v8159 = vpop.permute.xlu0 %8158
  %8160 = vrot.lane.b32.xlu0 %v7998, 16
  %v8161 = vpop.permute.xlu0 %8160
  %8162 = vrot.lane.b32.xlu0 %v7999, 16
  %v8163 = vpop.permute.xlu0 %8162
  %8164 = vrot.lane.b32.xlu0 %v8000, 16
  %v8165 = vpop.permute.xlu0 %8164
  %8166 = vrot.lane.b32.xlu0 %v8001, 16
  %v8167 = vpop.permute.xlu0 %8166
  %8168 = vrot.lane.b32.xlu0 %v8002, 16
  %v8169 = vpop.permute.xlu0 %8168
  %8170 = vrot.lane.b32.xlu0 %v8003, 16
  %v8171 = vpop.permute.xlu0 %8170
  %8172 = vrot.lane.b32.xlu0 %v8004, 16
  %v8173 = vpop.permute.xlu0 %8172
  %8174 = vrot.lane.b32.xlu0 %v8005, 16
  %v8175 = vpop.permute.xlu0 %8174
  %8176 = vrot.lane.b32.xlu0 %v8006, 16
  %v8177 = vpop.permute.xlu0 %8176
  %8178 = vrot.lane.b32.xlu0 %v8007, 16
  %v8179 = vpop.permute.xlu0 %8178
  %8180 = vrot.lane.b32.xlu0 %v8008, 16
  %v8181 = vpop.permute.xlu0 %8180
  %8182 = vrot.lane.b32.xlu0 %v8009, 16
  %v8183 = vpop.permute.xlu0 %8182
  %8184 = vrot.lane.b32.xlu0 %v8010, 16
  %v8185 = vpop.permute.xlu0 %8184
  %8186 = vrot.lane.b32.xlu0 %v8011, 16
  %v8187 = vpop.permute.xlu0 %8186
  %8188 = vrot.lane.b32.xlu0 %v8012, 16
  %v8189 = vpop.permute.xlu0 %8188
  %8190 = vrot.lane.b32.xlu0 %v8013, 16
  %v8191 = vpop.permute.xlu0 %8190
  %8192 = vrot.lane.b32.xlu0 %v8014, 16
  %v8193 = vpop.permute.xlu0 %8192
  %8194 = vrot.lane.b32.xlu0 %v8015, 16
  %v8195 = vpop.permute.xlu0 %8194
  %8196 = vrot.lane.b32.xlu0 %v8016, 16
  %v8197 = vpop.permute.xlu0 %8196
  %8198 = vrot.lane.b32.xlu0 %v8017, 16
  %v8199 = vpop.permute.xlu0 %8198
  %8200 = vrot.lane.b32.xlu0 %v8018, 16
  %v8201 = vpop.permute.xlu0 %8200
  %8202 = vrot.lane.b32.xlu0 %v8019, 16
  %v8203 = vpop.permute.xlu0 %8202
  %8204 = vrot.lane.b32.xlu0 %v8020, 16
  %v8205 = vpop.permute.xlu0 %8204
  %8206 = vrot.lane.b32.xlu0 %v8021, 16
  %v8207 = vpop.permute.xlu0 %8206
  %8208 = vrot.lane.b32.xlu0 %v8022, 16
  %v8209 = vpop.permute.xlu0 %8208
  %8210 = vrot.lane.b32.xlu0 %v8023, 16
  %v8211 = vpop.permute.xlu0 %8210
  %8212 = vrot.lane.b32.xlu0 %v8024, 16
  %v8213 = vpop.permute.xlu0 %8212
  %8214 = vrot.lane.b32.xlu0 %v8025, 16
  %v8215 = vpop.permute.xlu0 %8214
  %8216 = vrot.lane.b32.xlu0 %v8026, 16
  %v8217 = vpop.permute.xlu0 %8216
  %8218 = vrot.lane.b32.xlu0 %v8027, 16
  %v8219 = vpop.permute.xlu0 %8218
  %vm8284 = vcmask 162944
  %8285 = vst.msk [vmem:[#allocation4] sm:$0xff] %vm8284, %v8093
  %8286 = vst.msk [vmem:[#allocation4 + $0x8] sm:$0xff] %vm8284, %v8095
  %8287 = vst.msk [vmem:[#allocation4 + $0x10] sm:$0xff] %vm8284, %v8097
  %8288 = vst.msk [vmem:[#allocation4 + $0x18] sm:$0xff] %vm8284, %v8099
  %8289 = vst.msk [vmem:[#allocation4 + $0x20] sm:$0xff] %vm8284, %v8101
  %8290 = vst.msk [vmem:[#allocation4 + $0x28] sm:$0xff] %vm8284, %v8103
  %8291 = vst.msk [vmem:[#allocation4 + $0x30] sm:$0xff] %vm8284, %v8105
  %8292 = vst.msk [vmem:[#allocation4 + $0x38] sm:$0xff] %vm8284, %v8107
  %8293 = vst.msk [vmem:[#allocation4 + $0x40] sm:$0xff] %vm8284, %v8109
  %8294 = vst.msk [vmem:[#allocation4 + $0x48] sm:$0xff] %vm8284, %v8111
  %8295 = vst.msk [vmem:[#allocation4 + $0x50] sm:$0xff] %vm8284, %v8113
  %8296 = vst.msk [vmem:[#allocation4 + $0x58] sm:$0xff] %vm8284, %v8115
  %8297 = vst.msk [vmem:[#allocation4 + $0x60] sm:$0xff] %vm8284, %v8117
  %8298 = vst.msk [vmem:[#allocation4 + $0x68] sm:$0xff] %vm8284, %v8119
  %8299 = vst.msk [vmem:[#allocation4 + $0x70] sm:$0xff] %vm8284, %v8121
  %8300 = vst.msk [vmem:[#allocation4 + $0x78] sm:$0xff] %vm8284, %v8123
  %8301 = vst.msk [vmem:[#allocation4 + $0x80] sm:$0xff] %vm8284, %v8125
  %8302 = vst.msk [vmem:[#allocation4 + $0x88] sm:$0xff] %vm8284, %v8127
  %8303 = vst.msk [vmem:[#allocation4 + $0x90] sm:$0xff] %vm8284, %v8129
  %8304 = vst.msk [vmem:[#allocation4 + $0x98] sm:$0xff] %vm8284, %v8131
  %8305 = vst.msk [vmem:[#allocation4 + $0xa0] sm:$0xff] %vm8284, %v8133
  %8306 = vst.msk [vmem:[#allocation4 + $0xa8] sm:$0xff] %vm8284, %v8135
  %8307 = vst.msk [vmem:[#allocation4 + $0xb0] sm:$0xff] %vm8284, %v8137
  %8308 = vst.msk [vmem:[#allocation4 + $0xb8] sm:$0xff] %vm8284, %v8139
  %8309 = vst.msk [vmem:[#allocation4 + $0xc0] sm:$0xff] %vm8284, %v8141
  %8310 = vst.msk [vmem:[#allocation4 + $0xc8] sm:$0xff] %vm8284, %v8143
  %8311 = vst.msk [vmem:[#allocation4 + $0xd0] sm:$0xff] %vm8284, %v8145
  %8312 = vst.msk [vmem:[#allocation4 + $0xd8] sm:$0xff] %vm8284, %v8147
  %8313 = vst.msk [vmem:[#allocation4 + $0xe0] sm:$0xff] %vm8284, %v8149
  %8314 = vst.msk [vmem:[#allocation4 + $0xe8] sm:$0xff] %vm8284, %v8151
  %8315 = vst.msk [vmem:[#allocation4 + $0xf0] sm:$0xff] %vm8284, %v8153
  %8316 = vst.msk [vmem:[#allocation4 + $0xf8] sm:$0xff] %vm8284, %v8155
  %8317 = vst.msk [vmem:[#allocation4 + $0x100] sm:$0xff] %vm8284, %v8157
  %8318 = vst.msk [vmem:[#allocation4 + $0x108] sm:$0xff] %vm8284, %v8159
  %8319 = vst.msk [vmem:[#allocation4 + $0x110] sm:$0xff] %vm8284, %v8161
  %8320 = vst.msk [vmem:[#allocation4 + $0x118] sm:$0xff] %vm8284, %v8163
  %8321 = vst.msk [vmem:[#allocation4 + $0x120] sm:$0xff] %vm8284, %v8165
  %8322 = vst.msk [vmem:[#allocation4 + $0x128] sm:$0xff] %vm8284, %v8167
  %8323 = vst.msk [vmem:[#allocation4 + $0x130] sm:$0xff] %vm8284, %v8169
  %8324 = vst.msk [vmem:[#allocation4 + $0x138] sm:$0xff] %vm8284, %v8171
  %8325 = vst.msk [vmem:[#allocation4 + $0x140] sm:$0xff] %vm8284, %v8173
  %8326 = vst.msk [vmem:[#allocation4 + $0x148] sm:$0xff] %vm8284, %v8175
  %8327 = vst.msk [vmem:[#allocation4 + $0x150] sm:$0xff] %vm8284, %v8177
  %8328 = vst.msk [vmem:[#allocation4 + $0x158] sm:$0xff] %vm8284, %v8179
  %8329 = vst.msk [vmem:[#allocation4 + $0x160] sm:$0xff] %vm8284, %v8181
  %8330 = vst.msk [vmem:[#allocation4 + $0x168] sm:$0xff] %vm8284, %v8183
  %8331 = vst.msk [vmem:[#allocation4 + $0x170] sm:$0xff] %vm8284, %v8185
  %8332 = vst.msk [vmem:[#allocation4 + $0x178] sm:$0xff] %vm8284, %v8187
  %8333 = vst.msk [vmem:[#allocation4 + $0x180] sm:$0xff] %vm8284, %v8189
  %8334 = vst.msk [vmem:[#allocation4 + $0x188] sm:$0xff] %vm8284, %v8191
  %8335 = vst.msk [vmem:[#allocation4 + $0x190] sm:$0xff] %vm8284, %v8193
  %8336 = vst.msk [vmem:[#allocation4 + $0x198] sm:$0xff] %vm8284, %v8195
  %8337 = vst.msk [vmem:[#allocation4 + $0x1a0] sm:$0xff] %vm8284, %v8197
  %8338 = vst.msk [vmem:[#allocation4 + $0x1a8] sm:$0xff] %vm8284, %v8199
  %8339 = vst.msk [vmem:[#allocation4 + $0x1b0] sm:$0xff] %vm8284, %v8201
  %8340 = vst.msk [vmem:[#allocation4 + $0x1b8] sm:$0xff] %vm8284, %v8203
  %8341 = vst.msk [vmem:[#allocation4 + $0x1c0] sm:$0xff] %vm8284, %v8205
  %8342 = vst.msk [vmem:[#allocation4 + $0x1c8] sm:$0xff] %vm8284, %v8207
  %8343 = vst.msk [vmem:[#allocation4 + $0x1d0] sm:$0xff] %vm8284, %v8209
  %8344 = vst.msk [vmem:[#allocation4 + $0x1d8] sm:$0xff] %vm8284, %v8211
  %8345 = vst.msk [vmem:[#allocation4 + $0x1e0] sm:$0xff] %vm8284, %v8213
  %8346 = vst.msk [vmem:[#allocation4 + $0x1e8] sm:$0xff] %vm8284, %v8215
  %8347 = vst.msk [vmem:[#allocation4 + $0x1f0] sm:$0xff] %vm8284, %v8217
  %8348 = vst.msk [vmem:[#allocation4 + $0x1f8] sm:$0xff] %vm8284, %v8219
  %v8349 = vld [vmem:[%s181 + $0x2] sm:$0xff]
  %v8350 = vld [vmem:[%s181 + $0xa] sm:$0xff]
  %v8351 = vld [vmem:[%s181 + $0x1a] sm:$0xff]
  %v8352 = vld [vmem:[%s181 + $0x22] sm:$0xff]
  %v8353 = vld [vmem:[%s181 + $0x32] sm:$0xff]
  %v8354 = vld [vmem:[%s181 + $0x3a] sm:$0xff]
  %v8355 = vld [vmem:[%s181 + $0x4a] sm:$0xff]
  %v8356 = vld [vmem:[%s181 + $0x52] sm:$0xff]
  %v8357 = vld [vmem:[%s181 + $0x62] sm:$0xff]
  %v8358 = vld [vmem:[%s181 + $0x6a] sm:$0xff]
  %v8359 = vld [vmem:[%s181 + $0x7a] sm:$0xff]
  %v8360 = vld [vmem:[%s181 + $0x82] sm:$0xff]
  %v8361 = vld [vmem:[%s181 + $0x92] sm:$0xff]
  %v8362 = vld [vmem:[%s181 + $0x9a] sm:$0xff]
  %v8363 = vld [vmem:[%s181 + $0xaa] sm:$0xff]
  %v8364 = vld [vmem:[%s181 + $0xb2] sm:$0xff]
  %v8365 = vld [vmem:[%s181 + $0xc2] sm:$0xff]
  %v8366 = vld [vmem:[%s181 + $0xca] sm:$0xff]
  %v8367 = vld [vmem:[%s181 + $0xda] sm:$0xff]
  %v8368 = vld [vmem:[%s181 + $0xe2] sm:$0xff]
  %v8369 = vld [vmem:[%s181 + $0xf2] sm:$0xff]
  %v8370 = vld [vmem:[%s181 + $0xfa] sm:$0xff]
  %v8371 = vld [vmem:[%s181 + $0x10a] sm:$0xff]
  %v8372 = vld [vmem:[%s181 + $0x112] sm:$0xff]
  %v8373 = vld [vmem:[%s181 + $0x122] sm:$0xff]
  %v8374 = vld [vmem:[%s181 + $0x12a] sm:$0xff]
  %v8375 = vld [vmem:[%s181 + $0x13a] sm:$0xff]
  %v8376 = vld [vmem:[%s181 + $0x142] sm:$0xff]
  %v8377 = vld [vmem:[%s181 + $0x152] sm:$0xff]
  %v8378 = vld [vmem:[%s181 + $0x15a] sm:$0xff]
  %v8379 = vld [vmem:[%s181 + $0x16a] sm:$0xff]
  %v8380 = vld [vmem:[%s181 + $0x172] sm:$0xff]
  %v8381 = vld [vmem:[%s181 + $0x1b2] sm:$0xff]
  %v8382 = vld [vmem:[%s181 + $0x1ba] sm:$0xff]
  %v8383 = vld [vmem:[%s181 + $0x1ca] sm:$0xff]
  %v8384 = vld [vmem:[%s181 + $0x1d2] sm:$0xff]
  %v8385 = vld [vmem:[%s181 + $0x1e2] sm:$0xff]
  %v8386 = vld [vmem:[%s181 + $0x1ea] sm:$0xff]
  %v8387 = vld [vmem:[%s181 + $0x1fa] sm:$0xff]
  %v8388 = vld [vmem:[%s181 + $0x202] sm:$0xff]
  %v8389 = vld [vmem:[%s181 + $0x212] sm:$0xff]
  %v8390 = vld [vmem:[%s181 + $0x21a] sm:$0xff]
  %v8391 = vld [vmem:[%s181 + $0x22a] sm:$0xff]
  %v8392 = vld [vmem:[%s181 + $0x232] sm:$0xff]
  %v8393 = vld [vmem:[%s181 + $0x242] sm:$0xff]
  %v8394 = vld [vmem:[%s181 + $0x24a] sm:$0xff]
  %v8395 = vld [vmem:[%s181 + $0x25a] sm:$0xff]
  %v8396 = vld [vmem:[%s181 + $0x262] sm:$0xff]
  %v8397 = vld [vmem:[%s181 + $0x272] sm:$0xff]
  %v8398 = vld [vmem:[%s181 + $0x27a] sm:$0xff]
  %v8399 = vld [vmem:[%s181 + $0x28a] sm:$0xff]
  %v8400 = vld [vmem:[%s181 + $0x292] sm:$0xff]
  %v8401 = vld [vmem:[%s181 + $0x2a2] sm:$0xff]
  %v8402 = vld [vmem:[%s181 + $0x2aa] sm:$0xff]
  %v8403 = vld [vmem:[%s181 + $0x2ba] sm:$0xff]
  %v8404 = vld [vmem:[%s181 + $0x2c2] sm:$0xff]
  %v8405 = vld [vmem:[%s181 + $0x2d2] sm:$0xff]
  %v8406 = vld [vmem:[%s181 + $0x2da] sm:$0xff]
  %v8407 = vld [vmem:[%s181 + $0x2ea] sm:$0xff]
  %v8408 = vld [vmem:[%s181 + $0x2f2] sm:$0xff]
  %v8409 = vld [vmem:[%s181 + $0x302] sm:$0xff]
  %v8410 = vld [vmem:[%s181 + $0x30a] sm:$0xff]
  %v8411 = vld [vmem:[%s181 + $0x31a] sm:$0xff]
  %v8412 = vld [vmem:[%s181 + $0x322] sm:$0xff]
  %8477 = vrot.lane.b32.xlu0 %v8349, 20
  %v8478 = vpop.permute.xlu0 %8477
  %8479 = vrot.lane.b32.xlu0 %v8350, 20
  %v8480 = vpop.permute.xlu0 %8479
  %8481 = vrot.lane.b32.xlu0 %v8351, 20
  %v8482 = vpop.permute.xlu0 %8481
  %8483 = vrot.lane.b32.xlu0 %v8352, 20
  %v8484 = vpop.permute.xlu0 %8483
  %8485 = vrot.lane.b32.xlu0 %v8353, 20
  %v8486 = vpop.permute.xlu0 %8485
  %8487 = vrot.lane.b32.xlu0 %v8354, 20
  %v8488 = vpop.permute.xlu0 %8487
  %8489 = vrot.lane.b32.xlu0 %v8355, 20
  %v8490 = vpop.permute.xlu0 %8489
  %8491 = vrot.lane.b32.xlu0 %v8356, 20
  %v8492 = vpop.permute.xlu0 %8491
  %8493 = vrot.lane.b32.xlu0 %v8357, 20
  %v8494 = vpop.permute.xlu0 %8493
  %8495 = vrot.lane.b32.xlu0 %v8358, 20
  %v8496 = vpop.permute.xlu0 %8495
  %8497 = vrot.lane.b32.xlu0 %v8359, 20
  %v8498 = vpop.permute.xlu0 %8497
  %8499 = vrot.lane.b32.xlu0 %v8360, 20
  %v8500 = vpop.permute.xlu0 %8499
  %8501 = vrot.lane.b32.xlu0 %v8361, 20
  %v8502 = vpop.permute.xlu0 %8501
  %8503 = vrot.lane.b32.xlu0 %v8362, 20
  %v8504 = vpop.permute.xlu0 %8503
  %8505 = vrot.lane.b32.xlu0 %v8363, 20
  %v8506 = vpop.permute.xlu0 %8505
  %8507 = vrot.lane.b32.xlu0 %v8364, 20
  %v8508 = vpop.permute.xlu0 %8507
  %8509 = vrot.lane.b32.xlu0 %v8365, 20
  %v8510 = vpop.permute.xlu0 %8509
  %8511 = vrot.lane.b32.xlu0 %v8366, 20
  %v8512 = vpop.permute.xlu0 %8511
  %8513 = vrot.lane.b32.xlu0 %v8367, 20
  %v8514 = vpop.permute.xlu0 %8513
  %8515 = vrot.lane.b32.xlu0 %v8368, 20
  %v8516 = vpop.permute.xlu0 %8515
  %8517 = vrot.lane.b32.xlu0 %v8369, 20
  %v8518 = vpop.permute.xlu0 %8517
  %8519 = vrot.lane.b32.xlu0 %v8370, 20
  %v8520 = vpop.permute.xlu0 %8519
  %8521 = vrot.lane.b32.xlu0 %v8371, 20
  %v8522 = vpop.permute.xlu0 %8521
  %8523 = vrot.lane.b32.xlu0 %v8372, 20
  %v8524 = vpop.permute.xlu0 %8523
  %8525 = vrot.lane.b32.xlu0 %v8373, 20
  %v8526 = vpop.permute.xlu0 %8525
  %8527 = vrot.lane.b32.xlu0 %v8374, 20
  %v8528 = vpop.permute.xlu0 %8527
  %8529 = vrot.lane.b32.xlu0 %v8375, 20
  %v8530 = vpop.permute.xlu0 %8529
  %8531 = vrot.lane.b32.xlu0 %v8376, 20
  %v8532 = vpop.permute.xlu0 %8531
  %8533 = vrot.lane.b32.xlu0 %v8377, 20
  %v8534 = vpop.permute.xlu0 %8533
  %8535 = vrot.lane.b32.xlu0 %v8378, 20
  %v8536 = vpop.permute.xlu0 %8535
  %8537 = vrot.lane.b32.xlu0 %v8379, 20
  %v8538 = vpop.permute.xlu0 %8537
  %8539 = vrot.lane.b32.xlu0 %v8380, 20
  %v8540 = vpop.permute.xlu0 %8539
  %8541 = vrot.lane.b32.xlu0 %v8381, 20
  %v8542 = vpop.permute.xlu0 %8541
  %8543 = vrot.lane.b32.xlu0 %v8382, 20
  %v8544 = vpop.permute.xlu0 %8543
  %8545 = vrot.lane.b32.xlu0 %v8383, 20
  %v8546 = vpop.permute.xlu0 %8545
  %8547 = vrot.lane.b32.xlu0 %v8384, 20
  %v8548 = vpop.permute.xlu0 %8547
  %8549 = vrot.lane.b32.xlu0 %v8385, 20
  %v8550 = vpop.permute.xlu0 %8549
  %8551 = vrot.lane.b32.xlu0 %v8386, 20
  %v8552 = vpop.permute.xlu0 %8551
  %8553 = vrot.lane.b32.xlu0 %v8387, 20
  %v8554 = vpop.permute.xlu0 %8553
  %8555 = vrot.lane.b32.xlu0 %v8388, 20
  %v8556 = vpop.permute.xlu0 %8555
  %8557 = vrot.lane.b32.xlu0 %v8389, 20
  %v8558 = vpop.permute.xlu0 %8557
  %8559 = vrot.lane.b32.xlu0 %v8390, 20
  %v8560 = vpop.permute.xlu0 %8559
  %8561 = vrot.lane.b32.xlu0 %v8391, 20
  %v8562 = vpop.permute.xlu0 %8561
  %8563 = vrot.lane.b32.xlu0 %v8392, 20
  %v8564 = vpop.permute.xlu0 %8563
  %8565 = vrot.lane.b32.xlu0 %v8393, 20
  %v8566 = vpop.permute.xlu0 %8565
  %8567 = vrot.lane.b32.xlu0 %v8394, 20
  %v8568 = vpop.permute.xlu0 %8567
  %8569 = vrot.lane.b32.xlu0 %v8395, 20
  %v8570 = vpop.permute.xlu0 %8569
  %8571 = vrot.lane.b32.xlu0 %v8396, 20
  %v8572 = vpop.permute.xlu0 %8571
  %8573 = vrot.lane.b32.xlu0 %v8397, 20
  %v8574 = vpop.permute.xlu0 %8573
  %8575 = vrot.lane.b32.xlu0 %v8398, 20
  %v8576 = vpop.permute.xlu0 %8575
  %8577 = vrot.lane.b32.xlu0 %v8399, 20
  %v8578 = vpop.permute.xlu0 %8577
  %8579 = vrot.lane.b32.xlu0 %v8400, 20
  %v8580 = vpop.permute.xlu0 %8579
  %8581 = vrot.lane.b32.xlu0 %v8401, 20
  %v8582 = vpop.permute.xlu0 %8581
  %8583 = vrot.lane.b32.xlu0 %v8402, 20
  %v8584 = vpop.permute.xlu0 %8583
  %8585 = vrot.lane.b32.xlu0 %v8403, 20
  %v8586 = vpop.permute.xlu0 %8585
  %8587 = vrot.lane.b32.xlu0 %v8404, 20
  %v8588 = vpop.permute.xlu0 %8587
  %8589 = vrot.lane.b32.xlu0 %v8405, 20
  %v8590 = vpop.permute.xlu0 %8589
  %8591 = vrot.lane.b32.xlu0 %v8406, 20
  %v8592 = vpop.permute.xlu0 %8591
  %8593 = vrot.lane.b32.xlu0 %v8407, 20
  %v8594 = vpop.permute.xlu0 %8593
  %8595 = vrot.lane.b32.xlu0 %v8408, 20
  %v8596 = vpop.permute.xlu0 %8595
  %8597 = vrot.lane.b32.xlu0 %v8409, 20
  %v8598 = vpop.permute.xlu0 %8597
  %8599 = vrot.lane.b32.xlu0 %v8410, 20
  %v8600 = vpop.permute.xlu0 %8599
  %8601 = vrot.lane.b32.xlu0 %v8411, 20
  %v8602 = vpop.permute.xlu0 %8601
  %8603 = vrot.lane.b32.xlu0 %v8412, 20
  %v8604 = vpop.permute.xlu0 %8603
  %vm8669 = vcmask 195744
  %8670 = vst.msk [vmem:[#allocation4] sm:$0xff] %vm8669, %v8478
  %8671 = vst.msk [vmem:[#allocation4 + $0x8] sm:$0xff] %vm8669, %v8480
  %8672 = vst.msk [vmem:[#allocation4 + $0x10] sm:$0xff] %vm8669, %v8482
  %8673 = vst.msk [vmem:[#allocation4 + $0x18] sm:$0xff] %vm8669, %v8484
  %8674 = vst.msk [vmem:[#allocation4 + $0x20] sm:$0xff] %vm8669, %v8486
  %8675 = vst.msk [vmem:[#allocation4 + $0x28] sm:$0xff] %vm8669, %v8488
  %8676 = vst.msk [vmem:[#allocation4 + $0x30] sm:$0xff] %vm8669, %v8490
  %8677 = vst.msk [vmem:[#allocation4 + $0x38] sm:$0xff] %vm8669, %v8492
  %8678 = vst.msk [vmem:[#allocation4 + $0x40] sm:$0xff] %vm8669, %v8494
  %8679 = vst.msk [vmem:[#allocation4 + $0x48] sm:$0xff] %vm8669, %v8496
  %8680 = vst.msk [vmem:[#allocation4 + $0x50] sm:$0xff] %vm8669, %v8498
  %8681 = vst.msk [vmem:[#allocation4 + $0x58] sm:$0xff] %vm8669, %v8500
  %8682 = vst.msk [vmem:[#allocation4 + $0x60] sm:$0xff] %vm8669, %v8502
  %8683 = vst.msk [vmem:[#allocation4 + $0x68] sm:$0xff] %vm8669, %v8504
  %8684 = vst.msk [vmem:[#allocation4 + $0x70] sm:$0xff] %vm8669, %v8506
  %8685 = vst.msk [vmem:[#allocation4 + $0x78] sm:$0xff] %vm8669, %v8508
  %8686 = vst.msk [vmem:[#allocation4 + $0x80] sm:$0xff] %vm8669, %v8510
  %8687 = vst.msk [vmem:[#allocation4 + $0x88] sm:$0xff] %vm8669, %v8512
  %8688 = vst.msk [vmem:[#allocation4 + $0x90] sm:$0xff] %vm8669, %v8514
  %8689 = vst.msk [vmem:[#allocation4 + $0x98] sm:$0xff] %vm8669, %v8516
  %8690 = vst.msk [vmem:[#allocation4 + $0xa0] sm:$0xff] %vm8669, %v8518
  %8691 = vst.msk [vmem:[#allocation4 + $0xa8] sm:$0xff] %vm8669, %v8520
  %8692 = vst.msk [vmem:[#allocation4 + $0xb0] sm:$0xff] %vm8669, %v8522
  %8693 = vst.msk [vmem:[#allocation4 + $0xb8] sm:$0xff] %vm8669, %v8524
  %8694 = vst.msk [vmem:[#allocation4 + $0xc0] sm:$0xff] %vm8669, %v8526
  %8695 = vst.msk [vmem:[#allocation4 + $0xc8] sm:$0xff] %vm8669, %v8528
  %8696 = vst.msk [vmem:[#allocation4 + $0xd0] sm:$0xff] %vm8669, %v8530
  %8697 = vst.msk [vmem:[#allocation4 + $0xd8] sm:$0xff] %vm8669, %v8532
  %8698 = vst.msk [vmem:[#allocation4 + $0xe0] sm:$0xff] %vm8669, %v8534
  %8699 = vst.msk [vmem:[#allocation4 + $0xe8] sm:$0xff] %vm8669, %v8536
  %8700 = vst.msk [vmem:[#allocation4 + $0xf0] sm:$0xff] %vm8669, %v8538
  %8701 = vst.msk [vmem:[#allocation4 + $0xf8] sm:$0xff] %vm8669, %v8540
  %8702 = vst.msk [vmem:[#allocation4 + $0x100] sm:$0xff] %vm8669, %v8542
  %8703 = vst.msk [vmem:[#allocation4 + $0x108] sm:$0xff] %vm8669, %v8544
  %8704 = vst.msk [vmem:[#allocation4 + $0x110] sm:$0xff] %vm8669, %v8546
  %8705 = vst.msk [vmem:[#allocation4 + $0x118] sm:$0xff] %vm8669, %v8548
  %8706 = vst.msk [vmem:[#allocation4 + $0x120] sm:$0xff] %vm8669, %v8550
  %8707 = vst.msk [vmem:[#allocation4 + $0x128] sm:$0xff] %vm8669, %v8552
  %8708 = vst.msk [vmem:[#allocation4 + $0x130] sm:$0xff] %vm8669, %v8554
  %8709 = vst.msk [vmem:[#allocation4 + $0x138] sm:$0xff] %vm8669, %v8556
  %8710 = vst.msk [vmem:[#allocation4 + $0x140] sm:$0xff] %vm8669, %v8558
  %8711 = vst.msk [vmem:[#allocation4 + $0x148] sm:$0xff] %vm8669, %v8560
  %8712 = vst.msk [vmem:[#allocation4 + $0x150] sm:$0xff] %vm8669, %v8562
  %8713 = vst.msk [vmem:[#allocation4 + $0x158] sm:$0xff] %vm8669, %v8564
  %8714 = vst.msk [vmem:[#allocation4 + $0x160] sm:$0xff] %vm8669, %v8566
  %8715 = vst.msk [vmem:[#allocation4 + $0x168] sm:$0xff] %vm8669, %v8568
  %8716 = vst.msk [vmem:[#allocation4 + $0x170] sm:$0xff] %vm8669, %v8570
  %8717 = vst.msk [vmem:[#allocation4 + $0x178] sm:$0xff] %vm8669, %v8572
  %8718 = vst.msk [vmem:[#allocation4 + $0x180] sm:$0xff] %vm8669, %v8574
  %8719 = vst.msk [vmem:[#allocation4 + $0x188] sm:$0xff] %vm8669, %v8576
  %8720 = vst.msk [vmem:[#allocation4 + $0x190] sm:$0xff] %vm8669, %v8578
  %8721 = vst.msk [vmem:[#allocation4 + $0x198] sm:$0xff] %vm8669, %v8580
  %8722 = vst.msk [vmem:[#allocation4 + $0x1a0] sm:$0xff] %vm8669, %v8582
  %8723 = vst.msk [vmem:[#allocation4 + $0x1a8] sm:$0xff] %vm8669, %v8584
  %8724 = vst.msk [vmem:[#allocation4 + $0x1b0] sm:$0xff] %vm8669, %v8586
  %8725 = vst.msk [vmem:[#allocation4 + $0x1b8] sm:$0xff] %vm8669, %v8588
  %8726 = vst.msk [vmem:[#allocation4 + $0x1c0] sm:$0xff] %vm8669, %v8590
  %8727 = vst.msk [vmem:[#allocation4 + $0x1c8] sm:$0xff] %vm8669, %v8592
  %8728 = vst.msk [vmem:[#allocation4 + $0x1d0] sm:$0xff] %vm8669, %v8594
  %8729 = vst.msk [vmem:[#allocation4 + $0x1d8] sm:$0xff] %vm8669, %v8596
  %8730 = vst.msk [vmem:[#allocation4 + $0x1e0] sm:$0xff] %vm8669, %v8598
  %8731 = vst.msk [vmem:[#allocation4 + $0x1e8] sm:$0xff] %vm8669, %v8600
  %8732 = vst.msk [vmem:[#allocation4 + $0x1f0] sm:$0xff] %vm8669, %v8602
  %8733 = vst.msk [vmem:[#allocation4 + $0x1f8] sm:$0xff] %vm8669, %v8604
  %v8734 = vld [vmem:[%s1810] sm:$0xff]
  %v8735 = vld [vmem:[%s1810 + $0x8] sm:$0xff]
  %v8736 = vld [vmem:[%s1810 + $0x18] sm:$0xff]
  %v8737 = vld [vmem:[%s1810 + $0x20] sm:$0xff]
  %v8738 = vld [vmem:[%s1810 + $0x30] sm:$0xff]
  %v8739 = vld [vmem:[%s1810 + $0x38] sm:$0xff]
  %v8740 = vld [vmem:[%s1810 + $0x48] sm:$0xff]
  %v8741 = vld [vmem:[%s1810 + $0x50] sm:$0xff]
  %v8742 = vld [vmem:[%s1810 + $0x60] sm:$0xff]
  %v8743 = vld [vmem:[%s1810 + $0x68] sm:$0xff]
  %v8744 = vld [vmem:[%s1810 + $0x78] sm:$0xff]
  %v8745 = vld [vmem:[%s1810 + $0x80] sm:$0xff]
  %v8746 = vld [vmem:[%s1810 + $0x90] sm:$0xff]
  %v8747 = vld [vmem:[%s1810 + $0x98] sm:$0xff]
  %v8748 = vld [vmem:[%s1810 + $0xa8] sm:$0xff]
  %v8749 = vld [vmem:[%s1810 + $0xb0] sm:$0xff]
  %v8750 = vld [vmem:[%s1810 + $0xc0] sm:$0xff]
  %v8751 = vld [vmem:[%s1810 + $0xc8] sm:$0xff]
  %v8752 = vld [vmem:[%s1810 + $0xd8] sm:$0xff]
  %v8753 = vld [vmem:[%s1810 + $0xe0] sm:$0xff]
  %v8754 = vld [vmem:[%s1810 + $0xf0] sm:$0xff]
  %v8755 = vld [vmem:[%s1810 + $0xf8] sm:$0xff]
  %v8756 = vld [vmem:[%s1810 + $0x108] sm:$0xff]
  %v8757 = vld [vmem:[%s1810 + $0x110] sm:$0xff]
  %v8758 = vld [vmem:[%s1810 + $0x120] sm:$0xff]
  %v8759 = vld [vmem:[%s1810 + $0x128] sm:$0xff]
  %v8760 = vld [vmem:[%s1810 + $0x138] sm:$0xff]
  %v8761 = vld [vmem:[%s1810 + $0x140] sm:$0xff]
  %v8762 = vld [vmem:[%s1810 + $0x150] sm:$0xff]
  %v8763 = vld [vmem:[%s1810 + $0x158] sm:$0xff]
  %v8764 = vld [vmem:[%s1810 + $0x168] sm:$0xff]
  %v8765 = vld [vmem:[%s1810 + $0x170] sm:$0xff]
  %v8766 = vld [vmem:[%s1810 + $0x1b0] sm:$0xff]
  %v8767 = vld [vmem:[%s1810 + $0x1b8] sm:$0xff]
  %v8768 = vld [vmem:[%s1810 + $0x1c8] sm:$0xff]
  %v8769 = vld [vmem:[%s1810 + $0x1d0] sm:$0xff]
  %v8770 = vld [vmem:[%s1810 + $0x1e0] sm:$0xff]
  %v8771 = vld [vmem:[%s1810 + $0x1e8] sm:$0xff]
  %v8772 = vld [vmem:[%s1810 + $0x1f8] sm:$0xff]
  %v8773 = vld [vmem:[%s1810 + $0x200] sm:$0xff]
  %v8774 = vld [vmem:[%s1810 + $0x210] sm:$0xff]
  %v8775 = vld [vmem:[%s1810 + $0x218] sm:$0xff]
  %v8776 = vld [vmem:[%s1810 + $0x228] sm:$0xff]
  %v8777 = vld [vmem:[%s1810 + $0x230] sm:$0xff]
  %v8778 = vld [vmem:[%s1810 + $0x240] sm:$0xff]
  %v8779 = vld [vmem:[%s1810 + $0x248] sm:$0xff]
  %v8780 = vld [vmem:[%s1810 + $0x258] sm:$0xff]
  %v8781 = vld [vmem:[%s1810 + $0x260] sm:$0xff]
  %v8782 = vld [vmem:[%s1810 + $0x270] sm:$0xff]
  %v8783 = vld [vmem:[%s1810 + $0x278] sm:$0xff]
  %v8784 = vld [vmem:[%s1810 + $0x288] sm:$0xff]
  %v8785 = vld [vmem:[%s1810 + $0x290] sm:$0xff]
  %v8786 = vld [vmem:[%s1810 + $0x2a0] sm:$0xff]
  %v8787 = vld [vmem:[%s1810 + $0x2a8] sm:$0xff]
  %v8788 = vld [vmem:[%s1810 + $0x2b8] sm:$0xff]
  %v8789 = vld [vmem:[%s1810 + $0x2c0] sm:$0xff]
  %v8790 = vld [vmem:[%s1810 + $0x2d0] sm:$0xff]
  %v8791 = vld [vmem:[%s1810 + $0x2d8] sm:$0xff]
  %v8792 = vld [vmem:[%s1810 + $0x2e8] sm:$0xff]
  %v8793 = vld [vmem:[%s1810 + $0x2f0] sm:$0xff]
  %v8794 = vld [vmem:[%s1810 + $0x300] sm:$0xff]
  %v8795 = vld [vmem:[%s1810 + $0x308] sm:$0xff]
  %v8796 = vld [vmem:[%s1810 + $0x318] sm:$0xff]
  %v8797 = vld [vmem:[%s1810 + $0x320] sm:$0xff]
  %8862 = vrot.lane.b32.xlu0 %v8734, 24
  %v8863 = vpop.permute.xlu0 %8862
  %8864 = vrot.lane.b32.xlu0 %v8735, 24
  %v8865 = vpop.permute.xlu0 %8864
  %8866 = vrot.lane.b32.xlu0 %v8736, 24
  %v8867 = vpop.permute.xlu0 %8866
  %8868 = vrot.lane.b32.xlu0 %v8737, 24
  %v8869 = vpop.permute.xlu0 %8868
  %8870 = vrot.lane.b32.xlu0 %v8738, 24
  %v8871 = vpop.permute.xlu0 %8870
  %8872 = vrot.lane.b32.xlu0 %v8739, 24
  %v8873 = vpop.permute.xlu0 %8872
  %8874 = vrot.lane.b32.xlu0 %v8740, 24
  %v8875 = vpop.permute.xlu0 %8874
  %8876 = vrot.lane.b32.xlu0 %v8741, 24
  %v8877 = vpop.permute.xlu0 %8876
  %8878 = vrot.lane.b32.xlu0 %v8742, 24
  %v8879 = vpop.permute.xlu0 %8878
  %8880 = vrot.lane.b32.xlu0 %v8743, 24
  %v8881 = vpop.permute.xlu0 %8880
  %8882 = vrot.lane.b32.xlu0 %v8744, 24
  %v8883 = vpop.permute.xlu0 %8882
  %8884 = vrot.lane.b32.xlu0 %v8745, 24
  %v8885 = vpop.permute.xlu0 %8884
  %8886 = vrot.lane.b32.xlu0 %v8746, 24
  %v8887 = vpop.permute.xlu0 %8886
  %8888 = vrot.lane.b32.xlu0 %v8747, 24
  %v8889 = vpop.permute.xlu0 %8888
  %8890 = vrot.lane.b32.xlu0 %v8748, 24
  %v8891 = vpop.permute.xlu0 %8890
  %8892 = vrot.lane.b32.xlu0 %v8749, 24
  %v8893 = vpop.permute.xlu0 %8892
  %8894 = vrot.lane.b32.xlu0 %v8750, 24
  %v8895 = vpop.permute.xlu0 %8894
  %8896 = vrot.lane.b32.xlu0 %v8751, 24
  %v8897 = vpop.permute.xlu0 %8896
  %8898 = vrot.lane.b32.xlu0 %v8752, 24
  %v8899 = vpop.permute.xlu0 %8898
  %8900 = vrot.lane.b32.xlu0 %v8753, 24
  %v8901 = vpop.permute.xlu0 %8900
  %8902 = vrot.lane.b32.xlu0 %v8754, 24
  %v8903 = vpop.permute.xlu0 %8902
  %8904 = vrot.lane.b32.xlu0 %v8755, 24
  %v8905 = vpop.permute.xlu0 %8904
  %8906 = vrot.lane.b32.xlu0 %v8756, 24
  %v8907 = vpop.permute.xlu0 %8906
  %8908 = vrot.lane.b32.xlu0 %v8757, 24
  %v8909 = vpop.permute.xlu0 %8908
  %8910 = vrot.lane.b32.xlu0 %v8758, 24
  %v8911 = vpop.permute.xlu0 %8910
  %8912 = vrot.lane.b32.xlu0 %v8759, 24
  %v8913 = vpop.permute.xlu0 %8912
  %8914 = vrot.lane.b32.xlu0 %v8760, 24
  %v8915 = vpop.permute.xlu0 %8914
  %8916 = vrot.lane.b32.xlu0 %v8761, 24
  %v8917 = vpop.permute.xlu0 %8916
  %8918 = vrot.lane.b32.xlu0 %v8762, 24
  %v8919 = vpop.permute.xlu0 %8918
  %8920 = vrot.lane.b32.xlu0 %v8763, 24
  %v8921 = vpop.permute.xlu0 %8920
  %8922 = vrot.lane.b32.xlu0 %v8764, 24
  %v8923 = vpop.permute.xlu0 %8922
  %8924 = vrot.lane.b32.xlu0 %v8765, 24
  %v8925 = vpop.permute.xlu0 %8924
  %8926 = vrot.lane.b32.xlu0 %v8766, 24
  %v8927 = vpop.permute.xlu0 %8926
  %8928 = vrot.lane.b32.xlu0 %v8767, 24
  %v8929 = vpop.permute.xlu0 %8928
  %8930 = vrot.lane.b32.xlu0 %v8768, 24
  %v8931 = vpop.permute.xlu0 %8930
  %8932 = vrot.lane.b32.xlu0 %v8769, 24
  %v8933 = vpop.permute.xlu0 %8932
  %8934 = vrot.lane.b32.xlu0 %v8770, 24
  %v8935 = vpop.permute.xlu0 %8934
  %8936 = vrot.lane.b32.xlu0 %v8771, 24
  %v8937 = vpop.permute.xlu0 %8936
  %8938 = vrot.lane.b32.xlu0 %v8772, 24
  %v8939 = vpop.permute.xlu0 %8938
  %8940 = vrot.lane.b32.xlu0 %v8773, 24
  %v8941 = vpop.permute.xlu0 %8940
  %8942 = vrot.lane.b32.xlu0 %v8774, 24
  %v8943 = vpop.permute.xlu0 %8942
  %8944 = vrot.lane.b32.xlu0 %v8775, 24
  %v8945 = vpop.permute.xlu0 %8944
  %8946 = vrot.lane.b32.xlu0 %v8776, 24
  %v8947 = vpop.permute.xlu0 %8946
  %8948 = vrot.lane.b32.xlu0 %v8777, 24
  %v8949 = vpop.permute.xlu0 %8948
  %8950 = vrot.lane.b32.xlu0 %v8778, 24
  %v8951 = vpop.permute.xlu0 %8950
  %8952 = vrot.lane.b32.xlu0 %v8779, 24
  %v8953 = vpop.permute.xlu0 %8952
  %8954 = vrot.lane.b32.xlu0 %v8780, 24
  %v8955 = vpop.permute.xlu0 %8954
  %8956 = vrot.lane.b32.xlu0 %v8781, 24
  %v8957 = vpop.permute.xlu0 %8956
  %8958 = vrot.lane.b32.xlu0 %v8782, 24
  %v8959 = vpop.permute.xlu0 %8958
  %8960 = vrot.lane.b32.xlu0 %v8783, 24
  %v8961 = vpop.permute.xlu0 %8960
  %8962 = vrot.lane.b32.xlu0 %v8784, 24
  %v8963 = vpop.permute.xlu0 %8962
  %8964 = vrot.lane.b32.xlu0 %v8785, 24
  %v8965 = vpop.permute.xlu0 %8964
  %8966 = vrot.lane.b32.xlu0 %v8786, 24
  %v8967 = vpop.permute.xlu0 %8966
  %8968 = vrot.lane.b32.xlu0 %v8787, 24
  %v8969 = vpop.permute.xlu0 %8968
  %8970 = vrot.lane.b32.xlu0 %v8788, 24
  %v8971 = vpop.permute.xlu0 %8970
  %8972 = vrot.lane.b32.xlu0 %v8789, 24
  %v8973 = vpop.permute.xlu0 %8972
  %8974 = vrot.lane.b32.xlu0 %v8790, 24
  %v8975 = vpop.permute.xlu0 %8974
  %8976 = vrot.lane.b32.xlu0 %v8791, 24
  %v8977 = vpop.permute.xlu0 %8976
  %8978 = vrot.lane.b32.xlu0 %v8792, 24
  %v8979 = vpop.permute.xlu0 %8978
  %8980 = vrot.lane.b32.xlu0 %v8793, 24
  %v8981 = vpop.permute.xlu0 %8980
  %8982 = vrot.lane.b32.xlu0 %v8794, 24
  %v8983 = vpop.permute.xlu0 %8982
  %8984 = vrot.lane.b32.xlu0 %v8795, 24
  %v8985 = vpop.permute.xlu0 %8984
  %8986 = vrot.lane.b32.xlu0 %v8796, 24
  %v8987 = vpop.permute.xlu0 %8986
  %8988 = vrot.lane.b32.xlu0 %v8797, 24
  %v8989 = vpop.permute.xlu0 %8988
  %vm9054 = vcmask 228544
  %9055 = vst.msk [vmem:[#allocation4] sm:$0xff] %vm9054, %v8863
  %9056 = vst.msk [vmem:[#allocation4 + $0x8] sm:$0xff] %vm9054, %v8865
  %9057 = vst.msk [vmem:[#allocation4 + $0x10] sm:$0xff] %vm9054, %v8867
  %9058 = vst.msk [vmem:[#allocation4 + $0x18] sm:$0xff] %vm9054, %v8869
  %9059 = vst.msk [vmem:[#allocation4 + $0x20] sm:$0xff] %vm9054, %v8871
  %9060 = vst.msk [vmem:[#allocation4 + $0x28] sm:$0xff] %vm9054, %v8873
  %9061 = vst.msk [vmem:[#allocation4 + $0x30] sm:$0xff] %vm9054, %v8875
  %9062 = vst.msk [vmem:[#allocation4 + $0x38] sm:$0xff] %vm9054, %v8877
  %9063 = vst.msk [vmem:[#allocation4 + $0x40] sm:$0xff] %vm9054, %v8879
  %9064 = vst.msk [vmem:[#allocation4 + $0x48] sm:$0xff] %vm9054, %v8881
  %9065 = vst.msk [vmem:[#allocation4 + $0x50] sm:$0xff] %vm9054, %v8883
  %9066 = vst.msk [vmem:[#allocation4 + $0x58] sm:$0xff] %vm9054, %v8885
  %9067 = vst.msk [vmem:[#allocation4 + $0x60] sm:$0xff] %vm9054, %v8887
  %9068 = vst.msk [vmem:[#allocation4 + $0x68] sm:$0xff] %vm9054, %v8889
  %9069 = vst.msk [vmem:[#allocation4 + $0x70] sm:$0xff] %vm9054, %v8891
  %9070 = vst.msk [vmem:[#allocation4 + $0x78] sm:$0xff] %vm9054, %v8893
  %9071 = vst.msk [vmem:[#allocation4 + $0x80] sm:$0xff] %vm9054, %v8895
  %9072 = vst.msk [vmem:[#allocation4 + $0x88] sm:$0xff] %vm9054, %v8897
  %9073 = vst.msk [vmem:[#allocation4 + $0x90] sm:$0xff] %vm9054, %v8899
  %9074 = vst.msk [vmem:[#allocation4 + $0x98] sm:$0xff] %vm9054, %v8901
  %9075 = vst.msk [vmem:[#allocation4 + $0xa0] sm:$0xff] %vm9054, %v8903
  %9076 = vst.msk [vmem:[#allocation4 + $0xa8] sm:$0xff] %vm9054, %v8905
  %9077 = vst.msk [vmem:[#allocation4 + $0xb0] sm:$0xff] %vm9054, %v8907
  %9078 = vst.msk [vmem:[#allocation4 + $0xb8] sm:$0xff] %vm9054, %v8909
  %9079 = vst.msk [vmem:[#allocation4 + $0xc0] sm:$0xff] %vm9054, %v8911
  %9080 = vst.msk [vmem:[#allocation4 + $0xc8] sm:$0xff] %vm9054, %v8913
  %9081 = vst.msk [vmem:[#allocation4 + $0xd0] sm:$0xff] %vm9054, %v8915
  %9082 = vst.msk [vmem:[#allocation4 + $0xd8] sm:$0xff] %vm9054, %v8917
  %9083 = vst.msk [vmem:[#allocation4 + $0xe0] sm:$0xff] %vm9054, %v8919
  %9084 = vst.msk [vmem:[#allocation4 + $0xe8] sm:$0xff] %vm9054, %v8921
  %9085 = vst.msk [vmem:[#allocation4 + $0xf0] sm:$0xff] %vm9054, %v8923
  %9086 = vst.msk [vmem:[#allocation4 + $0xf8] sm:$0xff] %vm9054, %v8925
  %9087 = vst.msk [vmem:[#allocation4 + $0x100] sm:$0xff] %vm9054, %v8927
  %9088 = vst.msk [vmem:[#allocation4 + $0x108] sm:$0xff] %vm9054, %v8929
  %9089 = vst.msk [vmem:[#allocation4 + $0x110] sm:$0xff] %vm9054, %v8931
  %9090 = vst.msk [vmem:[#allocation4 + $0x118] sm:$0xff] %vm9054, %v8933
  %9091 = vst.msk [vmem:[#allocation4 + $0x120] sm:$0xff] %vm9054, %v8935
  %9092 = vst.msk [vmem:[#allocation4 + $0x128] sm:$0xff] %vm9054, %v8937
  %9093 = vst.msk [vmem:[#allocation4 + $0x130] sm:$0xff] %vm9054, %v8939
  %9094 = vst.msk [vmem:[#allocation4 + $0x138] sm:$0xff] %vm9054, %v8941
  %9095 = vst.msk [vmem:[#allocation4 + $0x140] sm:$0xff] %vm9054, %v8943
  %9096 = vst.msk [vmem:[#allocation4 + $0x148] sm:$0xff] %vm9054, %v8945
  %9097 = vst.msk [vmem:[#allocation4 + $0x150] sm:$0xff] %vm9054, %v8947
  %9098 = vst.msk [vmem:[#allocation4 + $0x158] sm:$0xff] %vm9054, %v8949
  %9099 = vst.msk [vmem:[#allocation4 + $0x160] sm:$0xff] %vm9054, %v8951
  %9100 = vst.msk [vmem:[#allocation4 + $0x168] sm:$0xff] %vm9054, %v8953
  %9101 = vst.msk [vmem:[#allocation4 + $0x170] sm:$0xff] %vm9054, %v8955
  %9102 = vst.msk [vmem:[#allocation4 + $0x178] sm:$0xff] %vm9054, %v8957
  %9103 = vst.msk [vmem:[#allocation4 + $0x180] sm:$0xff] %vm9054, %v8959
  %9104 = vst.msk [vmem:[#allocation4 + $0x188] sm:$0xff] %vm9054, %v8961
  %9105 = vst.msk [vmem:[#allocation4 + $0x190] sm:$0xff] %vm9054, %v8963
  %9106 = vst.msk [vmem:[#allocation4 + $0x198] sm:$0xff] %vm9054, %v8965
  %9107 = vst.msk [vmem:[#allocation4 + $0x1a0] sm:$0xff] %vm9054, %v8967
  %9108 = vst.msk [vmem:[#allocation4 + $0x1a8] sm:$0xff] %vm9054, %v8969
  %9109 = vst.msk [vmem:[#allocation4 + $0x1b0] sm:$0xff] %vm9054, %v8971
  %9110 = vst.msk [vmem:[#allocation4 + $0x1b8] sm:$0xff] %vm9054, %v8973
  %9111 = vst.msk [vmem:[#allocation4 + $0x1c0] sm:$0xff] %vm9054, %v8975
  %9112 = vst.msk [vmem:[#allocation4 + $0x1c8] sm:$0xff] %vm9054, %v8977
  %9113 = vst.msk [vmem:[#allocation4 + $0x1d0] sm:$0xff] %vm9054, %v8979
  %9114 = vst.msk [vmem:[#allocation4 + $0x1d8] sm:$0xff] %vm9054, %v8981
  %9115 = vst.msk [vmem:[#allocation4 + $0x1e0] sm:$0xff] %vm9054, %v8983
  %9116 = vst.msk [vmem:[#allocation4 + $0x1e8] sm:$0xff] %vm9054, %v8985
  %9117 = vst.msk [vmem:[#allocation4 + $0x1f0] sm:$0xff] %vm9054, %v8987
  %9118 = vst.msk [vmem:[#allocation4 + $0x1f8] sm:$0xff] %vm9054, %v8989
  %v9119 = vld [vmem:[%s1810 + $0x1] sm:$0xff]
  %v9120 = vld [vmem:[%s1810 + $0x9] sm:$0xff]
  %v9121 = vld [vmem:[%s1810 + $0x19] sm:$0xff]
  %v9122 = vld [vmem:[%s1810 + $0x21] sm:$0xff]
  %v9123 = vld [vmem:[%s1810 + $0x31] sm:$0xff]
  %v9124 = vld [vmem:[%s1810 + $0x39] sm:$0xff]
  %v9125 = vld [vmem:[%s1810 + $0x49] sm:$0xff]
  %v9126 = vld [vmem:[%s1810 + $0x51] sm:$0xff]
  %v9127 = vld [vmem:[%s1810 + $0x61] sm:$0xff]
  %v9128 = vld [vmem:[%s1810 + $0x69] sm:$0xff]
  %v9129 = vld [vmem:[%s1810 + $0x79] sm:$0xff]
  %v9130 = vld [vmem:[%s1810 + $0x81] sm:$0xff]
  %v9131 = vld [vmem:[%s1810 + $0x91] sm:$0xff]
  %v9132 = vld [vmem:[%s1810 + $0x99] sm:$0xff]
  %v9133 = vld [vmem:[%s1810 + $0xa9] sm:$0xff]
  %v9134 = vld [vmem:[%s1810 + $0xb1] sm:$0xff]
  %v9135 = vld [vmem:[%s1810 + $0xc1] sm:$0xff]
  %v9136 = vld [vmem:[%s1810 + $0xc9] sm:$0xff]
  %v9137 = vld [vmem:[%s1810 + $0xd9] sm:$0xff]
  %v9138 = vld [vmem:[%s1810 + $0xe1] sm:$0xff]
  %v9139 = vld [vmem:[%s1810 + $0xf1] sm:$0xff]
  %v9140 = vld [vmem:[%s1810 + $0xf9] sm:$0xff]
  %v9141 = vld [vmem:[%s1810 + $0x109] sm:$0xff]
  %v9142 = vld [vmem:[%s1810 + $0x111] sm:$0xff]
  %v9143 = vld [vmem:[%s1810 + $0x121] sm:$0xff]
  %v9144 = vld [vmem:[%s1810 + $0x129] sm:$0xff]
  %v9145 = vld [vmem:[%s1810 + $0x139] sm:$0xff]
  %v9146 = vld [vmem:[%s1810 + $0x141] sm:$0xff]
  %v9147 = vld [vmem:[%s1810 + $0x151] sm:$0xff]
  %v9148 = vld [vmem:[%s1810 + $0x159] sm:$0xff]
  %v9149 = vld [vmem:[%s1810 + $0x169] sm:$0xff]
  %v9150 = vld [vmem:[%s1810 + $0x171] sm:$0xff]
  %v9151 = vld [vmem:[%s1810 + $0x1b1] sm:$0xff]
  %v9152 = vld [vmem:[%s1810 + $0x1b9] sm:$0xff]
  %v9153 = vld [vmem:[%s1810 + $0x1c9] sm:$0xff]
  %v9154 = vld [vmem:[%s1810 + $0x1d1] sm:$0xff]
  %v9155 = vld [vmem:[%s1810 + $0x1e1] sm:$0xff]
  %v9156 = vld [vmem:[%s1810 + $0x1e9] sm:$0xff]
  %v9157 = vld [vmem:[%s1810 + $0x1f9] sm:$0xff]
  %v9158 = vld [vmem:[%s1810 + $0x201] sm:$0xff]
  %v9159 = vld [vmem:[%s1810 + $0x211] sm:$0xff]
  %v9160 = vld [vmem:[%s1810 + $0x219] sm:$0xff]
  %v9161 = vld [vmem:[%s1810 + $0x229] sm:$0xff]
  %v9162 = vld [vmem:[%s1810 + $0x231] sm:$0xff]
  %v9163 = vld [vmem:[%s1810 + $0x241] sm:$0xff]
  %v9164 = vld [vmem:[%s1810 + $0x249] sm:$0xff]
  %v9165 = vld [vmem:[%s1810 + $0x259] sm:$0xff]
  %v9166 = vld [vmem:[%s1810 + $0x261] sm:$0xff]
  %v9167 = vld [vmem:[%s1810 + $0x271] sm:$0xff]
  %v9168 = vld [vmem:[%s1810 + $0x279] sm:$0xff]
  %v9169 = vld [vmem:[%s1810 + $0x289] sm:$0xff]
  %v9170 = vld [vmem:[%s1810 + $0x291] sm:$0xff]
  %v9171 = vld [vmem:[%s1810 + $0x2a1] sm:$0xff]
  %v9172 = vld [vmem:[%s1810 + $0x2a9] sm:$0xff]
  %v9173 = vld [vmem:[%s1810 + $0x2b9] sm:$0xff]
  %v9174 = vld [vmem:[%s1810 + $0x2c1] sm:$0xff]
  %v9175 = vld [vmem:[%s1810 + $0x2d1] sm:$0xff]
  %v9176 = vld [vmem:[%s1810 + $0x2d9] sm:$0xff]
  %v9177 = vld [vmem:[%s1810 + $0x2e9] sm:$0xff]
  %v9178 = vld [vmem:[%s1810 + $0x2f1] sm:$0xff]
  %v9179 = vld [vmem:[%s1810 + $0x301] sm:$0xff]
  %v9180 = vld [vmem:[%s1810 + $0x309] sm:$0xff]
  %v9181 = vld [vmem:[%s1810 + $0x319] sm:$0xff]
  %v9182 = vld [vmem:[%s1810 + $0x321] sm:$0xff]
  %9247 = vrot.lane.b32.xlu0 %v9119, 28
  %v9248 = vpop.permute.xlu0 %9247
  %9249 = vrot.lane.b32.xlu0 %v9120, 28
  %v9250 = vpop.permute.xlu0 %9249
  %9251 = vrot.lane.b32.xlu0 %v9121, 28
  %v9252 = vpop.permute.xlu0 %9251
  %9253 = vrot.lane.b32.xlu0 %v9122, 28
  %v9254 = vpop.permute.xlu0 %9253
  %9255 = vrot.lane.b32.xlu0 %v9123, 28
  %v9256 = vpop.permute.xlu0 %9255
  %9257 = vrot.lane.b32.xlu0 %v9124, 28
  %v9258 = vpop.permute.xlu0 %9257
  %9259 = vrot.lane.b32.xlu0 %v9125, 28
  %v9260 = vpop.permute.xlu0 %9259
  %9261 = vrot.lane.b32.xlu0 %v9126, 28
  %v9262 = vpop.permute.xlu0 %9261
  %9263 = vrot.lane.b32.xlu0 %v9127, 28
  %v9264 = vpop.permute.xlu0 %9263
  %9265 = vrot.lane.b32.xlu0 %v9128, 28
  %v9266 = vpop.permute.xlu0 %9265
  %9267 = vrot.lane.b32.xlu0 %v9129, 28
  %v9268 = vpop.permute.xlu0 %9267
  %9269 = vrot.lane.b32.xlu0 %v9130, 28
  %v9270 = vpop.permute.xlu0 %9269
  %9271 = vrot.lane.b32.xlu0 %v9131, 28
  %v9272 = vpop.permute.xlu0 %9271
  %9273 = vrot.lane.b32.xlu0 %v9132, 28
  %v9274 = vpop.permute.xlu0 %9273
  %9275 = vrot.lane.b32.xlu0 %v9133, 28
  %v9276 = vpop.permute.xlu0 %9275
  %9277 = vrot.lane.b32.xlu0 %v9134, 28
  %v9278 = vpop.permute.xlu0 %9277
  %9279 = vrot.lane.b32.xlu0 %v9135, 28
  %v9280 = vpop.permute.xlu0 %9279
  %9281 = vrot.lane.b32.xlu0 %v9136, 28
  %v9282 = vpop.permute.xlu0 %9281
  %9283 = vrot.lane.b32.xlu0 %v9137, 28
  %v9284 = vpop.permute.xlu0 %9283
  %9285 = vrot.lane.b32.xlu0 %v9138, 28
  %v9286 = vpop.permute.xlu0 %9285
  %9287 = vrot.lane.b32.xlu0 %v9139, 28
  %v9288 = vpop.permute.xlu0 %9287
  %9289 = vrot.lane.b32.xlu0 %v9140, 28
  %v9290 = vpop.permute.xlu0 %9289
  %9291 = vrot.lane.b32.xlu0 %v9141, 28
  %v9292 = vpop.permute.xlu0 %9291
  %9293 = vrot.lane.b32.xlu0 %v9142, 28
  %v9294 = vpop.permute.xlu0 %9293
  %9295 = vrot.lane.b32.xlu0 %v9143, 28
  %v9296 = vpop.permute.xlu0 %9295
  %9297 = vrot.lane.b32.xlu0 %v9144, 28
  %v9298 = vpop.permute.xlu0 %9297
  %9299 = vrot.lane.b32.xlu0 %v9145, 28
  %v9300 = vpop.permute.xlu0 %9299
  %9301 = vrot.lane.b32.xlu0 %v9146, 28
  %v9302 = vpop.permute.xlu0 %9301
  %9303 = vrot.lane.b32.xlu0 %v9147, 28
  %v9304 = vpop.permute.xlu0 %9303
  %9305 = vrot.lane.b32.xlu0 %v9148, 28
  %v9306 = vpop.permute.xlu0 %9305
  %9307 = vrot.lane.b32.xlu0 %v9149, 28
  %v9308 = vpop.permute.xlu0 %9307
  %9309 = vrot.lane.b32.xlu0 %v9150, 28
  %v9310 = vpop.permute.xlu0 %9309
  %9311 = vrot.lane.b32.xlu0 %v9151, 28
  %v9312 = vpop.permute.xlu0 %9311
  %9313 = vrot.lane.b32.xlu0 %v9152, 28
  %v9314 = vpop.permute.xlu0 %9313
  %9315 = vrot.lane.b32.xlu0 %v9153, 28
  %v9316 = vpop.permute.xlu0 %9315
  %9317 = vrot.lane.b32.xlu0 %v9154, 28
  %v9318 = vpop.permute.xlu0 %9317
  %9319 = vrot.lane.b32.xlu0 %v9155, 28
  %v9320 = vpop.permute.xlu0 %9319
  %9321 = vrot.lane.b32.xlu0 %v9156, 28
  %v9322 = vpop.permute.xlu0 %9321
  %9323 = vrot.lane.b32.xlu0 %v9157, 28
  %v9324 = vpop.permute.xlu0 %9323
  %9325 = vrot.lane.b32.xlu0 %v9158, 28
  %v9326 = vpop.permute.xlu0 %9325
  %9327 = vrot.lane.b32.xlu0 %v9159, 28
  %v9328 = vpop.permute.xlu0 %9327
  %9329 = vrot.lane.b32.xlu0 %v9160, 28
  %v9330 = vpop.permute.xlu0 %9329
  %9331 = vrot.lane.b32.xlu0 %v9161, 28
  %v9332 = vpop.permute.xlu0 %9331
  %9333 = vrot.lane.b32.xlu0 %v9162, 28
  %v9334 = vpop.permute.xlu0 %9333
  %9335 = vrot.lane.b32.xlu0 %v9163, 28
  %v9336 = vpop.permute.xlu0 %9335
  %9337 = vrot.lane.b32.xlu0 %v9164, 28
  %v9338 = vpop.permute.xlu0 %9337
  %9339 = vrot.lane.b32.xlu0 %v9165, 28
  %v9340 = vpop.permute.xlu0 %9339
  %9341 = vrot.lane.b32.xlu0 %v9166, 28
  %v9342 = vpop.permute.xlu0 %9341
  %9343 = vrot.lane.b32.xlu0 %v9167, 28
  %v9344 = vpop.permute.xlu0 %9343
  %9345 = vrot.lane.b32.xlu0 %v9168, 28
  %v9346 = vpop.permute.xlu0 %9345
  %9347 = vrot.lane.b32.xlu0 %v9169, 28
  %v9348 = vpop.permute.xlu0 %9347
  %9349 = vrot.lane.b32.xlu0 %v9170, 28
  %v9350 = vpop.permute.xlu0 %9349
  %9351 = vrot.lane.b32.xlu0 %v9171, 28
  %v9352 = vpop.permute.xlu0 %9351
  %9353 = vrot.lane.b32.xlu0 %v9172, 28
  %v9354 = vpop.permute.xlu0 %9353
  %9355 = vrot.lane.b32.xlu0 %v9173, 28
  %v9356 = vpop.permute.xlu0 %9355
  %9357 = vrot.lane.b32.xlu0 %v9174, 28
  %v9358 = vpop.permute.xlu0 %9357
  %9359 = vrot.lane.b32.xlu0 %v9175, 28
  %v9360 = vpop.permute.xlu0 %9359
  %9361 = vrot.lane.b32.xlu0 %v9176, 28
  %v9362 = vpop.permute.xlu0 %9361
  %9363 = vrot.lane.b32.xlu0 %v9177, 28
  %v9364 = vpop.permute.xlu0 %9363
  %9365 = vrot.lane.b32.xlu0 %v9178, 28
  %v9366 = vpop.permute.xlu0 %9365
  %9367 = vrot.lane.b32.xlu0 %v9179, 28
  %v9368 = vpop.permute.xlu0 %9367
  %9369 = vrot.lane.b32.xlu0 %v9180, 28
  %v9370 = vpop.permute.xlu0 %9369
  %9371 = vrot.lane.b32.xlu0 %v9181, 28
  %v9372 = vpop.permute.xlu0 %9371
  %9373 = vrot.lane.b32.xlu0 %v9182, 28
  %v9374 = vpop.permute.xlu0 %9373
  %vm9439 = vcmask 261344
  %9440 = vst.msk [vmem:[#allocation4] sm:$0xff] %vm9439, %v9248
  %9441 = vst.msk [vmem:[#allocation4 + $0x8] sm:$0xff] %vm9439, %v9250
  %9442 = vst.msk [vmem:[#allocation4 + $0x10] sm:$0xff] %vm9439, %v9252
  %9443 = vst.msk [vmem:[#allocation4 + $0x18] sm:$0xff] %vm9439, %v9254
  %9444 = vst.msk [vmem:[#allocation4 + $0x20] sm:$0xff] %vm9439, %v9256
  %9445 = vst.msk [vmem:[#allocation4 + $0x28] sm:$0xff] %vm9439, %v9258
  %9446 = vst.msk [vmem:[#allocation4 + $0x30] sm:$0xff] %vm9439, %v9260
  %9447 = vst.msk [vmem:[#allocation4 + $0x38] sm:$0xff] %vm9439, %v9262
  %9448 = vst.msk [vmem:[#allocation4 + $0x40] sm:$0xff] %vm9439, %v9264
  %9449 = vst.msk [vmem:[#allocation4 + $0x48] sm:$0xff] %vm9439, %v9266
  %9450 = vst.msk [vmem:[#allocation4 + $0x50] sm:$0xff] %vm9439, %v9268
  %9451 = vst.msk [vmem:[#allocation4 + $0x58] sm:$0xff] %vm9439, %v9270
  %9452 = vst.msk [vmem:[#allocation4 + $0x60] sm:$0xff] %vm9439, %v9272
  %9453 = vst.msk [vmem:[#allocation4 + $0x68] sm:$0xff] %vm9439, %v9274
  %9454 = vst.msk [vmem:[#allocation4 + $0x70] sm:$0xff] %vm9439, %v9276
  %9455 = vst.msk [vmem:[#allocation4 + $0x78] sm:$0xff] %vm9439, %v9278
  %9456 = vst.msk [vmem:[#allocation4 + $0x80] sm:$0xff] %vm9439, %v9280
  %9457 = vst.msk [vmem:[#allocation4 + $0x88] sm:$0xff] %vm9439, %v9282
  %9458 = vst.msk [vmem:[#allocation4 + $0x90] sm:$0xff] %vm9439, %v9284
  %9459 = vst.msk [vmem:[#allocation4 + $0x98] sm:$0xff] %vm9439, %v9286
  %9460 = vst.msk [vmem:[#allocation4 + $0xa0] sm:$0xff] %vm9439, %v9288
  %9461 = vst.msk [vmem:[#allocation4 + $0xa8] sm:$0xff] %vm9439, %v9290
  %9462 = vst.msk [vmem:[#allocation4 + $0xb0] sm:$0xff] %vm9439, %v9292
  %9463 = vst.msk [vmem:[#allocation4 + $0xb8] sm:$0xff] %vm9439, %v9294
  %9464 = vst.msk [vmem:[#allocation4 + $0xc0] sm:$0xff] %vm9439, %v9296
  %9465 = vst.msk [vmem:[#allocation4 + $0xc8] sm:$0xff] %vm9439, %v9298
  %9466 = vst.msk [vmem:[#allocation4 + $0xd0] sm:$0xff] %vm9439, %v9300
  %9467 = vst.msk [vmem:[#allocation4 + $0xd8] sm:$0xff] %vm9439, %v9302
  %9468 = vst.msk [vmem:[#allocation4 + $0xe0] sm:$0xff] %vm9439, %v9304
  %9469 = vst.msk [vmem:[#allocation4 + $0xe8] sm:$0xff] %vm9439, %v9306
  %9470 = vst.msk [vmem:[#allocation4 + $0xf0] sm:$0xff] %vm9439, %v9308
  %9471 = vst.msk [vmem:[#allocation4 + $0xf8] sm:$0xff] %vm9439, %v9310
  %9472 = vst.msk [vmem:[#allocation4 + $0x100] sm:$0xff] %vm9439, %v9312
  %9473 = vst.msk [vmem:[#allocation4 + $0x108] sm:$0xff] %vm9439, %v9314
  %9474 = vst.msk [vmem:[#allocation4 + $0x110] sm:$0xff] %vm9439, %v9316
  %9475 = vst.msk [vmem:[#allocation4 + $0x118] sm:$0xff] %vm9439, %v9318
  %9476 = vst.msk [vmem:[#allocation4 + $0x120] sm:$0xff] %vm9439, %v9320
  %9477 = vst.msk [vmem:[#allocation4 + $0x128] sm:$0xff] %vm9439, %v9322
  %9478 = vst.msk [vmem:[#allocation4 + $0x130] sm:$0xff] %vm9439, %v9324
  %9479 = vst.msk [vmem:[#allocation4 + $0x138] sm:$0xff] %vm9439, %v9326
  %9480 = vst.msk [vmem:[#allocation4 + $0x140] sm:$0xff] %vm9439, %v9328
  %9481 = vst.msk [vmem:[#allocation4 + $0x148] sm:$0xff] %vm9439, %v9330
  %9482 = vst.msk [vmem:[#allocation4 + $0x150] sm:$0xff] %vm9439, %v9332
  %9483 = vst.msk [vmem:[#allocation4 + $0x158] sm:$0xff] %vm9439, %v9334
  %9484 = vst.msk [vmem:[#allocation4 + $0x160] sm:$0xff] %vm9439, %v9336
  %9485 = vst.msk [vmem:[#allocation4 + $0x168] sm:$0xff] %vm9439, %v9338
  %9486 = vst.msk [vmem:[#allocation4 + $0x170] sm:$0xff] %vm9439, %v9340
  %9487 = vst.msk [vmem:[#allocation4 + $0x178] sm:$0xff] %vm9439, %v9342
  %9488 = vst.msk [vmem:[#allocation4 + $0x180] sm:$0xff] %vm9439, %v9344
  %9489 = vst.msk [vmem:[#allocation4 + $0x188] sm:$0xff] %vm9439, %v9346
  %9490 = vst.msk [vmem:[#allocation4 + $0x190] sm:$0xff] %vm9439, %v9348
  %9491 = vst.msk [vmem:[#allocation4 + $0x198] sm:$0xff] %vm9439, %v9350
  %9492 = vst.msk [vmem:[#allocation4 + $0x1a0] sm:$0xff] %vm9439, %v9352
  %9493 = vst.msk [vmem:[#allocation4 + $0x1a8] sm:$0xff] %vm9439, %v9354
  %9494 = vst.msk [vmem:[#allocation4 + $0x1b0] sm:$0xff] %vm9439, %v9356
  %9495 = vst.msk [vmem:[#allocation4 + $0x1b8] sm:$0xff] %vm9439, %v9358
  %9496 = vst.msk [vmem:[#allocation4 + $0x1c0] sm:$0xff] %vm9439, %v9360
  %9497 = vst.msk [vmem:[#allocation4 + $0x1c8] sm:$0xff] %vm9439, %v9362
  %9498 = vst.msk [vmem:[#allocation4 + $0x1d0] sm:$0xff] %vm9439, %v9364
  %9499 = vst.msk [vmem:[#allocation4 + $0x1d8] sm:$0xff] %vm9439, %v9366
  %9500 = vst.msk [vmem:[#allocation4 + $0x1e0] sm:$0xff] %vm9439, %v9368
  %9501 = vst.msk [vmem:[#allocation4 + $0x1e8] sm:$0xff] %vm9439, %v9370
  %9502 = vst.msk [vmem:[#allocation4 + $0x1f0] sm:$0xff] %vm9439, %v9372
  %9503 = vst.msk [vmem:[#allocation4 + $0x1f8] sm:$0xff] %vm9439, %v9374
  %v9504 = vld [vmem:[%s1810 + $0x2] sm:$0xff]
  %v9505 = vld [vmem:[%s1810 + $0xa] sm:$0xff]
  %v9506 = vld [vmem:[%s1810 + $0x1a] sm:$0xff]
  %v9507 = vld [vmem:[%s1810 + $0x22] sm:$0xff]
  %v9508 = vld [vmem:[%s1810 + $0x32] sm:$0xff]
  %v9509 = vld [vmem:[%s1810 + $0x3a] sm:$0xff]
  %v9510 = vld [vmem:[%s1810 + $0x4a] sm:$0xff]
  %v9511 = vld [vmem:[%s1810 + $0x52] sm:$0xff]
  %v9512 = vld [vmem:[%s1810 + $0x62] sm:$0xff]
  %v9513 = vld [vmem:[%s1810 + $0x6a] sm:$0xff]
  %v9514 = vld [vmem:[%s1810 + $0x7a] sm:$0xff]
  %v9515 = vld [vmem:[%s1810 + $0x82] sm:$0xff]
  %v9516 = vld [vmem:[%s1810 + $0x92] sm:$0xff]
  %v9517 = vld [vmem:[%s1810 + $0x9a] sm:$0xff]
  %v9518 = vld [vmem:[%s1810 + $0xaa] sm:$0xff]
  %v9519 = vld [vmem:[%s1810 + $0xb2] sm:$0xff]
  %v9520 = vld [vmem:[%s1810 + $0xc2] sm:$0xff]
  %v9521 = vld [vmem:[%s1810 + $0xca] sm:$0xff]
  %v9522 = vld [vmem:[%s1810 + $0xda] sm:$0xff]
  %v9523 = vld [vmem:[%s1810 + $0xe2] sm:$0xff]
  %v9524 = vld [vmem:[%s1810 + $0xf2] sm:$0xff]
  %v9525 = vld [vmem:[%s1810 + $0xfa] sm:$0xff]
  %v9526 = vld [vmem:[%s1810 + $0x10a] sm:$0xff]
  %v9527 = vld [vmem:[%s1810 + $0x112] sm:$0xff]
  %v9528 = vld [vmem:[%s1810 + $0x122] sm:$0xff]
  %v9529 = vld [vmem:[%s1810 + $0x12a] sm:$0xff]
  %v9530 = vld [vmem:[%s1810 + $0x13a] sm:$0xff]
  %v9531 = vld [vmem:[%s1810 + $0x142] sm:$0xff]
  %v9532 = vld [vmem:[%s1810 + $0x152] sm:$0xff]
  %v9533 = vld [vmem:[%s1810 + $0x15a] sm:$0xff]
  %v9534 = vld [vmem:[%s1810 + $0x16a] sm:$0xff]
  %v9535 = vld [vmem:[%s1810 + $0x172] sm:$0xff]
  %v9536 = vld [vmem:[%s1810 + $0x1b2] sm:$0xff]
  %v9537 = vld [vmem:[%s1810 + $0x1ba] sm:$0xff]
  %v9538 = vld [vmem:[%s1810 + $0x1ca] sm:$0xff]
  %v9539 = vld [vmem:[%s1810 + $0x1d2] sm:$0xff]
  %v9540 = vld [vmem:[%s1810 + $0x1e2] sm:$0xff]
  %v9541 = vld [vmem:[%s1810 + $0x1ea] sm:$0xff]
  %v9542 = vld [vmem:[%s1810 + $0x1fa] sm:$0xff]
  %v9543 = vld [vmem:[%s1810 + $0x202] sm:$0xff]
  %v9544 = vld [vmem:[%s1810 + $0x212] sm:$0xff]
  %v9545 = vld [vmem:[%s1810 + $0x21a] sm:$0xff]
  %v9546 = vld [vmem:[%s1810 + $0x22a] sm:$0xff]
  %v9547 = vld [vmem:[%s1810 + $0x232] sm:$0xff]
  %v9548 = vld [vmem:[%s1810 + $0x242] sm:$0xff]
  %v9549 = vld [vmem:[%s1810 + $0x24a] sm:$0xff]
  %v9550 = vld [vmem:[%s1810 + $0x25a] sm:$0xff]
  %v9551 = vld [vmem:[%s1810 + $0x262] sm:$0xff]
  %v9552 = vld [vmem:[%s1810 + $0x272] sm:$0xff]
  %v9553 = vld [vmem:[%s1810 + $0x27a] sm:$0xff]
  %v9554 = vld [vmem:[%s1810 + $0x28a] sm:$0xff]
  %v9555 = vld [vmem:[%s1810 + $0x292] sm:$0xff]
  %v9556 = vld [vmem:[%s1810 + $0x2a2] sm:$0xff]
  %v9557 = vld [vmem:[%s1810 + $0x2aa] sm:$0xff]
  %v9558 = vld [vmem:[%s1810 + $0x2ba] sm:$0xff]
  %v9559 = vld [vmem:[%s1810 + $0x2c2] sm:$0xff]
  %v9560 = vld [vmem:[%s1810 + $0x2d2] sm:$0xff]
  %v9561 = vld [vmem:[%s1810 + $0x2da] sm:$0xff]
  %v9562 = vld [vmem:[%s1810 + $0x2ea] sm:$0xff]
  %v9563 = vld [vmem:[%s1810 + $0x2f2] sm:$0xff]
  %v9564 = vld [vmem:[%s1810 + $0x302] sm:$0xff]
  %v9565 = vld [vmem:[%s1810 + $0x30a] sm:$0xff]
  %v9566 = vld [vmem:[%s1810 + $0x31a] sm:$0xff]
  %v9567 = vld [vmem:[%s1810 + $0x322] sm:$0xff]
  %9632 = vrot.lane.b32.xlu0 %v9504, 32
  %v9633 = vpop.permute.xlu0 %9632
  %9634 = vrot.lane.b32.xlu0 %v9505, 32
  %v9635 = vpop.permute.xlu0 %9634
  %9636 = vrot.lane.b32.xlu0 %v9506, 32
  %v9637 = vpop.permute.xlu0 %9636
  %9638 = vrot.lane.b32.xlu0 %v9507, 32
  %v9639 = vpop.permute.xlu0 %9638
  %9640 = vrot.lane.b32.xlu0 %v9508, 32
  %v9641 = vpop.permute.xlu0 %9640
  %9642 = vrot.lane.b32.xlu0 %v9509, 32
  %v9643 = vpop.permute.xlu0 %9642
  %9644 = vrot.lane.b32.xlu0 %v9510, 32
  %v9645 = vpop.permute.xlu0 %9644
  %9646 = vrot.lane.b32.xlu0 %v9511, 32
  %v9647 = vpop.permute.xlu0 %9646
  %9648 = vrot.lane.b32.xlu0 %v9512, 32
  %v9649 = vpop.permute.xlu0 %9648
  %9650 = vrot.lane.b32.xlu0 %v9513, 32
  %v9651 = vpop.permute.xlu0 %9650
  %9652 = vrot.lane.b32.xlu0 %v9514, 32
  %v9653 = vpop.permute.xlu0 %9652
  %9654 = vrot.lane.b32.xlu0 %v9515, 32
  %v9655 = vpop.permute.xlu0 %9654
  %9656 = vrot.lane.b32.xlu0 %v9516, 32
  %v9657 = vpop.permute.xlu0 %9656
  %9658 = vrot.lane.b32.xlu0 %v9517, 32
  %v9659 = vpop.permute.xlu0 %9658
  %9660 = vrot.lane.b32.xlu0 %v9518, 32
  %v9661 = vpop.permute.xlu0 %9660
  %9662 = vrot.lane.b32.xlu0 %v9519, 32
  %v9663 = vpop.permute.xlu0 %9662
  %9664 = vrot.lane.b32.xlu0 %v9520, 32
  %v9665 = vpop.permute.xlu0 %9664
  %9666 = vrot.lane.b32.xlu0 %v9521, 32
  %v9667 = vpop.permute.xlu0 %9666
  %9668 = vrot.lane.b32.xlu0 %v9522, 32
  %v9669 = vpop.permute.xlu0 %9668
  %9670 = vrot.lane.b32.xlu0 %v9523, 32
  %v9671 = vpop.permute.xlu0 %9670
  %9672 = vrot.lane.b32.xlu0 %v9524, 32
  %v9673 = vpop.permute.xlu0 %9672
  %9674 = vrot.lane.b32.xlu0 %v9525, 32
  %v9675 = vpop.permute.xlu0 %9674
  %9676 = vrot.lane.b32.xlu0 %v9526, 32
  %v9677 = vpop.permute.xlu0 %9676
  %9678 = vrot.lane.b32.xlu0 %v9527, 32
  %v9679 = vpop.permute.xlu0 %9678
  %9680 = vrot.lane.b32.xlu0 %v9528, 32
  %v9681 = vpop.permute.xlu0 %9680
  %9682 = vrot.lane.b32.xlu0 %v9529, 32
  %v9683 = vpop.permute.xlu0 %9682
  %9684 = vrot.lane.b32.xlu0 %v9530, 32
  %v9685 = vpop.permute.xlu0 %9684
  %9686 = vrot.lane.b32.xlu0 %v9531, 32
  %v9687 = vpop.permute.xlu0 %9686
  %9688 = vrot.lane.b32.xlu0 %v9532, 32
  %v9689 = vpop.permute.xlu0 %9688
  %9690 = vrot.lane.b32.xlu0 %v9533, 32
  %v9691 = vpop.permute.xlu0 %9690
  %9692 = vrot.lane.b32.xlu0 %v9534, 32
  %v9693 = vpop.permute.xlu0 %9692
  %9694 = vrot.lane.b32.xlu0 %v9535, 32
  %v9695 = vpop.permute.xlu0 %9694
  %9696 = vrot.lane.b32.xlu0 %v9536, 32
  %v9697 = vpop.permute.xlu0 %9696
  %9698 = vrot.lane.b32.xlu0 %v9537, 32
  %v9699 = vpop.permute.xlu0 %9698
  %9700 = vrot.lane.b32.xlu0 %v9538, 32
  %v9701 = vpop.permute.xlu0 %9700
  %9702 = vrot.lane.b32.xlu0 %v9539, 32
  %v9703 = vpop.permute.xlu0 %9702
  %9704 = vrot.lane.b32.xlu0 %v9540, 32
  %v9705 = vpop.permute.xlu0 %9704
  %9706 = vrot.lane.b32.xlu0 %v9541, 32
  %v9707 = vpop.permute.xlu0 %9706
  %9708 = vrot.lane.b32.xlu0 %v9542, 32
  %v9709 = vpop.permute.xlu0 %9708
  %9710 = vrot.lane.b32.xlu0 %v9543, 32
  %v9711 = vpop.permute.xlu0 %9710
  %9712 = vrot.lane.b32.xlu0 %v9544, 32
  %v9713 = vpop.permute.xlu0 %9712
  %9714 = vrot.lane.b32.xlu0 %v9545, 32
  %v9715 = vpop.permute.xlu0 %9714
  %9716 = vrot.lane.b32.xlu0 %v9546, 32
  %v9717 = vpop.permute.xlu0 %9716
  %9718 = vrot.lane.b32.xlu0 %v9547, 32
  %v9719 = vpop.permute.xlu0 %9718
  %9720 = vrot.lane.b32.xlu0 %v9548, 32
  %v9721 = vpop.permute.xlu0 %9720
  %9722 = vrot.lane.b32.xlu0 %v9549, 32
  %v9723 = vpop.permute.xlu0 %9722
  %9724 = vrot.lane.b32.xlu0 %v9550, 32
  %v9725 = vpop.permute.xlu0 %9724
  %9726 = vrot.lane.b32.xlu0 %v9551, 32
  %v9727 = vpop.permute.xlu0 %9726
  %9728 = vrot.lane.b32.xlu0 %v9552, 32
  %v9729 = vpop.permute.xlu0 %9728
  %9730 = vrot.lane.b32.xlu0 %v9553, 32
  %v9731 = vpop.permute.xlu0 %9730
  %9732 = vrot.lane.b32.xlu0 %v9554, 32
  %v9733 = vpop.permute.xlu0 %9732
  %9734 = vrot.lane.b32.xlu0 %v9555, 32
  %v9735 = vpop.permute.xlu0 %9734
  %9736 = vrot.lane.b32.xlu0 %v9556, 32
  %v9737 = vpop.permute.xlu0 %9736
  %9738 = vrot.lane.b32.xlu0 %v9557, 32
  %v9739 = vpop.permute.xlu0 %9738
  %9740 = vrot.lane.b32.xlu0 %v9558, 32
  %v9741 = vpop.permute.xlu0 %9740
  %9742 = vrot.lane.b32.xlu0 %v9559, 32
  %v9743 = vpop.permute.xlu0 %9742
  %9744 = vrot.lane.b32.xlu0 %v9560, 32
  %v9745 = vpop.permute.xlu0 %9744
  %9746 = vrot.lane.b32.xlu0 %v9561, 32
  %v9747 = vpop.permute.xlu0 %9746
  %9748 = vrot.lane.b32.xlu0 %v9562, 32
  %v9749 = vpop.permute.xlu0 %9748
  %9750 = vrot.lane.b32.xlu0 %v9563, 32
  %v9751 = vpop.permute.xlu0 %9750
  %9752 = vrot.lane.b32.xlu0 %v9564, 32
  %v9753 = vpop.permute.xlu0 %9752
  %9754 = vrot.lane.b32.xlu0 %v9565, 32
  %v9755 = vpop.permute.xlu0 %9754
  %9756 = vrot.lane.b32.xlu0 %v9566, 32
  %v9757 = vpop.permute.xlu0 %9756
  %9758 = vrot.lane.b32.xlu0 %v9567, 32
  %v9759 = vpop.permute.xlu0 %9758
  %vm9824 = vcmask 294144
  %9825 = vst.msk [vmem:[#allocation4] sm:$0xff] %vm9824, %v9633
  %9826 = vst.msk [vmem:[#allocation4 + $0x8] sm:$0xff] %vm9824, %v9635
  %9827 = vst.msk [vmem:[#allocation4 + $0x10] sm:$0xff] %vm9824, %v9637
  %9828 = vst.msk [vmem:[#allocation4 + $0x18] sm:$0xff] %vm9824, %v9639
  %9829 = vst.msk [vmem:[#allocation4 + $0x20] sm:$0xff] %vm9824, %v9641
  %9830 = vst.msk [vmem:[#allocation4 + $0x28] sm:$0xff] %vm9824, %v9643
  %9831 = vst.msk [vmem:[#allocation4 + $0x30] sm:$0xff] %vm9824, %v9645
  %9832 = vst.msk [vmem:[#allocation4 + $0x38] sm:$0xff] %vm9824, %v9647
  %9833 = vst.msk [vmem:[#allocation4 + $0x40] sm:$0xff] %vm9824, %v9649
  %9834 = vst.msk [vmem:[#allocation4 + $0x48] sm:$0xff] %vm9824, %v9651
  %9835 = vst.msk [vmem:[#allocation4 + $0x50] sm:$0xff] %vm9824, %v9653
  %9836 = vst.msk [vmem:[#allocation4 + $0x58] sm:$0xff] %vm9824, %v9655
  %9837 = vst.msk [vmem:[#allocation4 + $0x60] sm:$0xff] %vm9824, %v9657
  %9838 = vst.msk [vmem:[#allocation4 + $0x68] sm:$0xff] %vm9824, %v9659
  %9839 = vst.msk [vmem:[#allocation4 + $0x70] sm:$0xff] %vm9824, %v9661
  %9840 = vst.msk [vmem:[#allocation4 + $0x78] sm:$0xff] %vm9824, %v9663
  %9841 = vst.msk [vmem:[#allocation4 + $0x80] sm:$0xff] %vm9824, %v9665
  %9842 = vst.msk [vmem:[#allocation4 + $0x88] sm:$0xff] %vm9824, %v9667
  %9843 = vst.msk [vmem:[#allocation4 + $0x90] sm:$0xff] %vm9824, %v9669
  %9844 = vst.msk [vmem:[#allocation4 + $0x98] sm:$0xff] %vm9824, %v9671
  %9845 = vst.msk [vmem:[#allocation4 + $0xa0] sm:$0xff] %vm9824, %v9673
  %9846 = vst.msk [vmem:[#allocation4 + $0xa8] sm:$0xff] %vm9824, %v9675
  %9847 = vst.msk [vmem:[#allocation4 + $0xb0] sm:$0xff] %vm9824, %v9677
  %9848 = vst.msk [vmem:[#allocation4 + $0xb8] sm:$0xff] %vm9824, %v9679
  %9849 = vst.msk [vmem:[#allocation4 + $0xc0] sm:$0xff] %vm9824, %v9681
  %9850 = vst.msk [vmem:[#allocation4 + $0xc8] sm:$0xff] %vm9824, %v9683
  %9851 = vst.msk [vmem:[#allocation4 + $0xd0] sm:$0xff] %vm9824, %v9685
  %9852 = vst.msk [vmem:[#allocation4 + $0xd8] sm:$0xff] %vm9824, %v9687
  %9853 = vst.msk [vmem:[#allocation4 + $0xe0] sm:$0xff] %vm9824, %v9689
  %9854 = vst.msk [vmem:[#allocation4 + $0xe8] sm:$0xff] %vm9824, %v9691
  %9855 = vst.msk [vmem:[#allocation4 + $0xf0] sm:$0xff] %vm9824, %v9693
  %9856 = vst.msk [vmem:[#allocation4 + $0xf8] sm:$0xff] %vm9824, %v9695
  %9857 = vst.msk [vmem:[#allocation4 + $0x100] sm:$0xff] %vm9824, %v9697
  %9858 = vst.msk [vmem:[#allocation4 + $0x108] sm:$0xff] %vm9824, %v9699
  %9859 = vst.msk [vmem:[#allocation4 + $0x110] sm:$0xff] %vm9824, %v9701
  %9860 = vst.msk [vmem:[#allocation4 + $0x118] sm:$0xff] %vm9824, %v9703
  %9861 = vst.msk [vmem:[#allocation4 + $0x120] sm:$0xff] %vm9824, %v9705
  %9862 = vst.msk [vmem:[#allocation4 + $0x128] sm:$0xff] %vm9824, %v9707
  %9863 = vst.msk [vmem:[#allocation4 + $0x130] sm:$0xff] %vm9824, %v9709
  %9864 = vst.msk [vmem:[#allocation4 + $0x138] sm:$0xff] %vm9824, %v9711
  %9865 = vst.msk [vmem:[#allocation4 + $0x140] sm:$0xff] %vm9824, %v9713
  %9866 = vst.msk [vmem:[#allocation4 + $0x148] sm:$0xff] %vm9824, %v9715
  %9867 = vst.msk [vmem:[#allocation4 + $0x150] sm:$0xff] %vm9824, %v9717
  %9868 = vst.msk [vmem:[#allocation4 + $0x158] sm:$0xff] %vm9824, %v9719
  %9869 = vst.msk [vmem:[#allocation4 + $0x160] sm:$0xff] %vm9824, %v9721
  %9870 = vst.msk [vmem:[#allocation4 + $0x168] sm:$0xff] %vm9824, %v9723
  %9871 = vst.msk [vmem:[#allocation4 + $0x170] sm:$0xff] %vm9824, %v9725
  %9872 = vst.msk [vmem:[#allocation4 + $0x178] sm:$0xff] %vm9824, %v9727
  %9873 = vst.msk [vmem:[#allocation4 + $0x180] sm:$0xff] %vm9824, %v9729
  %9874 = vst.msk [vmem:[#allocation4 + $0x188] sm:$0xff] %vm9824, %v9731
  %9875 = vst.msk [vmem:[#allocation4 + $0x190] sm:$0xff] %vm9824, %v9733
  %9876 = vst.msk [vmem:[#allocation4 + $0x198] sm:$0xff] %vm9824, %v9735
  %9877 = vst.msk [vmem:[#allocation4 + $0x1a0] sm:$0xff] %vm9824, %v9737
  %9878 = vst.msk [vmem:[#allocation4 + $0x1a8] sm:$0xff] %vm9824, %v9739
  %9879 = vst.msk [vmem:[#allocation4 + $0x1b0] sm:$0xff] %vm9824, %v9741
  %9880 = vst.msk [vmem:[#allocation4 + $0x1b8] sm:$0xff] %vm9824, %v9743
  %9881 = vst.msk [vmem:[#allocation4 + $0x1c0] sm:$0xff] %vm9824, %v9745
  %9882 = vst.msk [vmem:[#allocation4 + $0x1c8] sm:$0xff] %vm9824, %v9747
  %9883 = vst.msk [vmem:[#allocation4 + $0x1d0] sm:$0xff] %vm9824, %v9749
  %9884 = vst.msk [vmem:[#allocation4 + $0x1d8] sm:$0xff] %vm9824, %v9751
  %9885 = vst.msk [vmem:[#allocation4 + $0x1e0] sm:$0xff] %vm9824, %v9753
  %9886 = vst.msk [vmem:[#allocation4 + $0x1e8] sm:$0xff] %vm9824, %v9755
  %9887 = vst.msk [vmem:[#allocation4 + $0x1f0] sm:$0xff] %vm9824, %v9757
  %9888 = vst.msk [vmem:[#allocation4 + $0x1f8] sm:$0xff] %vm9824, %v9759
  %v9889 = vld [vmem:[%s5] sm:$0xff]
  %v9890 = vld [vmem:[#allocation4] sm:$0xff]
  %v9891 = vld [vmem:[#allocation4 + $0x8] sm:$0xff]
  %v9892 = vld [vmem:[#allocation4 + $0x10] sm:$0xff]
  %v9893 = vld [vmem:[#allocation4 + $0x18] sm:$0xff]
  %v9894 = vld [vmem:[#allocation4 + $0x20] sm:$0xff]
  %v9895 = vld [vmem:[#allocation4 + $0x28] sm:$0xff]
  %v9896 = vld [vmem:[#allocation4 + $0x30] sm:$0xff]
  %v9897 = vld [vmem:[#allocation4 + $0x38] sm:$0xff]
  %v9898 = vld [vmem:[#allocation4 + $0x40] sm:$0xff]
  %v9899 = vld [vmem:[#allocation4 + $0x48] sm:$0xff]
  %v9900 = vld [vmem:[#allocation4 + $0x50] sm:$0xff]
  %v9901 = vld [vmem:[#allocation4 + $0x58] sm:$0xff]
  %v9902 = vld [vmem:[#allocation4 + $0x60] sm:$0xff]
  %v9903 = vld [vmem:[#allocation4 + $0x68] sm:$0xff]
  %v9904 = vld [vmem:[#allocation4 + $0x70] sm:$0xff]
  %v9905 = vld [vmem:[#allocation4 + $0x78] sm:$0xff]
  %v9906 = vld [vmem:[#allocation4 + $0x80] sm:$0xff]
  %v9907 = vld [vmem:[#allocation4 + $0x88] sm:$0xff]
  %v9908 = vld [vmem:[#allocation4 + $0x90] sm:$0xff]
  %v9909 = vld [vmem:[#allocation4 + $0x98] sm:$0xff]
  %v9910 = vld [vmem:[#allocation4 + $0xa0] sm:$0xff]
  %v9911 = vld [vmem:[#allocation4 + $0xa8] sm:$0xff]
  %v9912 = vld [vmem:[#allocation4 + $0xb0] sm:$0xff]
  %v9913 = vld [vmem:[#allocation4 + $0xb8] sm:$0xff]
  %v9914 = vld [vmem:[#allocation4 + $0xc0] sm:$0xff]
  %v9915 = vld [vmem:[#allocation4 + $0xc8] sm:$0xff]
  %v9916 = vld [vmem:[#allocation4 + $0xd0] sm:$0xff]
  %v9917 = vld [vmem:[#allocation4 + $0xd8] sm:$0xff]
  %v9918 = vld [vmem:[#allocation4 + $0xe0] sm:$0xff]
  %v9919 = vld [vmem:[#allocation4 + $0xe8] sm:$0xff]
  %v9920 = vld [vmem:[#allocation4 + $0xf0] sm:$0xff]
  %v9921 = vld [vmem:[#allocation4 + $0xf8] sm:$0xff]
  %v9922 = vld [vmem:[#allocation4 + $0x100] sm:$0xff]
  %v9923 = vld [vmem:[#allocation4 + $0x108] sm:$0xff]
  %v9924 = vld [vmem:[#allocation4 + $0x110] sm:$0xff]
  %v9925 = vld [vmem:[#allocation4 + $0x118] sm:$0xff]
  %v9926 = vld [vmem:[#allocation4 + $0x120] sm:$0xff]
  %v9927 = vld [vmem:[#allocation4 + $0x128] sm:$0xff]
  %v9928 = vld [vmem:[#allocation4 + $0x130] sm:$0xff]
  %v9929 = vld [vmem:[#allocation4 + $0x138] sm:$0xff]
  %v9930 = vld [vmem:[#allocation4 + $0x140] sm:$0xff]
  %v9931 = vld [vmem:[#allocation4 + $0x148] sm:$0xff]
  %v9932 = vld [vmem:[#allocation4 + $0x150] sm:$0xff]
  %v9933 = vld [vmem:[#allocation4 + $0x158] sm:$0xff]
  %v9934 = vld [vmem:[#allocation4 + $0x160] sm:$0xff]
  %v9935 = vld [vmem:[#allocation4 + $0x168] sm:$0xff]
  %v9936 = vld [vmem:[#allocation4 + $0x170] sm:$0xff]
  %v9937 = vld [vmem:[#allocation4 + $0x178] sm:$0xff]
  %v9938 = vld [vmem:[#allocation4 + $0x180] sm:$0xff]
  %v9939 = vld [vmem:[#allocation4 + $0x188] sm:$0xff]
  %v9940 = vld [vmem:[#allocation4 + $0x190] sm:$0xff]
  %v9941 = vld [vmem:[#allocation4 + $0x198] sm:$0xff]
  %v9942 = vld [vmem:[#allocation4 + $0x1a0] sm:$0xff]
  %v9943 = vld [vmem:[#allocation4 + $0x1a8] sm:$0xff]
  %v9944 = vld [vmem:[#allocation4 + $0x1b0] sm:$0xff]
  %v9945 = vld [vmem:[#allocation4 + $0x1b8] sm:$0xff]
  %v9946 = vld [vmem:[#allocation4 + $0x1c0] sm:$0xff]
  %v9947 = vld [vmem:[#allocation4 + $0x1c8] sm:$0xff]
  %v9948 = vld [vmem:[#allocation4 + $0x1d0] sm:$0xff]
  %v9949 = vld [vmem:[#allocation4 + $0x1d8] sm:$0xff]
  %v9950 = vld [vmem:[#allocation4 + $0x1e0] sm:$0xff]
  %v9951 = vld [vmem:[#allocation4 + $0x1e8] sm:$0xff]
  %v9952 = vld [vmem:[#allocation4 + $0x1f0] sm:$0xff]
  %v9953 = vld [vmem:[#allocation4 + $0x1f8] sm:$0xff]
  %vm9954 = vcmask 293888
  %v9956 = vsel %vm9954, %v9889, 0
  %v9959 = vsel %vm9954, %v9890, 0
  %v9962 = vsel %vm9954, %v9891, 0
  %v9965 = vsel %vm9954, %v9892, 0
  %v9968 = vsel %vm9954, %v9893, 0
  %v9971 = vsel %vm9954, %v9894, 0
  %v9974 = vsel %vm9954, %v9895, 0
  %v9977 = vsel %vm9954, %v9896, 0
  %v9980 = vsel %vm9954, %v9897, 0
  %v9983 = vsel %vm9954, %v9898, 0
  %v9986 = vsel %vm9954, %v9899, 0
  %v9989 = vsel %vm9954, %v9900, 0
  %v9992 = vsel %vm9954, %v9901, 0
  %v9995 = vsel %vm9954, %v9902, 0
  %v9998 = vsel %vm9954, %v9903, 0
  %v10001 = vsel %vm9954, %v9904, 0
  %v10004 = vsel %vm9954, %v9905, 0
  %v10007 = vsel %vm9954, %v9906, 0
  %v10010 = vsel %vm9954, %v9907, 0
  %v10013 = vsel %vm9954, %v9908, 0
  %v10016 = vsel %vm9954, %v9909, 0
  %v10019 = vsel %vm9954, %v9910, 0
  %v10022 = vsel %vm9954, %v9911, 0
  %v10025 = vsel %vm9954, %v9912, 0
  %v10028 = vsel %vm9954, %v9913, 0
  %v10031 = vsel %vm9954, %v9914, 0
  %v10034 = vsel %vm9954, %v9915, 0
  %v10037 = vsel %vm9954, %v9916, 0
  %v10040 = vsel %vm9954, %v9917, 0
  %v10043 = vsel %vm9954, %v9918, 0
  %v10046 = vsel %vm9954, %v9919, 0
  %v10049 = vsel %vm9954, %v9920, 0
  %v10052 = vsel %vm9954, %v9921, 0
  %v10055 = vsel %vm9954, %v9922, 0
  %v10058 = vsel %vm9954, %v9923, 0
  %v10061 = vsel %vm9954, %v9924, 0
  %v10064 = vsel %vm9954, %v9925, 0
  %v10067 = vsel %vm9954, %v9926, 0
  %v10070 = vsel %vm9954, %v9927, 0
  %v10073 = vsel %vm9954, %v9928, 0
  %v10076 = vsel %vm9954, %v9929, 0
  %v10079 = vsel %vm9954, %v9930, 0
  %v10082 = vsel %vm9954, %v9931, 0
  %v10085 = vsel %vm9954, %v9932, 0
  %v10088 = vsel %vm9954, %v9933, 0
  %v10091 = vsel %vm9954, %v9934, 0
  %v10094 = vsel %vm9954, %v9935, 0
  %v10097 = vsel %vm9954, %v9936, 0
  %v10100 = vsel %vm9954, %v9937, 0
  %v10103 = vsel %vm9954, %v9938, 0
  %v10106 = vsel %vm9954, %v9939, 0
  %v10109 = vsel %vm9954, %v9940, 0
  %v10112 = vsel %vm9954, %v9941, 0
  %v10115 = vsel %vm9954, %v9942, 0
  %v10118 = vsel %vm9954, %v9943, 0
  %v10121 = vsel %vm9954, %v9944, 0
  %v10124 = vsel %vm9954, %v9945, 0
  %v10127 = vsel %vm9954, %v9946, 0
  %v10130 = vsel %vm9954, %v9947, 0
  %v10133 = vsel %vm9954, %v9948, 0
  %v10136 = vsel %vm9954, %v9949, 0
  %v10139 = vsel %vm9954, %v9950, 0
  %v10142 = vsel %vm9954, %v9951, 0
  %v10145 = vsel %vm9954, %v9952, 0
  %v10148 = vsel %vm9954, %v9953, 0
  %10150 = vmatpush.xpose.msra.mxu0 %v10004
  %10151 = vmatpush.xpose.msra.mxu0 %v10001
  %10152 = vmatpush.xpose.msra.mxu0 %v9998
  %10153 = vmatpush.xpose.msra.mxu0 %v9995
  %10154 = vmatpush.xpose.msra.mxu0 %v9992
  %10155 = vmatpush.xpose.msra.mxu0 %v9989
  %10156 = vmatpush.xpose.msra.mxu0 %v9986
  %10157 = vmatpush.xpose.msra.mxu0 %v9983
  %10158 = vmatpush.xpose.msra.mxu0 %v9980
  %10159 = vmatpush.xpose.msra.mxu0 %v9977
  %10160 = vmatpush.xpose.msra.mxu0 %v9974
  %10161 = vmatpush.xpose.msra.mxu0 %v9971
  %10162 = vmatpush.xpose.msra.mxu0 %v9968
  %10163 = vmatpush.xpose.msra.mxu0 %v9965
  %10164 = vmatpush.xpose.msra.mxu0 %v9962
  %10165 = vmatpush.xpose.msra.mxu0 %v9959
  %10166 = vmatmul.f32.gmra.mxu0 %v9956
  %v10167 = vpop.f32.mrf.mxu0
  %v10168 = vadd.f32 0.0, %v10167
  %10169 = vdwg.mxu0
  %10170 = vmatpush.xpose.msra.mxu0 %v10052
  %10171 = vmatpush.xpose.msra.mxu0 %v10049
  %10172 = vmatpush.xpose.msra.mxu0 %v10046
  %10173 = vmatpush.xpose.msra.mxu0 %v10043
  %10174 = vmatpush.xpose.msra.mxu0 %v10040
  %10175 = vmatpush.xpose.msra.mxu0 %v10037
  %10176 = vmatpush.xpose.msra.mxu0 %v10034
  %10177 = vmatpush.xpose.msra.mxu0 %v10031
  %10178 = vmatpush.xpose.msra.mxu0 %v10028
  %10179 = vmatpush.xpose.msra.mxu0 %v10025
  %10180 = vmatpush.xpose.msra.mxu0 %v10022
  %10181 = vmatpush.xpose.msra.mxu0 %v10019
  %10182 = vmatpush.xpose.msra.mxu0 %v10016
  %10183 = vmatpush.xpose.msra.mxu0 %v10013
  %10184 = vmatpush.xpose.msra.mxu0 %v10010
  %10185 = vmatpush.xpose.msra.mxu0 %v10007
  %10186 = vmatmul.f32.gmra.mxu0 %v9956
  %v10187 = vpop.f32.mrf.mxu0
  %v10188 = vadd.f32 0.0, %v10187
  %10189 = vdwg.mxu0
  %10190 = vmatpush.xpose.msra.mxu0 %v10100
  %10191 = vmatpush.xpose.msra.mxu0 %v10097
  %10192 = vmatpush.xpose.msra.mxu0 %v10094
  %10193 = vmatpush.xpose.msra.mxu0 %v10091
  %10194 = vmatpush.xpose.msra.mxu0 %v10088
  %10195 = vmatpush.xpose.msra.mxu0 %v10085
  %10196 = vmatpush.xpose.msra.mxu0 %v10082
  %10197 = vmatpush.xpose.msra.mxu0 %v10079
  %10198 = vmatpush.xpose.msra.mxu0 %v10076
  %10199 = vmatpush.xpose.msra.mxu0 %v10073
  %10200 = vmatpush.xpose.msra.mxu0 %v10070
  %10201 = vmatpush.xpose.msra.mxu0 %v10067
  %10202 = vmatpush.xpose.msra.mxu0 %v10064
  %10203 = vmatpush.xpose.msra.mxu0 %v10061
  %10204 = vmatpush.xpose.msra.mxu0 %v10058
  %10205 = vmatpush.xpose.msra.mxu0 %v10055
  %10206 = vmatmul.f32.gmra.mxu0 %v9956
  %v10207 = vpop.f32.mrf.mxu0
  %v10208 = vadd.f32 0.0, %v10207
  %10209 = vdwg.mxu0
  %10210 = vmatpush.xpose.msra.mxu0 %v10148
  %10211 = vmatpush.xpose.msra.mxu0 %v10145
  %10212 = vmatpush.xpose.msra.mxu0 %v10142
  %10213 = vmatpush.xpose.msra.mxu0 %v10139
  %10214 = vmatpush.xpose.msra.mxu0 %v10136
  %10215 = vmatpush.xpose.msra.mxu0 %v10133
  %10216 = vmatpush.xpose.msra.mxu0 %v10130
  %10217 = vmatpush.xpose.msra.mxu0 %v10127
  %10218 = vmatpush.xpose.msra.mxu0 %v10124
  %10219 = vmatpush.xpose.msra.mxu0 %v10121
  %10220 = vmatpush.xpose.msra.mxu0 %v10118
  %10221 = vmatpush.xpose.msra.mxu0 %v10115
  %10222 = vmatpush.xpose.msra.mxu0 %v10112
  %10223 = vmatpush.xpose.msra.mxu0 %v10109
  %10224 = vmatpush.xpose.msra.mxu0 %v10106
  %10225 = vmatpush.xpose.msra.mxu0 %v10103
  %10226 = vmatmul.f32.gmra.mxu0 %v9956
  %v10227 = vpop.f32.mrf.mxu0
  %v10228 = vadd.f32 0.0, %v10227
  %10229 = vdwg.mxu0
  %v10230 = vld [vmem:[%s6] sm:$0xff]
  %v10231 = vld [vmem:[%s7] sm:$0xff]
  %v10232 = vadd.f32 %v10168, %v10188
  %v10233 = vadd.f32 %v10232, %v10208
  %v10234 = vadd.f32 %v10233, %v10228
  %10235 = vadd.xlane.f32.xlu0 %v10234
  %v10236 = vpop.xlane.xlu0 %10235
  %v10237 = vmul.f32 %v10168, %v10168
  %v10238 = vmul.f32 %v10188, %v10188
  %v10239 = vmul.f32 %v10208, %v10208
  %v10240 = vmul.f32 %v10228, %v10228
  %v10241 = vadd.f32 %v10237, %v10238
  %v10242 = vadd.f32 %v10241, %v10239
  %v10243 = vadd.f32 %v10242, %v10240
  %10244 = vadd.xlane.f32.xlu0 %v10243
  %v10245 = vpop.xlane.xlu0 %10244
  %v10246 = vmul.f32 %v10236, 0.001953125
  %v10247 = vmul.f32 %v10245, 0.001953125
  %v10248 = vmul.f32 %v10246, %v10246
  %v10249 = vsub.f32 %v10247, %v10248
  %v10250 = vadd.f32 %v10249, 1e-05
  %v10251 = vrsqrt.pop %v10250
  %v10252 = vmul.f32 %v10251, %v10250
  %v10253 = vmul.f32 %v10252, %v10251
  %v10254 = vmul.f32 0.5, %v10253
  %v10255 = vsub.f32 1.5, %v10254
  %v10256 = vmul.f32 %v10251, %v10255
  %vm10257 = vweird.f32 %v10250
  %vm10258 = vweird.f32 %v10251
  %vm10259 = vmor %vm10257, %vm10258
  %v10260 = vsel %vm10259, %v10251, %v10256
  %v10261 = vmul.f32 %v10230, %v10260
  %v10262 = vmul.f32 %v10246, %v10261
  %v10263 = vsub.f32 %v10231, %v10262
  %10265 = vset.pattern.permute.xlu0 0
  %10266 = vperm.xlu0 %10265, %v10261
  %v10267 = vpop.permute.xlu0 %10266
  %v10269 = vmul.f32 %v10168, %v10267
  %v10270 = vmul.f32 %v10188, %v10267
  %v10271 = vmul.f32 %v10208, %v10267
  %v10272 = vmul.f32 %v10228, %v10267
  %10274 = vset.pattern.permute.xlu0 0
  %10275 = vperm.xlu0 %10274, %v10263
  %v10276 = vpop.permute.xlu0 %10275
  %v10278 = vadd.f32 %v10269, %v10276
  %v10279 = vadd.f32 %v10270, %v10276
  %v10280 = vadd.f32 %v10271, %v10276
  %v10281 = vadd.f32 %v10272, %v10276
  %v10282 = vmax.f32 %v10278, 0.0
  %v10283 = vmax.f32 %v10279, 0.0
  %v10284 = vmax.f32 %v10280, 0.0
  %v10285 = vmax.f32 %v10281, 0.0
  %10286 = vst [vmem:[%s8] sm:$0xff] %v10282
  %10287 = vst [vmem:[%s8 + $0x8] sm:$0xff] %v10283
  %10288 = vst [vmem:[%s8 + $0x10] sm:$0xff] %v10284
  %10289 = vst [vmem:[%s8 + $0x18] sm:$0xff] %v10285
  // Predicated region
  $region34: #{up_forward.1} parent=0 // pred_check
    _
  $region35: #{up_forward.1} parent=0 // pred_check_branch
    %10291 = sbr.rel (0) target = $region37
  $region36: #{up_forward.1} parent=0 // pred_region
    _
  $region37: #{up_forward.1} parent=0 // pred_fallthru
    _
  // Predicated region
  $region38: #{up_forward.1} parent=0 // pred_check
    _
  $region39: #{up_forward.1} parent=0 // pred_check_branch
    %10293 = sbr.rel (0) target = $region41
  $region40: #{up_forward.1} parent=0 // pred_region
    _
  $region41: #{up_forward.1} parent=0 // pred_fallthru
    _

</llo_original>
